<compile_context>
chip_gen: v6e
topology: v6e:2x2x1
jax: 0.10.0
libtpu: 0.0.40
codegen_flags: <defaults>
</compile_context>

<pallas_src>
import functools

import jax
import jax.numpy as jnp
from jax import lax
from jax.experimental import pallas as pl
from jax.experimental.pallas import tpu as pltpu


def _round_up(x, m):
    return (x + m - 1) // m * m


# ----------------------------------------------------------------------------
# Pallas kernels
# ----------------------------------------------------------------------------
def gemm_lrelu_kernel(a_ref, b_ref, o_ref, *, slope):
    """One M-tile of (tm,K)@(K,N) on the MXU with fused LeakyReLU (conv1)."""
    acc = jnp.dot(a_ref[...], b_ref[...], preferred_element_type=jnp.float32)
    acc = jnp.where(acc >= 0.0, acc, slope * acc)
    o_ref[...] = acc.astype(o_ref.dtype)


def gemm_bn_lrelu_kernel(a_ref, b_ref, g_ref, beta_ref, o_ref, acc_ref, *,
                         eps, slope):
    """K-tiled GEMM into an f32 VMEM accumulator; on the last K step apply
    training-mode BatchNorm (per-channel stats over the full M block, biased
    variance) + LeakyReLU and store bf16.

    Correct because the entire M (= batch*spatial) extent lives in this single
    block; only Cout (per-channel, independent stats) and K are tiled.
    """
    k = pl.program_id(1)

    @pl.when(k == 0)
    def _():
        acc_ref[...] = jnp.zeros_like(acc_ref)

    acc_ref[...] += jnp.dot(a_ref[...], b_ref[...],
                            preferred_element_type=jnp.float32)

    @pl.when(k == pl.num_programs(1) - 1)
    def _():
        y = acc_ref[...]
        mean = jnp.mean(y, axis=0, keepdims=True)
        var = jnp.mean((y - mean) ** 2, axis=0, keepdims=True)
        out = (y - mean) * lax.rsqrt(var + eps) * g_ref[...] + beta_ref[...]
        o_ref[...] = jnp.where(out >= 0.0, out, slope * out).astype(o_ref.dtype)


def dot_reduce_kernel(a_ref, w_ref, o_ref):
    """conv5 (Cout=1): per-row dot product as VPU multiply + row reduction."""
    prod = a_ref[...].astype(jnp.float32) * w_ref[...].astype(jnp.float32)
    o_ref[...] = jnp.sum(prod, axis=1, keepdims=True)


# ----------------------------------------------------------------------------
# Wrappers around pallas_call
# ----------------------------------------------------------------------------
def conv_lrelu(patches, w2d, *, tm=512, slope=0.2):
    """patches: (M,K) bf16, w2d: (K,N) bf16 -> (M,N) bf16 with LeakyReLU."""
    M, K = patches.shape
    _, N = w2d.shape
    tm = min(tm, M)
    assert M % tm == 0, (M, tm)
    return pl.pallas_call(
        functools.partial(gemm_lrelu_kernel, slope=slope),
        out_shape=jax.ShapeDtypeStruct((M, N), jnp.bfloat16),
        grid=(M // tm,),
        in_specs=[
            pl.BlockSpec((tm, K), lambda i: (i, 0)),
            pl.BlockSpec((K, N), lambda i: (0, 0)),
        ],
        out_specs=pl.BlockSpec((tm, N), lambda i: (i, 0)),
        compiler_params=pltpu.CompilerParams(
            dimension_semantics=("parallel",)),
    )(patches, w2d)


def conv_bn_lrelu(patches, w2d, gamma, beta, *, tn, tk=1024,
                  eps=1e-5, slope=0.2):
    """Fused conv-as-GEMM + BatchNorm(batch stats) + LeakyReLU.

    patches: (M,K) bf16, w2d: (K,N) bf16, gamma/beta: (N,) f32 -> (M,N) bf16.
    Grid = (N/tn "parallel", K/tk "arbitrary"); full M in one block.
    """
    M, K = patches.shape
    _, N = w2d.shape
    tk = min(tk, K)
    tn = min(tn, N)
    assert K % tk == 0 and N % tn == 0, (K, tk, N, tn)
    return pl.pallas_call(
        functools.partial(gemm_bn_lrelu_kernel, eps=eps, slope=slope),
        out_shape=jax.ShapeDtypeStruct((M, N), jnp.bfloat16),
        grid=(N // tn, K // tk),
        in_specs=[
            pl.BlockSpec((M, tk), lambda j, k: (0, k)),
            pl.BlockSpec((tk, tn), lambda j, k: (k, j)),
            pl.BlockSpec((1, tn), lambda j, k: (0, j)),
            pl.BlockSpec((1, tn), lambda j, k: (0, j)),
        ],
        out_specs=pl.BlockSpec((M, tn), lambda j, k: (0, j)),
        scratch_shapes=[pltpu.VMEM((M, tn), jnp.float32)],
        compiler_params=pltpu.CompilerParams(
            dimension_semantics=("parallel", "arbitrary")),
    )(patches, w2d,
      gamma.astype(jnp.float32).reshape(1, N),
      beta.astype(jnp.float32).reshape(1, N))


def conv_out1(patches, w2d):
    """conv5: patches (M,K) bf16, w2d (K,1) bf16 -> (M,1) f32 (no activation)."""
    M, K = patches.shape
    Mp = max(8, _round_up(M, 8))
    a = jnp.zeros((Mp, K), patches.dtype).at[:M].set(patches)  # tiny pad 2->8
    w = w2d.reshape(1, K)
    out = pl.pallas_call(
        dot_reduce_kernel,
        out_shape=jax.ShapeDtypeStruct((Mp, 1), jnp.float32),
        grid=(1,),
        in_specs=[
            pl.BlockSpec((Mp, K), lambda i: (0, 0)),
            pl.BlockSpec((1, K), lambda i: (0, 0)),
        ],
        out_specs=pl.BlockSpec((Mp, 1), lambda i: (0, 0)),
        compiler_params=pltpu.CompilerParams(
            dimension_semantics=("arbitrary",)),
    )(a, w)
    return out[:M]


# ----------------------------------------------------------------------------
# Glue: im2col, parameters, full forward
# ----------------------------------------------------------------------------
def im2col(x_nhwc, kh, kw, stride, pad):
    """x: (N,H,W,C) -> flat patches (N*Ho*Wo, kh*kw*C), feature order ((kh,kw),c)."""
    N, H, W, C = x_nhwc.shape
    xp = jnp.pad(x_nhwc, ((0, 0), (pad, pad), (pad, pad), (0, 0)))
    Ho = (H + 2 * pad - kh) // stride + 1
    Wo = (W + 2 * pad - kw) // stride + 1
    cols = [xp[:, i:i + stride * Ho:stride, j:j + stride * Wo:stride, :]
            for i in range(kh) for j in range(kw)]
    patches = jnp.concatenate(cols, axis=-1)       # (N,Ho,Wo,kh*kw*C)
    return patches.reshape(N * Ho * Wo, kh * kw * C), N, Ho, Wo


def make_conv_w(key, cout, cin, k):
    """DCGAN-style N(0,0.02) init in torch layout, reshaped to (KH*KW*Cin,Cout)
    to match im2col feature ordering, stored as bf16 for the MXU."""
    w = 0.02 * jax.random.normal(key, (cout, cin, k, k), dtype=jnp.float32)
    w = jnp.transpose(w, (2, 3, 1, 0)).reshape(k * k * cin, cout)
    return w.astype(jnp.bfloat16)


def init_params(key):
    keys = jax.random.split(key, 5)
    return {
        "w1": make_conv_w(keys[0], 64, 1, 4),
        "w2": make_conv_w(keys[1], 128, 64, 4),
        "w3": make_conv_w(keys[2], 256, 128, 4),
        "w4": make_conv_w(keys[3], 512, 256, 4),
        "w5": make_conv_w(keys[4], 1, 512, 4),
        # BatchNorm affine params (torch default init: weight=1, bias=0)
        "g1": jnp.ones((128,), jnp.float32), "b1": jnp.zeros((128,), jnp.float32),
        "g2": jnp.ones((256,), jnp.float32), "b2": jnp.zeros((256,), jnp.float32),
        "g3": jnp.ones((512,), jnp.float32), "b3": jnp.zeros((512,), jnp.float32),
    }


@jax.jit
def critic_forward(x_nchw, params):
    x = jnp.transpose(x_nchw, (0, 2, 3, 1)).astype(jnp.bfloat16)   # NHWC bf16
    N = x.shape[0]

    # conv1 (1->64, k4 s2 p1) + LeakyReLU(0.2) fused in the GEMM kernel
    p, _, Ho, Wo = im2col(x, 4, 4, 2, 1)                 # (2048, 16)
    y = conv_lrelu(p, params["w1"], tm=512)              # (2048, 64) bf16
    x = y.reshape(N, Ho, Wo, 64)

    # conv2 (64->128) + BN1 + LeakyReLU, fused, K=1024 N=128
    p, _, Ho, Wo = im2col(x, 4, 4, 2, 1)                 # (512, 1024)
    y = conv_bn_lrelu(p, params["w2"], params["g1"], params["b1"],
                      tn=128, tk=1024)
    x = y.reshape(N, Ho, Wo, 128)

    # conv3 (128->256) + BN2 + LeakyReLU, fused, K tiled 2x, Cout split 2x
    p, _, Ho, Wo = im2col(x, 4, 4, 2, 1)                 # (128, 2048)
    y = conv_bn_lrelu(p, params["w3"], params["g2"], params["b2"],
                      tn=128, tk=1024)
    x = y.reshape(N, Ho, Wo, 256)

    # conv4 (256->512) + BN3 + LeakyReLU, fused, K tiled 4x, Cout split 2x
    p, _, Ho, Wo = im2col(x, 4, 4, 2, 1)                 # (32, 4096)
    y = conv_bn_lrelu(p, params["w4"], params["g3"], params["b3"],
                      tn=256, tk=1024)
    x = y.reshape(N, Ho, Wo, 512)

    # conv5 (512->1, k4 s1 p0), no activation -> (N, 1) f32
    p, _, _, _ = im2col(x, 4, 4, 1, 0)                   # (2, 8192)
    y = conv_out1(p, params["w5"])
    return y                                             # matches x.view(-1, 1)


if __name__ == "__main__":
    key = jax.random.PRNGKey(0)
    kx, kp = jax.random.split(key)
    # 64x64 single-channel inputs (required by the 5-layer downsampling stack)
    x = jax.random.normal(kx, (2, 1, 64, 64), dtype=jnp.float32)
    params = init_params(kp)

    out = critic_forward(x, params)
    out = jax.block_until_ready(out)
    assert out.shape == (2, 1) and out.dtype == jnp.float32, (out.shape, out.dtype)
    assert bool(jnp.all(jnp.isfinite(out)))
    print("KERNEL_OK")
</pallas_src>

<mosaic_0001>
module attributes {stable_mosaic.version = 11 : i64} {
  func.func @gemm_lrelu_kernel(%arg0: i32, %arg1: memref<512x16xbf16, #tpu.memory_space<vmem>>, %arg2: memref<16x64xbf16, #tpu.memory_space<vmem>>, %arg3: memref<512x64xbf16, #tpu.memory_space<vmem>>) attributes {dimension_semantics = [#tpu.dimension_semantics<parallel>], iteration_bounds = array<i64: 4>, scalar_prefetch = 0 : i64, scratch_operands = 0 : i64, tpu.core_type = #tpu.core_type<tc>, window_params = [{transform_indices = @transform_0, window_bounds = array<i64: 512, 16>}, {pipeline_mode = #tpu.pipeline_mode<synchronous>, transform_indices = @transform_1, window_bounds = array<i64: 16, 64>}, {transform_indices = @transform_2, window_bounds = array<i64: 512, 64>}]} {
    %c0 = arith.constant 0 : index
    %c0_0 = arith.constant 0 : index
    %0 = vector.load %arg1[%c0, %c0_0] : memref<512x16xbf16, #tpu.memory_space<vmem>>, vector<512x16xbf16>
    %c0_1 = arith.constant 0 : index
    %c0_2 = arith.constant 0 : index
    %1 = vector.load %arg2[%c0_1, %c0_2] : memref<16x64xbf16, #tpu.memory_space<vmem>>, vector<16x64xbf16>
    %cst = arith.constant dense<0.000000e+00> : vector<512x64xf32>
    %2 = tpu.matmul %0, %1, %cst {dimension_numbers = #tpu.dot_dimension_numbers<[1], [0], [0], [1], [0, 0, 1, 1], [], []>} : vector<512x16xbf16>, vector<16x64xbf16>, vector<512x64xf32> -> vector<512x64xf32>
    %cst_3 = arith.constant 0.000000e+00 : f32
    %3 = vector.broadcast %cst_3 : f32 to vector<512x64xf32>
    %4 = arith.cmpf oge, %2, %3 : vector<512x64xf32>
    %cst_4 = arith.constant 2.000000e-01 : f32
    %5 = vector.broadcast %cst_4 : f32 to vector<512x64xf32>
    %6 = arith.mulf %5, %2 : vector<512x64xf32>
    %7 = arith.select %4, %2, %6 : vector<512x64xi1>, vector<512x64xf32>
    %8 = arith.truncf %7 : vector<512x64xf32> to vector<512x64xbf16>
    %c0_5 = arith.constant 0 : index
    %c0_6 = arith.constant 0 : index
    %9 = vector.load %arg3[%c0_5, %c0_6] : memref<512x64xbf16, #tpu.memory_space<vmem>>, vector<512x64xbf16>
    tpu.vector_store %arg3[%c0_5, %c0_6], %8 {strides = array<i32>} : memref<512x64xbf16, #tpu.memory_space<vmem>>, vector<512x64xbf16>,
    return
  }
  func.func @transform_0(%arg0: i32) -> (i32, i32) {
    %c0_i32 = arith.constant 0 : i32
    %c0_i32_0 = arith.constant 0 : i32
    return %arg0, %c0_i32 : i32, i32
  }
  func.func @transform_1(%arg0: i32) -> (i32, i32) {
    %c0_i32 = arith.constant 0 : i32
    %c0_i32_0 = arith.constant 0 : i32
    %c0_i32_1 = arith.constant 0 : i32
    return %c0_i32, %c0_i32_0 : i32, i32
  }
  func.func @transform_2(%arg0: i32) -> (i32, i32) {
    %c0_i32 = arith.constant 0 : i32
    %c0_i32_0 = arith.constant 0 : i32
    return %arg0, %c0_i32 : i32, i32
  }
}

module attributes {stable_mosaic.version = 11 : i64} {
  func.func @gemm_bn_lrelu_kernel(%arg0: i32, %arg1: i32, %arg2: memref<512x1024xbf16, #tpu.memory_space<vmem>>, %arg3: memref<1024x128xbf16, #tpu.memory_space<vmem>>, %arg4: memref<1x128xf32, #tpu.memory_space<vmem>>, %arg5: memref<1x128xf32, #tpu.memory_space<vmem>>, %arg6: memref<512x128xbf16, #tpu.memory_space<vmem>>, %arg7: memref<512x128xf32, #tpu.memory_space<vmem>>) attributes {dimension_semantics = [#tpu.dimension_semantics<parallel>, #tpu.dimension_semantics<arbitrary>], iteration_bounds = array<i64: 1, 1>, scalar_prefetch = 0 : i64, scratch_operands = 1 : i64, tpu.core_type = #tpu.core_type<tc>, window_params = [{transform_indices = @transform_0, window_bounds = array<i64: 512, 1024>}, {transform_indices = @transform_1, window_bounds = array<i64: 1024, 128>}, {transform_indices = @transform_2, window_bounds = array<i64: 1, 128>}, {transform_indices = @transform_3, window_bounds = array<i64: 1, 128>}, {transform_indices = @transform_4, window_bounds = array<i64: 512, 128>}]} {
    %c0_i32 = arith.constant 0 : i32
    %0 = arith.cmpi eq, %arg1, %c0_i32 : i32
    %1 = arith.extui %0 : i1 to i32
    %c0_i32_0 = arith.constant 0 : i32
    %2 = arith.cmpi ne, %1, %c0_i32_0 : i32
    scf.if %2 {
      %cst_10 = arith.constant 0.000000e+00 : f32
      %12 = vector.broadcast %cst_10 : f32 to vector<512x128xf32>
      %c0_11 = arith.constant 0 : index
      %c0_12 = arith.constant 0 : index
      %13 = vector.load %arg7[%c0_11, %c0_12] : memref<512x128xf32, #tpu.memory_space<vmem>>, vector<512x128xf32>
      tpu.vector_store %arg7[%c0_11, %c0_12], %12 {strides = array<i32>} : memref<512x128xf32, #tpu.memory_space<vmem>>, vector<512x128xf32>,
    } else {
    }
    %c0 = arith.constant 0 : index
    %c0_1 = arith.constant 0 : index
    %3 = vector.load %arg7[%c0, %c0_1] : memref<512x128xf32, #tpu.memory_space<vmem>>, vector<512x128xf32>
    %c0_2 = arith.constant 0 : index
    %c0_3 = arith.constant 0 : index
    %4 = vector.load %arg2[%c0_2, %c0_3] : memref<512x1024xbf16, #tpu.memory_space<vmem>>, vector<512x1024xbf16>
    %c0_4 = arith.constant 0 : index
    %c0_5 = arith.constant 0 : index
    %5 = vector.load %arg3[%c0_4, %c0_5] : memref<1024x128xbf16, #tpu.memory_space<vmem>>, vector<1024x128xbf16>
    %cst = arith.constant dense<0.000000e+00> : vector<512x128xf32>
    %6 = tpu.matmul %4, %5, %cst {dimension_numbers = #tpu.dot_dimension_numbers<[1], [0], [0], [1], [0, 0, 1, 1], [], []>} : vector<512x1024xbf16>, vector<1024x128xbf16>, vector<512x128xf32> -> vector<512x128xf32>
    %7 = arith.addf %3, %6 : vector<512x128xf32>
    %c0_6 = arith.constant 0 : index
    %c0_7 = arith.constant 0 : index
    %8 = vector.load %arg7[%c0_6, %c0_7] : memref<512x128xf32, #tpu.memory_space<vmem>>, vector<512x128xf32>
    tpu.vector_store %arg7[%c0_6, %c0_7], %7 {strides = array<i32>} : memref<512x128xf32, #tpu.memory_space<vmem>>, vector<512x128xf32>,
    %c0_i32_8 = arith.constant 0 : i32
    %9 = arith.cmpi eq, %arg1, %c0_i32_8 : i32
    %10 = arith.extui %9 : i1 to i32
    %c0_i32_9 = arith.constant 0 : i32
    %11 = arith.cmpi ne, %10, %c0_i32_9 : i32
    scf.if %11 {
      %c0_10 = arith.constant 0 : index
      %c0_11 = arith.constant 0 : index
      %12 = vector.load %arg7[%c0_10, %c0_11] : memref<512x128xf32, #tpu.memory_space<vmem>>, vector<512x128xf32>
      %cst_12 = arith.constant dense<0.000000e+00> : vector<128xf32>
      %13 = vector.multi_reduction <add>, %12, %cst_12 [0] : vector<512x128xf32> to vector<128xf32>
      %14 = vector.shape_cast %13 : vector<128xf32> to vector<1x128xf32>
      %cst_13 = arith.constant 5.120000e+02 : f32
      %15 = vector.broadcast %cst_13 : f32 to vector<1x128xf32>
      %16 = arith.divf %14, %15 : vector<1x128xf32>
      %17 = vector.broadcast %16 : vector<1x128xf32> to vector<512x128xf32>
      %18 = arith.subf %12, %17 : vector<512x128xf32>
      %19 = arith.mulf %18, %18 : vector<512x128xf32>
      %cst_14 = arith.constant dense<0.000000e+00> : vector<128xf32>
      %20 = vector.multi_reduction <add>, %19, %cst_14 [0] : vector<512x128xf32> to vector<128xf32>
      %21 = vector.shape_cast %20 : vector<128xf32> to vector<1x128xf32>
      %cst_15 = arith.constant 5.120000e+02 : f32
      %22 = vector.broadcast %cst_15 : f32 to vector<1x128xf32>
      %23 = arith.divf %21, %22 : vector<1x128xf32>
      %24 = vector.broadcast %16 : vector<1x128xf32> to vector<512x128xf32>
      %25 = arith.subf %12, %24 : vector<512x128xf32>
      %cst_16 = arith.constant 9.99999974E-6 : f32
      %26 = vector.broadcast %cst_16 : f32 to vector<1x128xf32>
      %27 = arith.addf %23, %26 : vector<1x128xf32>
      %28 = math.rsqrt %27 : vector<1x128xf32>
      %29 = vector.broadcast %28 : vector<1x128xf32> to vector<512x128xf32>
      %30 = arith.mulf %25, %29 : vector<512x128xf32>
      %c0_17 = arith.constant 0 : index
      %c0_18 = arith.constant 0 : index
      %31 = vector.load %arg4[%c0_17, %c0_18] : memref<1x128xf32, #tpu.memory_space<vmem>>, vector<1x128xf32>
      %32 = vector.broadcast %31 : vector<1x128xf32> to vector<512x128xf32>
      %33 = arith.mulf %30, %32 : vector<512x128xf32>
      %c0_19 = arith.constant 0 : index
      %c0_20 = arith.constant 0 : index
      %34 = vector.load %arg5[%c0_19, %c0_20] : memref<1x128xf32, #tpu.memory_space<vmem>>, vector<1x128xf32>
      %35 = vector.broadcast %34 : vector<1x128xf32> to vector<512x128xf32>
      %36 = arith.addf %33, %35 : vector<512x128xf32>
      %cst_21 = arith.constant 0.000000e+00 : f32
      %37 = vector.broadcast %cst_21 : f32 to vector<512x128xf32>
      %38 = arith.cmpf oge, %36, %37 : vector<512x128xf32>
      %cst_22 = arith.constant 2.000000e-01 : f32
      %39 = vector.broadcast %cst_22 : f32 to vector<512x128xf32>
      %40 = arith.mulf %39, %36 : vector<512x128xf32>
      %41 = arith.select %38, %36, %40 : vector<512x128xi1>, vector<512x128xf32>
      %42 = arith.truncf %41 : vector<512x128xf32> to vector<512x128xbf16>
      %c0_23 = arith.constant 0 : index
      %c0_24 = arith.constant 0 : index
      %43 = vector.load %arg6[%c0_23, %c0_24] : memref<512x128xbf16, #tpu.memory_space<vmem>>, vector<512x128xbf16>
      tpu.vector_store %arg6[%c0_23, %c0_24], %42 {strides = array<i32>} : memref<512x128xbf16, #tpu.memory_space<vmem>>, vector<512x128xbf16>,
    } else {
    }
    return
  }
  func.func @transform_0(%arg0: i32, %arg1: i32) -> (i32, i32) {
    %c0_i32 = arith.constant 0 : i32
    %c0_i32_0 = arith.constant 0 : i32
    return %c0_i32, %arg1 : i32, i32
  }
  func.func @transform_1(%arg0: i32, %arg1: i32) -> (i32, i32) {
    %c0_i32 = arith.constant 0 : i32
    return %arg1, %arg0 : i32, i32
  }
  func.func @transform_2(%arg0: i32, %arg1: i32) -> (i32, i32) {
    %c0_i32 = arith.constant 0 : i32
    %c0_i32_0 = arith.constant 0 : i32
    return %c0_i32, %arg0 : i32, i32
  }
  func.func @transform_3(%arg0: i32, %arg1: i32) -> (i32, i32) {
    %c0_i32 = arith.constant 0 : i32
    %c0_i32_0 = arith.constant 0 : i32
    return %c0_i32, %arg0 : i32, i32
  }
  func.func @transform_4(%arg0: i32, %arg1: i32) -> (i32, i32) {
    %c0_i32 = arith.constant 0 : i32
    %c0_i32_0 = arith.constant 0 : i32
    return %c0_i32, %arg0 : i32, i32
  }
}

module attributes {stable_mosaic.version = 11 : i64} {
  func.func @gemm_bn_lrelu_kernel(%arg0: i32, %arg1: i32, %arg2: memref<128x1024xbf16, #tpu.memory_space<vmem>>, %arg3: memref<1024x128xbf16, #tpu.memory_space<vmem>>, %arg4: memref<1x128xf32, #tpu.memory_space<vmem>>, %arg5: memref<1x128xf32, #tpu.memory_space<vmem>>, %arg6: memref<128x128xbf16, #tpu.memory_space<vmem>>, %arg7: memref<128x128xf32, #tpu.memory_space<vmem>>) attributes {dimension_semantics = [#tpu.dimension_semantics<parallel>, #tpu.dimension_semantics<arbitrary>], iteration_bounds = array<i64: 2, 2>, scalar_prefetch = 0 : i64, scratch_operands = 1 : i64, tpu.core_type = #tpu.core_type<tc>, window_params = [{transform_indices = @transform_0, window_bounds = array<i64: 128, 1024>}, {transform_indices = @transform_1, window_bounds = array<i64: 1024, 128>}, {transform_indices = @transform_2, window_bounds = array<i64: 1, 128>}, {transform_indices = @transform_3, window_bounds = array<i64: 1, 128>}, {transform_indices = @transform_4, window_bounds = array<i64: 128, 128>}]} {
    %c0_i32 = arith.constant 0 : i32
    %0 = arith.cmpi eq, %arg1, %c0_i32 : i32
    %1 = arith.extui %0 : i1 to i32
    %c0_i32_0 = arith.constant 0 : i32
    %2 = arith.cmpi ne, %1, %c0_i32_0 : i32
    scf.if %2 {
      %cst_9 = arith.constant 0.000000e+00 : f32
      %12 = vector.broadcast %cst_9 : f32 to vector<128x128xf32>
      %c0_10 = arith.constant 0 : index
      %c0_11 = arith.constant 0 : index
      %13 = vector.load %arg7[%c0_10, %c0_11] : memref<128x128xf32, #tpu.memory_space<vmem>>, vector<128x128xf32>
      tpu.vector_store %arg7[%c0_10, %c0_11], %12 {strides = array<i32>} : memref<128x128xf32, #tpu.memory_space<vmem>>, vector<128x128xf32>,
    } else {
    }
    %c0 = arith.constant 0 : index
    %c0_1 = arith.constant 0 : index
    %3 = vector.load %arg7[%c0, %c0_1] : memref<128x128xf32, #tpu.memory_space<vmem>>, vector<128x128xf32>
    %c0_2 = arith.constant 0 : index
    %c0_3 = arith.constant 0 : index
    %4 = vector.load %arg2[%c0_2, %c0_3] : memref<128x1024xbf16, #tpu.memory_space<vmem>>, vector<128x1024xbf16>
    %c0_4 = arith.constant 0 : index
    %c0_5 = arith.constant 0 : index
    %5 = vector.load %arg3[%c0_4, %c0_5] : memref<1024x128xbf16, #tpu.memory_space<vmem>>, vector<1024x128xbf16>
    %cst = arith.constant dense<0.000000e+00> : vector<128x128xf32>
    %6 = tpu.matmul %4, %5, %cst {dimension_numbers = #tpu.dot_dimension_numbers<[1], [0], [0], [1], [0, 0, 1, 1], [], []>} : vector<128x1024xbf16>, vector<1024x128xbf16>, vector<128x128xf32> -> vector<128x128xf32>
    %7 = arith.addf %3, %6 : vector<128x128xf32>
    %c0_6 = arith.constant 0 : index
    %c0_7 = arith.constant 0 : index
    %8 = vector.load %arg7[%c0_6, %c0_7] : memref<128x128xf32, #tpu.memory_space<vmem>>, vector<128x128xf32>
    tpu.vector_store %arg7[%c0_6, %c0_7], %7 {strides = array<i32>} : memref<128x128xf32, #tpu.memory_space<vmem>>, vector<128x128xf32>,
    %c1_i32 = arith.constant 1 : i32
    %9 = arith.cmpi eq, %arg1, %c1_i32 : i32
    %10 = arith.extui %9 : i1 to i32
    %c0_i32_8 = arith.constant 0 : i32
    %11 = arith.cmpi ne, %10, %c0_i32_8 : i32
    scf.if %11 {
      %c0_9 = arith.constant 0 : index
      %c0_10 = arith.constant 0 : index
      %12 = vector.load %arg7[%c0_9, %c0_10] : memref<128x128xf32, #tpu.memory_space<vmem>>, vector<128x128xf32>
      %cst_11 = arith.constant dense<0.000000e+00> : vector<128xf32>
      %13 = vector.multi_reduction <add>, %12, %cst_11 [0] : vector<128x128xf32> to vector<128xf32>
      %14 = vector.shape_cast %13 : vector<128xf32> to vector<1x128xf32>
      %cst_12 = arith.constant 1.280000e+02 : f32
      %15 = vector.broadcast %cst_12 : f32 to vector<1x128xf32>
      %16 = arith.divf %14, %15 : vector<1x128xf32>
      %17 = vector.broadcast %16 : vector<1x128xf32> to vector<128x128xf32>
      %18 = arith.subf %12, %17 : vector<128x128xf32>
      %19 = arith.mulf %18, %18 : vector<128x128xf32>
      %cst_13 = arith.constant dense<0.000000e+00> : vector<128xf32>
      %20 = vector.multi_reduction <add>, %19, %cst_13 [0] : vector<128x128xf32> to vector<128xf32>
      %21 = vector.shape_cast %20 : vector<128xf32> to vector<1x128xf32>
      %cst_14 = arith.constant 1.280000e+02 : f32
      %22 = vector.broadcast %cst_14 : f32 to vector<1x128xf32>
      %23 = arith.divf %21, %22 : vector<1x128xf32>
      %24 = vector.broadcast %16 : vector<1x128xf32> to vector<128x128xf32>
      %25 = arith.subf %12, %24 : vector<128x128xf32>
      %cst_15 = arith.constant 9.99999974E-6 : f32
      %26 = vector.broadcast %cst_15 : f32 to vector<1x128xf32>
      %27 = arith.addf %23, %26 : vector<1x128xf32>
      %28 = math.rsqrt %27 : vector<1x128xf32>
      %29 = vector.broadcast %28 : vector<1x128xf32> to vector<128x128xf32>
      %30 = arith.mulf %25, %29 : vector<128x128xf32>
      %c0_16 = arith.constant 0 : index
      %c0_17 = arith.constant 0 : index
      %31 = vector.load %arg4[%c0_16, %c0_17] : memref<1x128xf32, #tpu.memory_space<vmem>>, vector<1x128xf32>
      %32 = vector.broadcast %31 : vector<1x128xf32> to vector<128x128xf32>
      %33 = arith.mulf %30, %32 : vector<128x128xf32>
      %c0_18 = arith.constant 0 : index
      %c0_19 = arith.constant 0 : index
      %34 = vector.load %arg5[%c0_18, %c0_19] : memref<1x128xf32, #tpu.memory_space<vmem>>, vector<1x128xf32>
      %35 = vector.broadcast %34 : vector<1x128xf32> to vector<128x128xf32>
      %36 = arith.addf %33, %35 : vector<128x128xf32>
      %cst_20 = arith.constant 0.000000e+00 : f32
      %37 = vector.broadcast %cst_20 : f32 to vector<128x128xf32>
      %38 = arith.cmpf oge, %36, %37 : vector<128x128xf32>
      %cst_21 = arith.constant 2.000000e-01 : f32
      %39 = vector.broadcast %cst_21 : f32 to vector<128x128xf32>
      %40 = arith.mulf %39, %36 : vector<128x128xf32>
      %41 = arith.select %38, %36, %40 : vector<128x128xi1>, vector<128x128xf32>
      %42 = arith.truncf %41 : vector<128x128xf32> to vector<128x128xbf16>
      %c0_22 = arith.constant 0 : index
      %c0_23 = arith.constant 0 : index
      %43 = vector.load %arg6[%c0_22, %c0_23] : memref<128x128xbf16, #tpu.memory_space<vmem>>, vector<128x128xbf16>
      tpu.vector_store %arg6[%c0_22, %c0_23], %42 {strides = array<i32>} : memref<128x128xbf16, #tpu.memory_space<vmem>>, vector<128x128xbf16>,
    } else {
    }
    return
  }
  func.func @transform_0(%arg0: i32, %arg1: i32) -> (i32, i32) {
    %c0_i32 = arith.constant 0 : i32
    %c0_i32_0 = arith.constant 0 : i32
    return %c0_i32, %arg1 : i32, i32
  }
  func.func @transform_1(%arg0: i32, %arg1: i32) -> (i32, i32) {
    %c0_i32 = arith.constant 0 : i32
    return %arg1, %arg0 : i32, i32
  }
  func.func @transform_2(%arg0: i32, %arg1: i32) -> (i32, i32) {
    %c0_i32 = arith.constant 0 : i32
    %c0_i32_0 = arith.constant 0 : i32
    return %c0_i32, %arg0 : i32, i32
  }
  func.func @transform_3(%arg0: i32, %arg1: i32) -> (i32, i32) {
    %c0_i32 = arith.constant 0 : i32
    %c0_i32_0 = arith.constant 0 : i32
    return %c0_i32, %arg0 : i32, i32
  }
  func.func @transform_4(%arg0: i32, %arg1: i32) -> (i32, i32) {
    %c0_i32 = arith.constant 0 : i32
    %c0_i32_0 = arith.constant 0 : i32
    return %c0_i32, %arg0 : i32, i32
  }
}

module attributes {stable_mosaic.version = 11 : i64} {
  func.func @gemm_bn_lrelu_kernel(%arg0: i32, %arg1: i32, %arg2: memref<32x1024xbf16, #tpu.memory_space<vmem>>, %arg3: memref<1024x256xbf16, #tpu.memory_space<vmem>>, %arg4: memref<1x256xf32, #tpu.memory_space<vmem>>, %arg5: memref<1x256xf32, #tpu.memory_space<vmem>>, %arg6: memref<32x256xbf16, #tpu.memory_space<vmem>>, %arg7: memref<32x256xf32, #tpu.memory_space<vmem>>) attributes {dimension_semantics = [#tpu.dimension_semantics<parallel>, #tpu.dimension_semantics<arbitrary>], iteration_bounds = array<i64: 2, 4>, scalar_prefetch = 0 : i64, scratch_operands = 1 : i64, tpu.core_type = #tpu.core_type<tc>, window_params = [{transform_indices = @transform_0, window_bounds = array<i64: 32, 1024>}, {transform_indices = @transform_1, window_bounds = array<i64: 1024, 256>}, {transform_indices = @transform_2, window_bounds = array<i64: 1, 256>}, {transform_indices = @transform_3, window_bounds = array<i64: 1, 256>}, {transform_indices = @transform_4, window_bounds = array<i64: 32, 256>}]} {
    %c0_i32 = arith.constant 0 : i32
    %0 = arith.cmpi eq, %arg1, %c0_i32 : i32
    %1 = arith.extui %0 : i1 to i32
    %c0_i32_0 = arith.constant 0 : i32
    %2 = arith.cmpi ne, %1, %c0_i32_0 : i32
    scf.if %2 {
      %cst_9 = arith.constant 0.000000e+00 : f32
      %12 = vector.broadcast %cst_9 : f32 to vector<32x256xf32>
      %c0_10 = arith.constant 0 : index
      %c0_11 = arith.constant 0 : index
      %13 = vector.load %arg7[%c0_10, %c0_11] : memref<32x256xf32, #tpu.memory_space<vmem>>, vector<32x256xf32>
      tpu.vector_store %arg7[%c0_10, %c0_11], %12 {strides = array<i32>} : memref<32x256xf32, #tpu.memory_space<vmem>>, vector<32x256xf32>,
    } else {
    }
    %c0 = arith.constant 0 : index
    %c0_1 = arith.constant 0 : index
    %3 = vector.load %arg7[%c0, %c0_1] : memref<32x256xf32, #tpu.memory_space<vmem>>, vector<32x256xf32>
    %c0_2 = arith.constant 0 : index
    %c0_3 = arith.constant 0 : index
    %4 = vector.load %arg2[%c0_2, %c0_3] : memref<32x1024xbf16, #tpu.memory_space<vmem>>, vector<32x1024xbf16>
    %c0_4 = arith.constant 0 : index
    %c0_5 = arith.constant 0 : index
    %5 = vector.load %arg3[%c0_4, %c0_5] : memref<1024x256xbf16, #tpu.memory_space<vmem>>, vector<1024x256xbf16>
    %cst = arith.constant dense<0.000000e+00> : vector<32x256xf32>
    %6 = tpu.matmul %4, %5, %cst {dimension_numbers = #tpu.dot_dimension_numbers<[1], [0], [0], [1], [0, 0, 1, 1], [], []>} : vector<32x1024xbf16>, vector<1024x256xbf16>, vector<32x256xf32> -> vector<32x256xf32>
    %7 = arith.addf %3, %6 : vector<32x256xf32>
    %c0_6 = arith.constant 0 : index
    %c0_7 = arith.constant 0 : index
    %8 = vector.load %arg7[%c0_6, %c0_7] : memref<32x256xf32, #tpu.memory_space<vmem>>, vector<32x256xf32>
    tpu.vector_store %arg7[%c0_6, %c0_7], %7 {strides = array<i32>} : memref<32x256xf32, #tpu.memory_space<vmem>>, vector<32x256xf32>,
    %c3_i32 = arith.constant 3 : i32
    %9 = arith.cmpi eq, %arg1, %c3_i32 : i32
    %10 = arith.extui %9 : i1 to i32
    %c0_i32_8 = arith.constant 0 : i32
    %11 = arith.cmpi ne, %10, %c0_i32_8 : i32
    scf.if %11 {
      %c0_9 = arith.constant 0 : index
      %c0_10 = arith.constant 0 : index
      %12 = vector.load %arg7[%c0_9, %c0_10] : memref<32x256xf32, #tpu.memory_space<vmem>>, vector<32x256xf32>
      %cst_11 = arith.constant dense<0.000000e+00> : vector<256xf32>
      %13 = vector.multi_reduction <add>, %12, %cst_11 [0] : vector<32x256xf32> to vector<256xf32>
      %14 = vector.shape_cast %13 : vector<256xf32> to vector<1x256xf32>
      %cst_12 = arith.constant 3.200000e+01 : f32
      %15 = vector.broadcast %cst_12 : f32 to vector<1x256xf32>
      %16 = arith.divf %14, %15 : vector<1x256xf32>
      %17 = vector.broadcast %16 : vector<1x256xf32> to vector<32x256xf32>
      %18 = arith.subf %12, %17 : vector<32x256xf32>
      %19 = arith.mulf %18, %18 : vector<32x256xf32>
      %cst_13 = arith.constant dense<0.000000e+00> : vector<256xf32>
      %20 = vector.multi_reduction <add>, %19, %cst_13 [0] : vector<32x256xf32> to vector<256xf32>
      %21 = vector.shape_cast %20 : vector<256xf32> to vector<1x256xf32>
      %cst_14 = arith.constant 3.200000e+01 : f32
      %22 = vector.broadcast %cst_14 : f32 to vector<1x256xf32>
      %23 = arith.divf %21, %22 : vector<1x256xf32>
      %24 = vector.broadcast %16 : vector<1x256xf32> to vector<32x256xf32>
      %25 = arith.subf %12, %24 : vector<32x256xf32>
      %cst_15 = arith.constant 9.99999974E-6 : f32
      %26 = vector.broadcast %cst_15 : f32 to vector<1x256xf32>
      %27 = arith.addf %23, %26 : vector<1x256xf32>
      %28 = math.rsqrt %27 : vector<1x256xf32>
      %29 = vector.broadcast %28 : vector<1x256xf32> to vector<32x256xf32>
      %30 = arith.mulf %25, %29 : vector<32x256xf32>
      %c0_16 = arith.constant 0 : index
      %c0_17 = arith.constant 0 : index
      %31 = vector.load %arg4[%c0_16, %c0_17] : memref<1x256xf32, #tpu.memory_space<vmem>>, vector<1x256xf32>
      %32 = vector.broadcast %31 : vector<1x256xf32> to vector<32x256xf32>
      %33 = arith.mulf %30, %32 : vector<32x256xf32>
      %c0_18 = arith.constant 0 : index
      %c0_19 = arith.constant 0 : index
      %34 = vector.load %arg5[%c0_18, %c0_19] : memref<1x256xf32, #tpu.memory_space<vmem>>, vector<1x256xf32>
      %35 = vector.broadcast %34 : vector<1x256xf32> to vector<32x256xf32>
      %36 = arith.addf %33, %35 : vector<32x256xf32>
      %cst_20 = arith.constant 0.000000e+00 : f32
      %37 = vector.broadcast %cst_20 : f32 to vector<32x256xf32>
      %38 = arith.cmpf oge, %36, %37 : vector<32x256xf32>
      %cst_21 = arith.constant 2.000000e-01 : f32
      %39 = vector.broadcast %cst_21 : f32 to vector<32x256xf32>
      %40 = arith.mulf %39, %36 : vector<32x256xf32>
      %41 = arith.select %38, %36, %40 : vector<32x256xi1>, vector<32x256xf32>
      %42 = arith.truncf %41 : vector<32x256xf32> to vector<32x256xbf16>
      %c0_22 = arith.constant 0 : index
      %c0_23 = arith.constant 0 : index
      %43 = vector.load %arg6[%c0_22, %c0_23] : memref<32x256xbf16, #tpu.memory_space<vmem>>, vector<32x256xbf16>
      tpu.vector_store %arg6[%c0_22, %c0_23], %42 {strides = array<i32>} : memref<32x256xbf16, #tpu.memory_space<vmem>>, vector<32x256xbf16>,
    } else {
    }
    return
  }
  func.func @transform_0(%arg0: i32, %arg1: i32) -> (i32, i32) {
    %c0_i32 = arith.constant 0 : i32
    %c0_i32_0 = arith.constant 0 : i32
    return %c0_i32, %arg1 : i32, i32
  }
  func.func @transform_1(%arg0: i32, %arg1: i32) -> (i32, i32) {
    %c0_i32 = arith.constant 0 : i32
    return %arg1, %arg0 : i32, i32
  }
  func.func @transform_2(%arg0: i32, %arg1: i32) -> (i32, i32) {
    %c0_i32 = arith.constant 0 : i32
    %c0_i32_0 = arith.constant 0 : i32
    return %c0_i32, %arg0 : i32, i32
  }
  func.func @transform_3(%arg0: i32, %arg1: i32) -> (i32, i32) {
    %c0_i32 = arith.constant 0 : i32
    %c0_i32_0 = arith.constant 0 : i32
    return %c0_i32, %arg0 : i32, i32
  }
  func.func @transform_4(%arg0: i32, %arg1: i32) -> (i32, i32) {
    %c0_i32 = arith.constant 0 : i32
    %c0_i32_0 = arith.constant 0 : i32
    return %c0_i32, %arg0 : i32, i32
  }
}

module attributes {stable_mosaic.version = 11 : i64} {
  func.func @dot_reduce_kernel(%arg0: i32, %arg1: memref<8x8192xbf16, #tpu.memory_space<vmem>>, %arg2: memref<1x8192xbf16, #tpu.memory_space<vmem>>, %arg3: memref<8x1xf32, #tpu.memory_space<vmem>>) attributes {dimension_semantics = [#tpu.dimension_semantics<arbitrary>], iteration_bounds = array<i64: 1>, scalar_prefetch = 0 : i64, scratch_operands = 0 : i64, tpu.core_type = #tpu.core_type<tc>, window_params = [{pipeline_mode = #tpu.pipeline_mode<synchronous>, transform_indices = @transform_0, window_bounds = array<i64: 8, 8192>}, {pipeline_mode = #tpu.pipeline_mode<synchronous>, transform_indices = @transform_1, window_bounds = array<i64: 1, 8192>}, {pipeline_mode = #tpu.pipeline_mode<synchronous>, transform_indices = @transform_2, window_bounds = array<i64: 8, 1>}]} {
    %c0 = arith.constant 0 : index
    %c0_0 = arith.constant 0 : index
    %0 = vector.load %arg1[%c0, %c0_0] : memref<8x8192xbf16, #tpu.memory_space<vmem>>, vector<8x8192xbf16>
    %1 = arith.extf %0 : vector<8x8192xbf16> to vector<8x8192xf32>
    %c0_1 = arith.constant 0 : index
    %c0_2 = arith.constant 0 : index
    %2 = vector.load %arg2[%c0_1, %c0_2] : memref<1x8192xbf16, #tpu.memory_space<vmem>>, vector<1x8192xbf16>
    %3 = arith.extf %2 : vector<1x8192xbf16> to vector<1x8192xf32>
    %4 = vector.broadcast %3 : vector<1x8192xf32> to vector<8x8192xf32>
    %5 = arith.mulf %1, %4 : vector<8x8192xf32>
    %cst = arith.constant dense<0.000000e+00> : vector<8xf32>
    %6 = vector.multi_reduction <add>, %5, %cst [1] : vector<8x8192xf32> to vector<8xf32>
    %7 = vector.shape_cast %6 : vector<8xf32> to vector<8x1xf32>
    %c0_3 = arith.constant 0 : index
    %c0_4 = arith.constant 0 : index
    %8 = vector.load %arg3[%c0_3, %c0_4] : memref<8x1xf32, #tpu.memory_space<vmem>>, vector<8x1xf32>
    tpu.vector_store %arg3[%c0_3, %c0_4], %7 {strides = array<i32>} : memref<8x1xf32, #tpu.memory_space<vmem>>, vector<8x1xf32>,
    return
  }
  func.func @transform_0(%arg0: i32) -> (i32, i32) {
    %c0_i32 = arith.constant 0 : i32
    %c0_i32_0 = arith.constant 0 : i32
    %c0_i32_1 = arith.constant 0 : i32
    return %c0_i32, %c0_i32_0 : i32, i32
  }
  func.func @transform_1(%arg0: i32) -> (i32, i32) {
    %c0_i32 = arith.constant 0 : i32
    %c0_i32_0 = arith.constant 0 : i32
    %c0_i32_1 = arith.constant 0 : i32
    return %c0_i32, %c0_i32_0 : i32, i32
  }
  func.func @transform_2(%arg0: i32) -> (i32, i32) {
    %c0_i32 = arith.constant 0 : i32
    %c0_i32_0 = arith.constant 0 : i32
    %c0_i32_1 = arith.constant 0 : i32
    return %c0_i32, %c0_i32_0 : i32, i32
  }
}

</mosaic_0001>

<llo_original>
// kernel: critic_forward.5
$region0: #{critic_forward.5}
  #allocation0 [shape = 'u32[]', space=smem, size = 0x4, offset = 0x4, fixed_abs, tag = 'smem constant byte address 0x4 - core index']
  #allocation1 [shape = 'u32[144,128]{1,0:T(1,128)}', space=vmem, size = 0x12000, scoped, tag = 'internal scratch']
  %s0 = inlined_call_operand.vmem [shape: bf16[2048,16], index: 0, kind: input, shape index: {}]
  %s1 = inlined_call_operand.hbm [shape: bf16[16,64], index: 1, kind: input, shape index: {}]
  %s2 = inlined_call_operand.vmem [shape: bf16[2048,64], index: 2, kind: output, shape index: {}]
  %s3 = sld [smem:[#allocation0]]
  $region45: #{critic_forward.5} parent=0
    _
  %s5 = ssub.s32 1, %s3
  %s6 = scalar_select 0, %s5, %s3
  $region1: #{critic_forward.5} parent=0
    #allocation2 [shape = 'u8[4096]{0}', space=vmem, size = 0x1000, scoped, tag = 'input window, operand 1, single buffered']
    #allocation3 [shape = 's32[2]{0}', space=sflag, size = 0x8, scoped, tag = 'scoped memory for critic_forward.5']
    %7 = vsyncpa [#allocation3], 0
    loop: start=0, step=1, limit=6
    $region2: #{critic_forward.5} parent=1 // loop_pre_header
      _
    $region3: #{critic_forward.5} parent=1 // loop_header
      %s9 = sphi 0, %s13
      %p10 = scmp.ge.s32.totalorder %s9, 6
      %s19 = sphi 0, %s21
      %s22 = sphi 0, %s19
      %s23 = sphi 0, %s22
      %s39 = sphi 0, %s23
      %s43 = sphi 0, %s43
      %s45 = sphi 0, %s43
      %s46 = sphi 0, %s45
      %s60 = sphi 0, %s46
      %s66 = sphi 0, %s68
      %s69 = sphi 0, %s66
      %s70 = sphi 0, %s69
      %s86 = sphi 0, %s70
    $region4: #{critic_forward.5} parent=1 // loop_header_branch
      %12 = sbr.rel (%p10) target = $region8
    $region5: #{critic_forward.5} parent=1 // loop_body
      %s14 = ssub.s32 %s9, 1
      %s15 = ssub.s32 %s9, 2
      %s16 = sadd.s32 %s9, 1
      %s17 = ssub.s32 %s9, %s16
      %p18 = scmp.eq.s32.totalorder %s17, 0
      %s20 = sadd.s32 %s19, 1
      %s21 = scalar_select %p18, %s19, %s20
      %p24 = pneg %p18
      %p25 = scmp.eq.s32.totalorder %s9, 3
      %p26 = por %p24, %p25
      %p27 = scmp.ne.s32.totalorder %s19, %s22
      %p28 = scmp.eq.s32.totalorder %s9, 0
      %p29 = por %p27, %p28
      %p30 = scmp.ne.s32.totalorder %s19, %s22
      %p31 = scmp.eq.s32.totalorder %s14, 3
      %p32 = por %p30, %p31
      %p33 = scmp.ne.s32.totalorder %s22, %s23
      %p34 = scmp.eq.s32.totalorder %s14, 0
      %p35 = por %p33, %p34
      %p36 = scmp.ne.s32.totalorder %s22, %s23
      %p37 = scmp.eq.s32.totalorder %s15, 3
      %p38 = por %p36, %p37
      %p40 = scmp.ne.s32.totalorder %s23, %s39
      %p41 = scmp.eq.s32.totalorder %s15, 0
      %p42 = por %p40, %p41
      %s44 = sadd.s32 %s43, 1
      %p47 = scmp.eq.s32.totalorder %s9, 3
      %p48 = scmp.ne.s32.totalorder %s43, %s45
      %p49 = scmp.eq.s32.totalorder %s9, 0
      %p50 = por %p48, %p49
      %p51 = scmp.ne.s32.totalorder %s43, %s45
      %p52 = scmp.eq.s32.totalorder %s14, 3
      %p53 = por %p51, %p52
      %p54 = scmp.ne.s32.totalorder %s45, %s46
      %p55 = scmp.eq.s32.totalorder %s14, 0
      %p56 = por %p54, %p55
      %p57 = scmp.ne.s32.totalorder %s45, %s46
      %p58 = scmp.eq.s32.totalorder %s15, 3
      %p59 = por %p57, %p58
      %p61 = scmp.ne.s32.totalorder %s46, %s60
      %p62 = scmp.eq.s32.totalorder %s15, 0
      %p63 = por %p61, %p62
      %s64 = ssub.s32 %s9, %s16
      %p65 = scmp.eq.s32.totalorder %s64, 0
      %s67 = sadd.s32 %s66, 1
      %s68 = scalar_select %p65, %s66, %s67
      %p71 = pneg %p65
      %p72 = scmp.eq.s32.totalorder %s9, 3
      %p73 = por %p71, %p72
      %p74 = scmp.ne.s32.totalorder %s66, %s69
      %p75 = scmp.eq.s32.totalorder %s9, 0
      %p76 = por %p74, %p75
      %p77 = scmp.ne.s32.totalorder %s66, %s69
      %p78 = scmp.eq.s32.totalorder %s14, 3
      %p79 = por %p77, %p78
      %p80 = scmp.ne.s32.totalorder %s69, %s70
      %p81 = scmp.eq.s32.totalorder %s14, 0
      %p82 = por %p80, %p81
      %p83 = scmp.ne.s32.totalorder %s69, %s70
      %p84 = scmp.eq.s32.totalorder %s15, 3
      %p85 = por %p83, %p84
      %p87 = scmp.ne.s32.totalorder %s70, %s86
      %p88 = scmp.eq.s32.totalorder %s15, 0
      %p89 = por %p87, %p88
      %p90 = scmp.le.s32.totalorder 1, %s9
      %p91 = scmp.lt.s32.totalorder %s9, 5
      %p92 = pnand %p90, %p91
      %p93 = pneg %p92
      // Predicated region
      $region9: #{critic_forward.5} parent=5 // pred_check
        _
      $region10: #{critic_forward.5} parent=5 // pred_check_branch
        %95 = sbr.rel (%p92) target = $region12
      $region11: #{critic_forward.5} parent=5 // pred_region
        %s96 = ssub.s32 %s9, 1
        // Predicated region
        $region13: #{critic_forward.5} parent=11 // pred_check
          %p97 = pneg %p56
        $region14: #{critic_forward.5} parent=11 // pred_check_branch
          %99 = sbr.rel (%p97) target = $region16
        $region15: #{critic_forward.5} parent=11 // pred_region
          %s101 = ssub.s32 128, 128
          %102 = vsyncadd [#allocation3], %s101
          %s103 = sshll.u32 [#allocation2], 4
          %s104 = int_to_ptr.vmem [resolvable:$true] %s103
          %109 = dma.hbm_to_vmem [thread:$0]  %s1, 128, %s104, [#allocation3], 64, 64, 4
        $region16: #{critic_forward.5} parent=11 // pred_fallthru
          _
      $region12: #{critic_forward.5} parent=5 // pred_fallthru
        _
      %p110 = scmp.lt.s32.totalorder %s9, 4
      // Predicated region
      $region17: #{critic_forward.5} parent=5 // pred_check
        %p111 = pneg %p110
      $region18: #{critic_forward.5} parent=5 // pred_check_branch
        %113 = sbr.rel (%p111) target = $region20
      $region19: #{critic_forward.5} parent=5 // pred_region
        // Predicated region
        $region21: #{critic_forward.5} parent=19 // pred_check
          %p114 = pneg %p29
        $region22: #{critic_forward.5} parent=19 // pred_check_branch
          %116 = sbr.rel (%p114) target = $region24
        $region23: #{critic_forward.5} parent=19 // pred_region
          %s117 = smul.u32 64, %s9
          %p118 = scmp.lt.s32.totalorder %s117, 255
          %s119 = scalar_select %p118, %s117, 255
          %s120 = smul.addr %s119, 4
          %s121 = scalar_lea.vmem %s0, %s120
          %s122 = smul.u32 64, %s9
        $region24: #{critic_forward.5} parent=19 // pred_fallthru
          _
      $region20: #{critic_forward.5} parent=5 // pred_fallthru
        _
      %p123 = scmp.le.s32.totalorder 1, %s9
      %p124 = scmp.lt.s32.totalorder %s9, 5
      %p125 = pnand %p123, %p124
      %p126 = pneg %p125
      // Predicated region
      $region25: #{critic_forward.5} parent=5 // pred_check
        _
      $region26: #{critic_forward.5} parent=5 // pred_check_branch
        %128 = sbr.rel (%p125) target = $region28
      $region27: #{critic_forward.5} parent=5 // pred_region
        %s129 = ssub.s32 %s9, 1
        // Predicated region
        $region29: #{critic_forward.5} parent=27 // pred_check
          %p130 = pneg %p56
        $region30: #{critic_forward.5} parent=27 // pred_check_branch
          %132 = sbr.rel (%p130) target = $region32
        $region31: #{critic_forward.5} parent=27 // pred_region
          %133 = dma.done [#allocation3], 128
        $region32: #{critic_forward.5} parent=27 // pred_fallthru
          _
        %s134 = smul.u32 64, %s14
        %p135 = scmp.lt.s32.totalorder %s134, 255
        %s136 = scalar_select %p135, %s134, 255
        %s137 = smul.addr %s136, 4
        %s138 = scalar_lea.vmem %s0, %s137
        %p139 = pneg %p35
        %p140 = pneg %p32
        %p141 = pneg %p56
        %p142 = pneg %p53
        %p143 = pneg %p82
        %p144 = pneg %p79
        %s145 = smul.u32 64, %s14
        %p146 = scmp.lt.s32.totalorder %s145, 255
        %s147 = scalar_select %p146, %s145, 255
        %s148 = smul.addr %s147, 4
        %s149 = scalar_lea.vmem %s2, %s148
        %s150 = smul.u32 64, %s14
        %p151 = scmp.lt.s32.totalorder %s150, 255
        %s152 = scalar_select %p151, %s150, 255
        %s153 = smul.addr %s152, 4
        %s154 = scalar_lea.vmem %s0, %s153
        %s155 = smul.u32 64, %s14
        %s156 = smul.u32 64, %s14
        %p157 = scmp.lt.s32.totalorder %s156, 255
        %s158 = scalar_select %p157, %s156, 255
        %s159 = smul.addr %s158, 4
        %s160 = scalar_lea.vmem %s2, %s159
        %s161 = smul.u32 64, %s14
        %v163 = vld [vmem:[%s154] sm:$0xf]
        %v164 = vld [vmem:[%s154 + $0x4] sm:$0xf]
        %v165 = vld [vmem:[%s154 + $0x8] sm:$0xf]
        %v166 = vld [vmem:[%s154 + $0xc] sm:$0xf]
        %v167 = vld [vmem:[%s154 + $0x10] sm:$0xf]
        %v168 = vld [vmem:[%s154 + $0x14] sm:$0xf]
        %v169 = vld [vmem:[%s154 + $0x18] sm:$0xf]
        %v170 = vld [vmem:[%s154 + $0x1c] sm:$0xf]
        %v171 = vld [vmem:[%s154 + $0x20] sm:$0xf]
        %v172 = vld [vmem:[%s154 + $0x24] sm:$0xf]
        %v173 = vld [vmem:[%s154 + $0x28] sm:$0xf]
        %v174 = vld [vmem:[%s154 + $0x2c] sm:$0xf]
        %v175 = vld [vmem:[%s154 + $0x30] sm:$0xf]
        %v176 = vld [vmem:[%s154 + $0x34] sm:$0xf]
        %v177 = vld [vmem:[%s154 + $0x38] sm:$0xf]
        %v178 = vld [vmem:[%s154 + $0x3c] sm:$0xf]
        %v179 = vld [vmem:[%s154 + $0x40] sm:$0xf]
        %v180 = vld [vmem:[%s154 + $0x44] sm:$0xf]
        %v181 = vld [vmem:[%s154 + $0x48] sm:$0xf]
        %v182 = vld [vmem:[%s154 + $0x4c] sm:$0xf]
        %v183 = vld [vmem:[%s154 + $0x50] sm:$0xf]
        %v184 = vld [vmem:[%s154 + $0x54] sm:$0xf]
        %v185 = vld [vmem:[%s154 + $0x58] sm:$0xf]
        %v186 = vld [vmem:[%s154 + $0x5c] sm:$0xf]
        %v187 = vld [vmem:[%s154 + $0x60] sm:$0xf]
        %v188 = vld [vmem:[%s154 + $0x64] sm:$0xf]
        %v189 = vld [vmem:[%s154 + $0x68] sm:$0xf]
        %v190 = vld [vmem:[%s154 + $0x6c] sm:$0xf]
        %v191 = vld [vmem:[%s154 + $0x70] sm:$0xf]
        %v192 = vld [vmem:[%s154 + $0x74] sm:$0xf]
        %v193 = vld [vmem:[%s154 + $0x78] sm:$0xf]
        %v194 = vld [vmem:[%s154 + $0x7c] sm:$0xf]
        %v195 = vld [vmem:[%s154 + $0x80] sm:$0xf]
        %v196 = vld [vmem:[%s154 + $0x84] sm:$0xf]
        %v197 = vld [vmem:[%s154 + $0x88] sm:$0xf]
        %v198 = vld [vmem:[%s154 + $0x8c] sm:$0xf]
        %v199 = vld [vmem:[%s154 + $0x90] sm:$0xf]
        %v200 = vld [vmem:[%s154 + $0x94] sm:$0xf]
        %v201 = vld [vmem:[%s154 + $0x98] sm:$0xf]
        %v202 = vld [vmem:[%s154 + $0x9c] sm:$0xf]
        %v203 = vld [vmem:[%s154 + $0xa0] sm:$0xf]
        %v204 = vld [vmem:[%s154 + $0xa4] sm:$0xf]
        %v205 = vld [vmem:[%s154 + $0xa8] sm:$0xf]
        %v206 = vld [vmem:[%s154 + $0xac] sm:$0xf]
        %v207 = vld [vmem:[%s154 + $0xb0] sm:$0xf]
        %v208 = vld [vmem:[%s154 + $0xb4] sm:$0xf]
        %v209 = vld [vmem:[%s154 + $0xb8] sm:$0xf]
        %v210 = vld [vmem:[%s154 + $0xbc] sm:$0xf]
        %v211 = vld [vmem:[%s154 + $0xc0] sm:$0xf]
        %v212 = vld [vmem:[%s154 + $0xc4] sm:$0xf]
        %v213 = vld [vmem:[%s154 + $0xc8] sm:$0xf]
        %v214 = vld [vmem:[%s154 + $0xcc] sm:$0xf]
        %v215 = vld [vmem:[%s154 + $0xd0] sm:$0xf]
        %v216 = vld [vmem:[%s154 + $0xd4] sm:$0xf]
        %v217 = vld [vmem:[%s154 + $0xd8] sm:$0xf]
        %v218 = vld [vmem:[%s154 + $0xdc] sm:$0xf]
        %v219 = vld [vmem:[%s154 + $0xe0] sm:$0xf]
        %v220 = vld [vmem:[%s154 + $0xe4] sm:$0xf]
        %v221 = vld [vmem:[%s154 + $0xe8] sm:$0xf]
        %v222 = vld [vmem:[%s154 + $0xec] sm:$0xf]
        %v223 = vld [vmem:[%s154 + $0xf0] sm:$0xf]
        %v224 = vld [vmem:[%s154 + $0xf4] sm:$0xf]
        %v225 = vld [vmem:[%s154 + $0xf8] sm:$0xf]
        %v226 = vld [vmem:[%s154 + $0xfc] sm:$0xf]
        %v227 = vld [vmem:[#allocation2] sm:$0xf]
        %v228 = vld [vmem:[#allocation2 + $0x4] sm:$0xf]
        %v293 = vunpack.c.l.b16 %v163
        %v294 = vunpack.c.l.b16 %v164
        %v295 = vunpack.c.l.b16 %v165
        %v296 = vunpack.c.l.b16 %v166
        %v297 = vunpack.c.l.b16 %v167
        %v298 = vunpack.c.l.b16 %v168
        %v299 = vunpack.c.l.b16 %v169
        %v300 = vunpack.c.l.b16 %v170
        %v301 = vunpack.c.l.b16 %v171
        %v302 = vunpack.c.l.b16 %v172
        %v303 = vunpack.c.l.b16 %v173
        %v304 = vunpack.c.l.b16 %v174
        %v305 = vunpack.c.l.b16 %v175
        %v306 = vunpack.c.l.b16 %v176
        %v307 = vunpack.c.l.b16 %v177
        %v308 = vunpack.c.l.b16 %v178
        %v309 = vunpack.c.l.b16 %v179
        %v310 = vunpack.c.l.b16 %v180
        %v311 = vunpack.c.l.b16 %v181
        %v312 = vunpack.c.l.b16 %v182
        %v313 = vunpack.c.l.b16 %v183
        %v314 = vunpack.c.l.b16 %v184
        %v315 = vunpack.c.l.b16 %v185
        %v316 = vunpack.c.l.b16 %v186
        %v317 = vunpack.c.l.b16 %v187
        %v318 = vunpack.c.l.b16 %v188
        %v319 = vunpack.c.l.b16 %v189
        %v320 = vunpack.c.l.b16 %v190
        %v321 = vunpack.c.l.b16 %v191
        %v322 = vunpack.c.l.b16 %v192
        %v323 = vunpack.c.l.b16 %v193
        %v324 = vunpack.c.l.b16 %v194
        %v325 = vunpack.c.l.b16 %v195
        %v326 = vunpack.c.l.b16 %v196
        %v327 = vunpack.c.l.b16 %v197
        %v328 = vunpack.c.l.b16 %v198
        %v329 = vunpack.c.l.b16 %v199
        %v330 = vunpack.c.l.b16 %v200
        %v331 = vunpack.c.l.b16 %v201
        %v332 = vunpack.c.l.b16 %v202
        %v333 = vunpack.c.l.b16 %v203
        %v334 = vunpack.c.l.b16 %v204
        %v335 = vunpack.c.l.b16 %v205
        %v336 = vunpack.c.l.b16 %v206
        %v337 = vunpack.c.l.b16 %v207
        %v338 = vunpack.c.l.b16 %v208
        %v339 = vunpack.c.l.b16 %v209
        %v340 = vunpack.c.l.b16 %v210
        %v341 = vunpack.c.l.b16 %v211
        %v342 = vunpack.c.l.b16 %v212
        %v343 = vunpack.c.l.b16 %v213
        %v344 = vunpack.c.l.b16 %v214
        %v345 = vunpack.c.l.b16 %v215
        %v346 = vunpack.c.l.b16 %v216
        %v347 = vunpack.c.l.b16 %v217
        %v348 = vunpack.c.l.b16 %v218
        %v349 = vunpack.c.l.b16 %v219
        %v350 = vunpack.c.l.b16 %v220
        %v351 = vunpack.c.l.b16 %v221
        %v352 = vunpack.c.l.b16 %v222
        %v353 = vunpack.c.l.b16 %v223
        %v354 = vunpack.c.l.b16 %v224
        %v355 = vunpack.c.l.b16 %v225
        %v356 = vunpack.c.l.b16 %v226
        %v357 = vpack.c.b16 %v294, %v293
        %v358 = vpack.c.b16 %v296, %v295
        %v359 = vpack.c.b16 %v298, %v297
        %v360 = vpack.c.b16 %v300, %v299
        %v361 = vpack.c.b16 %v302, %v301
        %v362 = vpack.c.b16 %v304, %v303
        %v363 = vpack.c.b16 %v306, %v305
        %v364 = vpack.c.b16 %v308, %v307
        %v365 = vpack.c.b16 %v310, %v309
        %v366 = vpack.c.b16 %v312, %v311
        %v367 = vpack.c.b16 %v314, %v313
        %v368 = vpack.c.b16 %v316, %v315
        %v369 = vpack.c.b16 %v318, %v317
        %v370 = vpack.c.b16 %v320, %v319
        %v371 = vpack.c.b16 %v322, %v321
        %v372 = vpack.c.b16 %v324, %v323
        %v373 = vpack.c.b16 %v326, %v325
        %v374 = vpack.c.b16 %v328, %v327
        %v375 = vpack.c.b16 %v330, %v329
        %v376 = vpack.c.b16 %v332, %v331
        %v377 = vpack.c.b16 %v334, %v333
        %v378 = vpack.c.b16 %v336, %v335
        %v379 = vpack.c.b16 %v338, %v337
        %v380 = vpack.c.b16 %v340, %v339
        %v381 = vpack.c.b16 %v342, %v341
        %v382 = vpack.c.b16 %v344, %v343
        %v383 = vpack.c.b16 %v346, %v345
        %v384 = vpack.c.b16 %v348, %v347
        %v385 = vpack.c.b16 %v350, %v349
        %v386 = vpack.c.b16 %v352, %v351
        %v387 = vpack.c.b16 %v354, %v353
        %v388 = vpack.c.b16 %v356, %v355
        %v391 = vunpack.c.l.b16 %v227
        %v392 = vunpack.c.l.b16 %v228
        %v393 = vpack.c.b16 %v392, %v391
        %vm395 = vcmask 130048
        %v397 = vsel %vm395, %v357, 0
        %v400 = vsel %vm395, %v358, 0
        %v403 = vsel %vm395, %v359, 0
        %v406 = vsel %vm395, %v360, 0
        %v409 = vsel %vm395, %v361, 0
        %v412 = vsel %vm395, %v362, 0
        %v415 = vsel %vm395, %v363, 0
        %v418 = vsel %vm395, %v364, 0
        %v421 = vsel %vm395, %v365, 0
        %v424 = vsel %vm395, %v366, 0
        %v427 = vsel %vm395, %v367, 0
        %v430 = vsel %vm395, %v368, 0
        %v433 = vsel %vm395, %v369, 0
        %v436 = vsel %vm395, %v370, 0
        %v439 = vsel %vm395, %v371, 0
        %v442 = vsel %vm395, %v372, 0
        %v445 = vsel %vm395, %v373, 0
        %v448 = vsel %vm395, %v374, 0
        %v451 = vsel %vm395, %v375, 0
        %v454 = vsel %vm395, %v376, 0
        %v457 = vsel %vm395, %v377, 0
        %v460 = vsel %vm395, %v378, 0
        %v463 = vsel %vm395, %v379, 0
        %v466 = vsel %vm395, %v380, 0
        %v469 = vsel %vm395, %v381, 0
        %v472 = vsel %vm395, %v382, 0
        %v475 = vsel %vm395, %v383, 0
        %v478 = vsel %vm395, %v384, 0
        %v481 = vsel %vm395, %v385, 0
        %v484 = vsel %vm395, %v386, 0
        %v487 = vsel %vm395, %v387, 0
        %v490 = vsel %vm395, %v388, 0
        %492 = vmatprep.subr.bf16.mxu0 0
        %493 = vmatpush1.bf16.msra.mxu0 0
        %494 = vmatprep.subr.bf16.mxu0 0
        %495 = vmatpush1.bf16.msra.mxu0 0
        %496 = vmatprep.subr.bf16.mxu0 0
        %497 = vmatpush1.bf16.msra.mxu0 0
        %498 = vmatprep.subr.bf16.mxu0 0
        %499 = vmatpush1.bf16.msra.mxu0 0
        %500 = vmatprep.subr.bf16.mxu0 0
        %501 = vmatpush1.bf16.msra.mxu0 0
        %502 = vmatprep.subr.bf16.mxu0 0
        %503 = vmatpush1.bf16.msra.mxu0 0
        %504 = vmatprep.subr.bf16.mxu0 0
        %505 = vmatpush1.bf16.msra.mxu0 0
        %506 = vmatprep.subr.bf16.mxu0 0
        %507 = vmatpush1.bf16.msra.mxu0 %v393
        %508 = vmatprep.subr.bf16.mxu0 0
        %509 = vmatpush2.bf16.msra.mxu0 0
        %510 = vmatprep.subr.bf16.mxu0 0
        %511 = vmatpush2.bf16.msra.mxu0 0
        %512 = vmatprep.subr.bf16.mxu0 0
        %513 = vmatpush2.bf16.msra.mxu0 0
        %514 = vmatprep.subr.bf16.mxu0 0
        %515 = vmatpush2.bf16.msra.mxu0 0
        %516 = vmatprep.subr.bf16.mxu0 0
        %517 = vmatpush2.bf16.msra.mxu0 0
        %518 = vmatprep.subr.bf16.mxu0 0
        %519 = vmatpush2.bf16.msra.mxu0 0
        %520 = vmatprep.subr.bf16.mxu0 0
        %521 = vmatpush2.bf16.msra.mxu0 0
        %522 = vmatprep.subr.bf16.mxu0 0
        %523 = vmatpush2.bf16.msra.mxu0 0
        %524 = vmatprep.mubr.bf16.mxu0 0
        %525 = vmatmul.mubr.bf16.gmra.mxu0 %v397
        %v526 = vpop.f32.mrf.mxu0
        %v527 = vadd.f32 0.0, %v526
        %v528 = vpop.f32.mrf.mxu0
        %v529 = vpop.f32.mrf.mxu0
        %v530 = vadd.f32 0.0, %v529
        %v531 = vpop.f32.mrf.mxu0
        %532 = vmatprep.mubr.bf16.mxu0 0
        %533 = vmatmul.mubr.bf16.gmra.mxu0 %v400
        %v534 = vpop.f32.mrf.mxu0
        %v535 = vadd.f32 0.0, %v534
        %v536 = vpop.f32.mrf.mxu0
        %v537 = vpop.f32.mrf.mxu0
        %v538 = vadd.f32 0.0, %v537
        %v539 = vpop.f32.mrf.mxu0
        %540 = vmatprep.mubr.bf16.mxu0 0
        %541 = vmatmul.mubr.bf16.gmra.mxu0 %v403
        %v542 = vpop.f32.mrf.mxu0
        %v543 = vadd.f32 0.0, %v542
        %v544 = vpop.f32.mrf.mxu0
        %v545 = vpop.f32.mrf.mxu0
        %v546 = vadd.f32 0.0, %v545
        %v547 = vpop.f32.mrf.mxu0
        %548 = vmatprep.mubr.bf16.mxu0 0
        %549 = vmatmul.mubr.bf16.gmra.mxu0 %v406
        %v550 = vpop.f32.mrf.mxu0
        %v551 = vadd.f32 0.0, %v550
        %v552 = vpop.f32.mrf.mxu0
        %v553 = vpop.f32.mrf.mxu0
        %v554 = vadd.f32 0.0, %v553
        %v555 = vpop.f32.mrf.mxu0
        %556 = vmatprep.mubr.bf16.mxu0 0
        %557 = vmatmul.mubr.bf16.gmra.mxu0 %v409
        %v558 = vpop.f32.mrf.mxu0
        %v559 = vadd.f32 0.0, %v558
        %v560 = vpop.f32.mrf.mxu0
        %v561 = vpop.f32.mrf.mxu0
        %v562 = vadd.f32 0.0, %v561
        %v563 = vpop.f32.mrf.mxu0
        %564 = vmatprep.mubr.bf16.mxu0 0
        %565 = vmatmul.mubr.bf16.gmra.mxu0 %v412
        %v566 = vpop.f32.mrf.mxu0
        %v567 = vadd.f32 0.0, %v566
        %v568 = vpop.f32.mrf.mxu0
        %v569 = vpop.f32.mrf.mxu0
        %v570 = vadd.f32 0.0, %v569
        %v571 = vpop.f32.mrf.mxu0
        %572 = vmatprep.mubr.bf16.mxu0 0
        %573 = vmatmul.mubr.bf16.gmra.mxu0 %v415
        %v574 = vpop.f32.mrf.mxu0
        %v575 = vadd.f32 0.0, %v574
        %v576 = vpop.f32.mrf.mxu0
        %v577 = vpop.f32.mrf.mxu0
        %v578 = vadd.f32 0.0, %v577
        %v579 = vpop.f32.mrf.mxu0
        %580 = vmatprep.mubr.bf16.mxu0 0
        %581 = vmatmul.mubr.bf16.gmra.mxu0 %v418
        %v582 = vpop.f32.mrf.mxu0
        %v583 = vadd.f32 0.0, %v582
        %v584 = vpop.f32.mrf.mxu0
        %v585 = vpop.f32.mrf.mxu0
        %v586 = vadd.f32 0.0, %v585
        %v587 = vpop.f32.mrf.mxu0
        %588 = vmatprep.mubr.bf16.mxu0 0
        %589 = vmatmul.mubr.bf16.gmra.mxu0 %v421
        %v590 = vpop.f32.mrf.mxu0
        %v591 = vadd.f32 0.0, %v590
        %v592 = vpop.f32.mrf.mxu0
        %v593 = vpop.f32.mrf.mxu0
        %v594 = vadd.f32 0.0, %v593
        %v595 = vpop.f32.mrf.mxu0
        %596 = vmatprep.mubr.bf16.mxu0 0
        %597 = vmatmul.mubr.bf16.gmra.mxu0 %v424
        %v598 = vpop.f32.mrf.mxu0
        %v599 = vadd.f32 0.0, %v598
        %v600 = vpop.f32.mrf.mxu0
        %v601 = vpop.f32.mrf.mxu0
        %v602 = vadd.f32 0.0, %v601
        %v603 = vpop.f32.mrf.mxu0
        %604 = vmatprep.mubr.bf16.mxu0 0
        %605 = vmatmul.mubr.bf16.gmra.mxu0 %v427
        %v606 = vpop.f32.mrf.mxu0
        %v607 = vadd.f32 0.0, %v606
        %v608 = vpop.f32.mrf.mxu0
        %v609 = vpop.f32.mrf.mxu0
        %v610 = vadd.f32 0.0, %v609
        %v611 = vpop.f32.mrf.mxu0
        %612 = vmatprep.mubr.bf16.mxu0 0
        %613 = vmatmul.mubr.bf16.gmra.mxu0 %v430
        %v614 = vpop.f32.mrf.mxu0
        %v615 = vadd.f32 0.0, %v614
        %v616 = vpop.f32.mrf.mxu0
        %v617 = vpop.f32.mrf.mxu0
        %v618 = vadd.f32 0.0, %v617
        %v619 = vpop.f32.mrf.mxu0
        %620 = vmatprep.mubr.bf16.mxu0 0
        %621 = vmatmul.mubr.bf16.gmra.mxu0 %v433
        %v622 = vpop.f32.mrf.mxu0
        %v623 = vadd.f32 0.0, %v622
        %v624 = vpop.f32.mrf.mxu0
        %v625 = vpop.f32.mrf.mxu0
        %v626 = vadd.f32 0.0, %v625
        %v627 = vpop.f32.mrf.mxu0
        %628 = vmatprep.mubr.bf16.mxu0 0
        %629 = vmatmul.mubr.bf16.gmra.mxu0 %v436
        %v630 = vpop.f32.mrf.mxu0
        %v631 = vadd.f32 0.0, %v630
        %v632 = vpop.f32.mrf.mxu0
        %v633 = vpop.f32.mrf.mxu0
        %v634 = vadd.f32 0.0, %v633
        %v635 = vpop.f32.mrf.mxu0
        %636 = vmatprep.mubr.bf16.mxu0 0
        %637 = vmatmul.mubr.bf16.gmra.mxu0 %v439
        %v638 = vpop.f32.mrf.mxu0
        %v639 = vadd.f32 0.0, %v638
        %v640 = vpop.f32.mrf.mxu0
        %v641 = vpop.f32.mrf.mxu0
        %v642 = vadd.f32 0.0, %v641
        %v643 = vpop.f32.mrf.mxu0
        %644 = vmatprep.mubr.bf16.mxu0 0
        %645 = vmatmul.mubr.bf16.gmra.mxu0 %v442
        %v646 = vpop.f32.mrf.mxu0
        %v647 = vadd.f32 0.0, %v646
        %v648 = vpop.f32.mrf.mxu0
        %v649 = vpop.f32.mrf.mxu0
        %v650 = vadd.f32 0.0, %v649
        %v651 = vpop.f32.mrf.mxu0
        %652 = vmatprep.mubr.bf16.mxu0 0
        %653 = vmatmul.mubr.bf16.gmra.mxu0 %v445
        %v654 = vpop.f32.mrf.mxu0
        %v655 = vadd.f32 0.0, %v654
        %v656 = vpop.f32.mrf.mxu0
        %v657 = vpop.f32.mrf.mxu0
        %v658 = vadd.f32 0.0, %v657
        %v659 = vpop.f32.mrf.mxu0
        %660 = vmatprep.mubr.bf16.mxu0 0
        %661 = vmatmul.mubr.bf16.gmra.mxu0 %v448
        %v662 = vpop.f32.mrf.mxu0
        %v663 = vadd.f32 0.0, %v662
        %v664 = vpop.f32.mrf.mxu0
        %v665 = vpop.f32.mrf.mxu0
        %v666 = vadd.f32 0.0, %v665
        %v667 = vpop.f32.mrf.mxu0
        %668 = vmatprep.mubr.bf16.mxu0 0
        %669 = vmatmul.mubr.bf16.gmra.mxu0 %v451
        %v670 = vpop.f32.mrf.mxu0
        %v671 = vadd.f32 0.0, %v670
        %v672 = vpop.f32.mrf.mxu0
        %v673 = vpop.f32.mrf.mxu0
        %v674 = vadd.f32 0.0, %v673
        %v675 = vpop.f32.mrf.mxu0
        %676 = vmatprep.mubr.bf16.mxu0 0
        %677 = vmatmul.mubr.bf16.gmra.mxu0 %v454
        %v678 = vpop.f32.mrf.mxu0
        %v679 = vadd.f32 0.0, %v678
        %v680 = vpop.f32.mrf.mxu0
        %v681 = vpop.f32.mrf.mxu0
        %v682 = vadd.f32 0.0, %v681
        %v683 = vpop.f32.mrf.mxu0
        %684 = vmatprep.mubr.bf16.mxu0 0
        %685 = vmatmul.mubr.bf16.gmra.mxu0 %v457
        %v686 = vpop.f32.mrf.mxu0
        %v687 = vadd.f32 0.0, %v686
        %v688 = vpop.f32.mrf.mxu0
        %v689 = vpop.f32.mrf.mxu0
        %v690 = vadd.f32 0.0, %v689
        %v691 = vpop.f32.mrf.mxu0
        %692 = vmatprep.mubr.bf16.mxu0 0
        %693 = vmatmul.mubr.bf16.gmra.mxu0 %v460
        %v694 = vpop.f32.mrf.mxu0
        %v695 = vadd.f32 0.0, %v694
        %v696 = vpop.f32.mrf.mxu0
        %v697 = vpop.f32.mrf.mxu0
        %v698 = vadd.f32 0.0, %v697
        %v699 = vpop.f32.mrf.mxu0
        %700 = vmatprep.mubr.bf16.mxu0 0
        %701 = vmatmul.mubr.bf16.gmra.mxu0 %v463
        %v702 = vpop.f32.mrf.mxu0
        %v703 = vadd.f32 0.0, %v702
        %v704 = vpop.f32.mrf.mxu0
        %v705 = vpop.f32.mrf.mxu0
        %v706 = vadd.f32 0.0, %v705
        %v707 = vpop.f32.mrf.mxu0
        %708 = vmatprep.mubr.bf16.mxu0 0
        %709 = vmatmul.mubr.bf16.gmra.mxu0 %v466
        %v710 = vpop.f32.mrf.mxu0
        %v711 = vadd.f32 0.0, %v710
        %v712 = vpop.f32.mrf.mxu0
        %v713 = vpop.f32.mrf.mxu0
        %v714 = vadd.f32 0.0, %v713
        %v715 = vpop.f32.mrf.mxu0
        %716 = vmatprep.mubr.bf16.mxu0 0
        %717 = vmatmul.mubr.bf16.gmra.mxu0 %v469
        %v718 = vpop.f32.mrf.mxu0
        %v719 = vadd.f32 0.0, %v718
        %v720 = vpop.f32.mrf.mxu0
        %v721 = vpop.f32.mrf.mxu0
        %v722 = vadd.f32 0.0, %v721
        %v723 = vpop.f32.mrf.mxu0
        %724 = vmatprep.mubr.bf16.mxu0 0
        %725 = vmatmul.mubr.bf16.gmra.mxu0 %v472
        %v726 = vpop.f32.mrf.mxu0
        %v727 = vadd.f32 0.0, %v726
        %v728 = vpop.f32.mrf.mxu0
        %v729 = vpop.f32.mrf.mxu0
        %v730 = vadd.f32 0.0, %v729
        %v731 = vpop.f32.mrf.mxu0
        %732 = vmatprep.mubr.bf16.mxu0 0
        %733 = vmatmul.mubr.bf16.gmra.mxu0 %v475
        %v734 = vpop.f32.mrf.mxu0
        %v735 = vadd.f32 0.0, %v734
        %v736 = vpop.f32.mrf.mxu0
        %v737 = vpop.f32.mrf.mxu0
        %v738 = vadd.f32 0.0, %v737
        %v739 = vpop.f32.mrf.mxu0
        %740 = vmatprep.mubr.bf16.mxu0 0
        %741 = vmatmul.mubr.bf16.gmra.mxu0 %v478
        %v742 = vpop.f32.mrf.mxu0
        %v743 = vadd.f32 0.0, %v742
        %v744 = vpop.f32.mrf.mxu0
        %v745 = vpop.f32.mrf.mxu0
        %v746 = vadd.f32 0.0, %v745
        %v747 = vpop.f32.mrf.mxu0
        %748 = vmatprep.mubr.bf16.mxu0 0
        %749 = vmatmul.mubr.bf16.gmra.mxu0 %v481
        %v750 = vpop.f32.mrf.mxu0
        %v751 = vadd.f32 0.0, %v750
        %v752 = vpop.f32.mrf.mxu0
        %v753 = vpop.f32.mrf.mxu0
        %v754 = vadd.f32 0.0, %v753
        %v755 = vpop.f32.mrf.mxu0
        %756 = vmatprep.mubr.bf16.mxu0 0
        %757 = vmatmul.mubr.bf16.gmra.mxu0 %v484
        %v758 = vpop.f32.mrf.mxu0
        %v759 = vadd.f32 0.0, %v758
        %v760 = vpop.f32.mrf.mxu0
        %v761 = vpop.f32.mrf.mxu0
        %v762 = vadd.f32 0.0, %v761
        %v763 = vpop.f32.mrf.mxu0
        %764 = vmatprep.mubr.bf16.mxu0 0
        %765 = vmatmul.mubr.bf16.gmra.mxu0 %v487
        %v766 = vpop.f32.mrf.mxu0
        %v767 = vadd.f32 0.0, %v766
        %v768 = vpop.f32.mrf.mxu0
        %v769 = vpop.f32.mrf.mxu0
        %v770 = vadd.f32 0.0, %v769
        %v771 = vpop.f32.mrf.mxu0
        %772 = vmatprep.mubr.bf16.mxu0 0
        %773 = vmatmul.mubr.bf16.gmra.mxu0 %v490
        %v774 = vpop.f32.mrf.mxu0
        %v775 = vadd.f32 0.0, %v774
        %v776 = vpop.f32.mrf.mxu0
        %v777 = vpop.f32.mrf.mxu0
        %v778 = vadd.f32 0.0, %v777
        %v779 = vpop.f32.mrf.mxu0
        %780 = vdwg.mxu0
        %vm781 = vcmp.ge.f32.partialorder %v527, 0.0
        %vm782 = vcmp.ge.f32.partialorder %v530, 0.0
        %vm783 = vcmp.ge.f32.partialorder %v535, 0.0
        %vm784 = vcmp.ge.f32.partialorder %v538, 0.0
        %vm785 = vcmp.ge.f32.partialorder %v543, 0.0
        %vm786 = vcmp.ge.f32.partialorder %v546, 0.0
        %vm787 = vcmp.ge.f32.partialorder %v551, 0.0
        %vm788 = vcmp.ge.f32.partialorder %v554, 0.0
        %vm789 = vcmp.ge.f32.partialorder %v559, 0.0
        %vm790 = vcmp.ge.f32.partialorder %v562, 0.0
        %vm791 = vcmp.ge.f32.partialorder %v567, 0.0
        %vm792 = vcmp.ge.f32.partialorder %v570, 0.0
        %vm793 = vcmp.ge.f32.partialorder %v575, 0.0
        %vm794 = vcmp.ge.f32.partialorder %v578, 0.0
        %vm795 = vcmp.ge.f32.partialorder %v583, 0.0
        %vm796 = vcmp.ge.f32.partialorder %v586, 0.0
        %vm797 = vcmp.ge.f32.partialorder %v591, 0.0
        %vm798 = vcmp.ge.f32.partialorder %v594, 0.0
        %vm799 = vcmp.ge.f32.partialorder %v599, 0.0
        %vm800 = vcmp.ge.f32.partialorder %v602, 0.0
        %vm801 = vcmp.ge.f32.partialorder %v607, 0.0
        %vm802 = vcmp.ge.f32.partialorder %v610, 0.0
        %vm803 = vcmp.ge.f32.partialorder %v615, 0.0
        %vm804 = vcmp.ge.f32.partialorder %v618, 0.0
        %vm805 = vcmp.ge.f32.partialorder %v623, 0.0
        %vm806 = vcmp.ge.f32.partialorder %v626, 0.0
        %vm807 = vcmp.ge.f32.partialorder %v631, 0.0
        %vm808 = vcmp.ge.f32.partialorder %v634, 0.0
        %vm809 = vcmp.ge.f32.partialorder %v639, 0.0
        %vm810 = vcmp.ge.f32.partialorder %v642, 0.0
        %vm811 = vcmp.ge.f32.partialorder %v647, 0.0
        %vm812 = vcmp.ge.f32.partialorder %v650, 0.0
        %vm813 = vcmp.ge.f32.partialorder %v655, 0.0
        %vm814 = vcmp.ge.f32.partialorder %v658, 0.0
        %vm815 = vcmp.ge.f32.partialorder %v663, 0.0
        %vm816 = vcmp.ge.f32.partialorder %v666, 0.0
        %vm817 = vcmp.ge.f32.partialorder %v671, 0.0
        %vm818 = vcmp.ge.f32.partialorder %v674, 0.0
        %vm819 = vcmp.ge.f32.partialorder %v679, 0.0
        %vm820 = vcmp.ge.f32.partialorder %v682, 0.0
        %vm821 = vcmp.ge.f32.partialorder %v687, 0.0
        %vm822 = vcmp.ge.f32.partialorder %v690, 0.0
        %vm823 = vcmp.ge.f32.partialorder %v695, 0.0
        %vm824 = vcmp.ge.f32.partialorder %v698, 0.0
        %vm825 = vcmp.ge.f32.partialorder %v703, 0.0
        %vm826 = vcmp.ge.f32.partialorder %v706, 0.0
        %vm827 = vcmp.ge.f32.partialorder %v711, 0.0
        %vm828 = vcmp.ge.f32.partialorder %v714, 0.0
        %vm829 = vcmp.ge.f32.partialorder %v719, 0.0
        %vm830 = vcmp.ge.f32.partialorder %v722, 0.0
        %vm831 = vcmp.ge.f32.partialorder %v727, 0.0
        %vm832 = vcmp.ge.f32.partialorder %v730, 0.0
        %vm833 = vcmp.ge.f32.partialorder %v735, 0.0
        %vm834 = vcmp.ge.f32.partialorder %v738, 0.0
        %vm835 = vcmp.ge.f32.partialorder %v743, 0.0
        %vm836 = vcmp.ge.f32.partialorder %v746, 0.0
        %vm837 = vcmp.ge.f32.partialorder %v751, 0.0
        %vm838 = vcmp.ge.f32.partialorder %v754, 0.0
        %vm839 = vcmp.ge.f32.partialorder %v759, 0.0
        %vm840 = vcmp.ge.f32.partialorder %v762, 0.0
        %vm841 = vcmp.ge.f32.partialorder %v767, 0.0
        %vm842 = vcmp.ge.f32.partialorder %v770, 0.0
        %vm843 = vcmp.ge.f32.partialorder %v775, 0.0
        %vm844 = vcmp.ge.f32.partialorder %v778, 0.0
        %v845 = vmul.f32 %v527, 0.2
        %v846 = vmul.f32 %v530, 0.2
        %v847 = vmul.f32 %v535, 0.2
        %v848 = vmul.f32 %v538, 0.2
        %v849 = vmul.f32 %v543, 0.2
        %v850 = vmul.f32 %v546, 0.2
        %v851 = vmul.f32 %v551, 0.2
        %v852 = vmul.f32 %v554, 0.2
        %v853 = vmul.f32 %v559, 0.2
        %v854 = vmul.f32 %v562, 0.2
        %v855 = vmul.f32 %v567, 0.2
        %v856 = vmul.f32 %v570, 0.2
        %v857 = vmul.f32 %v575, 0.2
        %v858 = vmul.f32 %v578, 0.2
        %v859 = vmul.f32 %v583, 0.2
        %v860 = vmul.f32 %v586, 0.2
        %v861 = vmul.f32 %v591, 0.2
        %v862 = vmul.f32 %v594, 0.2
        %v863 = vmul.f32 %v599, 0.2
        %v864 = vmul.f32 %v602, 0.2
        %v865 = vmul.f32 %v607, 0.2
        %v866 = vmul.f32 %v610, 0.2
        %v867 = vmul.f32 %v615, 0.2
        %v868 = vmul.f32 %v618, 0.2
        %v869 = vmul.f32 %v623, 0.2
        %v870 = vmul.f32 %v626, 0.2
        %v871 = vmul.f32 %v631, 0.2
        %v872 = vmul.f32 %v634, 0.2
        %v873 = vmul.f32 %v639, 0.2
        %v874 = vmul.f32 %v642, 0.2
        %v875 = vmul.f32 %v647, 0.2
        %v876 = vmul.f32 %v650, 0.2
        %v877 = vmul.f32 %v655, 0.2
        %v878 = vmul.f32 %v658, 0.2
        %v879 = vmul.f32 %v663, 0.2
        %v880 = vmul.f32 %v666, 0.2
        %v881 = vmul.f32 %v671, 0.2
        %v882 = vmul.f32 %v674, 0.2
        %v883 = vmul.f32 %v679, 0.2
        %v884 = vmul.f32 %v682, 0.2
        %v885 = vmul.f32 %v687, 0.2
        %v886 = vmul.f32 %v690, 0.2
        %v887 = vmul.f32 %v695, 0.2
        %v888 = vmul.f32 %v698, 0.2
        %v889 = vmul.f32 %v703, 0.2
        %v890 = vmul.f32 %v706, 0.2
        %v891 = vmul.f32 %v711, 0.2
        %v892 = vmul.f32 %v714, 0.2
        %v893 = vmul.f32 %v719, 0.2
        %v894 = vmul.f32 %v722, 0.2
        %v895 = vmul.f32 %v727, 0.2
        %v896 = vmul.f32 %v730, 0.2
        %v897 = vmul.f32 %v735, 0.2
        %v898 = vmul.f32 %v738, 0.2
        %v899 = vmul.f32 %v743, 0.2
        %v900 = vmul.f32 %v746, 0.2
        %v901 = vmul.f32 %v751, 0.2
        %v902 = vmul.f32 %v754, 0.2
        %v903 = vmul.f32 %v759, 0.2
        %v904 = vmul.f32 %v762, 0.2
        %v905 = vmul.f32 %v767, 0.2
        %v906 = vmul.f32 %v770, 0.2
        %v907 = vmul.f32 %v775, 0.2
        %v908 = vmul.f32 %v778, 0.2
        %v909 = vsel %vm781, %v527, %v845
        %v910 = vsel %vm782, %v530, %v846
        %v911 = vsel %vm783, %v535, %v847
        %v912 = vsel %vm784, %v538, %v848
        %v913 = vsel %vm785, %v543, %v849
        %v914 = vsel %vm786, %v546, %v850
        %v915 = vsel %vm787, %v551, %v851
        %v916 = vsel %vm788, %v554, %v852
        %v917 = vsel %vm789, %v559, %v853
        %v918 = vsel %vm790, %v562, %v854
        %v919 = vsel %vm791, %v567, %v855
        %v920 = vsel %vm792, %v570, %v856
        %v921 = vsel %vm793, %v575, %v857
        %v922 = vsel %vm794, %v578, %v858
        %v923 = vsel %vm795, %v583, %v859
        %v924 = vsel %vm796, %v586, %v860
        %v925 = vsel %vm797, %v591, %v861
        %v926 = vsel %vm798, %v594, %v862
        %v927 = vsel %vm799, %v599, %v863
        %v928 = vsel %vm800, %v602, %v864
        %v929 = vsel %vm801, %v607, %v865
        %v930 = vsel %vm802, %v610, %v866
        %v931 = vsel %vm803, %v615, %v867
        %v932 = vsel %vm804, %v618, %v868
        %v933 = vsel %vm805, %v623, %v869
        %v934 = vsel %vm806, %v626, %v870
        %v935 = vsel %vm807, %v631, %v871
        %v936 = vsel %vm808, %v634, %v872
        %v937 = vsel %vm809, %v639, %v873
        %v938 = vsel %vm810, %v642, %v874
        %v939 = vsel %vm811, %v647, %v875
        %v940 = vsel %vm812, %v650, %v876
        %v941 = vsel %vm813, %v655, %v877
        %v942 = vsel %vm814, %v658, %v878
        %v943 = vsel %vm815, %v663, %v879
        %v944 = vsel %vm816, %v666, %v880
        %v945 = vsel %vm817, %v671, %v881
        %v946 = vsel %vm818, %v674, %v882
        %v947 = vsel %vm819, %v679, %v883
        %v948 = vsel %vm820, %v682, %v884
        %v949 = vsel %vm821, %v687, %v885
        %v950 = vsel %vm822, %v690, %v886
        %v951 = vsel %vm823, %v695, %v887
        %v952 = vsel %vm824, %v698, %v888
        %v953 = vsel %vm825, %v703, %v889
        %v954 = vsel %vm826, %v706, %v890
        %v955 = vsel %vm827, %v711, %v891
        %v956 = vsel %vm828, %v714, %v892
        %v957 = vsel %vm829, %v719, %v893
        %v958 = vsel %vm830, %v722, %v894
        %v959 = vsel %vm831, %v727, %v895
        %v960 = vsel %vm832, %v730, %v896
        %v961 = vsel %vm833, %v735, %v897
        %v962 = vsel %vm834, %v738, %v898
        %v963 = vsel %vm835, %v743, %v899
        %v964 = vsel %vm836, %v746, %v900
        %v965 = vsel %vm837, %v751, %v901
        %v966 = vsel %vm838, %v754, %v902
        %v967 = vsel %vm839, %v759, %v903
        %v968 = vsel %vm840, %v762, %v904
        %v969 = vsel %vm841, %v767, %v905
        %v970 = vsel %vm842, %v770, %v906
        %v971 = vsel %vm843, %v775, %v907
        %v972 = vsel %vm844, %v778, %v908
        %v973 = vpack.c.bf16 %v910, %v909
        %v974 = vpack.c.bf16 %v912, %v911
        %v975 = vpack.c.bf16 %v914, %v913
        %v976 = vpack.c.bf16 %v916, %v915
        %v977 = vpack.c.bf16 %v918, %v917
        %v978 = vpack.c.bf16 %v920, %v919
        %v979 = vpack.c.bf16 %v922, %v921
        %v980 = vpack.c.bf16 %v924, %v923
        %v981 = vpack.c.bf16 %v926, %v925
        %v982 = vpack.c.bf16 %v928, %v927
        %v983 = vpack.c.bf16 %v930, %v929
        %v984 = vpack.c.bf16 %v932, %v931
        %v985 = vpack.c.bf16 %v934, %v933
        %v986 = vpack.c.bf16 %v936, %v935
        %v987 = vpack.c.bf16 %v938, %v937
        %v988 = vpack.c.bf16 %v940, %v939
        %v989 = vpack.c.bf16 %v942, %v941
        %v990 = vpack.c.bf16 %v944, %v943
        %v991 = vpack.c.bf16 %v946, %v945
        %v992 = vpack.c.bf16 %v948, %v947
        %v993 = vpack.c.bf16 %v950, %v949
        %v994 = vpack.c.bf16 %v952, %v951
        %v995 = vpack.c.bf16 %v954, %v953
        %v996 = vpack.c.bf16 %v956, %v955
        %v997 = vpack.c.bf16 %v958, %v957
        %v998 = vpack.c.bf16 %v960, %v959
        %v999 = vpack.c.bf16 %v962, %v961
        %v1000 = vpack.c.bf16 %v964, %v963
        %v1001 = vpack.c.bf16 %v966, %v965
        %v1002 = vpack.c.bf16 %v968, %v967
        %v1003 = vpack.c.bf16 %v970, %v969
        %v1004 = vpack.c.bf16 %v972, %v971
        %v1037 = vunpack.c.l.b16 %v973
        %v1038 = vunpack.c.h.b16 %v973
        %v1039 = vunpack.c.l.b16 %v974
        %v1040 = vunpack.c.h.b16 %v974
        %v1041 = vunpack.c.l.b16 %v975
        %v1042 = vunpack.c.h.b16 %v975
        %v1043 = vunpack.c.l.b16 %v976
        %v1044 = vunpack.c.h.b16 %v976
        %v1045 = vunpack.c.l.b16 %v977
        %v1046 = vunpack.c.h.b16 %v977
        %v1047 = vunpack.c.l.b16 %v978
        %v1048 = vunpack.c.h.b16 %v978
        %v1049 = vunpack.c.l.b16 %v979
        %v1050 = vunpack.c.h.b16 %v979
        %v1051 = vunpack.c.l.b16 %v980
        %v1052 = vunpack.c.h.b16 %v980
        %v1053 = vunpack.c.l.b16 %v981
        %v1054 = vunpack.c.h.b16 %v981
        %v1055 = vunpack.c.l.b16 %v982
        %v1056 = vunpack.c.h.b16 %v982
        %v1057 = vunpack.c.l.b16 %v983
        %v1058 = vunpack.c.h.b16 %v983
        %v1059 = vunpack.c.l.b16 %v984
        %v1060 = vunpack.c.h.b16 %v984
        %v1061 = vunpack.c.l.b16 %v985
        %v1062 = vunpack.c.h.b16 %v985
        %v1063 = vunpack.c.l.b16 %v986
        %v1064 = vunpack.c.h.b16 %v986
        %v1065 = vunpack.c.l.b16 %v987
        %v1066 = vunpack.c.h.b16 %v987
        %v1067 = vunpack.c.l.b16 %v988
        %v1068 = vunpack.c.h.b16 %v988
        %v1069 = vunpack.c.l.b16 %v989
        %v1070 = vunpack.c.h.b16 %v989
        %v1071 = vunpack.c.l.b16 %v990
        %v1072 = vunpack.c.h.b16 %v990
        %v1073 = vunpack.c.l.b16 %v991
        %v1074 = vunpack.c.h.b16 %v991
        %v1075 = vunpack.c.l.b16 %v992
        %v1076 = vunpack.c.h.b16 %v992
        %v1077 = vunpack.c.l.b16 %v993
        %v1078 = vunpack.c.h.b16 %v993
        %v1079 = vunpack.c.l.b16 %v994
        %v1080 = vunpack.c.h.b16 %v994
        %v1081 = vunpack.c.l.b16 %v995
        %v1082 = vunpack.c.h.b16 %v995
        %v1083 = vunpack.c.l.b16 %v996
        %v1084 = vunpack.c.h.b16 %v996
        %v1085 = vunpack.c.l.b16 %v997
        %v1086 = vunpack.c.h.b16 %v997
        %v1087 = vunpack.c.l.b16 %v998
        %v1088 = vunpack.c.h.b16 %v998
        %v1089 = vunpack.c.l.b16 %v999
        %v1090 = vunpack.c.h.b16 %v999
        %v1091 = vunpack.c.l.b16 %v1000
        %v1092 = vunpack.c.h.b16 %v1000
        %v1093 = vunpack.c.l.b16 %v1001
        %v1094 = vunpack.c.h.b16 %v1001
        %v1095 = vunpack.c.l.b16 %v1002
        %v1096 = vunpack.c.h.b16 %v1002
        %v1097 = vunpack.c.l.b16 %v1003
        %v1098 = vunpack.c.h.b16 %v1003
        %v1099 = vunpack.c.l.b16 %v1004
        %v1100 = vunpack.c.h.b16 %v1004
        %v1101 = vpack.c.b16 %v1037, %v1037
        %v1102 = vpack.c.b16 %v1038, %v1038
        %v1103 = vpack.c.b16 %v1039, %v1039
        %v1104 = vpack.c.b16 %v1040, %v1040
        %v1105 = vpack.c.b16 %v1041, %v1041
        %v1106 = vpack.c.b16 %v1042, %v1042
        %v1107 = vpack.c.b16 %v1043, %v1043
        %v1108 = vpack.c.b16 %v1044, %v1044
        %v1109 = vpack.c.b16 %v1045, %v1045
        %v1110 = vpack.c.b16 %v1046, %v1046
        %v1111 = vpack.c.b16 %v1047, %v1047
        %v1112 = vpack.c.b16 %v1048, %v1048
        %v1113 = vpack.c.b16 %v1049, %v1049
        %v1114 = vpack.c.b16 %v1050, %v1050
        %v1115 = vpack.c.b16 %v1051, %v1051
        %v1116 = vpack.c.b16 %v1052, %v1052
        %v1117 = vpack.c.b16 %v1053, %v1053
        %v1118 = vpack.c.b16 %v1054, %v1054
        %v1119 = vpack.c.b16 %v1055, %v1055
        %v1120 = vpack.c.b16 %v1056, %v1056
        %v1121 = vpack.c.b16 %v1057, %v1057
        %v1122 = vpack.c.b16 %v1058, %v1058
        %v1123 = vpack.c.b16 %v1059, %v1059
        %v1124 = vpack.c.b16 %v1060, %v1060
        %v1125 = vpack.c.b16 %v1061, %v1061
        %v1126 = vpack.c.b16 %v1062, %v1062
        %v1127 = vpack.c.b16 %v1063, %v1063
        %v1128 = vpack.c.b16 %v1064, %v1064
        %v1129 = vpack.c.b16 %v1065, %v1065
        %v1130 = vpack.c.b16 %v1066, %v1066
        %v1131 = vpack.c.b16 %v1067, %v1067
        %v1132 = vpack.c.b16 %v1068, %v1068
        %v1133 = vpack.c.b16 %v1069, %v1069
        %v1134 = vpack.c.b16 %v1070, %v1070
        %v1135 = vpack.c.b16 %v1071, %v1071
        %v1136 = vpack.c.b16 %v1072, %v1072
        %v1137 = vpack.c.b16 %v1073, %v1073
        %v1138 = vpack.c.b16 %v1074, %v1074
        %v1139 = vpack.c.b16 %v1075, %v1075
        %v1140 = vpack.c.b16 %v1076, %v1076
        %v1141 = vpack.c.b16 %v1077, %v1077
        %v1142 = vpack.c.b16 %v1078, %v1078
        %v1143 = vpack.c.b16 %v1079, %v1079
        %v1144 = vpack.c.b16 %v1080, %v1080
        %v1145 = vpack.c.b16 %v1081, %v1081
        %v1146 = vpack.c.b16 %v1082, %v1082
        %v1147 = vpack.c.b16 %v1083, %v1083
        %v1148 = vpack.c.b16 %v1084, %v1084
        %v1149 = vpack.c.b16 %v1085, %v1085
        %v1150 = vpack.c.b16 %v1086, %v1086
        %v1151 = vpack.c.b16 %v1087, %v1087
        %v1152 = vpack.c.b16 %v1088, %v1088
        %v1153 = vpack.c.b16 %v1089, %v1089
        %v1154 = vpack.c.b16 %v1090, %v1090
        %v1155 = vpack.c.b16 %v1091, %v1091
        %v1156 = vpack.c.b16 %v1092, %v1092
        %v1157 = vpack.c.b16 %v1093, %v1093
        %v1158 = vpack.c.b16 %v1094, %v1094
        %v1159 = vpack.c.b16 %v1095, %v1095
        %v1160 = vpack.c.b16 %v1096, %v1096
        %v1161 = vpack.c.b16 %v1097, %v1097
        %v1162 = vpack.c.b16 %v1098, %v1098
        %v1163 = vpack.c.b16 %v1099, %v1099
        %v1164 = vpack.c.b16 %v1100, %v1100
        %vm1229 = vcmask 519168
        %1230 = vst.msk [vmem:[%s160] sm:$0xf] %vm1229, %v1101
        %1231 = vst.msk [vmem:[%s160 + $0x4] sm:$0xf] %vm1229, %v1102
        %1232 = vst.msk [vmem:[%s160 + $0x8] sm:$0xf] %vm1229, %v1103
        %1233 = vst.msk [vmem:[%s160 + $0xc] sm:$0xf] %vm1229, %v1104
        %1234 = vst.msk [vmem:[%s160 + $0x10] sm:$0xf] %vm1229, %v1105
        %1235 = vst.msk [vmem:[%s160 + $0x14] sm:$0xf] %vm1229, %v1106
        %1236 = vst.msk [vmem:[%s160 + $0x18] sm:$0xf] %vm1229, %v1107
        %1237 = vst.msk [vmem:[%s160 + $0x1c] sm:$0xf] %vm1229, %v1108
        %1238 = vst.msk [vmem:[%s160 + $0x20] sm:$0xf] %vm1229, %v1109
        %1239 = vst.msk [vmem:[%s160 + $0x24] sm:$0xf] %vm1229, %v1110
        %1240 = vst.msk [vmem:[%s160 + $0x28] sm:$0xf] %vm1229, %v1111
        %1241 = vst.msk [vmem:[%s160 + $0x2c] sm:$0xf] %vm1229, %v1112
        %1242 = vst.msk [vmem:[%s160 + $0x30] sm:$0xf] %vm1229, %v1113
        %1243 = vst.msk [vmem:[%s160 + $0x34] sm:$0xf] %vm1229, %v1114
        %1244 = vst.msk [vmem:[%s160 + $0x38] sm:$0xf] %vm1229, %v1115
        %1245 = vst.msk [vmem:[%s160 + $0x3c] sm:$0xf] %vm1229, %v1116
        %1246 = vst.msk [vmem:[%s160 + $0x40] sm:$0xf] %vm1229, %v1117
        %1247 = vst.msk [vmem:[%s160 + $0x44] sm:$0xf] %vm1229, %v1118
        %1248 = vst.msk [vmem:[%s160 + $0x48] sm:$0xf] %vm1229, %v1119
        %1249 = vst.msk [vmem:[%s160 + $0x4c] sm:$0xf] %vm1229, %v1120
        %1250 = vst.msk [vmem:[%s160 + $0x50] sm:$0xf] %vm1229, %v1121
        %1251 = vst.msk [vmem:[%s160 + $0x54] sm:$0xf] %vm1229, %v1122
        %1252 = vst.msk [vmem:[%s160 + $0x58] sm:$0xf] %vm1229, %v1123
        %1253 = vst.msk [vmem:[%s160 + $0x5c] sm:$0xf] %vm1229, %v1124
        %1254 = vst.msk [vmem:[%s160 + $0x60] sm:$0xf] %vm1229, %v1125
        %1255 = vst.msk [vmem:[%s160 + $0x64] sm:$0xf] %vm1229, %v1126
        %1256 = vst.msk [vmem:[%s160 + $0x68] sm:$0xf] %vm1229, %v1127
        %1257 = vst.msk [vmem:[%s160 + $0x6c] sm:$0xf] %vm1229, %v1128
        %1258 = vst.msk [vmem:[%s160 + $0x70] sm:$0xf] %vm1229, %v1129
        %1259 = vst.msk [vmem:[%s160 + $0x74] sm:$0xf] %vm1229, %v1130
        %1260 = vst.msk [vmem:[%s160 + $0x78] sm:$0xf] %vm1229, %v1131
        %1261 = vst.msk [vmem:[%s160 + $0x7c] sm:$0xf] %vm1229, %v1132
        %1262 = vst.msk [vmem:[%s160 + $0x80] sm:$0xf] %vm1229, %v1133
        %1263 = vst.msk [vmem:[%s160 + $0x84] sm:$0xf] %vm1229, %v1134
        %1264 = vst.msk [vmem:[%s160 + $0x88] sm:$0xf] %vm1229, %v1135
        %1265 = vst.msk [vmem:[%s160 + $0x8c] sm:$0xf] %vm1229, %v1136
        %1266 = vst.msk [vmem:[%s160 + $0x90] sm:$0xf] %vm1229, %v1137
        %1267 = vst.msk [vmem:[%s160 + $0x94] sm:$0xf] %vm1229, %v1138
        %1268 = vst.msk [vmem:[%s160 + $0x98] sm:$0xf] %vm1229, %v1139
        %1269 = vst.msk [vmem:[%s160 + $0x9c] sm:$0xf] %vm1229, %v1140
        %1270 = vst.msk [vmem:[%s160 + $0xa0] sm:$0xf] %vm1229, %v1141
        %1271 = vst.msk [vmem:[%s160 + $0xa4] sm:$0xf] %vm1229, %v1142
        %1272 = vst.msk [vmem:[%s160 + $0xa8] sm:$0xf] %vm1229, %v1143
        %1273 = vst.msk [vmem:[%s160 + $0xac] sm:$0xf] %vm1229, %v1144
        %1274 = vst.msk [vmem:[%s160 + $0xb0] sm:$0xf] %vm1229, %v1145
        %1275 = vst.msk [vmem:[%s160 + $0xb4] sm:$0xf] %vm1229, %v1146
        %1276 = vst.msk [vmem:[%s160 + $0xb8] sm:$0xf] %vm1229, %v1147
        %1277 = vst.msk [vmem:[%s160 + $0xbc] sm:$0xf] %vm1229, %v1148
        %1278 = vst.msk [vmem:[%s160 + $0xc0] sm:$0xf] %vm1229, %v1149
        %1279 = vst.msk [vmem:[%s160 + $0xc4] sm:$0xf] %vm1229, %v1150
        %1280 = vst.msk [vmem:[%s160 + $0xc8] sm:$0xf] %vm1229, %v1151
        %1281 = vst.msk [vmem:[%s160 + $0xcc] sm:$0xf] %vm1229, %v1152
        %1282 = vst.msk [vmem:[%s160 + $0xd0] sm:$0xf] %vm1229, %v1153
        %1283 = vst.msk [vmem:[%s160 + $0xd4] sm:$0xf] %vm1229, %v1154
        %1284 = vst.msk [vmem:[%s160 + $0xd8] sm:$0xf] %vm1229, %v1155
        %1285 = vst.msk [vmem:[%s160 + $0xdc] sm:$0xf] %vm1229, %v1156
        %1286 = vst.msk [vmem:[%s160 + $0xe0] sm:$0xf] %vm1229, %v1157
        %1287 = vst.msk [vmem:[%s160 + $0xe4] sm:$0xf] %vm1229, %v1158
        %1288 = vst.msk [vmem:[%s160 + $0xe8] sm:$0xf] %vm1229, %v1159
        %1289 = vst.msk [vmem:[%s160 + $0xec] sm:$0xf] %vm1229, %v1160
        %1290 = vst.msk [vmem:[%s160 + $0xf0] sm:$0xf] %vm1229, %v1161
        %1291 = vst.msk [vmem:[%s160 + $0xf4] sm:$0xf] %vm1229, %v1162
        %1292 = vst.msk [vmem:[%s160 + $0xf8] sm:$0xf] %vm1229, %v1163
        %1293 = vst.msk [vmem:[%s160 + $0xfc] sm:$0xf] %vm1229, %v1164
        %s1294 = smul.u32 64, %s14
        %p1295 = scmp.lt.s32.totalorder %s1294, 255
        %s1296 = scalar_select %p1295, %s1294, 255
        %s1297 = smul.addr %s1296, 4
        %s1298 = scalar_lea.vmem %s2, %s1297
        // Predicated region
        $region33: #{critic_forward.5} parent=27 // pred_check
          %p1299 = pneg %p79
        $region34: #{critic_forward.5} parent=27 // pred_check_branch
          %1301 = sbr.rel (%p1299) target = $region36
        $region35: #{critic_forward.5} parent=27 // pred_region
          %s1302 = smul.u32 64, %s14
        $region36: #{critic_forward.5} parent=27 // pred_fallthru
          _
      $region28: #{critic_forward.5} parent=5 // pred_fallthru
        _
      %p1303 = scmp.le.s32.totalorder 2, %s9
      // Predicated region
      $region37: #{critic_forward.5} parent=5 // pred_check
        %p1304 = pneg %p1303
      $region38: #{critic_forward.5} parent=5 // pred_check_branch
        %1306 = sbr.rel (%p1304) target = $region40
      $region39: #{critic_forward.5} parent=5 // pred_region
        %s1307 = ssub.s32 %s9, 2
        // Predicated region
        $region41: #{critic_forward.5} parent=39 // pred_check
          %p1308 = pneg %p85
        $region42: #{critic_forward.5} parent=39 // pred_check_branch
          %1310 = sbr.rel (%p1308) target = $region44
        $region43: #{critic_forward.5} parent=39 // pred_region
          %s1311 = smul.u32 64, %s15
          %p1312 = scmp.lt.s32.totalorder %s1311, 255
          %s1313 = scalar_select %p1312, %s1311, 255
          %s1314 = smul.addr %s1313, 4
          %s1315 = scalar_lea.vmem %s2, %s1314
        $region44: #{critic_forward.5} parent=39 // pred_fallthru
          _
      $region40: #{critic_forward.5} parent=5 // pred_fallthru
        _
    $region6: #{critic_forward.5} parent=1 // loop_footer
      %s13 = sadd.s32 1, %s9
    $region7: #{critic_forward.5} parent=1 // loop_footer_branch
      %8 = sbr.rel target = $region3
    $region8: #{critic_forward.5} parent=1 // loop_exit
      _
    %1316 = vsyncpa [#allocation3], 1
    %s1317 = scalar_lea.sflag [#allocation3], 1
    %1318 = vsyncpa %s1317, 1

// kernel: critic_forward.6
$region0: #{critic_forward.6}
  #allocation0 [shape = 'u32[]', space=smem, size = 0x4, offset = 0x4, fixed_abs, tag = 'smem constant byte address 0x4 - core index']
  #allocation1 [shape = 'u32[144,128]{1,0:T(1,128)}', space=vmem, size = 0x12000, scoped, tag = 'internal scratch']
  #allocation2 [shape = 'f32[512,128]{1,0:T(8,128)}', space=vmem, size = 0x40000, scoped, tag = 'scratch operand']
  %s0 = inlined_call_operand.vmem [shape: bf16[512,1024], index: 0, kind: input, shape index: {}]
  %s1 = inlined_call_operand.vmem [shape: bf16[1024,128], index: 1, kind: input, shape index: {}]
  %s2 = inlined_call_operand.vmem [shape: f32[1,128], index: 2, kind: input, shape index: {}]
  %s3 = inlined_call_operand.vmem [shape: f32[1,128], index: 3, kind: input, shape index: {}]
  %s4 = inlined_call_operand.vmem [shape: bf16[512,128], index: 4, kind: output, shape index: {}]
  %s5 = sld [smem:[#allocation0]]
  $region34: #{critic_forward.6} parent=0
    _
  %s7 = ssub.s32 1, %s5
  %s8 = scalar_select 0, %s7, %s5
  // Predicated region
  $region2: #{critic_forward.6} parent=0 // pred_check
    _
  $region3: #{critic_forward.6} parent=0 // pred_check_branch
    %10 = sbr.rel (0) target = $region5
  $region4: #{critic_forward.6} parent=0 // pred_region
    _
  $region5: #{critic_forward.6} parent=0 // pred_fallthru
    _
  // Predicated region
  $region6: #{critic_forward.6} parent=0 // pred_check
    _
  $region7: #{critic_forward.6} parent=0 // pred_check_branch
    %12 = sbr.rel (0) target = $region9
  $region8: #{critic_forward.6} parent=0 // pred_region
    _
  $region9: #{critic_forward.6} parent=0 // pred_fallthru
    _
  // Predicated region
  $region10: #{critic_forward.6} parent=0 // pred_check
    _
  $region11: #{critic_forward.6} parent=0 // pred_check_branch
    %14 = sbr.rel (0) target = $region13
  $region12: #{critic_forward.6} parent=0 // pred_region
    _
  $region13: #{critic_forward.6} parent=0 // pred_fallthru
    _
  // Predicated region
  $region14: #{critic_forward.6} parent=0 // pred_check
    _
  $region15: #{critic_forward.6} parent=0 // pred_check_branch
    %16 = sbr.rel (0) target = $region17
  $region16: #{critic_forward.6} parent=0 // pred_region
    _
  $region17: #{critic_forward.6} parent=0 // pred_fallthru
    _
  %p18 = scmp.eq.s32.totalorder 0, 0
  // Predicated region
  $region18: #{critic_forward.6} parent=0 // pred_check
    %p19 = pneg %p18
  $region19: #{critic_forward.6} parent=0 // pred_check_branch
    %21 = sbr.rel (%p19) target = $region21
  $region20: #{critic_forward.6} parent=0 // pred_region
    %22 = vst [vmem:[#allocation2] sm:$0xff] 0.0
    %23 = vst [vmem:[#allocation2 + $0x8] sm:$0xff] 0.0
    %24 = vst [vmem:[#allocation2 + $0x10] sm:$0xff] 0.0
    %25 = vst [vmem:[#allocation2 + $0x18] sm:$0xff] 0.0
    %26 = vst [vmem:[#allocation2 + $0x20] sm:$0xff] 0.0
    %27 = vst [vmem:[#allocation2 + $0x28] sm:$0xff] 0.0
    %28 = vst [vmem:[#allocation2 + $0x30] sm:$0xff] 0.0
    %29 = vst [vmem:[#allocation2 + $0x38] sm:$0xff] 0.0
    %30 = vst [vmem:[#allocation2 + $0x40] sm:$0xff] 0.0
    %31 = vst [vmem:[#allocation2 + $0x48] sm:$0xff] 0.0
    %32 = vst [vmem:[#allocation2 + $0x50] sm:$0xff] 0.0
    %33 = vst [vmem:[#allocation2 + $0x58] sm:$0xff] 0.0
    %34 = vst [vmem:[#allocation2 + $0x60] sm:$0xff] 0.0
    %35 = vst [vmem:[#allocation2 + $0x68] sm:$0xff] 0.0
    %36 = vst [vmem:[#allocation2 + $0x70] sm:$0xff] 0.0
    %37 = vst [vmem:[#allocation2 + $0x78] sm:$0xff] 0.0
    %38 = vst [vmem:[#allocation2 + $0x80] sm:$0xff] 0.0
    %39 = vst [vmem:[#allocation2 + $0x88] sm:$0xff] 0.0
    %40 = vst [vmem:[#allocation2 + $0x90] sm:$0xff] 0.0
    %41 = vst [vmem:[#allocation2 + $0x98] sm:$0xff] 0.0
    %42 = vst [vmem:[#allocation2 + $0xa0] sm:$0xff] 0.0
    %43 = vst [vmem:[#allocation2 + $0xa8] sm:$0xff] 0.0
    %44 = vst [vmem:[#allocation2 + $0xb0] sm:$0xff] 0.0
    %45 = vst [vmem:[#allocation2 + $0xb8] sm:$0xff] 0.0
    %46 = vst [vmem:[#allocation2 + $0xc0] sm:$0xff] 0.0
    %47 = vst [vmem:[#allocation2 + $0xc8] sm:$0xff] 0.0
    %48 = vst [vmem:[#allocation2 + $0xd0] sm:$0xff] 0.0
    %49 = vst [vmem:[#allocation2 + $0xd8] sm:$0xff] 0.0
    %50 = vst [vmem:[#allocation2 + $0xe0] sm:$0xff] 0.0
    %51 = vst [vmem:[#allocation2 + $0xe8] sm:$0xff] 0.0
    %52 = vst [vmem:[#allocation2 + $0xf0] sm:$0xff] 0.0
    %53 = vst [vmem:[#allocation2 + $0xf8] sm:$0xff] 0.0
    %54 = vst [vmem:[#allocation2 + $0x100] sm:$0xff] 0.0
    %55 = vst [vmem:[#allocation2 + $0x108] sm:$0xff] 0.0
    %56 = vst [vmem:[#allocation2 + $0x110] sm:$0xff] 0.0
    %57 = vst [vmem:[#allocation2 + $0x118] sm:$0xff] 0.0
    %58 = vst [vmem:[#allocation2 + $0x120] sm:$0xff] 0.0
    %59 = vst [vmem:[#allocation2 + $0x128] sm:$0xff] 0.0
    %60 = vst [vmem:[#allocation2 + $0x130] sm:$0xff] 0.0
    %61 = vst [vmem:[#allocation2 + $0x138] sm:$0xff] 0.0
    %62 = vst [vmem:[#allocation2 + $0x140] sm:$0xff] 0.0
    %63 = vst [vmem:[#allocation2 + $0x148] sm:$0xff] 0.0
    %64 = vst [vmem:[#allocation2 + $0x150] sm:$0xff] 0.0
    %65 = vst [vmem:[#allocation2 + $0x158] sm:$0xff] 0.0
    %66 = vst [vmem:[#allocation2 + $0x160] sm:$0xff] 0.0
    %67 = vst [vmem:[#allocation2 + $0x168] sm:$0xff] 0.0
    %68 = vst [vmem:[#allocation2 + $0x170] sm:$0xff] 0.0
    %69 = vst [vmem:[#allocation2 + $0x178] sm:$0xff] 0.0
    %70 = vst [vmem:[#allocation2 + $0x180] sm:$0xff] 0.0
    %71 = vst [vmem:[#allocation2 + $0x188] sm:$0xff] 0.0
    %72 = vst [vmem:[#allocation2 + $0x190] sm:$0xff] 0.0
    %73 = vst [vmem:[#allocation2 + $0x198] sm:$0xff] 0.0
    %74 = vst [vmem:[#allocation2 + $0x1a0] sm:$0xff] 0.0
    %75 = vst [vmem:[#allocation2 + $0x1a8] sm:$0xff] 0.0
    %76 = vst [vmem:[#allocation2 + $0x1b0] sm:$0xff] 0.0
    %77 = vst [vmem:[#allocation2 + $0x1b8] sm:$0xff] 0.0
    %78 = vst [vmem:[#allocation2 + $0x1c0] sm:$0xff] 0.0
    %79 = vst [vmem:[#allocation2 + $0x1c8] sm:$0xff] 0.0
    %80 = vst [vmem:[#allocation2 + $0x1d0] sm:$0xff] 0.0
    %81 = vst [vmem:[#allocation2 + $0x1d8] sm:$0xff] 0.0
    %82 = vst [vmem:[#allocation2 + $0x1e0] sm:$0xff] 0.0
    %83 = vst [vmem:[#allocation2 + $0x1e8] sm:$0xff] 0.0
    %84 = vst [vmem:[#allocation2 + $0x1f0] sm:$0xff] 0.0
    %85 = vst [vmem:[#allocation2 + $0x1f8] sm:$0xff] 0.0
  $region21: #{critic_forward.6} parent=0 // pred_fallthru
    _
  %v86 = vld [vmem:[#allocation2] sm:$0xff]
  %v87 = vld [vmem:[#allocation2 + $0x8] sm:$0xff]
  %v88 = vld [vmem:[#allocation2 + $0x10] sm:$0xff]
  %v89 = vld [vmem:[#allocation2 + $0x18] sm:$0xff]
  %v90 = vld [vmem:[#allocation2 + $0x20] sm:$0xff]
  %v91 = vld [vmem:[#allocation2 + $0x28] sm:$0xff]
  %v92 = vld [vmem:[#allocation2 + $0x30] sm:$0xff]
  %v93 = vld [vmem:[#allocation2 + $0x38] sm:$0xff]
  %v94 = vld [vmem:[#allocation2 + $0x40] sm:$0xff]
  %v95 = vld [vmem:[#allocation2 + $0x48] sm:$0xff]
  %v96 = vld [vmem:[#allocation2 + $0x50] sm:$0xff]
  %v97 = vld [vmem:[#allocation2 + $0x58] sm:$0xff]
  %v98 = vld [vmem:[#allocation2 + $0x60] sm:$0xff]
  %v99 = vld [vmem:[#allocation2 + $0x68] sm:$0xff]
  %v100 = vld [vmem:[#allocation2 + $0x70] sm:$0xff]
  %v101 = vld [vmem:[#allocation2 + $0x78] sm:$0xff]
  %v102 = vld [vmem:[#allocation2 + $0x80] sm:$0xff]
  %v103 = vld [vmem:[#allocation2 + $0x88] sm:$0xff]
  %v104 = vld [vmem:[#allocation2 + $0x90] sm:$0xff]
  %v105 = vld [vmem:[#allocation2 + $0x98] sm:$0xff]
  %v106 = vld [vmem:[#allocation2 + $0xa0] sm:$0xff]
  %v107 = vld [vmem:[#allocation2 + $0xa8] sm:$0xff]
  %v108 = vld [vmem:[#allocation2 + $0xb0] sm:$0xff]
  %v109 = vld [vmem:[#allocation2 + $0xb8] sm:$0xff]
  %v110 = vld [vmem:[#allocation2 + $0xc0] sm:$0xff]
  %v111 = vld [vmem:[#allocation2 + $0xc8] sm:$0xff]
  %v112 = vld [vmem:[#allocation2 + $0xd0] sm:$0xff]
  %v113 = vld [vmem:[#allocation2 + $0xd8] sm:$0xff]
  %v114 = vld [vmem:[#allocation2 + $0xe0] sm:$0xff]
  %v115 = vld [vmem:[#allocation2 + $0xe8] sm:$0xff]
  %v116 = vld [vmem:[#allocation2 + $0xf0] sm:$0xff]
  %v117 = vld [vmem:[#allocation2 + $0xf8] sm:$0xff]
  %v118 = vld [vmem:[#allocation2 + $0x100] sm:$0xff]
  %v119 = vld [vmem:[#allocation2 + $0x108] sm:$0xff]
  %v120 = vld [vmem:[#allocation2 + $0x110] sm:$0xff]
  %v121 = vld [vmem:[#allocation2 + $0x118] sm:$0xff]
  %v122 = vld [vmem:[#allocation2 + $0x120] sm:$0xff]
  %v123 = vld [vmem:[#allocation2 + $0x128] sm:$0xff]
  %v124 = vld [vmem:[#allocation2 + $0x130] sm:$0xff]
  %v125 = vld [vmem:[#allocation2 + $0x138] sm:$0xff]
  %v126 = vld [vmem:[#allocation2 + $0x140] sm:$0xff]
  %v127 = vld [vmem:[#allocation2 + $0x148] sm:$0xff]
  %v128 = vld [vmem:[#allocation2 + $0x150] sm:$0xff]
  %v129 = vld [vmem:[#allocation2 + $0x158] sm:$0xff]
  %v130 = vld [vmem:[#allocation2 + $0x160] sm:$0xff]
  %v131 = vld [vmem:[#allocation2 + $0x168] sm:$0xff]
  %v132 = vld [vmem:[#allocation2 + $0x170] sm:$0xff]
  %v133 = vld [vmem:[#allocation2 + $0x178] sm:$0xff]
  %v134 = vld [vmem:[#allocation2 + $0x180] sm:$0xff]
  %v135 = vld [vmem:[#allocation2 + $0x188] sm:$0xff]
  %v136 = vld [vmem:[#allocation2 + $0x190] sm:$0xff]
  %v137 = vld [vmem:[#allocation2 + $0x198] sm:$0xff]
  %v138 = vld [vmem:[#allocation2 + $0x1a0] sm:$0xff]
  %v139 = vld [vmem:[#allocation2 + $0x1a8] sm:$0xff]
  %v140 = vld [vmem:[#allocation2 + $0x1b0] sm:$0xff]
  %v141 = vld [vmem:[#allocation2 + $0x1b8] sm:$0xff]
  %v142 = vld [vmem:[#allocation2 + $0x1c0] sm:$0xff]
  %v143 = vld [vmem:[#allocation2 + $0x1c8] sm:$0xff]
  %v144 = vld [vmem:[#allocation2 + $0x1d0] sm:$0xff]
  %v145 = vld [vmem:[#allocation2 + $0x1d8] sm:$0xff]
  %v146 = vld [vmem:[#allocation2 + $0x1e0] sm:$0xff]
  %v147 = vld [vmem:[#allocation2 + $0x1e8] sm:$0xff]
  %v148 = vld [vmem:[#allocation2 + $0x1f0] sm:$0xff]
  %v149 = vld [vmem:[#allocation2 + $0x1f8] sm:$0xff]
  %v150 = vld [vmem:[%s0] sm:$0xff]
  %v151 = vld [vmem:[%s0 + $0x8] sm:$0xff]
  %v152 = vld [vmem:[%s0 + $0x10] sm:$0xff]
  %v153 = vld [vmem:[%s0 + $0x18] sm:$0xff]
  %v154 = vld [vmem:[%s0 + $0x20] sm:$0xff]
  %v155 = vld [vmem:[%s0 + $0x28] sm:$0xff]
  %v156 = vld [vmem:[%s0 + $0x30] sm:$0xff]
  %v157 = vld [vmem:[%s0 + $0x38] sm:$0xff]
  %v158 = vld [vmem:[%s0 + $0x40] sm:$0xff]
  %v159 = vld [vmem:[%s0 + $0x48] sm:$0xff]
  %v160 = vld [vmem:[%s0 + $0x50] sm:$0xff]
  %v161 = vld [vmem:[%s0 + $0x58] sm:$0xff]
  %v162 = vld [vmem:[%s0 + $0x60] sm:$0xff]
  %v163 = vld [vmem:[%s0 + $0x68] sm:$0xff]
  %v164 = vld [vmem:[%s0 + $0x70] sm:$0xff]
  %v165 = vld [vmem:[%s0 + $0x78] sm:$0xff]
  %v166 = vld [vmem:[%s0 + $0x80] sm:$0xff]
  %v167 = vld [vmem:[%s0 + $0x88] sm:$0xff]
  %v168 = vld [vmem:[%s0 + $0x90] sm:$0xff]
  %v169 = vld [vmem:[%s0 + $0x98] sm:$0xff]
  %v170 = vld [vmem:[%s0 + $0xa0] sm:$0xff]
  %v171 = vld [vmem:[%s0 + $0xa8] sm:$0xff]
  %v172 = vld [vmem:[%s0 + $0xb0] sm:$0xff]
  %v173 = vld [vmem:[%s0 + $0xb8] sm:$0xff]
  %v174 = vld [vmem:[%s0 + $0xc0] sm:$0xff]
  %v175 = vld [vmem:[%s0 + $0xc8] sm:$0xff]
  %v176 = vld [vmem:[%s0 + $0xd0] sm:$0xff]
  %v177 = vld [vmem:[%s0 + $0xd8] sm:$0xff]
  %v178 = vld [vmem:[%s0 + $0xe0] sm:$0xff]
  %v179 = vld [vmem:[%s0 + $0xe8] sm:$0xff]
  %v180 = vld [vmem:[%s0 + $0xf0] sm:$0xff]
  %v181 = vld [vmem:[%s0 + $0xf8] sm:$0xff]
  %v182 = vld [vmem:[%s0 + $0x100] sm:$0xff]
  %v183 = vld [vmem:[%s0 + $0x108] sm:$0xff]
  %v184 = vld [vmem:[%s0 + $0x110] sm:$0xff]
  %v185 = vld [vmem:[%s0 + $0x118] sm:$0xff]
  %v186 = vld [vmem:[%s0 + $0x120] sm:$0xff]
  %v187 = vld [vmem:[%s0 + $0x128] sm:$0xff]
  %v188 = vld [vmem:[%s0 + $0x130] sm:$0xff]
  %v189 = vld [vmem:[%s0 + $0x138] sm:$0xff]
  %v190 = vld [vmem:[%s0 + $0x140] sm:$0xff]
  %v191 = vld [vmem:[%s0 + $0x148] sm:$0xff]
  %v192 = vld [vmem:[%s0 + $0x150] sm:$0xff]
  %v193 = vld [vmem:[%s0 + $0x158] sm:$0xff]
  %v194 = vld [vmem:[%s0 + $0x160] sm:$0xff]
  %v195 = vld [vmem:[%s0 + $0x168] sm:$0xff]
  %v196 = vld [vmem:[%s0 + $0x170] sm:$0xff]
  %v197 = vld [vmem:[%s0 + $0x178] sm:$0xff]
  %v198 = vld [vmem:[%s0 + $0x180] sm:$0xff]
  %v199 = vld [vmem:[%s0 + $0x188] sm:$0xff]
  %v200 = vld [vmem:[%s0 + $0x190] sm:$0xff]
  %v201 = vld [vmem:[%s0 + $0x198] sm:$0xff]
  %v202 = vld [vmem:[%s0 + $0x1a0] sm:$0xff]
  %v203 = vld [vmem:[%s0 + $0x1a8] sm:$0xff]
  %v204 = vld [vmem:[%s0 + $0x1b0] sm:$0xff]
  %v205 = vld [vmem:[%s0 + $0x1b8] sm:$0xff]
  %v206 = vld [vmem:[%s0 + $0x1c0] sm:$0xff]
  %v207 = vld [vmem:[%s0 + $0x1c8] sm:$0xff]
  %v208 = vld [vmem:[%s0 + $0x1d0] sm:$0xff]
  %v209 = vld [vmem:[%s0 + $0x1d8] sm:$0xff]
  %v210 = vld [vmem:[%s0 + $0x1e0] sm:$0xff]
  %v211 = vld [vmem:[%s0 + $0x1e8] sm:$0xff]
  %v212 = vld [vmem:[%s0 + $0x1f0] sm:$0xff]
  %v213 = vld [vmem:[%s0 + $0x1f8] sm:$0xff]
  %v214 = vld [vmem:[%s0 + $0x200] sm:$0xff]
  %v215 = vld [vmem:[%s0 + $0x208] sm:$0xff]
  %v216 = vld [vmem:[%s0 + $0x210] sm:$0xff]
  %v217 = vld [vmem:[%s0 + $0x218] sm:$0xff]
  %v218 = vld [vmem:[%s0 + $0x220] sm:$0xff]
  %v219 = vld [vmem:[%s0 + $0x228] sm:$0xff]
  %v220 = vld [vmem:[%s0 + $0x230] sm:$0xff]
  %v221 = vld [vmem:[%s0 + $0x238] sm:$0xff]
  %v222 = vld [vmem:[%s0 + $0x240] sm:$0xff]
  %v223 = vld [vmem:[%s0 + $0x248] sm:$0xff]
  %v224 = vld [vmem:[%s0 + $0x250] sm:$0xff]
  %v225 = vld [vmem:[%s0 + $0x258] sm:$0xff]
  %v226 = vld [vmem:[%s0 + $0x260] sm:$0xff]
  %v227 = vld [vmem:[%s0 + $0x268] sm:$0xff]
  %v228 = vld [vmem:[%s0 + $0x270] sm:$0xff]
  %v229 = vld [vmem:[%s0 + $0x278] sm:$0xff]
  %v230 = vld [vmem:[%s0 + $0x280] sm:$0xff]
  %v231 = vld [vmem:[%s0 + $0x288] sm:$0xff]
  %v232 = vld [vmem:[%s0 + $0x290] sm:$0xff]
  %v233 = vld [vmem:[%s0 + $0x298] sm:$0xff]
  %v234 = vld [vmem:[%s0 + $0x2a0] sm:$0xff]
  %v235 = vld [vmem:[%s0 + $0x2a8] sm:$0xff]
  %v236 = vld [vmem:[%s0 + $0x2b0] sm:$0xff]
  %v237 = vld [vmem:[%s0 + $0x2b8] sm:$0xff]
  %v238 = vld [vmem:[%s0 + $0x2c0] sm:$0xff]
  %v239 = vld [vmem:[%s0 + $0x2c8] sm:$0xff]
  %v240 = vld [vmem:[%s0 + $0x2d0] sm:$0xff]
  %v241 = vld [vmem:[%s0 + $0x2d8] sm:$0xff]
  %v242 = vld [vmem:[%s0 + $0x2e0] sm:$0xff]
  %v243 = vld [vmem:[%s0 + $0x2e8] sm:$0xff]
  %v244 = vld [vmem:[%s0 + $0x2f0] sm:$0xff]
  %v245 = vld [vmem:[%s0 + $0x2f8] sm:$0xff]
  %v246 = vld [vmem:[%s0 + $0x300] sm:$0xff]
  %v247 = vld [vmem:[%s0 + $0x308] sm:$0xff]
  %v248 = vld [vmem:[%s0 + $0x310] sm:$0xff]
  %v249 = vld [vmem:[%s0 + $0x318] sm:$0xff]
  %v250 = vld [vmem:[%s0 + $0x320] sm:$0xff]
  %v251 = vld [vmem:[%s0 + $0x328] sm:$0xff]
  %v252 = vld [vmem:[%s0 + $0x330] sm:$0xff]
  %v253 = vld [vmem:[%s0 + $0x338] sm:$0xff]
  %v254 = vld [vmem:[%s0 + $0x340] sm:$0xff]
  %v255 = vld [vmem:[%s0 + $0x348] sm:$0xff]
  %v256 = vld [vmem:[%s0 + $0x350] sm:$0xff]
  %v257 = vld [vmem:[%s0 + $0x358] sm:$0xff]
  %v258 = vld [vmem:[%s0 + $0x360] sm:$0xff]
  %v259 = vld [vmem:[%s0 + $0x368] sm:$0xff]
  %v260 = vld [vmem:[%s0 + $0x370] sm:$0xff]
  %v261 = vld [vmem:[%s0 + $0x378] sm:$0xff]
  %v262 = vld [vmem:[%s0 + $0x380] sm:$0xff]
  %v263 = vld [vmem:[%s0 + $0x388] sm:$0xff]
  %v264 = vld [vmem:[%s0 + $0x390] sm:$0xff]
  %v265 = vld [vmem:[%s0 + $0x398] sm:$0xff]
  %v266 = vld [vmem:[%s0 + $0x3a0] sm:$0xff]
  %v267 = vld [vmem:[%s0 + $0x3a8] sm:$0xff]
  %v268 = vld [vmem:[%s0 + $0x3b0] sm:$0xff]
  %v269 = vld [vmem:[%s0 + $0x3b8] sm:$0xff]
  %v270 = vld [vmem:[%s0 + $0x3c0] sm:$0xff]
  %v271 = vld [vmem:[%s0 + $0x3c8] sm:$0xff]
  %v272 = vld [vmem:[%s0 + $0x3d0] sm:$0xff]
  %v273 = vld [vmem:[%s0 + $0x3d8] sm:$0xff]
  %v274 = vld [vmem:[%s0 + $0x3e0] sm:$0xff]
  %v275 = vld [vmem:[%s0 + $0x3e8] sm:$0xff]
  %v276 = vld [vmem:[%s0 + $0x3f0] sm:$0xff]
  %v277 = vld [vmem:[%s0 + $0x3f8] sm:$0xff]
  %v278 = vld [vmem:[%s0 + $0x400] sm:$0xff]
  %v279 = vld [vmem:[%s0 + $0x408] sm:$0xff]
  %v280 = vld [vmem:[%s0 + $0x410] sm:$0xff]
  %v281 = vld [vmem:[%s0 + $0x418] sm:$0xff]
  %v282 = vld [vmem:[%s0 + $0x420] sm:$0xff]
  %v283 = vld [vmem:[%s0 + $0x428] sm:$0xff]
  %v284 = vld [vmem:[%s0 + $0x430] sm:$0xff]
  %v285 = vld [vmem:[%s0 + $0x438] sm:$0xff]
  %v286 = vld [vmem:[%s0 + $0x440] sm:$0xff]
  %v287 = vld [vmem:[%s0 + $0x448] sm:$0xff]
  %v288 = vld [vmem:[%s0 + $0x450] sm:$0xff]
  %v289 = vld [vmem:[%s0 + $0x458] sm:$0xff]
  %v290 = vld [vmem:[%s0 + $0x460] sm:$0xff]
  %v291 = vld [vmem:[%s0 + $0x468] sm:$0xff]
  %v292 = vld [vmem:[%s0 + $0x470] sm:$0xff]
  %v293 = vld [vmem:[%s0 + $0x478] sm:$0xff]
  %v294 = vld [vmem:[%s0 + $0x480] sm:$0xff]
  %v295 = vld [vmem:[%s0 + $0x488] sm:$0xff]
  %v296 = vld [vmem:[%s0 + $0x490] sm:$0xff]
  %v297 = vld [vmem:[%s0 + $0x498] sm:$0xff]
  %v298 = vld [vmem:[%s0 + $0x4a0] sm:$0xff]
  %v299 = vld [vmem:[%s0 + $0x4a8] sm:$0xff]
  %v300 = vld [vmem:[%s0 + $0x4b0] sm:$0xff]
  %v301 = vld [vmem:[%s0 + $0x4b8] sm:$0xff]
  %v302 = vld [vmem:[%s0 + $0x4c0] sm:$0xff]
  %v303 = vld [vmem:[%s0 + $0x4c8] sm:$0xff]
  %v304 = vld [vmem:[%s0 + $0x4d0] sm:$0xff]
  %v305 = vld [vmem:[%s0 + $0x4d8] sm:$0xff]
  %v306 = vld [vmem:[%s0 + $0x4e0] sm:$0xff]
  %v307 = vld [vmem:[%s0 + $0x4e8] sm:$0xff]
  %v308 = vld [vmem:[%s0 + $0x4f0] sm:$0xff]
  %v309 = vld [vmem:[%s0 + $0x4f8] sm:$0xff]
  %v310 = vld [vmem:[%s0 + $0x500] sm:$0xff]
  %v311 = vld [vmem:[%s0 + $0x508] sm:$0xff]
  %v312 = vld [vmem:[%s0 + $0x510] sm:$0xff]
  %v313 = vld [vmem:[%s0 + $0x518] sm:$0xff]
  %v314 = vld [vmem:[%s0 + $0x520] sm:$0xff]
  %v315 = vld [vmem:[%s0 + $0x528] sm:$0xff]
  %v316 = vld [vmem:[%s0 + $0x530] sm:$0xff]
  %v317 = vld [vmem:[%s0 + $0x538] sm:$0xff]
  %v318 = vld [vmem:[%s0 + $0x540] sm:$0xff]
  %v319 = vld [vmem:[%s0 + $0x548] sm:$0xff]
  %v320 = vld [vmem:[%s0 + $0x550] sm:$0xff]
  %v321 = vld [vmem:[%s0 + $0x558] sm:$0xff]
  %v322 = vld [vmem:[%s0 + $0x560] sm:$0xff]
  %v323 = vld [vmem:[%s0 + $0x568] sm:$0xff]
  %v324 = vld [vmem:[%s0 + $0x570] sm:$0xff]
  %v325 = vld [vmem:[%s0 + $0x578] sm:$0xff]
  %v326 = vld [vmem:[%s0 + $0x580] sm:$0xff]
  %v327 = vld [vmem:[%s0 + $0x588] sm:$0xff]
  %v328 = vld [vmem:[%s0 + $0x590] sm:$0xff]
  %v329 = vld [vmem:[%s0 + $0x598] sm:$0xff]
  %v330 = vld [vmem:[%s0 + $0x5a0] sm:$0xff]
  %v331 = vld [vmem:[%s0 + $0x5a8] sm:$0xff]
  %v332 = vld [vmem:[%s0 + $0x5b0] sm:$0xff]
  %v333 = vld [vmem:[%s0 + $0x5b8] sm:$0xff]
  %v334 = vld [vmem:[%s0 + $0x5c0] sm:$0xff]
  %v335 = vld [vmem:[%s0 + $0x5c8] sm:$0xff]
  %v336 = vld [vmem:[%s0 + $0x5d0] sm:$0xff]
  %v337 = vld [vmem:[%s0 + $0x5d8] sm:$0xff]
  %v338 = vld [vmem:[%s0 + $0x5e0] sm:$0xff]
  %v339 = vld [vmem:[%s0 + $0x5e8] sm:$0xff]
  %v340 = vld [vmem:[%s0 + $0x5f0] sm:$0xff]
  %v341 = vld [vmem:[%s0 + $0x5f8] sm:$0xff]
  %v342 = vld [vmem:[%s0 + $0x600] sm:$0xff]
  %v343 = vld [vmem:[%s0 + $0x608] sm:$0xff]
  %v344 = vld [vmem:[%s0 + $0x610] sm:$0xff]
  %v345 = vld [vmem:[%s0 + $0x618] sm:$0xff]
  %v346 = vld [vmem:[%s0 + $0x620] sm:$0xff]
  %v347 = vld [vmem:[%s0 + $0x628] sm:$0xff]
  %v348 = vld [vmem:[%s0 + $0x630] sm:$0xff]
  %v349 = vld [vmem:[%s0 + $0x638] sm:$0xff]
  %v350 = vld [vmem:[%s0 + $0x640] sm:$0xff]
  %v351 = vld [vmem:[%s0 + $0x648] sm:$0xff]
  %v352 = vld [vmem:[%s0 + $0x650] sm:$0xff]
  %v353 = vld [vmem:[%s0 + $0x658] sm:$0xff]
  %v354 = vld [vmem:[%s0 + $0x660] sm:$0xff]
  %v355 = vld [vmem:[%s0 + $0x668] sm:$0xff]
  %v356 = vld [vmem:[%s0 + $0x670] sm:$0xff]
  %v357 = vld [vmem:[%s0 + $0x678] sm:$0xff]
  %v358 = vld [vmem:[%s0 + $0x680] sm:$0xff]
  %v359 = vld [vmem:[%s0 + $0x688] sm:$0xff]
  %v360 = vld [vmem:[%s0 + $0x690] sm:$0xff]
  %v361 = vld [vmem:[%s0 + $0x698] sm:$0xff]
  %v362 = vld [vmem:[%s0 + $0x6a0] sm:$0xff]
  %v363 = vld [vmem:[%s0 + $0x6a8] sm:$0xff]
  %v364 = vld [vmem:[%s0 + $0x6b0] sm:$0xff]
  %v365 = vld [vmem:[%s0 + $0x6b8] sm:$0xff]
  %v366 = vld [vmem:[%s0 + $0x6c0] sm:$0xff]
  %v367 = vld [vmem:[%s0 + $0x6c8] sm:$0xff]
  %v368 = vld [vmem:[%s0 + $0x6d0] sm:$0xff]
  %v369 = vld [vmem:[%s0 + $0x6d8] sm:$0xff]
  %v370 = vld [vmem:[%s0 + $0x6e0] sm:$0xff]
  %v371 = vld [vmem:[%s0 + $0x6e8] sm:$0xff]
  %v372 = vld [vmem:[%s0 + $0x6f0] sm:$0xff]
  %v373 = vld [vmem:[%s0 + $0x6f8] sm:$0xff]
  %v374 = vld [vmem:[%s0 + $0x700] sm:$0xff]
  %v375 = vld [vmem:[%s0 + $0x708] sm:$0xff]
  %v376 = vld [vmem:[%s0 + $0x710] sm:$0xff]
  %v377 = vld [vmem:[%s0 + $0x718] sm:$0xff]
  %v378 = vld [vmem:[%s0 + $0x720] sm:$0xff]
  %v379 = vld [vmem:[%s0 + $0x728] sm:$0xff]
  %v380 = vld [vmem:[%s0 + $0x730] sm:$0xff]
  %v381 = vld [vmem:[%s0 + $0x738] sm:$0xff]
  %v382 = vld [vmem:[%s0 + $0x740] sm:$0xff]
  %v383 = vld [vmem:[%s0 + $0x748] sm:$0xff]
  %v384 = vld [vmem:[%s0 + $0x750] sm:$0xff]
  %v385 = vld [vmem:[%s0 + $0x758] sm:$0xff]
  %v386 = vld [vmem:[%s0 + $0x760] sm:$0xff]
  %v387 = vld [vmem:[%s0 + $0x768] sm:$0xff]
  %v388 = vld [vmem:[%s0 + $0x770] sm:$0xff]
  %v389 = vld [vmem:[%s0 + $0x778] sm:$0xff]
  %v390 = vld [vmem:[%s0 + $0x780] sm:$0xff]
  %v391 = vld [vmem:[%s0 + $0x788] sm:$0xff]
  %v392 = vld [vmem:[%s0 + $0x790] sm:$0xff]
  %v393 = vld [vmem:[%s0 + $0x798] sm:$0xff]
  %v394 = vld [vmem:[%s0 + $0x7a0] sm:$0xff]
  %v395 = vld [vmem:[%s0 + $0x7a8] sm:$0xff]
  %v396 = vld [vmem:[%s0 + $0x7b0] sm:$0xff]
  %v397 = vld [vmem:[%s0 + $0x7b8] sm:$0xff]
  %v398 = vld [vmem:[%s0 + $0x7c0] sm:$0xff]
  %v399 = vld [vmem:[%s0 + $0x7c8] sm:$0xff]
  %v400 = vld [vmem:[%s0 + $0x7d0] sm:$0xff]
  %v401 = vld [vmem:[%s0 + $0x7d8] sm:$0xff]
  %v402 = vld [vmem:[%s0 + $0x7e0] sm:$0xff]
  %v403 = vld [vmem:[%s0 + $0x7e8] sm:$0xff]
  %v404 = vld [vmem:[%s0 + $0x7f0] sm:$0xff]
  %v405 = vld [vmem:[%s0 + $0x7f8] sm:$0xff]
  %v406 = vld [vmem:[%s1] sm:$0xf]
  %v407 = vld [vmem:[%s1 + $0x4] sm:$0xf]
  %v408 = vld [vmem:[%s1 + $0x8] sm:$0xf]
  %v409 = vld [vmem:[%s1 + $0xc] sm:$0xf]
  %v410 = vld [vmem:[%s1 + $0x10] sm:$0xf]
  %v411 = vld [vmem:[%s1 + $0x14] sm:$0xf]
  %v412 = vld [vmem:[%s1 + $0x18] sm:$0xf]
  %v413 = vld [vmem:[%s1 + $0x1c] sm:$0xf]
  %v414 = vld [vmem:[%s1 + $0x20] sm:$0xf]
  %v415 = vld [vmem:[%s1 + $0x24] sm:$0xf]
  %v416 = vld [vmem:[%s1 + $0x28] sm:$0xf]
  %v417 = vld [vmem:[%s1 + $0x2c] sm:$0xf]
  %v418 = vld [vmem:[%s1 + $0x30] sm:$0xf]
  %v419 = vld [vmem:[%s1 + $0x34] sm:$0xf]
  %v420 = vld [vmem:[%s1 + $0x38] sm:$0xf]
  %v421 = vld [vmem:[%s1 + $0x3c] sm:$0xf]
  %v422 = vld [vmem:[%s1 + $0x40] sm:$0xf]
  %v423 = vld [vmem:[%s1 + $0x44] sm:$0xf]
  %v424 = vld [vmem:[%s1 + $0x48] sm:$0xf]
  %v425 = vld [vmem:[%s1 + $0x4c] sm:$0xf]
  %v426 = vld [vmem:[%s1 + $0x50] sm:$0xf]
  %v427 = vld [vmem:[%s1 + $0x54] sm:$0xf]
  %v428 = vld [vmem:[%s1 + $0x58] sm:$0xf]
  %v429 = vld [vmem:[%s1 + $0x5c] sm:$0xf]
  %v430 = vld [vmem:[%s1 + $0x60] sm:$0xf]
  %v431 = vld [vmem:[%s1 + $0x64] sm:$0xf]
  %v432 = vld [vmem:[%s1 + $0x68] sm:$0xf]
  %v433 = vld [vmem:[%s1 + $0x6c] sm:$0xf]
  %v434 = vld [vmem:[%s1 + $0x70] sm:$0xf]
  %v435 = vld [vmem:[%s1 + $0x74] sm:$0xf]
  %v436 = vld [vmem:[%s1 + $0x78] sm:$0xf]
  %v437 = vld [vmem:[%s1 + $0x7c] sm:$0xf]
  %v438 = vld [vmem:[%s1 + $0x80] sm:$0xf]
  %v439 = vld [vmem:[%s1 + $0x84] sm:$0xf]
  %v440 = vld [vmem:[%s1 + $0x88] sm:$0xf]
  %v441 = vld [vmem:[%s1 + $0x8c] sm:$0xf]
  %v442 = vld [vmem:[%s1 + $0x90] sm:$0xf]
  %v443 = vld [vmem:[%s1 + $0x94] sm:$0xf]
  %v444 = vld [vmem:[%s1 + $0x98] sm:$0xf]
  %v445 = vld [vmem:[%s1 + $0x9c] sm:$0xf]
  %v446 = vld [vmem:[%s1 + $0xa0] sm:$0xf]
  %v447 = vld [vmem:[%s1 + $0xa4] sm:$0xf]
  %v448 = vld [vmem:[%s1 + $0xa8] sm:$0xf]
  %v449 = vld [vmem:[%s1 + $0xac] sm:$0xf]
  %v450 = vld [vmem:[%s1 + $0xb0] sm:$0xf]
  %v451 = vld [vmem:[%s1 + $0xb4] sm:$0xf]
  %v452 = vld [vmem:[%s1 + $0xb8] sm:$0xf]
  %v453 = vld [vmem:[%s1 + $0xbc] sm:$0xf]
  %v454 = vld [vmem:[%s1 + $0xc0] sm:$0xf]
  %v455 = vld [vmem:[%s1 + $0xc4] sm:$0xf]
  %v456 = vld [vmem:[%s1 + $0xc8] sm:$0xf]
  %v457 = vld [vmem:[%s1 + $0xcc] sm:$0xf]
  %v458 = vld [vmem:[%s1 + $0xd0] sm:$0xf]
  %v459 = vld [vmem:[%s1 + $0xd4] sm:$0xf]
  %v460 = vld [vmem:[%s1 + $0xd8] sm:$0xf]
  %v461 = vld [vmem:[%s1 + $0xdc] sm:$0xf]
  %v462 = vld [vmem:[%s1 + $0xe0] sm:$0xf]
  %v463 = vld [vmem:[%s1 + $0xe4] sm:$0xf]
  %v464 = vld [vmem:[%s1 + $0xe8] sm:$0xf]
  %v465 = vld [vmem:[%s1 + $0xec] sm:$0xf]
  %v466 = vld [vmem:[%s1 + $0xf0] sm:$0xf]
  %v467 = vld [vmem:[%s1 + $0xf4] sm:$0xf]
  %v468 = vld [vmem:[%s1 + $0xf8] sm:$0xf]
  %v469 = vld [vmem:[%s1 + $0xfc] sm:$0xf]
  %v470 = vld [vmem:[%s1 + $0x100] sm:$0xf]
  %v471 = vld [vmem:[%s1 + $0x104] sm:$0xf]
  %v472 = vld [vmem:[%s1 + $0x108] sm:$0xf]
  %v473 = vld [vmem:[%s1 + $0x10c] sm:$0xf]
  %v474 = vld [vmem:[%s1 + $0x110] sm:$0xf]
  %v475 = vld [vmem:[%s1 + $0x114] sm:$0xf]
  %v476 = vld [vmem:[%s1 + $0x118] sm:$0xf]
  %v477 = vld [vmem:[%s1 + $0x11c] sm:$0xf]
  %v478 = vld [vmem:[%s1 + $0x120] sm:$0xf]
  %v479 = vld [vmem:[%s1 + $0x124] sm:$0xf]
  %v480 = vld [vmem:[%s1 + $0x128] sm:$0xf]
  %v481 = vld [vmem:[%s1 + $0x12c] sm:$0xf]
  %v482 = vld [vmem:[%s1 + $0x130] sm:$0xf]
  %v483 = vld [vmem:[%s1 + $0x134] sm:$0xf]
  %v484 = vld [vmem:[%s1 + $0x138] sm:$0xf]
  %v485 = vld [vmem:[%s1 + $0x13c] sm:$0xf]
  %v486 = vld [vmem:[%s1 + $0x140] sm:$0xf]
  %v487 = vld [vmem:[%s1 + $0x144] sm:$0xf]
  %v488 = vld [vmem:[%s1 + $0x148] sm:$0xf]
  %v489 = vld [vmem:[%s1 + $0x14c] sm:$0xf]
  %v490 = vld [vmem:[%s1 + $0x150] sm:$0xf]
  %v491 = vld [vmem:[%s1 + $0x154] sm:$0xf]
  %v492 = vld [vmem:[%s1 + $0x158] sm:$0xf]
  %v493 = vld [vmem:[%s1 + $0x15c] sm:$0xf]
  %v494 = vld [vmem:[%s1 + $0x160] sm:$0xf]
  %v495 = vld [vmem:[%s1 + $0x164] sm:$0xf]
  %v496 = vld [vmem:[%s1 + $0x168] sm:$0xf]
  %v497 = vld [vmem:[%s1 + $0x16c] sm:$0xf]
  %v498 = vld [vmem:[%s1 + $0x170] sm:$0xf]
  %v499 = vld [vmem:[%s1 + $0x174] sm:$0xf]
  %v500 = vld [vmem:[%s1 + $0x178] sm:$0xf]
  %v501 = vld [vmem:[%s1 + $0x17c] sm:$0xf]
  %v502 = vld [vmem:[%s1 + $0x180] sm:$0xf]
  %v503 = vld [vmem:[%s1 + $0x184] sm:$0xf]
  %v504 = vld [vmem:[%s1 + $0x188] sm:$0xf]
  %v505 = vld [vmem:[%s1 + $0x18c] sm:$0xf]
  %v506 = vld [vmem:[%s1 + $0x190] sm:$0xf]
  %v507 = vld [vmem:[%s1 + $0x194] sm:$0xf]
  %v508 = vld [vmem:[%s1 + $0x198] sm:$0xf]
  %v509 = vld [vmem:[%s1 + $0x19c] sm:$0xf]
  %v510 = vld [vmem:[%s1 + $0x1a0] sm:$0xf]
  %v511 = vld [vmem:[%s1 + $0x1a4] sm:$0xf]
  %v512 = vld [vmem:[%s1 + $0x1a8] sm:$0xf]
  %v513 = vld [vmem:[%s1 + $0x1ac] sm:$0xf]
  %v514 = vld [vmem:[%s1 + $0x1b0] sm:$0xf]
  %v515 = vld [vmem:[%s1 + $0x1b4] sm:$0xf]
  %v516 = vld [vmem:[%s1 + $0x1b8] sm:$0xf]
  %v517 = vld [vmem:[%s1 + $0x1bc] sm:$0xf]
  %v518 = vld [vmem:[%s1 + $0x1c0] sm:$0xf]
  %v519 = vld [vmem:[%s1 + $0x1c4] sm:$0xf]
  %v520 = vld [vmem:[%s1 + $0x1c8] sm:$0xf]
  %v521 = vld [vmem:[%s1 + $0x1cc] sm:$0xf]
  %v522 = vld [vmem:[%s1 + $0x1d0] sm:$0xf]
  %v523 = vld [vmem:[%s1 + $0x1d4] sm:$0xf]
  %v524 = vld [vmem:[%s1 + $0x1d8] sm:$0xf]
  %v525 = vld [vmem:[%s1 + $0x1dc] sm:$0xf]
  %v526 = vld [vmem:[%s1 + $0x1e0] sm:$0xf]
  %v527 = vld [vmem:[%s1 + $0x1e4] sm:$0xf]
  %v528 = vld [vmem:[%s1 + $0x1e8] sm:$0xf]
  %v529 = vld [vmem:[%s1 + $0x1ec] sm:$0xf]
  %v530 = vld [vmem:[%s1 + $0x1f0] sm:$0xf]
  %v531 = vld [vmem:[%s1 + $0x1f4] sm:$0xf]
  %v532 = vld [vmem:[%s1 + $0x1f8] sm:$0xf]
  %v533 = vld [vmem:[%s1 + $0x1fc] sm:$0xf]
  %v790 = vunpack.c.l.b16 %v150
  %v791 = vunpack.c.h.b16 %v150
  %v792 = vunpack.c.l.b16 %v151
  %v793 = vunpack.c.h.b16 %v151
  %v794 = vunpack.c.l.b16 %v152
  %v795 = vunpack.c.h.b16 %v152
  %v796 = vunpack.c.l.b16 %v153
  %v797 = vunpack.c.h.b16 %v153
  %v798 = vunpack.c.l.b16 %v154
  %v799 = vunpack.c.h.b16 %v154
  %v800 = vunpack.c.l.b16 %v155
  %v801 = vunpack.c.h.b16 %v155
  %v802 = vunpack.c.l.b16 %v156
  %v803 = vunpack.c.h.b16 %v156
  %v804 = vunpack.c.l.b16 %v157
  %v805 = vunpack.c.h.b16 %v157
  %v806 = vunpack.c.l.b16 %v158
  %v807 = vunpack.c.h.b16 %v158
  %v808 = vunpack.c.l.b16 %v159
  %v809 = vunpack.c.h.b16 %v159
  %v810 = vunpack.c.l.b16 %v160
  %v811 = vunpack.c.h.b16 %v160
  %v812 = vunpack.c.l.b16 %v161
  %v813 = vunpack.c.h.b16 %v161
  %v814 = vunpack.c.l.b16 %v162
  %v815 = vunpack.c.h.b16 %v162
  %v816 = vunpack.c.l.b16 %v163
  %v817 = vunpack.c.h.b16 %v163
  %v818 = vunpack.c.l.b16 %v164
  %v819 = vunpack.c.h.b16 %v164
  %v820 = vunpack.c.l.b16 %v165
  %v821 = vunpack.c.h.b16 %v165
  %v822 = vunpack.c.l.b16 %v166
  %v823 = vunpack.c.h.b16 %v166
  %v824 = vunpack.c.l.b16 %v167
  %v825 = vunpack.c.h.b16 %v167
  %v826 = vunpack.c.l.b16 %v168
  %v827 = vunpack.c.h.b16 %v168
  %v828 = vunpack.c.l.b16 %v169
  %v829 = vunpack.c.h.b16 %v169
  %v830 = vunpack.c.l.b16 %v170
  %v831 = vunpack.c.h.b16 %v170
  %v832 = vunpack.c.l.b16 %v171
  %v833 = vunpack.c.h.b16 %v171
  %v834 = vunpack.c.l.b16 %v172
  %v835 = vunpack.c.h.b16 %v172
  %v836 = vunpack.c.l.b16 %v173
  %v837 = vunpack.c.h.b16 %v173
  %v838 = vunpack.c.l.b16 %v174
  %v839 = vunpack.c.h.b16 %v174
  %v840 = vunpack.c.l.b16 %v175
  %v841 = vunpack.c.h.b16 %v175
  %v842 = vunpack.c.l.b16 %v176
  %v843 = vunpack.c.h.b16 %v176
  %v844 = vunpack.c.l.b16 %v177
  %v845 = vunpack.c.h.b16 %v177
  %v846 = vunpack.c.l.b16 %v178
  %v847 = vunpack.c.h.b16 %v178
  %v848 = vunpack.c.l.b16 %v179
  %v849 = vunpack.c.h.b16 %v179
  %v850 = vunpack.c.l.b16 %v180
  %v851 = vunpack.c.h.b16 %v180
  %v852 = vunpack.c.l.b16 %v181
  %v853 = vunpack.c.h.b16 %v181
  %v854 = vunpack.c.l.b16 %v182
  %v855 = vunpack.c.h.b16 %v182
  %v856 = vunpack.c.l.b16 %v183
  %v857 = vunpack.c.h.b16 %v183
  %v858 = vunpack.c.l.b16 %v184
  %v859 = vunpack.c.h.b16 %v184
  %v860 = vunpack.c.l.b16 %v185
  %v861 = vunpack.c.h.b16 %v185
  %v862 = vunpack.c.l.b16 %v186
  %v863 = vunpack.c.h.b16 %v186
  %v864 = vunpack.c.l.b16 %v187
  %v865 = vunpack.c.h.b16 %v187
  %v866 = vunpack.c.l.b16 %v188
  %v867 = vunpack.c.h.b16 %v188
  %v868 = vunpack.c.l.b16 %v189
  %v869 = vunpack.c.h.b16 %v189
  %v870 = vunpack.c.l.b16 %v190
  %v871 = vunpack.c.h.b16 %v190
  %v872 = vunpack.c.l.b16 %v191
  %v873 = vunpack.c.h.b16 %v191
  %v874 = vunpack.c.l.b16 %v192
  %v875 = vunpack.c.h.b16 %v192
  %v876 = vunpack.c.l.b16 %v193
  %v877 = vunpack.c.h.b16 %v193
  %v878 = vunpack.c.l.b16 %v194
  %v879 = vunpack.c.h.b16 %v194
  %v880 = vunpack.c.l.b16 %v195
  %v881 = vunpack.c.h.b16 %v195
  %v882 = vunpack.c.l.b16 %v196
  %v883 = vunpack.c.h.b16 %v196
  %v884 = vunpack.c.l.b16 %v197
  %v885 = vunpack.c.h.b16 %v197
  %v886 = vunpack.c.l.b16 %v198
  %v887 = vunpack.c.h.b16 %v198
  %v888 = vunpack.c.l.b16 %v199
  %v889 = vunpack.c.h.b16 %v199
  %v890 = vunpack.c.l.b16 %v200
  %v891 = vunpack.c.h.b16 %v200
  %v892 = vunpack.c.l.b16 %v201
  %v893 = vunpack.c.h.b16 %v201
  %v894 = vunpack.c.l.b16 %v202
  %v895 = vunpack.c.h.b16 %v202
  %v896 = vunpack.c.l.b16 %v203
  %v897 = vunpack.c.h.b16 %v203
  %v898 = vunpack.c.l.b16 %v204
  %v899 = vunpack.c.h.b16 %v204
  %v900 = vunpack.c.l.b16 %v205
  %v901 = vunpack.c.h.b16 %v205
  %v902 = vunpack.c.l.b16 %v206
  %v903 = vunpack.c.h.b16 %v206
  %v904 = vunpack.c.l.b16 %v207
  %v905 = vunpack.c.h.b16 %v207
  %v906 = vunpack.c.l.b16 %v208
  %v907 = vunpack.c.h.b16 %v208
  %v908 = vunpack.c.l.b16 %v209
  %v909 = vunpack.c.h.b16 %v209
  %v910 = vunpack.c.l.b16 %v210
  %v911 = vunpack.c.h.b16 %v210
  %v912 = vunpack.c.l.b16 %v211
  %v913 = vunpack.c.h.b16 %v211
  %v914 = vunpack.c.l.b16 %v212
  %v915 = vunpack.c.h.b16 %v212
  %v916 = vunpack.c.l.b16 %v213
  %v917 = vunpack.c.h.b16 %v213
  %v918 = vunpack.c.l.b16 %v214
  %v919 = vunpack.c.h.b16 %v214
  %v920 = vunpack.c.l.b16 %v215
  %v921 = vunpack.c.h.b16 %v215
  %v922 = vunpack.c.l.b16 %v216
  %v923 = vunpack.c.h.b16 %v216
  %v924 = vunpack.c.l.b16 %v217
  %v925 = vunpack.c.h.b16 %v217
  %v926 = vunpack.c.l.b16 %v218
  %v927 = vunpack.c.h.b16 %v218
  %v928 = vunpack.c.l.b16 %v219
  %v929 = vunpack.c.h.b16 %v219
  %v930 = vunpack.c.l.b16 %v220
  %v931 = vunpack.c.h.b16 %v220
  %v932 = vunpack.c.l.b16 %v221
  %v933 = vunpack.c.h.b16 %v221
  %v934 = vunpack.c.l.b16 %v222
  %v935 = vunpack.c.h.b16 %v222
  %v936 = vunpack.c.l.b16 %v223
  %v937 = vunpack.c.h.b16 %v223
  %v938 = vunpack.c.l.b16 %v224
  %v939 = vunpack.c.h.b16 %v224
  %v940 = vunpack.c.l.b16 %v225
  %v941 = vunpack.c.h.b16 %v225
  %v942 = vunpack.c.l.b16 %v226
  %v943 = vunpack.c.h.b16 %v226
  %v944 = vunpack.c.l.b16 %v227
  %v945 = vunpack.c.h.b16 %v227
  %v946 = vunpack.c.l.b16 %v228
  %v947 = vunpack.c.h.b16 %v228
  %v948 = vunpack.c.l.b16 %v229
  %v949 = vunpack.c.h.b16 %v229
  %v950 = vunpack.c.l.b16 %v230
  %v951 = vunpack.c.h.b16 %v230
  %v952 = vunpack.c.l.b16 %v231
  %v953 = vunpack.c.h.b16 %v231
  %v954 = vunpack.c.l.b16 %v232
  %v955 = vunpack.c.h.b16 %v232
  %v956 = vunpack.c.l.b16 %v233
  %v957 = vunpack.c.h.b16 %v233
  %v958 = vunpack.c.l.b16 %v234
  %v959 = vunpack.c.h.b16 %v234
  %v960 = vunpack.c.l.b16 %v235
  %v961 = vunpack.c.h.b16 %v235
  %v962 = vunpack.c.l.b16 %v236
  %v963 = vunpack.c.h.b16 %v236
  %v964 = vunpack.c.l.b16 %v237
  %v965 = vunpack.c.h.b16 %v237
  %v966 = vunpack.c.l.b16 %v238
  %v967 = vunpack.c.h.b16 %v238
  %v968 = vunpack.c.l.b16 %v239
  %v969 = vunpack.c.h.b16 %v239
  %v970 = vunpack.c.l.b16 %v240
  %v971 = vunpack.c.h.b16 %v240
  %v972 = vunpack.c.l.b16 %v241
  %v973 = vunpack.c.h.b16 %v241
  %v974 = vunpack.c.l.b16 %v242
  %v975 = vunpack.c.h.b16 %v242
  %v976 = vunpack.c.l.b16 %v243
  %v977 = vunpack.c.h.b16 %v243
  %v978 = vunpack.c.l.b16 %v244
  %v979 = vunpack.c.h.b16 %v244
  %v980 = vunpack.c.l.b16 %v245
  %v981 = vunpack.c.h.b16 %v245
  %v982 = vunpack.c.l.b16 %v246
  %v983 = vunpack.c.h.b16 %v246
  %v984 = vunpack.c.l.b16 %v247
  %v985 = vunpack.c.h.b16 %v247
  %v986 = vunpack.c.l.b16 %v248
  %v987 = vunpack.c.h.b16 %v248
  %v988 = vunpack.c.l.b16 %v249
  %v989 = vunpack.c.h.b16 %v249
  %v990 = vunpack.c.l.b16 %v250
  %v991 = vunpack.c.h.b16 %v250
  %v992 = vunpack.c.l.b16 %v251
  %v993 = vunpack.c.h.b16 %v251
  %v994 = vunpack.c.l.b16 %v252
  %v995 = vunpack.c.h.b16 %v252
  %v996 = vunpack.c.l.b16 %v253
  %v997 = vunpack.c.h.b16 %v253
  %v998 = vunpack.c.l.b16 %v254
  %v999 = vunpack.c.h.b16 %v254
  %v1000 = vunpack.c.l.b16 %v255
  %v1001 = vunpack.c.h.b16 %v255
  %v1002 = vunpack.c.l.b16 %v256
  %v1003 = vunpack.c.h.b16 %v256
  %v1004 = vunpack.c.l.b16 %v257
  %v1005 = vunpack.c.h.b16 %v257
  %v1006 = vunpack.c.l.b16 %v258
  %v1007 = vunpack.c.h.b16 %v258
  %v1008 = vunpack.c.l.b16 %v259
  %v1009 = vunpack.c.h.b16 %v259
  %v1010 = vunpack.c.l.b16 %v260
  %v1011 = vunpack.c.h.b16 %v260
  %v1012 = vunpack.c.l.b16 %v261
  %v1013 = vunpack.c.h.b16 %v261
  %v1014 = vunpack.c.l.b16 %v262
  %v1015 = vunpack.c.h.b16 %v262
  %v1016 = vunpack.c.l.b16 %v263
  %v1017 = vunpack.c.h.b16 %v263
  %v1018 = vunpack.c.l.b16 %v264
  %v1019 = vunpack.c.h.b16 %v264
  %v1020 = vunpack.c.l.b16 %v265
  %v1021 = vunpack.c.h.b16 %v265
  %v1022 = vunpack.c.l.b16 %v266
  %v1023 = vunpack.c.h.b16 %v266
  %v1024 = vunpack.c.l.b16 %v267
  %v1025 = vunpack.c.h.b16 %v267
  %v1026 = vunpack.c.l.b16 %v268
  %v1027 = vunpack.c.h.b16 %v268
  %v1028 = vunpack.c.l.b16 %v269
  %v1029 = vunpack.c.h.b16 %v269
  %v1030 = vunpack.c.l.b16 %v270
  %v1031 = vunpack.c.h.b16 %v270
  %v1032 = vunpack.c.l.b16 %v271
  %v1033 = vunpack.c.h.b16 %v271
  %v1034 = vunpack.c.l.b16 %v272
  %v1035 = vunpack.c.h.b16 %v272
  %v1036 = vunpack.c.l.b16 %v273
  %v1037 = vunpack.c.h.b16 %v273
  %v1038 = vunpack.c.l.b16 %v274
  %v1039 = vunpack.c.h.b16 %v274
  %v1040 = vunpack.c.l.b16 %v275
  %v1041 = vunpack.c.h.b16 %v275
  %v1042 = vunpack.c.l.b16 %v276
  %v1043 = vunpack.c.h.b16 %v276
  %v1044 = vunpack.c.l.b16 %v277
  %v1045 = vunpack.c.h.b16 %v277
  %v1046 = vunpack.c.l.b16 %v278
  %v1047 = vunpack.c.h.b16 %v278
  %v1048 = vunpack.c.l.b16 %v279
  %v1049 = vunpack.c.h.b16 %v279
  %v1050 = vunpack.c.l.b16 %v280
  %v1051 = vunpack.c.h.b16 %v280
  %v1052 = vunpack.c.l.b16 %v281
  %v1053 = vunpack.c.h.b16 %v281
  %v1054 = vunpack.c.l.b16 %v282
  %v1055 = vunpack.c.h.b16 %v282
  %v1056 = vunpack.c.l.b16 %v283
  %v1057 = vunpack.c.h.b16 %v283
  %v1058 = vunpack.c.l.b16 %v284
  %v1059 = vunpack.c.h.b16 %v284
  %v1060 = vunpack.c.l.b16 %v285
  %v1061 = vunpack.c.h.b16 %v285
  %v1062 = vunpack.c.l.b16 %v286
  %v1063 = vunpack.c.h.b16 %v286
  %v1064 = vunpack.c.l.b16 %v287
  %v1065 = vunpack.c.h.b16 %v287
  %v1066 = vunpack.c.l.b16 %v288
  %v1067 = vunpack.c.h.b16 %v288
  %v1068 = vunpack.c.l.b16 %v289
  %v1069 = vunpack.c.h.b16 %v289
  %v1070 = vunpack.c.l.b16 %v290
  %v1071 = vunpack.c.h.b16 %v290
  %v1072 = vunpack.c.l.b16 %v291
  %v1073 = vunpack.c.h.b16 %v291
  %v1074 = vunpack.c.l.b16 %v292
  %v1075 = vunpack.c.h.b16 %v292
  %v1076 = vunpack.c.l.b16 %v293
  %v1077 = vunpack.c.h.b16 %v293
  %v1078 = vunpack.c.l.b16 %v294
  %v1079 = vunpack.c.h.b16 %v294
  %v1080 = vunpack.c.l.b16 %v295
  %v1081 = vunpack.c.h.b16 %v295
  %v1082 = vunpack.c.l.b16 %v296
  %v1083 = vunpack.c.h.b16 %v296
  %v1084 = vunpack.c.l.b16 %v297
  %v1085 = vunpack.c.h.b16 %v297
  %v1086 = vunpack.c.l.b16 %v298
  %v1087 = vunpack.c.h.b16 %v298
  %v1088 = vunpack.c.l.b16 %v299
  %v1089 = vunpack.c.h.b16 %v299
  %v1090 = vunpack.c.l.b16 %v300
  %v1091 = vunpack.c.h.b16 %v300
  %v1092 = vunpack.c.l.b16 %v301
  %v1093 = vunpack.c.h.b16 %v301
  %v1094 = vunpack.c.l.b16 %v302
  %v1095 = vunpack.c.h.b16 %v302
  %v1096 = vunpack.c.l.b16 %v303
  %v1097 = vunpack.c.h.b16 %v303
  %v1098 = vunpack.c.l.b16 %v304
  %v1099 = vunpack.c.h.b16 %v304
  %v1100 = vunpack.c.l.b16 %v305
  %v1101 = vunpack.c.h.b16 %v305
  %v1102 = vunpack.c.l.b16 %v306
  %v1103 = vunpack.c.h.b16 %v306
  %v1104 = vunpack.c.l.b16 %v307
  %v1105 = vunpack.c.h.b16 %v307
  %v1106 = vunpack.c.l.b16 %v308
  %v1107 = vunpack.c.h.b16 %v308
  %v1108 = vunpack.c.l.b16 %v309
  %v1109 = vunpack.c.h.b16 %v309
  %v1110 = vunpack.c.l.b16 %v310
  %v1111 = vunpack.c.h.b16 %v310
  %v1112 = vunpack.c.l.b16 %v311
  %v1113 = vunpack.c.h.b16 %v311
  %v1114 = vunpack.c.l.b16 %v312
  %v1115 = vunpack.c.h.b16 %v312
  %v1116 = vunpack.c.l.b16 %v313
  %v1117 = vunpack.c.h.b16 %v313
  %v1118 = vunpack.c.l.b16 %v314
  %v1119 = vunpack.c.h.b16 %v314
  %v1120 = vunpack.c.l.b16 %v315
  %v1121 = vunpack.c.h.b16 %v315
  %v1122 = vunpack.c.l.b16 %v316
  %v1123 = vunpack.c.h.b16 %v316
  %v1124 = vunpack.c.l.b16 %v317
  %v1125 = vunpack.c.h.b16 %v317
  %v1126 = vunpack.c.l.b16 %v318
  %v1127 = vunpack.c.h.b16 %v318
  %v1128 = vunpack.c.l.b16 %v319
  %v1129 = vunpack.c.h.b16 %v319
  %v1130 = vunpack.c.l.b16 %v320
  %v1131 = vunpack.c.h.b16 %v320
  %v1132 = vunpack.c.l.b16 %v321
  %v1133 = vunpack.c.h.b16 %v321
  %v1134 = vunpack.c.l.b16 %v322
  %v1135 = vunpack.c.h.b16 %v322
  %v1136 = vunpack.c.l.b16 %v323
  %v1137 = vunpack.c.h.b16 %v323
  %v1138 = vunpack.c.l.b16 %v324
  %v1139 = vunpack.c.h.b16 %v324
  %v1140 = vunpack.c.l.b16 %v325
  %v1141 = vunpack.c.h.b16 %v325
  %v1142 = vunpack.c.l.b16 %v326
  %v1143 = vunpack.c.h.b16 %v326
  %v1144 = vunpack.c.l.b16 %v327
  %v1145 = vunpack.c.h.b16 %v327
  %v1146 = vunpack.c.l.b16 %v328
  %v1147 = vunpack.c.h.b16 %v328
  %v1148 = vunpack.c.l.b16 %v329
  %v1149 = vunpack.c.h.b16 %v329
  %v1150 = vunpack.c.l.b16 %v330
  %v1151 = vunpack.c.h.b16 %v330
  %v1152 = vunpack.c.l.b16 %v331
  %v1153 = vunpack.c.h.b16 %v331
  %v1154 = vunpack.c.l.b16 %v332
  %v1155 = vunpack.c.h.b16 %v332
  %v1156 = vunpack.c.l.b16 %v333
  %v1157 = vunpack.c.h.b16 %v333
  %v1158 = vunpack.c.l.b16 %v334
  %v1159 = vunpack.c.h.b16 %v334
  %v1160 = vunpack.c.l.b16 %v335
  %v1161 = vunpack.c.h.b16 %v335
  %v1162 = vunpack.c.l.b16 %v336
  %v1163 = vunpack.c.h.b16 %v336
  %v1164 = vunpack.c.l.b16 %v337
  %v1165 = vunpack.c.h.b16 %v337
  %v1166 = vunpack.c.l.b16 %v338
  %v1167 = vunpack.c.h.b16 %v338
  %v1168 = vunpack.c.l.b16 %v339
  %v1169 = vunpack.c.h.b16 %v339
  %v1170 = vunpack.c.l.b16 %v340
  %v1171 = vunpack.c.h.b16 %v340
  %v1172 = vunpack.c.l.b16 %v341
  %v1173 = vunpack.c.h.b16 %v341
  %v1174 = vunpack.c.l.b16 %v342
  %v1175 = vunpack.c.h.b16 %v342
  %v1176 = vunpack.c.l.b16 %v343
  %v1177 = vunpack.c.h.b16 %v343
  %v1178 = vunpack.c.l.b16 %v344
  %v1179 = vunpack.c.h.b16 %v344
  %v1180 = vunpack.c.l.b16 %v345
  %v1181 = vunpack.c.h.b16 %v345
  %v1182 = vunpack.c.l.b16 %v346
  %v1183 = vunpack.c.h.b16 %v346
  %v1184 = vunpack.c.l.b16 %v347
  %v1185 = vunpack.c.h.b16 %v347
  %v1186 = vunpack.c.l.b16 %v348
  %v1187 = vunpack.c.h.b16 %v348
  %v1188 = vunpack.c.l.b16 %v349
  %v1189 = vunpack.c.h.b16 %v349
  %v1190 = vunpack.c.l.b16 %v350
  %v1191 = vunpack.c.h.b16 %v350
  %v1192 = vunpack.c.l.b16 %v351
  %v1193 = vunpack.c.h.b16 %v351
  %v1194 = vunpack.c.l.b16 %v352
  %v1195 = vunpack.c.h.b16 %v352
  %v1196 = vunpack.c.l.b16 %v353
  %v1197 = vunpack.c.h.b16 %v353
  %v1198 = vunpack.c.l.b16 %v354
  %v1199 = vunpack.c.h.b16 %v354
  %v1200 = vunpack.c.l.b16 %v355
  %v1201 = vunpack.c.h.b16 %v355
  %v1202 = vunpack.c.l.b16 %v356
  %v1203 = vunpack.c.h.b16 %v356
  %v1204 = vunpack.c.l.b16 %v357
  %v1205 = vunpack.c.h.b16 %v357
  %v1206 = vunpack.c.l.b16 %v358
  %v1207 = vunpack.c.h.b16 %v358
  %v1208 = vunpack.c.l.b16 %v359
  %v1209 = vunpack.c.h.b16 %v359
  %v1210 = vunpack.c.l.b16 %v360
  %v1211 = vunpack.c.h.b16 %v360
  %v1212 = vunpack.c.l.b16 %v361
  %v1213 = vunpack.c.h.b16 %v361
  %v1214 = vunpack.c.l.b16 %v362
  %v1215 = vunpack.c.h.b16 %v362
  %v1216 = vunpack.c.l.b16 %v363
  %v1217 = vunpack.c.h.b16 %v363
  %v1218 = vunpack.c.l.b16 %v364
  %v1219 = vunpack.c.h.b16 %v364
  %v1220 = vunpack.c.l.b16 %v365
  %v1221 = vunpack.c.h.b16 %v365
  %v1222 = vunpack.c.l.b16 %v366
  %v1223 = vunpack.c.h.b16 %v366
  %v1224 = vunpack.c.l.b16 %v367
  %v1225 = vunpack.c.h.b16 %v367
  %v1226 = vunpack.c.l.b16 %v368
  %v1227 = vunpack.c.h.b16 %v368
  %v1228 = vunpack.c.l.b16 %v369
  %v1229 = vunpack.c.h.b16 %v369
  %v1230 = vunpack.c.l.b16 %v370
  %v1231 = vunpack.c.h.b16 %v370
  %v1232 = vunpack.c.l.b16 %v371
  %v1233 = vunpack.c.h.b16 %v371
  %v1234 = vunpack.c.l.b16 %v372
  %v1235 = vunpack.c.h.b16 %v372
  %v1236 = vunpack.c.l.b16 %v373
  %v1237 = vunpack.c.h.b16 %v373
  %v1238 = vunpack.c.l.b16 %v374
  %v1239 = vunpack.c.h.b16 %v374
  %v1240 = vunpack.c.l.b16 %v375
  %v1241 = vunpack.c.h.b16 %v375
  %v1242 = vunpack.c.l.b16 %v376
  %v1243 = vunpack.c.h.b16 %v376
  %v1244 = vunpack.c.l.b16 %v377
  %v1245 = vunpack.c.h.b16 %v377
  %v1246 = vunpack.c.l.b16 %v378
  %v1247 = vunpack.c.h.b16 %v378
  %v1248 = vunpack.c.l.b16 %v379
  %v1249 = vunpack.c.h.b16 %v379
  %v1250 = vunpack.c.l.b16 %v380
  %v1251 = vunpack.c.h.b16 %v380
  %v1252 = vunpack.c.l.b16 %v381
  %v1253 = vunpack.c.h.b16 %v381
  %v1254 = vunpack.c.l.b16 %v382
  %v1255 = vunpack.c.h.b16 %v382
  %v1256 = vunpack.c.l.b16 %v383
  %v1257 = vunpack.c.h.b16 %v383
  %v1258 = vunpack.c.l.b16 %v384
  %v1259 = vunpack.c.h.b16 %v384
  %v1260 = vunpack.c.l.b16 %v385
  %v1261 = vunpack.c.h.b16 %v385
  %v1262 = vunpack.c.l.b16 %v386
  %v1263 = vunpack.c.h.b16 %v386
  %v1264 = vunpack.c.l.b16 %v387
  %v1265 = vunpack.c.h.b16 %v387
  %v1266 = vunpack.c.l.b16 %v388
  %v1267 = vunpack.c.h.b16 %v388
  %v1268 = vunpack.c.l.b16 %v389
  %v1269 = vunpack.c.h.b16 %v389
  %v1270 = vunpack.c.l.b16 %v390
  %v1271 = vunpack.c.h.b16 %v390
  %v1272 = vunpack.c.l.b16 %v391
  %v1273 = vunpack.c.h.b16 %v391
  %v1274 = vunpack.c.l.b16 %v392
  %v1275 = vunpack.c.h.b16 %v392
  %v1276 = vunpack.c.l.b16 %v393
  %v1277 = vunpack.c.h.b16 %v393
  %v1278 = vunpack.c.l.b16 %v394
  %v1279 = vunpack.c.h.b16 %v394
  %v1280 = vunpack.c.l.b16 %v395
  %v1281 = vunpack.c.h.b16 %v395
  %v1282 = vunpack.c.l.b16 %v396
  %v1283 = vunpack.c.h.b16 %v396
  %v1284 = vunpack.c.l.b16 %v397
  %v1285 = vunpack.c.h.b16 %v397
  %v1286 = vunpack.c.l.b16 %v398
  %v1287 = vunpack.c.h.b16 %v398
  %v1288 = vunpack.c.l.b16 %v399
  %v1289 = vunpack.c.h.b16 %v399
  %v1290 = vunpack.c.l.b16 %v400
  %v1291 = vunpack.c.h.b16 %v400
  %v1292 = vunpack.c.l.b16 %v401
  %v1293 = vunpack.c.h.b16 %v401
  %v1294 = vunpack.c.l.b16 %v402
  %v1295 = vunpack.c.h.b16 %v402
  %v1296 = vunpack.c.l.b16 %v403
  %v1297 = vunpack.c.h.b16 %v403
  %v1298 = vunpack.c.l.b16 %v404
  %v1299 = vunpack.c.h.b16 %v404
  %v1300 = vunpack.c.l.b16 %v405
  %v1301 = vunpack.c.h.b16 %v405
  %v1302 = vpack.c.b16 %v798, %v790
  %v1303 = vpack.c.b16 %v799, %v791
  %v1304 = vpack.c.b16 %v800, %v792
  %v1305 = vpack.c.b16 %v801, %v793
  %v1306 = vpack.c.b16 %v802, %v794
  %v1307 = vpack.c.b16 %v803, %v795
  %v1308 = vpack.c.b16 %v804, %v796
  %v1309 = vpack.c.b16 %v805, %v797
  %v1310 = vpack.c.b16 %v814, %v806
  %v1311 = vpack.c.b16 %v815, %v807
  %v1312 = vpack.c.b16 %v816, %v808
  %v1313 = vpack.c.b16 %v817, %v809
  %v1314 = vpack.c.b16 %v818, %v810
  %v1315 = vpack.c.b16 %v819, %v811
  %v1316 = vpack.c.b16 %v820, %v812
  %v1317 = vpack.c.b16 %v821, %v813
  %v1318 = vpack.c.b16 %v830, %v822
  %v1319 = vpack.c.b16 %v831, %v823
  %v1320 = vpack.c.b16 %v832, %v824
  %v1321 = vpack.c.b16 %v833, %v825
  %v1322 = vpack.c.b16 %v834, %v826
  %v1323 = vpack.c.b16 %v835, %v827
  %v1324 = vpack.c.b16 %v836, %v828
  %v1325 = vpack.c.b16 %v837, %v829
  %v1326 = vpack.c.b16 %v846, %v838
  %v1327 = vpack.c.b16 %v847, %v839
  %v1328 = vpack.c.b16 %v848, %v840
  %v1329 = vpack.c.b16 %v849, %v841
  %v1330 = vpack.c.b16 %v850, %v842
  %v1331 = vpack.c.b16 %v851, %v843
  %v1332 = vpack.c.b16 %v852, %v844
  %v1333 = vpack.c.b16 %v853, %v845
  %v1334 = vpack.c.b16 %v862, %v854
  %v1335 = vpack.c.b16 %v863, %v855
  %v1336 = vpack.c.b16 %v864, %v856
  %v1337 = vpack.c.b16 %v865, %v857
  %v1338 = vpack.c.b16 %v866, %v858
  %v1339 = vpack.c.b16 %v867, %v859
  %v1340 = vpack.c.b16 %v868, %v860
  %v1341 = vpack.c.b16 %v869, %v861
  %v1342 = vpack.c.b16 %v878, %v870
  %v1343 = vpack.c.b16 %v879, %v871
  %v1344 = vpack.c.b16 %v880, %v872
  %v1345 = vpack.c.b16 %v881, %v873
  %v1346 = vpack.c.b16 %v882, %v874
  %v1347 = vpack.c.b16 %v883, %v875
  %v1348 = vpack.c.b16 %v884, %v876
  %v1349 = vpack.c.b16 %v885, %v877
  %v1350 = vpack.c.b16 %v894, %v886
  %v1351 = vpack.c.b16 %v895, %v887
  %v1352 = vpack.c.b16 %v896, %v888
  %v1353 = vpack.c.b16 %v897, %v889
  %v1354 = vpack.c.b16 %v898, %v890
  %v1355 = vpack.c.b16 %v899, %v891
  %v1356 = vpack.c.b16 %v900, %v892
  %v1357 = vpack.c.b16 %v901, %v893
  %v1358 = vpack.c.b16 %v910, %v902
  %v1359 = vpack.c.b16 %v911, %v903
  %v1360 = vpack.c.b16 %v912, %v904
  %v1361 = vpack.c.b16 %v913, %v905
  %v1362 = vpack.c.b16 %v914, %v906
  %v1363 = vpack.c.b16 %v915, %v907
  %v1364 = vpack.c.b16 %v916, %v908
  %v1365 = vpack.c.b16 %v917, %v909
  %v1366 = vpack.c.b16 %v926, %v918
  %v1367 = vpack.c.b16 %v927, %v919
  %v1368 = vpack.c.b16 %v928, %v920
  %v1369 = vpack.c.b16 %v929, %v921
  %v1370 = vpack.c.b16 %v930, %v922
  %v1371 = vpack.c.b16 %v931, %v923
  %v1372 = vpack.c.b16 %v932, %v924
  %v1373 = vpack.c.b16 %v933, %v925
  %v1374 = vpack.c.b16 %v942, %v934
  %v1375 = vpack.c.b16 %v943, %v935
  %v1376 = vpack.c.b16 %v944, %v936
  %v1377 = vpack.c.b16 %v945, %v937
  %v1378 = vpack.c.b16 %v946, %v938
  %v1379 = vpack.c.b16 %v947, %v939
  %v1380 = vpack.c.b16 %v948, %v940
  %v1381 = vpack.c.b16 %v949, %v941
  %v1382 = vpack.c.b16 %v958, %v950
  %v1383 = vpack.c.b16 %v959, %v951
  %v1384 = vpack.c.b16 %v960, %v952
  %v1385 = vpack.c.b16 %v961, %v953
  %v1386 = vpack.c.b16 %v962, %v954
  %v1387 = vpack.c.b16 %v963, %v955
  %v1388 = vpack.c.b16 %v964, %v956
  %v1389 = vpack.c.b16 %v965, %v957
  %v1390 = vpack.c.b16 %v974, %v966
  %v1391 = vpack.c.b16 %v975, %v967
  %v1392 = vpack.c.b16 %v976, %v968
  %v1393 = vpack.c.b16 %v977, %v969
  %v1394 = vpack.c.b16 %v978, %v970
  %v1395 = vpack.c.b16 %v979, %v971
  %v1396 = vpack.c.b16 %v980, %v972
  %v1397 = vpack.c.b16 %v981, %v973
  %v1398 = vpack.c.b16 %v990, %v982
  %v1399 = vpack.c.b16 %v991, %v983
  %v1400 = vpack.c.b16 %v992, %v984
  %v1401 = vpack.c.b16 %v993, %v985
  %v1402 = vpack.c.b16 %v994, %v986
  %v1403 = vpack.c.b16 %v995, %v987
  %v1404 = vpack.c.b16 %v996, %v988
  %v1405 = vpack.c.b16 %v997, %v989
  %v1406 = vpack.c.b16 %v1006, %v998
  %v1407 = vpack.c.b16 %v1007, %v999
  %v1408 = vpack.c.b16 %v1008, %v1000
  %v1409 = vpack.c.b16 %v1009, %v1001
  %v1410 = vpack.c.b16 %v1010, %v1002
  %v1411 = vpack.c.b16 %v1011, %v1003
  %v1412 = vpack.c.b16 %v1012, %v1004
  %v1413 = vpack.c.b16 %v1013, %v1005
  %v1414 = vpack.c.b16 %v1022, %v1014
  %v1415 = vpack.c.b16 %v1023, %v1015
  %v1416 = vpack.c.b16 %v1024, %v1016
  %v1417 = vpack.c.b16 %v1025, %v1017
  %v1418 = vpack.c.b16 %v1026, %v1018
  %v1419 = vpack.c.b16 %v1027, %v1019
  %v1420 = vpack.c.b16 %v1028, %v1020
  %v1421 = vpack.c.b16 %v1029, %v1021
  %v1422 = vpack.c.b16 %v1038, %v1030
  %v1423 = vpack.c.b16 %v1039, %v1031
  %v1424 = vpack.c.b16 %v1040, %v1032
  %v1425 = vpack.c.b16 %v1041, %v1033
  %v1426 = vpack.c.b16 %v1042, %v1034
  %v1427 = vpack.c.b16 %v1043, %v1035
  %v1428 = vpack.c.b16 %v1044, %v1036
  %v1429 = vpack.c.b16 %v1045, %v1037
  %v1430 = vpack.c.b16 %v1054, %v1046
  %v1431 = vpack.c.b16 %v1055, %v1047
  %v1432 = vpack.c.b16 %v1056, %v1048
  %v1433 = vpack.c.b16 %v1057, %v1049
  %v1434 = vpack.c.b16 %v1058, %v1050
  %v1435 = vpack.c.b16 %v1059, %v1051
  %v1436 = vpack.c.b16 %v1060, %v1052
  %v1437 = vpack.c.b16 %v1061, %v1053
  %v1438 = vpack.c.b16 %v1070, %v1062
  %v1439 = vpack.c.b16 %v1071, %v1063
  %v1440 = vpack.c.b16 %v1072, %v1064
  %v1441 = vpack.c.b16 %v1073, %v1065
  %v1442 = vpack.c.b16 %v1074, %v1066
  %v1443 = vpack.c.b16 %v1075, %v1067
  %v1444 = vpack.c.b16 %v1076, %v1068
  %v1445 = vpack.c.b16 %v1077, %v1069
  %v1446 = vpack.c.b16 %v1086, %v1078
  %v1447 = vpack.c.b16 %v1087, %v1079
  %v1448 = vpack.c.b16 %v1088, %v1080
  %v1449 = vpack.c.b16 %v1089, %v1081
  %v1450 = vpack.c.b16 %v1090, %v1082
  %v1451 = vpack.c.b16 %v1091, %v1083
  %v1452 = vpack.c.b16 %v1092, %v1084
  %v1453 = vpack.c.b16 %v1093, %v1085
  %v1454 = vpack.c.b16 %v1102, %v1094
  %v1455 = vpack.c.b16 %v1103, %v1095
  %v1456 = vpack.c.b16 %v1104, %v1096
  %v1457 = vpack.c.b16 %v1105, %v1097
  %v1458 = vpack.c.b16 %v1106, %v1098
  %v1459 = vpack.c.b16 %v1107, %v1099
  %v1460 = vpack.c.b16 %v1108, %v1100
  %v1461 = vpack.c.b16 %v1109, %v1101
  %v1462 = vpack.c.b16 %v1118, %v1110
  %v1463 = vpack.c.b16 %v1119, %v1111
  %v1464 = vpack.c.b16 %v1120, %v1112
  %v1465 = vpack.c.b16 %v1121, %v1113
  %v1466 = vpack.c.b16 %v1122, %v1114
  %v1467 = vpack.c.b16 %v1123, %v1115
  %v1468 = vpack.c.b16 %v1124, %v1116
  %v1469 = vpack.c.b16 %v1125, %v1117
  %v1470 = vpack.c.b16 %v1134, %v1126
  %v1471 = vpack.c.b16 %v1135, %v1127
  %v1472 = vpack.c.b16 %v1136, %v1128
  %v1473 = vpack.c.b16 %v1137, %v1129
  %v1474 = vpack.c.b16 %v1138, %v1130
  %v1475 = vpack.c.b16 %v1139, %v1131
  %v1476 = vpack.c.b16 %v1140, %v1132
  %v1477 = vpack.c.b16 %v1141, %v1133
  %v1478 = vpack.c.b16 %v1150, %v1142
  %v1479 = vpack.c.b16 %v1151, %v1143
  %v1480 = vpack.c.b16 %v1152, %v1144
  %v1481 = vpack.c.b16 %v1153, %v1145
  %v1482 = vpack.c.b16 %v1154, %v1146
  %v1483 = vpack.c.b16 %v1155, %v1147
  %v1484 = vpack.c.b16 %v1156, %v1148
  %v1485 = vpack.c.b16 %v1157, %v1149
  %v1486 = vpack.c.b16 %v1166, %v1158
  %v1487 = vpack.c.b16 %v1167, %v1159
  %v1488 = vpack.c.b16 %v1168, %v1160
  %v1489 = vpack.c.b16 %v1169, %v1161
  %v1490 = vpack.c.b16 %v1170, %v1162
  %v1491 = vpack.c.b16 %v1171, %v1163
  %v1492 = vpack.c.b16 %v1172, %v1164
  %v1493 = vpack.c.b16 %v1173, %v1165
  %v1494 = vpack.c.b16 %v1182, %v1174
  %v1495 = vpack.c.b16 %v1183, %v1175
  %v1496 = vpack.c.b16 %v1184, %v1176
  %v1497 = vpack.c.b16 %v1185, %v1177
  %v1498 = vpack.c.b16 %v1186, %v1178
  %v1499 = vpack.c.b16 %v1187, %v1179
  %v1500 = vpack.c.b16 %v1188, %v1180
  %v1501 = vpack.c.b16 %v1189, %v1181
  %v1502 = vpack.c.b16 %v1198, %v1190
  %v1503 = vpack.c.b16 %v1199, %v1191
  %v1504 = vpack.c.b16 %v1200, %v1192
  %v1505 = vpack.c.b16 %v1201, %v1193
  %v1506 = vpack.c.b16 %v1202, %v1194
  %v1507 = vpack.c.b16 %v1203, %v1195
  %v1508 = vpack.c.b16 %v1204, %v1196
  %v1509 = vpack.c.b16 %v1205, %v1197
  %v1510 = vpack.c.b16 %v1214, %v1206
  %v1511 = vpack.c.b16 %v1215, %v1207
  %v1512 = vpack.c.b16 %v1216, %v1208
  %v1513 = vpack.c.b16 %v1217, %v1209
  %v1514 = vpack.c.b16 %v1218, %v1210
  %v1515 = vpack.c.b16 %v1219, %v1211
  %v1516 = vpack.c.b16 %v1220, %v1212
  %v1517 = vpack.c.b16 %v1221, %v1213
  %v1518 = vpack.c.b16 %v1230, %v1222
  %v1519 = vpack.c.b16 %v1231, %v1223
  %v1520 = vpack.c.b16 %v1232, %v1224
  %v1521 = vpack.c.b16 %v1233, %v1225
  %v1522 = vpack.c.b16 %v1234, %v1226
  %v1523 = vpack.c.b16 %v1235, %v1227
  %v1524 = vpack.c.b16 %v1236, %v1228
  %v1525 = vpack.c.b16 %v1237, %v1229
  %v1526 = vpack.c.b16 %v1246, %v1238
  %v1527 = vpack.c.b16 %v1247, %v1239
  %v1528 = vpack.c.b16 %v1248, %v1240
  %v1529 = vpack.c.b16 %v1249, %v1241
  %v1530 = vpack.c.b16 %v1250, %v1242
  %v1531 = vpack.c.b16 %v1251, %v1243
  %v1532 = vpack.c.b16 %v1252, %v1244
  %v1533 = vpack.c.b16 %v1253, %v1245
  %v1534 = vpack.c.b16 %v1262, %v1254
  %v1535 = vpack.c.b16 %v1263, %v1255
  %v1536 = vpack.c.b16 %v1264, %v1256
  %v1537 = vpack.c.b16 %v1265, %v1257
  %v1538 = vpack.c.b16 %v1266, %v1258
  %v1539 = vpack.c.b16 %v1267, %v1259
  %v1540 = vpack.c.b16 %v1268, %v1260
  %v1541 = vpack.c.b16 %v1269, %v1261
  %v1542 = vpack.c.b16 %v1278, %v1270
  %v1543 = vpack.c.b16 %v1279, %v1271
  %v1544 = vpack.c.b16 %v1280, %v1272
  %v1545 = vpack.c.b16 %v1281, %v1273
  %v1546 = vpack.c.b16 %v1282, %v1274
  %v1547 = vpack.c.b16 %v1283, %v1275
  %v1548 = vpack.c.b16 %v1284, %v1276
  %v1549 = vpack.c.b16 %v1285, %v1277
  %v1550 = vpack.c.b16 %v1294, %v1286
  %v1551 = vpack.c.b16 %v1295, %v1287
  %v1552 = vpack.c.b16 %v1296, %v1288
  %v1553 = vpack.c.b16 %v1297, %v1289
  %v1554 = vpack.c.b16 %v1298, %v1290
  %v1555 = vpack.c.b16 %v1299, %v1291
  %v1556 = vpack.c.b16 %v1300, %v1292
  %v1557 = vpack.c.b16 %v1301, %v1293
  %v1942 = vunpack.c.l.b16 %v406
  %v1943 = vunpack.c.l.b16 %v407
  %v1944 = vunpack.c.l.b16 %v408
  %v1945 = vunpack.c.l.b16 %v409
  %v1946 = vunpack.c.l.b16 %v410
  %v1947 = vunpack.c.l.b16 %v411
  %v1948 = vunpack.c.l.b16 %v412
  %v1949 = vunpack.c.l.b16 %v413
  %v1950 = vunpack.c.l.b16 %v414
  %v1951 = vunpack.c.l.b16 %v415
  %v1952 = vunpack.c.l.b16 %v416
  %v1953 = vunpack.c.l.b16 %v417
  %v1954 = vunpack.c.l.b16 %v418
  %v1955 = vunpack.c.l.b16 %v419
  %v1956 = vunpack.c.l.b16 %v420
  %v1957 = vunpack.c.l.b16 %v421
  %v1958 = vunpack.c.l.b16 %v422
  %v1959 = vunpack.c.l.b16 %v423
  %v1960 = vunpack.c.l.b16 %v424
  %v1961 = vunpack.c.l.b16 %v425
  %v1962 = vunpack.c.l.b16 %v426
  %v1963 = vunpack.c.l.b16 %v427
  %v1964 = vunpack.c.l.b16 %v428
  %v1965 = vunpack.c.l.b16 %v429
  %v1966 = vunpack.c.l.b16 %v430
  %v1967 = vunpack.c.l.b16 %v431
  %v1968 = vunpack.c.l.b16 %v432
  %v1969 = vunpack.c.l.b16 %v433
  %v1970 = vunpack.c.l.b16 %v434
  %v1971 = vunpack.c.l.b16 %v435
  %v1972 = vunpack.c.l.b16 %v436
  %v1973 = vunpack.c.l.b16 %v437
  %v1974 = vunpack.c.l.b16 %v438
  %v1975 = vunpack.c.l.b16 %v439
  %v1976 = vunpack.c.l.b16 %v440
  %v1977 = vunpack.c.l.b16 %v441
  %v1978 = vunpack.c.l.b16 %v442
  %v1979 = vunpack.c.l.b16 %v443
  %v1980 = vunpack.c.l.b16 %v444
  %v1981 = vunpack.c.l.b16 %v445
  %v1982 = vunpack.c.l.b16 %v446
  %v1983 = vunpack.c.l.b16 %v447
  %v1984 = vunpack.c.l.b16 %v448
  %v1985 = vunpack.c.l.b16 %v449
  %v1986 = vunpack.c.l.b16 %v450
  %v1987 = vunpack.c.l.b16 %v451
  %v1988 = vunpack.c.l.b16 %v452
  %v1989 = vunpack.c.l.b16 %v453
  %v1990 = vunpack.c.l.b16 %v454
  %v1991 = vunpack.c.l.b16 %v455
  %v1992 = vunpack.c.l.b16 %v456
  %v1993 = vunpack.c.l.b16 %v457
  %v1994 = vunpack.c.l.b16 %v458
  %v1995 = vunpack.c.l.b16 %v459
  %v1996 = vunpack.c.l.b16 %v460
  %v1997 = vunpack.c.l.b16 %v461
  %v1998 = vunpack.c.l.b16 %v462
  %v1999 = vunpack.c.l.b16 %v463
  %v2000 = vunpack.c.l.b16 %v464
  %v2001 = vunpack.c.l.b16 %v465
  %v2002 = vunpack.c.l.b16 %v466
  %v2003 = vunpack.c.l.b16 %v467
  %v2004 = vunpack.c.l.b16 %v468
  %v2005 = vunpack.c.l.b16 %v469
  %v2006 = vunpack.c.l.b16 %v470
  %v2007 = vunpack.c.l.b16 %v471
  %v2008 = vunpack.c.l.b16 %v472
  %v2009 = vunpack.c.l.b16 %v473
  %v2010 = vunpack.c.l.b16 %v474
  %v2011 = vunpack.c.l.b16 %v475
  %v2012 = vunpack.c.l.b16 %v476
  %v2013 = vunpack.c.l.b16 %v477
  %v2014 = vunpack.c.l.b16 %v478
  %v2015 = vunpack.c.l.b16 %v479
  %v2016 = vunpack.c.l.b16 %v480
  %v2017 = vunpack.c.l.b16 %v481
  %v2018 = vunpack.c.l.b16 %v482
  %v2019 = vunpack.c.l.b16 %v483
  %v2020 = vunpack.c.l.b16 %v484
  %v2021 = vunpack.c.l.b16 %v485
  %v2022 = vunpack.c.l.b16 %v486
  %v2023 = vunpack.c.l.b16 %v487
  %v2024 = vunpack.c.l.b16 %v488
  %v2025 = vunpack.c.l.b16 %v489
  %v2026 = vunpack.c.l.b16 %v490
  %v2027 = vunpack.c.l.b16 %v491
  %v2028 = vunpack.c.l.b16 %v492
  %v2029 = vunpack.c.l.b16 %v493
  %v2030 = vunpack.c.l.b16 %v494
  %v2031 = vunpack.c.l.b16 %v495
  %v2032 = vunpack.c.l.b16 %v496
  %v2033 = vunpack.c.l.b16 %v497
  %v2034 = vunpack.c.l.b16 %v498
  %v2035 = vunpack.c.l.b16 %v499
  %v2036 = vunpack.c.l.b16 %v500
  %v2037 = vunpack.c.l.b16 %v501
  %v2038 = vunpack.c.l.b16 %v502
  %v2039 = vunpack.c.l.b16 %v503
  %v2040 = vunpack.c.l.b16 %v504
  %v2041 = vunpack.c.l.b16 %v505
  %v2042 = vunpack.c.l.b16 %v506
  %v2043 = vunpack.c.l.b16 %v507
  %v2044 = vunpack.c.l.b16 %v508
  %v2045 = vunpack.c.l.b16 %v509
  %v2046 = vunpack.c.l.b16 %v510
  %v2047 = vunpack.c.l.b16 %v511
  %v2048 = vunpack.c.l.b16 %v512
  %v2049 = vunpack.c.l.b16 %v513
  %v2050 = vunpack.c.l.b16 %v514
  %v2051 = vunpack.c.l.b16 %v515
  %v2052 = vunpack.c.l.b16 %v516
  %v2053 = vunpack.c.l.b16 %v517
  %v2054 = vunpack.c.l.b16 %v518
  %v2055 = vunpack.c.l.b16 %v519
  %v2056 = vunpack.c.l.b16 %v520
  %v2057 = vunpack.c.l.b16 %v521
  %v2058 = vunpack.c.l.b16 %v522
  %v2059 = vunpack.c.l.b16 %v523
  %v2060 = vunpack.c.l.b16 %v524
  %v2061 = vunpack.c.l.b16 %v525
  %v2062 = vunpack.c.l.b16 %v526
  %v2063 = vunpack.c.l.b16 %v527
  %v2064 = vunpack.c.l.b16 %v528
  %v2065 = vunpack.c.l.b16 %v529
  %v2066 = vunpack.c.l.b16 %v530
  %v2067 = vunpack.c.l.b16 %v531
  %v2068 = vunpack.c.l.b16 %v532
  %v2069 = vunpack.c.l.b16 %v533
  %v2070 = vpack.c.b16 %v1943, %v1942
  %v2071 = vpack.c.b16 %v1945, %v1944
  %v2072 = vpack.c.b16 %v1947, %v1946
  %v2073 = vpack.c.b16 %v1949, %v1948
  %v2074 = vpack.c.b16 %v1951, %v1950
  %v2075 = vpack.c.b16 %v1953, %v1952
  %v2076 = vpack.c.b16 %v1955, %v1954
  %v2077 = vpack.c.b16 %v1957, %v1956
  %v2078 = vpack.c.b16 %v1959, %v1958
  %v2079 = vpack.c.b16 %v1961, %v1960
  %v2080 = vpack.c.b16 %v1963, %v1962
  %v2081 = vpack.c.b16 %v1965, %v1964
  %v2082 = vpack.c.b16 %v1967, %v1966
  %v2083 = vpack.c.b16 %v1969, %v1968
  %v2084 = vpack.c.b16 %v1971, %v1970
  %v2085 = vpack.c.b16 %v1973, %v1972
  %v2086 = vpack.c.b16 %v1975, %v1974
  %v2087 = vpack.c.b16 %v1977, %v1976
  %v2088 = vpack.c.b16 %v1979, %v1978
  %v2089 = vpack.c.b16 %v1981, %v1980
  %v2090 = vpack.c.b16 %v1983, %v1982
  %v2091 = vpack.c.b16 %v1985, %v1984
  %v2092 = vpack.c.b16 %v1987, %v1986
  %v2093 = vpack.c.b16 %v1989, %v1988
  %v2094 = vpack.c.b16 %v1991, %v1990
  %v2095 = vpack.c.b16 %v1993, %v1992
  %v2096 = vpack.c.b16 %v1995, %v1994
  %v2097 = vpack.c.b16 %v1997, %v1996
  %v2098 = vpack.c.b16 %v1999, %v1998
  %v2099 = vpack.c.b16 %v2001, %v2000
  %v2100 = vpack.c.b16 %v2003, %v2002
  %v2101 = vpack.c.b16 %v2005, %v2004
  %v2102 = vpack.c.b16 %v2007, %v2006
  %v2103 = vpack.c.b16 %v2009, %v2008
  %v2104 = vpack.c.b16 %v2011, %v2010
  %v2105 = vpack.c.b16 %v2013, %v2012
  %v2106 = vpack.c.b16 %v2015, %v2014
  %v2107 = vpack.c.b16 %v2017, %v2016
  %v2108 = vpack.c.b16 %v2019, %v2018
  %v2109 = vpack.c.b16 %v2021, %v2020
  %v2110 = vpack.c.b16 %v2023, %v2022
  %v2111 = vpack.c.b16 %v2025, %v2024
  %v2112 = vpack.c.b16 %v2027, %v2026
  %v2113 = vpack.c.b16 %v2029, %v2028
  %v2114 = vpack.c.b16 %v2031, %v2030
  %v2115 = vpack.c.b16 %v2033, %v2032
  %v2116 = vpack.c.b16 %v2035, %v2034
  %v2117 = vpack.c.b16 %v2037, %v2036
  %v2118 = vpack.c.b16 %v2039, %v2038
  %v2119 = vpack.c.b16 %v2041, %v2040
  %v2120 = vpack.c.b16 %v2043, %v2042
  %v2121 = vpack.c.b16 %v2045, %v2044
  %v2122 = vpack.c.b16 %v2047, %v2046
  %v2123 = vpack.c.b16 %v2049, %v2048
  %v2124 = vpack.c.b16 %v2051, %v2050
  %v2125 = vpack.c.b16 %v2053, %v2052
  %v2126 = vpack.c.b16 %v2055, %v2054
  %v2127 = vpack.c.b16 %v2057, %v2056
  %v2128 = vpack.c.b16 %v2059, %v2058
  %v2129 = vpack.c.b16 %v2061, %v2060
  %v2130 = vpack.c.b16 %v2063, %v2062
  %v2131 = vpack.c.b16 %v2065, %v2064
  %v2132 = vpack.c.b16 %v2067, %v2066
  %v2133 = vpack.c.b16 %v2069, %v2068
  %2198 = vmatprep.subr.bf16.mxu0 0
  %2199 = vmatpush1.bf16.msra.mxu0 %v2077
  %2200 = vmatprep.subr.bf16.mxu0 0
  %2201 = vmatpush1.bf16.msra.mxu0 %v2076
  %2202 = vmatprep.subr.bf16.mxu0 0
  %2203 = vmatpush1.bf16.msra.mxu0 %v2075
  %2204 = vmatprep.subr.bf16.mxu0 0
  %2205 = vmatpush1.bf16.msra.mxu0 %v2074
  %2206 = vmatprep.subr.bf16.mxu0 0
  %2207 = vmatpush1.bf16.msra.mxu0 %v2073
  %2208 = vmatprep.subr.bf16.mxu0 0
  %2209 = vmatpush1.bf16.msra.mxu0 %v2072
  %2210 = vmatprep.subr.bf16.mxu0 0
  %2211 = vmatpush1.bf16.msra.mxu0 %v2071
  %2212 = vmatprep.subr.bf16.mxu0 0
  %2213 = vmatpush1.bf16.msra.mxu0 %v2070
  %2214 = vmatprep.subr.bf16.mxu0 0
  %2215 = vmatpush2.bf16.msra.mxu0 %v2085
  %2216 = vmatprep.subr.bf16.mxu0 0
  %2217 = vmatpush2.bf16.msra.mxu0 %v2084
  %2218 = vmatprep.subr.bf16.mxu0 0
  %2219 = vmatpush2.bf16.msra.mxu0 %v2083
  %2220 = vmatprep.subr.bf16.mxu0 0
  %2221 = vmatpush2.bf16.msra.mxu0 %v2082
  %2222 = vmatprep.subr.bf16.mxu0 0
  %2223 = vmatpush2.bf16.msra.mxu0 %v2081
  %2224 = vmatprep.subr.bf16.mxu0 0
  %2225 = vmatpush2.bf16.msra.mxu0 %v2080
  %2226 = vmatprep.subr.bf16.mxu0 0
  %2227 = vmatpush2.bf16.msra.mxu0 %v2079
  %2228 = vmatprep.subr.bf16.mxu0 0
  %2229 = vmatpush2.bf16.msra.mxu0 %v2078
  %2230 = vmatprep.mubr.bf16.mxu0 %v1303
  %2231 = vmatmul.mubr.bf16.gmra.mxu0 %v1302
  %v2232 = vpop.f32.mrf.mxu0
  %v2233 = vadd.f32 0.0, %v2232
  %v2234 = vpop.f32.mrf.mxu0
  %v2235 = vpop.f32.mrf.mxu0
  %v2236 = vadd.f32 0.0, %v2235
  %v2237 = vpop.f32.mrf.mxu0
  %2238 = vmatprep.mubr.bf16.mxu0 %v1311
  %2239 = vmatmul.mubr.bf16.gmra.mxu0 %v1310
  %v2240 = vpop.f32.mrf.mxu0
  %v2241 = vadd.f32 0.0, %v2240
  %v2242 = vpop.f32.mrf.mxu0
  %v2243 = vpop.f32.mrf.mxu0
  %v2244 = vadd.f32 0.0, %v2243
  %v2245 = vpop.f32.mrf.mxu0
  %2246 = vmatprep.mubr.bf16.mxu0 %v1319
  %2247 = vmatmul.mubr.bf16.gmra.mxu0 %v1318
  %v2248 = vpop.f32.mrf.mxu0
  %v2249 = vadd.f32 0.0, %v2248
  %v2250 = vpop.f32.mrf.mxu0
  %v2251 = vpop.f32.mrf.mxu0
  %v2252 = vadd.f32 0.0, %v2251
  %v2253 = vpop.f32.mrf.mxu0
  %2254 = vmatprep.mubr.bf16.mxu0 %v1327
  %2255 = vmatmul.mubr.bf16.gmra.mxu0 %v1326
  %v2256 = vpop.f32.mrf.mxu0
  %v2257 = vadd.f32 0.0, %v2256
  %v2258 = vpop.f32.mrf.mxu0
  %v2259 = vpop.f32.mrf.mxu0
  %v2260 = vadd.f32 0.0, %v2259
  %v2261 = vpop.f32.mrf.mxu0
  %2262 = vmatprep.mubr.bf16.mxu0 %v1335
  %2263 = vmatmul.mubr.bf16.gmra.mxu0 %v1334
  %v2264 = vpop.f32.mrf.mxu0
  %v2265 = vadd.f32 0.0, %v2264
  %v2266 = vpop.f32.mrf.mxu0
  %v2267 = vpop.f32.mrf.mxu0
  %v2268 = vadd.f32 0.0, %v2267
  %v2269 = vpop.f32.mrf.mxu0
  %2270 = vmatprep.mubr.bf16.mxu0 %v1343
  %2271 = vmatmul.mubr.bf16.gmra.mxu0 %v1342
  %v2272 = vpop.f32.mrf.mxu0
  %v2273 = vadd.f32 0.0, %v2272
  %v2274 = vpop.f32.mrf.mxu0
  %v2275 = vpop.f32.mrf.mxu0
  %v2276 = vadd.f32 0.0, %v2275
  %v2277 = vpop.f32.mrf.mxu0
  %2278 = vmatprep.mubr.bf16.mxu0 %v1351
  %2279 = vmatmul.mubr.bf16.gmra.mxu0 %v1350
  %v2280 = vpop.f32.mrf.mxu0
  %v2281 = vadd.f32 0.0, %v2280
  %v2282 = vpop.f32.mrf.mxu0
  %v2283 = vpop.f32.mrf.mxu0
  %v2284 = vadd.f32 0.0, %v2283
  %v2285 = vpop.f32.mrf.mxu0
  %2286 = vmatprep.mubr.bf16.mxu0 %v1359
  %2287 = vmatmul.mubr.bf16.gmra.mxu0 %v1358
  %v2288 = vpop.f32.mrf.mxu0
  %v2289 = vadd.f32 0.0, %v2288
  %v2290 = vpop.f32.mrf.mxu0
  %v2291 = vpop.f32.mrf.mxu0
  %v2292 = vadd.f32 0.0, %v2291
  %v2293 = vpop.f32.mrf.mxu0
  %2294 = vmatprep.mubr.bf16.mxu0 %v1367
  %2295 = vmatmul.mubr.bf16.gmra.mxu0 %v1366
  %v2296 = vpop.f32.mrf.mxu0
  %v2297 = vadd.f32 0.0, %v2296
  %v2298 = vpop.f32.mrf.mxu0
  %v2299 = vpop.f32.mrf.mxu0
  %v2300 = vadd.f32 0.0, %v2299
  %v2301 = vpop.f32.mrf.mxu0
  %2302 = vmatprep.mubr.bf16.mxu0 %v1375
  %2303 = vmatmul.mubr.bf16.gmra.mxu0 %v1374
  %v2304 = vpop.f32.mrf.mxu0
  %v2305 = vadd.f32 0.0, %v2304
  %v2306 = vpop.f32.mrf.mxu0
  %v2307 = vpop.f32.mrf.mxu0
  %v2308 = vadd.f32 0.0, %v2307
  %v2309 = vpop.f32.mrf.mxu0
  %2310 = vmatprep.mubr.bf16.mxu0 %v1383
  %2311 = vmatmul.mubr.bf16.gmra.mxu0 %v1382
  %v2312 = vpop.f32.mrf.mxu0
  %v2313 = vadd.f32 0.0, %v2312
  %v2314 = vpop.f32.mrf.mxu0
  %v2315 = vpop.f32.mrf.mxu0
  %v2316 = vadd.f32 0.0, %v2315
  %v2317 = vpop.f32.mrf.mxu0
  %2318 = vmatprep.mubr.bf16.mxu0 %v1391
  %2319 = vmatmul.mubr.bf16.gmra.mxu0 %v1390
  %v2320 = vpop.f32.mrf.mxu0
  %v2321 = vadd.f32 0.0, %v2320
  %v2322 = vpop.f32.mrf.mxu0
  %v2323 = vpop.f32.mrf.mxu0
  %v2324 = vadd.f32 0.0, %v2323
  %v2325 = vpop.f32.mrf.mxu0
  %2326 = vmatprep.mubr.bf16.mxu0 %v1399
  %2327 = vmatmul.mubr.bf16.gmra.mxu0 %v1398
  %v2328 = vpop.f32.mrf.mxu0
  %v2329 = vadd.f32 0.0, %v2328
  %v2330 = vpop.f32.mrf.mxu0
  %v2331 = vpop.f32.mrf.mxu0
  %v2332 = vadd.f32 0.0, %v2331
  %v2333 = vpop.f32.mrf.mxu0
  %2334 = vmatprep.mubr.bf16.mxu0 %v1407
  %2335 = vmatmul.mubr.bf16.gmra.mxu0 %v1406
  %v2336 = vpop.f32.mrf.mxu0
  %v2337 = vadd.f32 0.0, %v2336
  %v2338 = vpop.f32.mrf.mxu0
  %v2339 = vpop.f32.mrf.mxu0
  %v2340 = vadd.f32 0.0, %v2339
  %v2341 = vpop.f32.mrf.mxu0
  %2342 = vmatprep.mubr.bf16.mxu0 %v1415
  %2343 = vmatmul.mubr.bf16.gmra.mxu0 %v1414
  %v2344 = vpop.f32.mrf.mxu0
  %v2345 = vadd.f32 0.0, %v2344
  %v2346 = vpop.f32.mrf.mxu0
  %v2347 = vpop.f32.mrf.mxu0
  %v2348 = vadd.f32 0.0, %v2347
  %v2349 = vpop.f32.mrf.mxu0
  %2350 = vmatprep.mubr.bf16.mxu0 %v1423
  %2351 = vmatmul.mubr.bf16.gmra.mxu0 %v1422
  %v2352 = vpop.f32.mrf.mxu0
  %v2353 = vadd.f32 0.0, %v2352
  %v2354 = vpop.f32.mrf.mxu0
  %v2355 = vpop.f32.mrf.mxu0
  %v2356 = vadd.f32 0.0, %v2355
  %v2357 = vpop.f32.mrf.mxu0
  %2358 = vmatprep.mubr.bf16.mxu0 %v1431
  %2359 = vmatmul.mubr.bf16.gmra.mxu0 %v1430
  %v2360 = vpop.f32.mrf.mxu0
  %v2361 = vadd.f32 0.0, %v2360
  %v2362 = vpop.f32.mrf.mxu0
  %v2363 = vpop.f32.mrf.mxu0
  %v2364 = vadd.f32 0.0, %v2363
  %v2365 = vpop.f32.mrf.mxu0
  %2366 = vmatprep.mubr.bf16.mxu0 %v1439
  %2367 = vmatmul.mubr.bf16.gmra.mxu0 %v1438
  %v2368 = vpop.f32.mrf.mxu0
  %v2369 = vadd.f32 0.0, %v2368
  %v2370 = vpop.f32.mrf.mxu0
  %v2371 = vpop.f32.mrf.mxu0
  %v2372 = vadd.f32 0.0, %v2371
  %v2373 = vpop.f32.mrf.mxu0
  %2374 = vmatprep.mubr.bf16.mxu0 %v1447
  %2375 = vmatmul.mubr.bf16.gmra.mxu0 %v1446
  %v2376 = vpop.f32.mrf.mxu0
  %v2377 = vadd.f32 0.0, %v2376
  %v2378 = vpop.f32.mrf.mxu0
  %v2379 = vpop.f32.mrf.mxu0
  %v2380 = vadd.f32 0.0, %v2379
  %v2381 = vpop.f32.mrf.mxu0
  %2382 = vmatprep.mubr.bf16.mxu0 %v1455
  %2383 = vmatmul.mubr.bf16.gmra.mxu0 %v1454
  %v2384 = vpop.f32.mrf.mxu0
  %v2385 = vadd.f32 0.0, %v2384
  %v2386 = vpop.f32.mrf.mxu0
  %v2387 = vpop.f32.mrf.mxu0
  %v2388 = vadd.f32 0.0, %v2387
  %v2389 = vpop.f32.mrf.mxu0
  %2390 = vmatprep.mubr.bf16.mxu0 %v1463
  %2391 = vmatmul.mubr.bf16.gmra.mxu0 %v1462
  %v2392 = vpop.f32.mrf.mxu0
  %v2393 = vadd.f32 0.0, %v2392
  %v2394 = vpop.f32.mrf.mxu0
  %v2395 = vpop.f32.mrf.mxu0
  %v2396 = vadd.f32 0.0, %v2395
  %v2397 = vpop.f32.mrf.mxu0
  %2398 = vmatprep.mubr.bf16.mxu0 %v1471
  %2399 = vmatmul.mubr.bf16.gmra.mxu0 %v1470
  %v2400 = vpop.f32.mrf.mxu0
  %v2401 = vadd.f32 0.0, %v2400
  %v2402 = vpop.f32.mrf.mxu0
  %v2403 = vpop.f32.mrf.mxu0
  %v2404 = vadd.f32 0.0, %v2403
  %v2405 = vpop.f32.mrf.mxu0
  %2406 = vmatprep.mubr.bf16.mxu0 %v1479
  %2407 = vmatmul.mubr.bf16.gmra.mxu0 %v1478
  %v2408 = vpop.f32.mrf.mxu0
  %v2409 = vadd.f32 0.0, %v2408
  %v2410 = vpop.f32.mrf.mxu0
  %v2411 = vpop.f32.mrf.mxu0
  %v2412 = vadd.f32 0.0, %v2411
  %v2413 = vpop.f32.mrf.mxu0
  %2414 = vmatprep.mubr.bf16.mxu0 %v1487
  %2415 = vmatmul.mubr.bf16.gmra.mxu0 %v1486
  %v2416 = vpop.f32.mrf.mxu0
  %v2417 = vadd.f32 0.0, %v2416
  %v2418 = vpop.f32.mrf.mxu0
  %v2419 = vpop.f32.mrf.mxu0
  %v2420 = vadd.f32 0.0, %v2419
  %v2421 = vpop.f32.mrf.mxu0
  %2422 = vmatprep.mubr.bf16.mxu0 %v1495
  %2423 = vmatmul.mubr.bf16.gmra.mxu0 %v1494
  %v2424 = vpop.f32.mrf.mxu0
  %v2425 = vadd.f32 0.0, %v2424
  %v2426 = vpop.f32.mrf.mxu0
  %v2427 = vpop.f32.mrf.mxu0
  %v2428 = vadd.f32 0.0, %v2427
  %v2429 = vpop.f32.mrf.mxu0
  %2430 = vmatprep.mubr.bf16.mxu0 %v1503
  %2431 = vmatmul.mubr.bf16.gmra.mxu0 %v1502
  %v2432 = vpop.f32.mrf.mxu0
  %v2433 = vadd.f32 0.0, %v2432
  %v2434 = vpop.f32.mrf.mxu0
  %v2435 = vpop.f32.mrf.mxu0
  %v2436 = vadd.f32 0.0, %v2435
  %v2437 = vpop.f32.mrf.mxu0
  %2438 = vmatprep.mubr.bf16.mxu0 %v1511
  %2439 = vmatmul.mubr.bf16.gmra.mxu0 %v1510
  %v2440 = vpop.f32.mrf.mxu0
  %v2441 = vadd.f32 0.0, %v2440
  %v2442 = vpop.f32.mrf.mxu0
  %v2443 = vpop.f32.mrf.mxu0
  %v2444 = vadd.f32 0.0, %v2443
  %v2445 = vpop.f32.mrf.mxu0
  %2446 = vmatprep.mubr.bf16.mxu0 %v1519
  %2447 = vmatmul.mubr.bf16.gmra.mxu0 %v1518
  %v2448 = vpop.f32.mrf.mxu0
  %v2449 = vadd.f32 0.0, %v2448
  %v2450 = vpop.f32.mrf.mxu0
  %v2451 = vpop.f32.mrf.mxu0
  %v2452 = vadd.f32 0.0, %v2451
  %v2453 = vpop.f32.mrf.mxu0
  %2454 = vmatprep.mubr.bf16.mxu0 %v1527
  %2455 = vmatmul.mubr.bf16.gmra.mxu0 %v1526
  %v2456 = vpop.f32.mrf.mxu0
  %v2457 = vadd.f32 0.0, %v2456
  %v2458 = vpop.f32.mrf.mxu0
  %v2459 = vpop.f32.mrf.mxu0
  %v2460 = vadd.f32 0.0, %v2459
  %v2461 = vpop.f32.mrf.mxu0
  %2462 = vmatprep.mubr.bf16.mxu0 %v1535
  %2463 = vmatmul.mubr.bf16.gmra.mxu0 %v1534
  %v2464 = vpop.f32.mrf.mxu0
  %v2465 = vadd.f32 0.0, %v2464
  %v2466 = vpop.f32.mrf.mxu0
  %v2467 = vpop.f32.mrf.mxu0
  %v2468 = vadd.f32 0.0, %v2467
  %v2469 = vpop.f32.mrf.mxu0
  %2470 = vmatprep.mubr.bf16.mxu0 %v1543
  %2471 = vmatmul.mubr.bf16.gmra.mxu0 %v1542
  %v2472 = vpop.f32.mrf.mxu0
  %v2473 = vadd.f32 0.0, %v2472
  %v2474 = vpop.f32.mrf.mxu0
  %v2475 = vpop.f32.mrf.mxu0
  %v2476 = vadd.f32 0.0, %v2475
  %v2477 = vpop.f32.mrf.mxu0
  %2478 = vmatprep.mubr.bf16.mxu0 %v1551
  %2479 = vmatmul.mubr.bf16.gmra.mxu0 %v1550
  %v2480 = vpop.f32.mrf.mxu0
  %v2481 = vadd.f32 0.0, %v2480
  %v2482 = vpop.f32.mrf.mxu0
  %v2483 = vpop.f32.mrf.mxu0
  %v2484 = vadd.f32 0.0, %v2483
  %v2485 = vpop.f32.mrf.mxu0
  %2486 = vdwg.mxu0
  %2487 = vmatprep.subr.bf16.mxu0 0
  %2488 = vmatpush1.bf16.msra.mxu0 %v2093
  %2489 = vmatprep.subr.bf16.mxu0 0
  %2490 = vmatpush1.bf16.msra.mxu0 %v2092
  %2491 = vmatprep.subr.bf16.mxu0 0
  %2492 = vmatpush1.bf16.msra.mxu0 %v2091
  %2493 = vmatprep.subr.bf16.mxu0 0
  %2494 = vmatpush1.bf16.msra.mxu0 %v2090
  %2495 = vmatprep.subr.bf16.mxu0 0
  %2496 = vmatpush1.bf16.msra.mxu0 %v2089
  %2497 = vmatprep.subr.bf16.mxu0 0
  %2498 = vmatpush1.bf16.msra.mxu0 %v2088
  %2499 = vmatprep.subr.bf16.mxu0 0
  %2500 = vmatpush1.bf16.msra.mxu0 %v2087
  %2501 = vmatprep.subr.bf16.mxu0 0
  %2502 = vmatpush1.bf16.msra.mxu0 %v2086
  %2503 = vmatprep.subr.bf16.mxu0 0
  %2504 = vmatpush2.bf16.msra.mxu0 %v2101
  %2505 = vmatprep.subr.bf16.mxu0 0
  %2506 = vmatpush2.bf16.msra.mxu0 %v2100
  %2507 = vmatprep.subr.bf16.mxu0 0
  %2508 = vmatpush2.bf16.msra.mxu0 %v2099
  %2509 = vmatprep.subr.bf16.mxu0 0
  %2510 = vmatpush2.bf16.msra.mxu0 %v2098
  %2511 = vmatprep.subr.bf16.mxu0 0
  %2512 = vmatpush2.bf16.msra.mxu0 %v2097
  %2513 = vmatprep.subr.bf16.mxu0 0
  %2514 = vmatpush2.bf16.msra.mxu0 %v2096
  %2515 = vmatprep.subr.bf16.mxu0 0
  %2516 = vmatpush2.bf16.msra.mxu0 %v2095
  %2517 = vmatprep.subr.bf16.mxu0 0
  %2518 = vmatpush2.bf16.msra.mxu0 %v2094
  %2519 = vmatprep.mubr.bf16.mxu0 %v1305
  %2520 = vmatmul.mubr.bf16.gmra.mxu0 %v1304
  %v2521 = vpop.f32.mrf.mxu0
  %v2522 = vadd.f32 %v2233, %v2521
  %v2523 = vpop.f32.mrf.mxu0
  %v2524 = vpop.f32.mrf.mxu0
  %v2525 = vadd.f32 %v2236, %v2524
  %v2526 = vpop.f32.mrf.mxu0
  %2527 = vmatprep.mubr.bf16.mxu0 %v1313
  %2528 = vmatmul.mubr.bf16.gmra.mxu0 %v1312
  %v2529 = vpop.f32.mrf.mxu0
  %v2530 = vadd.f32 %v2241, %v2529
  %v2531 = vpop.f32.mrf.mxu0
  %v2532 = vpop.f32.mrf.mxu0
  %v2533 = vadd.f32 %v2244, %v2532
  %v2534 = vpop.f32.mrf.mxu0
  %2535 = vmatprep.mubr.bf16.mxu0 %v1321
  %2536 = vmatmul.mubr.bf16.gmra.mxu0 %v1320
  %v2537 = vpop.f32.mrf.mxu0
  %v2538 = vadd.f32 %v2249, %v2537
  %v2539 = vpop.f32.mrf.mxu0
  %v2540 = vpop.f32.mrf.mxu0
  %v2541 = vadd.f32 %v2252, %v2540
  %v2542 = vpop.f32.mrf.mxu0
  %2543 = vmatprep.mubr.bf16.mxu0 %v1329
  %2544 = vmatmul.mubr.bf16.gmra.mxu0 %v1328
  %v2545 = vpop.f32.mrf.mxu0
  %v2546 = vadd.f32 %v2257, %v2545
  %v2547 = vpop.f32.mrf.mxu0
  %v2548 = vpop.f32.mrf.mxu0
  %v2549 = vadd.f32 %v2260, %v2548
  %v2550 = vpop.f32.mrf.mxu0
  %2551 = vmatprep.mubr.bf16.mxu0 %v1337
  %2552 = vmatmul.mubr.bf16.gmra.mxu0 %v1336
  %v2553 = vpop.f32.mrf.mxu0
  %v2554 = vadd.f32 %v2265, %v2553
  %v2555 = vpop.f32.mrf.mxu0
  %v2556 = vpop.f32.mrf.mxu0
  %v2557 = vadd.f32 %v2268, %v2556
  %v2558 = vpop.f32.mrf.mxu0
  %2559 = vmatprep.mubr.bf16.mxu0 %v1345
  %2560 = vmatmul.mubr.bf16.gmra.mxu0 %v1344
  %v2561 = vpop.f32.mrf.mxu0
  %v2562 = vadd.f32 %v2273, %v2561
  %v2563 = vpop.f32.mrf.mxu0
  %v2564 = vpop.f32.mrf.mxu0
  %v2565 = vadd.f32 %v2276, %v2564
  %v2566 = vpop.f32.mrf.mxu0
  %2567 = vmatprep.mubr.bf16.mxu0 %v1353
  %2568 = vmatmul.mubr.bf16.gmra.mxu0 %v1352
  %v2569 = vpop.f32.mrf.mxu0
  %v2570 = vadd.f32 %v2281, %v2569
  %v2571 = vpop.f32.mrf.mxu0
  %v2572 = vpop.f32.mrf.mxu0
  %v2573 = vadd.f32 %v2284, %v2572
  %v2574 = vpop.f32.mrf.mxu0
  %2575 = vmatprep.mubr.bf16.mxu0 %v1361
  %2576 = vmatmul.mubr.bf16.gmra.mxu0 %v1360
  %v2577 = vpop.f32.mrf.mxu0
  %v2578 = vadd.f32 %v2289, %v2577
  %v2579 = vpop.f32.mrf.mxu0
  %v2580 = vpop.f32.mrf.mxu0
  %v2581 = vadd.f32 %v2292, %v2580
  %v2582 = vpop.f32.mrf.mxu0
  %2583 = vmatprep.mubr.bf16.mxu0 %v1369
  %2584 = vmatmul.mubr.bf16.gmra.mxu0 %v1368
  %v2585 = vpop.f32.mrf.mxu0
  %v2586 = vadd.f32 %v2297, %v2585
  %v2587 = vpop.f32.mrf.mxu0
  %v2588 = vpop.f32.mrf.mxu0
  %v2589 = vadd.f32 %v2300, %v2588
  %v2590 = vpop.f32.mrf.mxu0
  %2591 = vmatprep.mubr.bf16.mxu0 %v1377
  %2592 = vmatmul.mubr.bf16.gmra.mxu0 %v1376
  %v2593 = vpop.f32.mrf.mxu0
  %v2594 = vadd.f32 %v2305, %v2593
  %v2595 = vpop.f32.mrf.mxu0
  %v2596 = vpop.f32.mrf.mxu0
  %v2597 = vadd.f32 %v2308, %v2596
  %v2598 = vpop.f32.mrf.mxu0
  %2599 = vmatprep.mubr.bf16.mxu0 %v1385
  %2600 = vmatmul.mubr.bf16.gmra.mxu0 %v1384
  %v2601 = vpop.f32.mrf.mxu0
  %v2602 = vadd.f32 %v2313, %v2601
  %v2603 = vpop.f32.mrf.mxu0
  %v2604 = vpop.f32.mrf.mxu0
  %v2605 = vadd.f32 %v2316, %v2604
  %v2606 = vpop.f32.mrf.mxu0
  %2607 = vmatprep.mubr.bf16.mxu0 %v1393
  %2608 = vmatmul.mubr.bf16.gmra.mxu0 %v1392
  %v2609 = vpop.f32.mrf.mxu0
  %v2610 = vadd.f32 %v2321, %v2609
  %v2611 = vpop.f32.mrf.mxu0
  %v2612 = vpop.f32.mrf.mxu0
  %v2613 = vadd.f32 %v2324, %v2612
  %v2614 = vpop.f32.mrf.mxu0
  %2615 = vmatprep.mubr.bf16.mxu0 %v1401
  %2616 = vmatmul.mubr.bf16.gmra.mxu0 %v1400
  %v2617 = vpop.f32.mrf.mxu0
  %v2618 = vadd.f32 %v2329, %v2617
  %v2619 = vpop.f32.mrf.mxu0
  %v2620 = vpop.f32.mrf.mxu0
  %v2621 = vadd.f32 %v2332, %v2620
  %v2622 = vpop.f32.mrf.mxu0
  %2623 = vmatprep.mubr.bf16.mxu0 %v1409
  %2624 = vmatmul.mubr.bf16.gmra.mxu0 %v1408
  %v2625 = vpop.f32.mrf.mxu0
  %v2626 = vadd.f32 %v2337, %v2625
  %v2627 = vpop.f32.mrf.mxu0
  %v2628 = vpop.f32.mrf.mxu0
  %v2629 = vadd.f32 %v2340, %v2628
  %v2630 = vpop.f32.mrf.mxu0
  %2631 = vmatprep.mubr.bf16.mxu0 %v1417
  %2632 = vmatmul.mubr.bf16.gmra.mxu0 %v1416
  %v2633 = vpop.f32.mrf.mxu0
  %v2634 = vadd.f32 %v2345, %v2633
  %v2635 = vpop.f32.mrf.mxu0
  %v2636 = vpop.f32.mrf.mxu0
  %v2637 = vadd.f32 %v2348, %v2636
  %v2638 = vpop.f32.mrf.mxu0
  %2639 = vmatprep.mubr.bf16.mxu0 %v1425
  %2640 = vmatmul.mubr.bf16.gmra.mxu0 %v1424
  %v2641 = vpop.f32.mrf.mxu0
  %v2642 = vadd.f32 %v2353, %v2641
  %v2643 = vpop.f32.mrf.mxu0
  %v2644 = vpop.f32.mrf.mxu0
  %v2645 = vadd.f32 %v2356, %v2644
  %v2646 = vpop.f32.mrf.mxu0
  %2647 = vmatprep.mubr.bf16.mxu0 %v1433
  %2648 = vmatmul.mubr.bf16.gmra.mxu0 %v1432
  %v2649 = vpop.f32.mrf.mxu0
  %v2650 = vadd.f32 %v2361, %v2649
  %v2651 = vpop.f32.mrf.mxu0
  %v2652 = vpop.f32.mrf.mxu0
  %v2653 = vadd.f32 %v2364, %v2652
  %v2654 = vpop.f32.mrf.mxu0
  %2655 = vmatprep.mubr.bf16.mxu0 %v1441
  %2656 = vmatmul.mubr.bf16.gmra.mxu0 %v1440
  %v2657 = vpop.f32.mrf.mxu0
  %v2658 = vadd.f32 %v2369, %v2657
  %v2659 = vpop.f32.mrf.mxu0
  %v2660 = vpop.f32.mrf.mxu0
  %v2661 = vadd.f32 %v2372, %v2660
  %v2662 = vpop.f32.mrf.mxu0
  %2663 = vmatprep.mubr.bf16.mxu0 %v1449
  %2664 = vmatmul.mubr.bf16.gmra.mxu0 %v1448
  %v2665 = vpop.f32.mrf.mxu0
  %v2666 = vadd.f32 %v2377, %v2665
  %v2667 = vpop.f32.mrf.mxu0
  %v2668 = vpop.f32.mrf.mxu0
  %v2669 = vadd.f32 %v2380, %v2668
  %v2670 = vpop.f32.mrf.mxu0
  %2671 = vmatprep.mubr.bf16.mxu0 %v1457
  %2672 = vmatmul.mubr.bf16.gmra.mxu0 %v1456
  %v2673 = vpop.f32.mrf.mxu0
  %v2674 = vadd.f32 %v2385, %v2673
  %v2675 = vpop.f32.mrf.mxu0
  %v2676 = vpop.f32.mrf.mxu0
  %v2677 = vadd.f32 %v2388, %v2676
  %v2678 = vpop.f32.mrf.mxu0
  %2679 = vmatprep.mubr.bf16.mxu0 %v1465
  %2680 = vmatmul.mubr.bf16.gmra.mxu0 %v1464
  %v2681 = vpop.f32.mrf.mxu0
  %v2682 = vadd.f32 %v2393, %v2681
  %v2683 = vpop.f32.mrf.mxu0
  %v2684 = vpop.f32.mrf.mxu0
  %v2685 = vadd.f32 %v2396, %v2684
  %v2686 = vpop.f32.mrf.mxu0
  %2687 = vmatprep.mubr.bf16.mxu0 %v1473
  %2688 = vmatmul.mubr.bf16.gmra.mxu0 %v1472
  %v2689 = vpop.f32.mrf.mxu0
  %v2690 = vadd.f32 %v2401, %v2689
  %v2691 = vpop.f32.mrf.mxu0
  %v2692 = vpop.f32.mrf.mxu0
  %v2693 = vadd.f32 %v2404, %v2692
  %v2694 = vpop.f32.mrf.mxu0
  %2695 = vmatprep.mubr.bf16.mxu0 %v1481
  %2696 = vmatmul.mubr.bf16.gmra.mxu0 %v1480
  %v2697 = vpop.f32.mrf.mxu0
  %v2698 = vadd.f32 %v2409, %v2697
  %v2699 = vpop.f32.mrf.mxu0
  %v2700 = vpop.f32.mrf.mxu0
  %v2701 = vadd.f32 %v2412, %v2700
  %v2702 = vpop.f32.mrf.mxu0
  %2703 = vmatprep.mubr.bf16.mxu0 %v1489
  %2704 = vmatmul.mubr.bf16.gmra.mxu0 %v1488
  %v2705 = vpop.f32.mrf.mxu0
  %v2706 = vadd.f32 %v2417, %v2705
  %v2707 = vpop.f32.mrf.mxu0
  %v2708 = vpop.f32.mrf.mxu0
  %v2709 = vadd.f32 %v2420, %v2708
  %v2710 = vpop.f32.mrf.mxu0
  %2711 = vmatprep.mubr.bf16.mxu0 %v1497
  %2712 = vmatmul.mubr.bf16.gmra.mxu0 %v1496
  %v2713 = vpop.f32.mrf.mxu0
  %v2714 = vadd.f32 %v2425, %v2713
  %v2715 = vpop.f32.mrf.mxu0
  %v2716 = vpop.f32.mrf.mxu0
  %v2717 = vadd.f32 %v2428, %v2716
  %v2718 = vpop.f32.mrf.mxu0
  %2719 = vmatprep.mubr.bf16.mxu0 %v1505
  %2720 = vmatmul.mubr.bf16.gmra.mxu0 %v1504
  %v2721 = vpop.f32.mrf.mxu0
  %v2722 = vadd.f32 %v2433, %v2721
  %v2723 = vpop.f32.mrf.mxu0
  %v2724 = vpop.f32.mrf.mxu0
  %v2725 = vadd.f32 %v2436, %v2724
  %v2726 = vpop.f32.mrf.mxu0
  %2727 = vmatprep.mubr.bf16.mxu0 %v1513
  %2728 = vmatmul.mubr.bf16.gmra.mxu0 %v1512
  %v2729 = vpop.f32.mrf.mxu0
  %v2730 = vadd.f32 %v2441, %v2729
  %v2731 = vpop.f32.mrf.mxu0
  %v2732 = vpop.f32.mrf.mxu0
  %v2733 = vadd.f32 %v2444, %v2732
  %v2734 = vpop.f32.mrf.mxu0
  %2735 = vmatprep.mubr.bf16.mxu0 %v1521
  %2736 = vmatmul.mubr.bf16.gmra.mxu0 %v1520
  %v2737 = vpop.f32.mrf.mxu0
  %v2738 = vadd.f32 %v2449, %v2737
  %v2739 = vpop.f32.mrf.mxu0
  %v2740 = vpop.f32.mrf.mxu0
  %v2741 = vadd.f32 %v2452, %v2740
  %v2742 = vpop.f32.mrf.mxu0
  %2743 = vmatprep.mubr.bf16.mxu0 %v1529
  %2744 = vmatmul.mubr.bf16.gmra.mxu0 %v1528
  %v2745 = vpop.f32.mrf.mxu0
  %v2746 = vadd.f32 %v2457, %v2745
  %v2747 = vpop.f32.mrf.mxu0
  %v2748 = vpop.f32.mrf.mxu0
  %v2749 = vadd.f32 %v2460, %v2748
  %v2750 = vpop.f32.mrf.mxu0
  %2751 = vmatprep.mubr.bf16.mxu0 %v1537
  %2752 = vmatmul.mubr.bf16.gmra.mxu0 %v1536
  %v2753 = vpop.f32.mrf.mxu0
  %v2754 = vadd.f32 %v2465, %v2753
  %v2755 = vpop.f32.mrf.mxu0
  %v2756 = vpop.f32.mrf.mxu0
  %v2757 = vadd.f32 %v2468, %v2756
  %v2758 = vpop.f32.mrf.mxu0
  %2759 = vmatprep.mubr.bf16.mxu0 %v1545
  %2760 = vmatmul.mubr.bf16.gmra.mxu0 %v1544
  %v2761 = vpop.f32.mrf.mxu0
  %v2762 = vadd.f32 %v2473, %v2761
  %v2763 = vpop.f32.mrf.mxu0
  %v2764 = vpop.f32.mrf.mxu0
  %v2765 = vadd.f32 %v2476, %v2764
  %v2766 = vpop.f32.mrf.mxu0
  %2767 = vmatprep.mubr.bf16.mxu0 %v1553
  %2768 = vmatmul.mubr.bf16.gmra.mxu0 %v1552
  %v2769 = vpop.f32.mrf.mxu0
  %v2770 = vadd.f32 %v2481, %v2769
  %v2771 = vpop.f32.mrf.mxu0
  %v2772 = vpop.f32.mrf.mxu0
  %v2773 = vadd.f32 %v2484, %v2772
  %v2774 = vpop.f32.mrf.mxu0
  %2775 = vdwg.mxu0
  %2776 = vmatprep.subr.bf16.mxu0 0
  %2777 = vmatpush1.bf16.msra.mxu0 %v2109
  %2778 = vmatprep.subr.bf16.mxu0 0
  %2779 = vmatpush1.bf16.msra.mxu0 %v2108
  %2780 = vmatprep.subr.bf16.mxu0 0
  %2781 = vmatpush1.bf16.msra.mxu0 %v2107
  %2782 = vmatprep.subr.bf16.mxu0 0
  %2783 = vmatpush1.bf16.msra.mxu0 %v2106
  %2784 = vmatprep.subr.bf16.mxu0 0
  %2785 = vmatpush1.bf16.msra.mxu0 %v2105
  %2786 = vmatprep.subr.bf16.mxu0 0
  %2787 = vmatpush1.bf16.msra.mxu0 %v2104
  %2788 = vmatprep.subr.bf16.mxu0 0
  %2789 = vmatpush1.bf16.msra.mxu0 %v2103
  %2790 = vmatprep.subr.bf16.mxu0 0
  %2791 = vmatpush1.bf16.msra.mxu0 %v2102
  %2792 = vmatprep.subr.bf16.mxu0 0
  %2793 = vmatpush2.bf16.msra.mxu0 %v2117
  %2794 = vmatprep.subr.bf16.mxu0 0
  %2795 = vmatpush2.bf16.msra.mxu0 %v2116
  %2796 = vmatprep.subr.bf16.mxu0 0
  %2797 = vmatpush2.bf16.msra.mxu0 %v2115
  %2798 = vmatprep.subr.bf16.mxu0 0
  %2799 = vmatpush2.bf16.msra.mxu0 %v2114
  %2800 = vmatprep.subr.bf16.mxu0 0
  %2801 = vmatpush2.bf16.msra.mxu0 %v2113
  %2802 = vmatprep.subr.bf16.mxu0 0
  %2803 = vmatpush2.bf16.msra.mxu0 %v2112
  %2804 = vmatprep.subr.bf16.mxu0 0
  %2805 = vmatpush2.bf16.msra.mxu0 %v2111
  %2806 = vmatprep.subr.bf16.mxu0 0
  %2807 = vmatpush2.bf16.msra.mxu0 %v2110
  %2808 = vmatprep.mubr.bf16.mxu0 %v1307
  %2809 = vmatmul.mubr.bf16.gmra.mxu0 %v1306
  %v2810 = vpop.f32.mrf.mxu0
  %v2811 = vadd.f32 %v2522, %v2810
  %v2812 = vpop.f32.mrf.mxu0
  %v2813 = vpop.f32.mrf.mxu0
  %v2814 = vadd.f32 %v2525, %v2813
  %v2815 = vpop.f32.mrf.mxu0
  %2816 = vmatprep.mubr.bf16.mxu0 %v1315
  %2817 = vmatmul.mubr.bf16.gmra.mxu0 %v1314
  %v2818 = vpop.f32.mrf.mxu0
  %v2819 = vadd.f32 %v2530, %v2818
  %v2820 = vpop.f32.mrf.mxu0
  %v2821 = vpop.f32.mrf.mxu0
  %v2822 = vadd.f32 %v2533, %v2821
  %v2823 = vpop.f32.mrf.mxu0
  %2824 = vmatprep.mubr.bf16.mxu0 %v1323
  %2825 = vmatmul.mubr.bf16.gmra.mxu0 %v1322
  %v2826 = vpop.f32.mrf.mxu0
  %v2827 = vadd.f32 %v2538, %v2826
  %v2828 = vpop.f32.mrf.mxu0
  %v2829 = vpop.f32.mrf.mxu0
  %v2830 = vadd.f32 %v2541, %v2829
  %v2831 = vpop.f32.mrf.mxu0
  %2832 = vmatprep.mubr.bf16.mxu0 %v1331
  %2833 = vmatmul.mubr.bf16.gmra.mxu0 %v1330
  %v2834 = vpop.f32.mrf.mxu0
  %v2835 = vadd.f32 %v2546, %v2834
  %v2836 = vpop.f32.mrf.mxu0
  %v2837 = vpop.f32.mrf.mxu0
  %v2838 = vadd.f32 %v2549, %v2837
  %v2839 = vpop.f32.mrf.mxu0
  %2840 = vmatprep.mubr.bf16.mxu0 %v1339
  %2841 = vmatmul.mubr.bf16.gmra.mxu0 %v1338
  %v2842 = vpop.f32.mrf.mxu0
  %v2843 = vadd.f32 %v2554, %v2842
  %v2844 = vpop.f32.mrf.mxu0
  %v2845 = vpop.f32.mrf.mxu0
  %v2846 = vadd.f32 %v2557, %v2845
  %v2847 = vpop.f32.mrf.mxu0
  %2848 = vmatprep.mubr.bf16.mxu0 %v1347
  %2849 = vmatmul.mubr.bf16.gmra.mxu0 %v1346
  %v2850 = vpop.f32.mrf.mxu0
  %v2851 = vadd.f32 %v2562, %v2850
  %v2852 = vpop.f32.mrf.mxu0
  %v2853 = vpop.f32.mrf.mxu0
  %v2854 = vadd.f32 %v2565, %v2853
  %v2855 = vpop.f32.mrf.mxu0
  %2856 = vmatprep.mubr.bf16.mxu0 %v1355
  %2857 = vmatmul.mubr.bf16.gmra.mxu0 %v1354
  %v2858 = vpop.f32.mrf.mxu0
  %v2859 = vadd.f32 %v2570, %v2858
  %v2860 = vpop.f32.mrf.mxu0
  %v2861 = vpop.f32.mrf.mxu0
  %v2862 = vadd.f32 %v2573, %v2861
  %v2863 = vpop.f32.mrf.mxu0
  %2864 = vmatprep.mubr.bf16.mxu0 %v1363
  %2865 = vmatmul.mubr.bf16.gmra.mxu0 %v1362
  %v2866 = vpop.f32.mrf.mxu0
  %v2867 = vadd.f32 %v2578, %v2866
  %v2868 = vpop.f32.mrf.mxu0
  %v2869 = vpop.f32.mrf.mxu0
  %v2870 = vadd.f32 %v2581, %v2869
  %v2871 = vpop.f32.mrf.mxu0
  %2872 = vmatprep.mubr.bf16.mxu0 %v1371
  %2873 = vmatmul.mubr.bf16.gmra.mxu0 %v1370
  %v2874 = vpop.f32.mrf.mxu0
  %v2875 = vadd.f32 %v2586, %v2874
  %v2876 = vpop.f32.mrf.mxu0
  %v2877 = vpop.f32.mrf.mxu0
  %v2878 = vadd.f32 %v2589, %v2877
  %v2879 = vpop.f32.mrf.mxu0
  %2880 = vmatprep.mubr.bf16.mxu0 %v1379
  %2881 = vmatmul.mubr.bf16.gmra.mxu0 %v1378
  %v2882 = vpop.f32.mrf.mxu0
  %v2883 = vadd.f32 %v2594, %v2882
  %v2884 = vpop.f32.mrf.mxu0
  %v2885 = vpop.f32.mrf.mxu0
  %v2886 = vadd.f32 %v2597, %v2885
  %v2887 = vpop.f32.mrf.mxu0
  %2888 = vmatprep.mubr.bf16.mxu0 %v1387
  %2889 = vmatmul.mubr.bf16.gmra.mxu0 %v1386
  %v2890 = vpop.f32.mrf.mxu0
  %v2891 = vadd.f32 %v2602, %v2890
  %v2892 = vpop.f32.mrf.mxu0
  %v2893 = vpop.f32.mrf.mxu0
  %v2894 = vadd.f32 %v2605, %v2893
  %v2895 = vpop.f32.mrf.mxu0
  %2896 = vmatprep.mubr.bf16.mxu0 %v1395
  %2897 = vmatmul.mubr.bf16.gmra.mxu0 %v1394
  %v2898 = vpop.f32.mrf.mxu0
  %v2899 = vadd.f32 %v2610, %v2898
  %v2900 = vpop.f32.mrf.mxu0
  %v2901 = vpop.f32.mrf.mxu0
  %v2902 = vadd.f32 %v2613, %v2901
  %v2903 = vpop.f32.mrf.mxu0
  %2904 = vmatprep.mubr.bf16.mxu0 %v1403
  %2905 = vmatmul.mubr.bf16.gmra.mxu0 %v1402
  %v2906 = vpop.f32.mrf.mxu0
  %v2907 = vadd.f32 %v2618, %v2906
  %v2908 = vpop.f32.mrf.mxu0
  %v2909 = vpop.f32.mrf.mxu0
  %v2910 = vadd.f32 %v2621, %v2909
  %v2911 = vpop.f32.mrf.mxu0
  %2912 = vmatprep.mubr.bf16.mxu0 %v1411
  %2913 = vmatmul.mubr.bf16.gmra.mxu0 %v1410
  %v2914 = vpop.f32.mrf.mxu0
  %v2915 = vadd.f32 %v2626, %v2914
  %v2916 = vpop.f32.mrf.mxu0
  %v2917 = vpop.f32.mrf.mxu0
  %v2918 = vadd.f32 %v2629, %v2917
  %v2919 = vpop.f32.mrf.mxu0
  %2920 = vmatprep.mubr.bf16.mxu0 %v1419
  %2921 = vmatmul.mubr.bf16.gmra.mxu0 %v1418
  %v2922 = vpop.f32.mrf.mxu0
  %v2923 = vadd.f32 %v2634, %v2922
  %v2924 = vpop.f32.mrf.mxu0
  %v2925 = vpop.f32.mrf.mxu0
  %v2926 = vadd.f32 %v2637, %v2925
  %v2927 = vpop.f32.mrf.mxu0
  %2928 = vmatprep.mubr.bf16.mxu0 %v1427
  %2929 = vmatmul.mubr.bf16.gmra.mxu0 %v1426
  %v2930 = vpop.f32.mrf.mxu0
  %v2931 = vadd.f32 %v2642, %v2930
  %v2932 = vpop.f32.mrf.mxu0
  %v2933 = vpop.f32.mrf.mxu0
  %v2934 = vadd.f32 %v2645, %v2933
  %v2935 = vpop.f32.mrf.mxu0
  %2936 = vmatprep.mubr.bf16.mxu0 %v1435
  %2937 = vmatmul.mubr.bf16.gmra.mxu0 %v1434
  %v2938 = vpop.f32.mrf.mxu0
  %v2939 = vadd.f32 %v2650, %v2938
  %v2940 = vpop.f32.mrf.mxu0
  %v2941 = vpop.f32.mrf.mxu0
  %v2942 = vadd.f32 %v2653, %v2941
  %v2943 = vpop.f32.mrf.mxu0
  %2944 = vmatprep.mubr.bf16.mxu0 %v1443
  %2945 = vmatmul.mubr.bf16.gmra.mxu0 %v1442
  %v2946 = vpop.f32.mrf.mxu0
  %v2947 = vadd.f32 %v2658, %v2946
  %v2948 = vpop.f32.mrf.mxu0
  %v2949 = vpop.f32.mrf.mxu0
  %v2950 = vadd.f32 %v2661, %v2949
  %v2951 = vpop.f32.mrf.mxu0
  %2952 = vmatprep.mubr.bf16.mxu0 %v1451
  %2953 = vmatmul.mubr.bf16.gmra.mxu0 %v1450
  %v2954 = vpop.f32.mrf.mxu0
  %v2955 = vadd.f32 %v2666, %v2954
  %v2956 = vpop.f32.mrf.mxu0
  %v2957 = vpop.f32.mrf.mxu0
  %v2958 = vadd.f32 %v2669, %v2957
  %v2959 = vpop.f32.mrf.mxu0
  %2960 = vmatprep.mubr.bf16.mxu0 %v1459
  %2961 = vmatmul.mubr.bf16.gmra.mxu0 %v1458
  %v2962 = vpop.f32.mrf.mxu0
  %v2963 = vadd.f32 %v2674, %v2962
  %v2964 = vpop.f32.mrf.mxu0
  %v2965 = vpop.f32.mrf.mxu0
  %v2966 = vadd.f32 %v2677, %v2965
  %v2967 = vpop.f32.mrf.mxu0
  %2968 = vmatprep.mubr.bf16.mxu0 %v1467
  %2969 = vmatmul.mubr.bf16.gmra.mxu0 %v1466
  %v2970 = vpop.f32.mrf.mxu0
  %v2971 = vadd.f32 %v2682, %v2970
  %v2972 = vpop.f32.mrf.mxu0
  %v2973 = vpop.f32.mrf.mxu0
  %v2974 = vadd.f32 %v2685, %v2973
  %v2975 = vpop.f32.mrf.mxu0
  %2976 = vmatprep.mubr.bf16.mxu0 %v1475
  %2977 = vmatmul.mubr.bf16.gmra.mxu0 %v1474
  %v2978 = vpop.f32.mrf.mxu0
  %v2979 = vadd.f32 %v2690, %v2978
  %v2980 = vpop.f32.mrf.mxu0
  %v2981 = vpop.f32.mrf.mxu0
  %v2982 = vadd.f32 %v2693, %v2981
  %v2983 = vpop.f32.mrf.mxu0
  %2984 = vmatprep.mubr.bf16.mxu0 %v1483
  %2985 = vmatmul.mubr.bf16.gmra.mxu0 %v1482
  %v2986 = vpop.f32.mrf.mxu0
  %v2987 = vadd.f32 %v2698, %v2986
  %v2988 = vpop.f32.mrf.mxu0
  %v2989 = vpop.f32.mrf.mxu0
  %v2990 = vadd.f32 %v2701, %v2989
  %v2991 = vpop.f32.mrf.mxu0
  %2992 = vmatprep.mubr.bf16.mxu0 %v1491
  %2993 = vmatmul.mubr.bf16.gmra.mxu0 %v1490
  %v2994 = vpop.f32.mrf.mxu0
  %v2995 = vadd.f32 %v2706, %v2994
  %v2996 = vpop.f32.mrf.mxu0
  %v2997 = vpop.f32.mrf.mxu0
  %v2998 = vadd.f32 %v2709, %v2997
  %v2999 = vpop.f32.mrf.mxu0
  %3000 = vmatprep.mubr.bf16.mxu0 %v1499
  %3001 = vmatmul.mubr.bf16.gmra.mxu0 %v1498
  %v3002 = vpop.f32.mrf.mxu0
  %v3003 = vadd.f32 %v2714, %v3002
  %v3004 = vpop.f32.mrf.mxu0
  %v3005 = vpop.f32.mrf.mxu0
  %v3006 = vadd.f32 %v2717, %v3005
  %v3007 = vpop.f32.mrf.mxu0
  %3008 = vmatprep.mubr.bf16.mxu0 %v1507
  %3009 = vmatmul.mubr.bf16.gmra.mxu0 %v1506
  %v3010 = vpop.f32.mrf.mxu0
  %v3011 = vadd.f32 %v2722, %v3010
  %v3012 = vpop.f32.mrf.mxu0
  %v3013 = vpop.f32.mrf.mxu0
  %v3014 = vadd.f32 %v2725, %v3013
  %v3015 = vpop.f32.mrf.mxu0
  %3016 = vmatprep.mubr.bf16.mxu0 %v1515
  %3017 = vmatmul.mubr.bf16.gmra.mxu0 %v1514
  %v3018 = vpop.f32.mrf.mxu0
  %v3019 = vadd.f32 %v2730, %v3018
  %v3020 = vpop.f32.mrf.mxu0
  %v3021 = vpop.f32.mrf.mxu0
  %v3022 = vadd.f32 %v2733, %v3021
  %v3023 = vpop.f32.mrf.mxu0
  %3024 = vmatprep.mubr.bf16.mxu0 %v1523
  %3025 = vmatmul.mubr.bf16.gmra.mxu0 %v1522
  %v3026 = vpop.f32.mrf.mxu0
  %v3027 = vadd.f32 %v2738, %v3026
  %v3028 = vpop.f32.mrf.mxu0
  %v3029 = vpop.f32.mrf.mxu0
  %v3030 = vadd.f32 %v2741, %v3029
  %v3031 = vpop.f32.mrf.mxu0
  %3032 = vmatprep.mubr.bf16.mxu0 %v1531
  %3033 = vmatmul.mubr.bf16.gmra.mxu0 %v1530
  %v3034 = vpop.f32.mrf.mxu0
  %v3035 = vadd.f32 %v2746, %v3034
  %v3036 = vpop.f32.mrf.mxu0
  %v3037 = vpop.f32.mrf.mxu0
  %v3038 = vadd.f32 %v2749, %v3037
  %v3039 = vpop.f32.mrf.mxu0
  %3040 = vmatprep.mubr.bf16.mxu0 %v1539
  %3041 = vmatmul.mubr.bf16.gmra.mxu0 %v1538
  %v3042 = vpop.f32.mrf.mxu0
  %v3043 = vadd.f32 %v2754, %v3042
  %v3044 = vpop.f32.mrf.mxu0
  %v3045 = vpop.f32.mrf.mxu0
  %v3046 = vadd.f32 %v2757, %v3045
  %v3047 = vpop.f32.mrf.mxu0
  %3048 = vmatprep.mubr.bf16.mxu0 %v1547
  %3049 = vmatmul.mubr.bf16.gmra.mxu0 %v1546
  %v3050 = vpop.f32.mrf.mxu0
  %v3051 = vadd.f32 %v2762, %v3050
  %v3052 = vpop.f32.mrf.mxu0
  %v3053 = vpop.f32.mrf.mxu0
  %v3054 = vadd.f32 %v2765, %v3053
  %v3055 = vpop.f32.mrf.mxu0
  %3056 = vmatprep.mubr.bf16.mxu0 %v1555
  %3057 = vmatmul.mubr.bf16.gmra.mxu0 %v1554
  %v3058 = vpop.f32.mrf.mxu0
  %v3059 = vadd.f32 %v2770, %v3058
  %v3060 = vpop.f32.mrf.mxu0
  %v3061 = vpop.f32.mrf.mxu0
  %v3062 = vadd.f32 %v2773, %v3061
  %v3063 = vpop.f32.mrf.mxu0
  %3064 = vdwg.mxu0
  %3065 = vmatprep.subr.bf16.mxu0 0
  %3066 = vmatpush1.bf16.msra.mxu0 %v2125
  %3067 = vmatprep.subr.bf16.mxu0 0
  %3068 = vmatpush1.bf16.msra.mxu0 %v2124
  %3069 = vmatprep.subr.bf16.mxu0 0
  %3070 = vmatpush1.bf16.msra.mxu0 %v2123
  %3071 = vmatprep.subr.bf16.mxu0 0
  %3072 = vmatpush1.bf16.msra.mxu0 %v2122
  %3073 = vmatprep.subr.bf16.mxu0 0
  %3074 = vmatpush1.bf16.msra.mxu0 %v2121
  %3075 = vmatprep.subr.bf16.mxu0 0
  %3076 = vmatpush1.bf16.msra.mxu0 %v2120
  %3077 = vmatprep.subr.bf16.mxu0 0
  %3078 = vmatpush1.bf16.msra.mxu0 %v2119
  %3079 = vmatprep.subr.bf16.mxu0 0
  %3080 = vmatpush1.bf16.msra.mxu0 %v2118
  %3081 = vmatprep.subr.bf16.mxu0 0
  %3082 = vmatpush2.bf16.msra.mxu0 %v2133
  %3083 = vmatprep.subr.bf16.mxu0 0
  %3084 = vmatpush2.bf16.msra.mxu0 %v2132
  %3085 = vmatprep.subr.bf16.mxu0 0
  %3086 = vmatpush2.bf16.msra.mxu0 %v2131
  %3087 = vmatprep.subr.bf16.mxu0 0
  %3088 = vmatpush2.bf16.msra.mxu0 %v2130
  %3089 = vmatprep.subr.bf16.mxu0 0
  %3090 = vmatpush2.bf16.msra.mxu0 %v2129
  %3091 = vmatprep.subr.bf16.mxu0 0
  %3092 = vmatpush2.bf16.msra.mxu0 %v2128
  %3093 = vmatprep.subr.bf16.mxu0 0
  %3094 = vmatpush2.bf16.msra.mxu0 %v2127
  %3095 = vmatprep.subr.bf16.mxu0 0
  %3096 = vmatpush2.bf16.msra.mxu0 %v2126
  %3097 = vmatprep.mubr.bf16.mxu0 %v1309
  %3098 = vmatmul.mubr.bf16.gmra.mxu0 %v1308
  %v3099 = vpop.f32.mrf.mxu0
  %v3100 = vadd.f32 %v2811, %v3099
  %v3101 = vpop.f32.mrf.mxu0
  %v3102 = vpop.f32.mrf.mxu0
  %v3103 = vadd.f32 %v2814, %v3102
  %v3104 = vpop.f32.mrf.mxu0
  %3105 = vmatprep.mubr.bf16.mxu0 %v1317
  %3106 = vmatmul.mubr.bf16.gmra.mxu0 %v1316
  %v3107 = vpop.f32.mrf.mxu0
  %v3108 = vadd.f32 %v2819, %v3107
  %v3109 = vpop.f32.mrf.mxu0
  %v3110 = vpop.f32.mrf.mxu0
  %v3111 = vadd.f32 %v2822, %v3110
  %v3112 = vpop.f32.mrf.mxu0
  %3113 = vmatprep.mubr.bf16.mxu0 %v1325
  %3114 = vmatmul.mubr.bf16.gmra.mxu0 %v1324
  %v3115 = vpop.f32.mrf.mxu0
  %v3116 = vadd.f32 %v2827, %v3115
  %v3117 = vpop.f32.mrf.mxu0
  %v3118 = vpop.f32.mrf.mxu0
  %v3119 = vadd.f32 %v2830, %v3118
  %v3120 = vpop.f32.mrf.mxu0
  %3121 = vmatprep.mubr.bf16.mxu0 %v1333
  %3122 = vmatmul.mubr.bf16.gmra.mxu0 %v1332
  %v3123 = vpop.f32.mrf.mxu0
  %v3124 = vadd.f32 %v2835, %v3123
  %v3125 = vpop.f32.mrf.mxu0
  %v3126 = vpop.f32.mrf.mxu0
  %v3127 = vadd.f32 %v2838, %v3126
  %v3128 = vpop.f32.mrf.mxu0
  %3129 = vmatprep.mubr.bf16.mxu0 %v1341
  %3130 = vmatmul.mubr.bf16.gmra.mxu0 %v1340
  %v3131 = vpop.f32.mrf.mxu0
  %v3132 = vadd.f32 %v2843, %v3131
  %v3133 = vpop.f32.mrf.mxu0
  %v3134 = vpop.f32.mrf.mxu0
  %v3135 = vadd.f32 %v2846, %v3134
  %v3136 = vpop.f32.mrf.mxu0
  %3137 = vmatprep.mubr.bf16.mxu0 %v1349
  %3138 = vmatmul.mubr.bf16.gmra.mxu0 %v1348
  %v3139 = vpop.f32.mrf.mxu0
  %v3140 = vadd.f32 %v2851, %v3139
  %v3141 = vpop.f32.mrf.mxu0
  %v3142 = vpop.f32.mrf.mxu0
  %v3143 = vadd.f32 %v2854, %v3142
  %v3144 = vpop.f32.mrf.mxu0
  %3145 = vmatprep.mubr.bf16.mxu0 %v1357
  %3146 = vmatmul.mubr.bf16.gmra.mxu0 %v1356
  %v3147 = vpop.f32.mrf.mxu0
  %v3148 = vadd.f32 %v2859, %v3147
  %v3149 = vpop.f32.mrf.mxu0
  %v3150 = vpop.f32.mrf.mxu0
  %v3151 = vadd.f32 %v2862, %v3150
  %v3152 = vpop.f32.mrf.mxu0
  %3153 = vmatprep.mubr.bf16.mxu0 %v1365
  %3154 = vmatmul.mubr.bf16.gmra.mxu0 %v1364
  %v3155 = vpop.f32.mrf.mxu0
  %v3156 = vadd.f32 %v2867, %v3155
  %v3157 = vpop.f32.mrf.mxu0
  %v3158 = vpop.f32.mrf.mxu0
  %v3159 = vadd.f32 %v2870, %v3158
  %v3160 = vpop.f32.mrf.mxu0
  %3161 = vmatprep.mubr.bf16.mxu0 %v1373
  %3162 = vmatmul.mubr.bf16.gmra.mxu0 %v1372
  %v3163 = vpop.f32.mrf.mxu0
  %v3164 = vadd.f32 %v2875, %v3163
  %v3165 = vpop.f32.mrf.mxu0
  %v3166 = vpop.f32.mrf.mxu0
  %v3167 = vadd.f32 %v2878, %v3166
  %v3168 = vpop.f32.mrf.mxu0
  %3169 = vmatprep.mubr.bf16.mxu0 %v1381
  %3170 = vmatmul.mubr.bf16.gmra.mxu0 %v1380
  %v3171 = vpop.f32.mrf.mxu0
  %v3172 = vadd.f32 %v2883, %v3171
  %v3173 = vpop.f32.mrf.mxu0
  %v3174 = vpop.f32.mrf.mxu0
  %v3175 = vadd.f32 %v2886, %v3174
  %v3176 = vpop.f32.mrf.mxu0
  %3177 = vmatprep.mubr.bf16.mxu0 %v1389
  %3178 = vmatmul.mubr.bf16.gmra.mxu0 %v1388
  %v3179 = vpop.f32.mrf.mxu0
  %v3180 = vadd.f32 %v2891, %v3179
  %v3181 = vpop.f32.mrf.mxu0
  %v3182 = vpop.f32.mrf.mxu0
  %v3183 = vadd.f32 %v2894, %v3182
  %v3184 = vpop.f32.mrf.mxu0
  %3185 = vmatprep.mubr.bf16.mxu0 %v1397
  %3186 = vmatmul.mubr.bf16.gmra.mxu0 %v1396
  %v3187 = vpop.f32.mrf.mxu0
  %v3188 = vadd.f32 %v2899, %v3187
  %v3189 = vpop.f32.mrf.mxu0
  %v3190 = vpop.f32.mrf.mxu0
  %v3191 = vadd.f32 %v2902, %v3190
  %v3192 = vpop.f32.mrf.mxu0
  %3193 = vmatprep.mubr.bf16.mxu0 %v1405
  %3194 = vmatmul.mubr.bf16.gmra.mxu0 %v1404
  %v3195 = vpop.f32.mrf.mxu0
  %v3196 = vadd.f32 %v2907, %v3195
  %v3197 = vpop.f32.mrf.mxu0
  %v3198 = vpop.f32.mrf.mxu0
  %v3199 = vadd.f32 %v2910, %v3198
  %v3200 = vpop.f32.mrf.mxu0
  %3201 = vmatprep.mubr.bf16.mxu0 %v1413
  %3202 = vmatmul.mubr.bf16.gmra.mxu0 %v1412
  %v3203 = vpop.f32.mrf.mxu0
  %v3204 = vadd.f32 %v2915, %v3203
  %v3205 = vpop.f32.mrf.mxu0
  %v3206 = vpop.f32.mrf.mxu0
  %v3207 = vadd.f32 %v2918, %v3206
  %v3208 = vpop.f32.mrf.mxu0
  %3209 = vmatprep.mubr.bf16.mxu0 %v1421
  %3210 = vmatmul.mubr.bf16.gmra.mxu0 %v1420
  %v3211 = vpop.f32.mrf.mxu0
  %v3212 = vadd.f32 %v2923, %v3211
  %v3213 = vpop.f32.mrf.mxu0
  %v3214 = vpop.f32.mrf.mxu0
  %v3215 = vadd.f32 %v2926, %v3214
  %v3216 = vpop.f32.mrf.mxu0
  %3217 = vmatprep.mubr.bf16.mxu0 %v1429
  %3218 = vmatmul.mubr.bf16.gmra.mxu0 %v1428
  %v3219 = vpop.f32.mrf.mxu0
  %v3220 = vadd.f32 %v2931, %v3219
  %v3221 = vpop.f32.mrf.mxu0
  %v3222 = vpop.f32.mrf.mxu0
  %v3223 = vadd.f32 %v2934, %v3222
  %v3224 = vpop.f32.mrf.mxu0
  %3225 = vmatprep.mubr.bf16.mxu0 %v1437
  %3226 = vmatmul.mubr.bf16.gmra.mxu0 %v1436
  %v3227 = vpop.f32.mrf.mxu0
  %v3228 = vadd.f32 %v2939, %v3227
  %v3229 = vpop.f32.mrf.mxu0
  %v3230 = vpop.f32.mrf.mxu0
  %v3231 = vadd.f32 %v2942, %v3230
  %v3232 = vpop.f32.mrf.mxu0
  %3233 = vmatprep.mubr.bf16.mxu0 %v1445
  %3234 = vmatmul.mubr.bf16.gmra.mxu0 %v1444
  %v3235 = vpop.f32.mrf.mxu0
  %v3236 = vadd.f32 %v2947, %v3235
  %v3237 = vpop.f32.mrf.mxu0
  %v3238 = vpop.f32.mrf.mxu0
  %v3239 = vadd.f32 %v2950, %v3238
  %v3240 = vpop.f32.mrf.mxu0
  %3241 = vmatprep.mubr.bf16.mxu0 %v1453
  %3242 = vmatmul.mubr.bf16.gmra.mxu0 %v1452
  %v3243 = vpop.f32.mrf.mxu0
  %v3244 = vadd.f32 %v2955, %v3243
  %v3245 = vpop.f32.mrf.mxu0
  %v3246 = vpop.f32.mrf.mxu0
  %v3247 = vadd.f32 %v2958, %v3246
  %v3248 = vpop.f32.mrf.mxu0
  %3249 = vmatprep.mubr.bf16.mxu0 %v1461
  %3250 = vmatmul.mubr.bf16.gmra.mxu0 %v1460
  %v3251 = vpop.f32.mrf.mxu0
  %v3252 = vadd.f32 %v2963, %v3251
  %v3253 = vpop.f32.mrf.mxu0
  %v3254 = vpop.f32.mrf.mxu0
  %v3255 = vadd.f32 %v2966, %v3254
  %v3256 = vpop.f32.mrf.mxu0
  %3257 = vmatprep.mubr.bf16.mxu0 %v1469
  %3258 = vmatmul.mubr.bf16.gmra.mxu0 %v1468
  %v3259 = vpop.f32.mrf.mxu0
  %v3260 = vadd.f32 %v2971, %v3259
  %v3261 = vpop.f32.mrf.mxu0
  %v3262 = vpop.f32.mrf.mxu0
  %v3263 = vadd.f32 %v2974, %v3262
  %v3264 = vpop.f32.mrf.mxu0
  %3265 = vmatprep.mubr.bf16.mxu0 %v1477
  %3266 = vmatmul.mubr.bf16.gmra.mxu0 %v1476
  %v3267 = vpop.f32.mrf.mxu0
  %v3268 = vadd.f32 %v2979, %v3267
  %v3269 = vpop.f32.mrf.mxu0
  %v3270 = vpop.f32.mrf.mxu0
  %v3271 = vadd.f32 %v2982, %v3270
  %v3272 = vpop.f32.mrf.mxu0
  %3273 = vmatprep.mubr.bf16.mxu0 %v1485
  %3274 = vmatmul.mubr.bf16.gmra.mxu0 %v1484
  %v3275 = vpop.f32.mrf.mxu0
  %v3276 = vadd.f32 %v2987, %v3275
  %v3277 = vpop.f32.mrf.mxu0
  %v3278 = vpop.f32.mrf.mxu0
  %v3279 = vadd.f32 %v2990, %v3278
  %v3280 = vpop.f32.mrf.mxu0
  %3281 = vmatprep.mubr.bf16.mxu0 %v1493
  %3282 = vmatmul.mubr.bf16.gmra.mxu0 %v1492
  %v3283 = vpop.f32.mrf.mxu0
  %v3284 = vadd.f32 %v2995, %v3283
  %v3285 = vpop.f32.mrf.mxu0
  %v3286 = vpop.f32.mrf.mxu0
  %v3287 = vadd.f32 %v2998, %v3286
  %v3288 = vpop.f32.mrf.mxu0
  %3289 = vmatprep.mubr.bf16.mxu0 %v1501
  %3290 = vmatmul.mubr.bf16.gmra.mxu0 %v1500
  %v3291 = vpop.f32.mrf.mxu0
  %v3292 = vadd.f32 %v3003, %v3291
  %v3293 = vpop.f32.mrf.mxu0
  %v3294 = vpop.f32.mrf.mxu0
  %v3295 = vadd.f32 %v3006, %v3294
  %v3296 = vpop.f32.mrf.mxu0
  %3297 = vmatprep.mubr.bf16.mxu0 %v1509
  %3298 = vmatmul.mubr.bf16.gmra.mxu0 %v1508
  %v3299 = vpop.f32.mrf.mxu0
  %v3300 = vadd.f32 %v3011, %v3299
  %v3301 = vpop.f32.mrf.mxu0
  %v3302 = vpop.f32.mrf.mxu0
  %v3303 = vadd.f32 %v3014, %v3302
  %v3304 = vpop.f32.mrf.mxu0
  %3305 = vmatprep.mubr.bf16.mxu0 %v1517
  %3306 = vmatmul.mubr.bf16.gmra.mxu0 %v1516
  %v3307 = vpop.f32.mrf.mxu0
  %v3308 = vadd.f32 %v3019, %v3307
  %v3309 = vpop.f32.mrf.mxu0
  %v3310 = vpop.f32.mrf.mxu0
  %v3311 = vadd.f32 %v3022, %v3310
  %v3312 = vpop.f32.mrf.mxu0
  %3313 = vmatprep.mubr.bf16.mxu0 %v1525
  %3314 = vmatmul.mubr.bf16.gmra.mxu0 %v1524
  %v3315 = vpop.f32.mrf.mxu0
  %v3316 = vadd.f32 %v3027, %v3315
  %v3317 = vpop.f32.mrf.mxu0
  %v3318 = vpop.f32.mrf.mxu0
  %v3319 = vadd.f32 %v3030, %v3318
  %v3320 = vpop.f32.mrf.mxu0
  %3321 = vmatprep.mubr.bf16.mxu0 %v1533
  %3322 = vmatmul.mubr.bf16.gmra.mxu0 %v1532
  %v3323 = vpop.f32.mrf.mxu0
  %v3324 = vadd.f32 %v3035, %v3323
  %v3325 = vpop.f32.mrf.mxu0
  %v3326 = vpop.f32.mrf.mxu0
  %v3327 = vadd.f32 %v3038, %v3326
  %v3328 = vpop.f32.mrf.mxu0
  %3329 = vmatprep.mubr.bf16.mxu0 %v1541
  %3330 = vmatmul.mubr.bf16.gmra.mxu0 %v1540
  %v3331 = vpop.f32.mrf.mxu0
  %v3332 = vadd.f32 %v3043, %v3331
  %v3333 = vpop.f32.mrf.mxu0
  %v3334 = vpop.f32.mrf.mxu0
  %v3335 = vadd.f32 %v3046, %v3334
  %v3336 = vpop.f32.mrf.mxu0
  %3337 = vmatprep.mubr.bf16.mxu0 %v1549
  %3338 = vmatmul.mubr.bf16.gmra.mxu0 %v1548
  %v3339 = vpop.f32.mrf.mxu0
  %v3340 = vadd.f32 %v3051, %v3339
  %v3341 = vpop.f32.mrf.mxu0
  %v3342 = vpop.f32.mrf.mxu0
  %v3343 = vadd.f32 %v3054, %v3342
  %v3344 = vpop.f32.mrf.mxu0
  %3345 = vmatprep.mubr.bf16.mxu0 %v1557
  %3346 = vmatmul.mubr.bf16.gmra.mxu0 %v1556
  %v3347 = vpop.f32.mrf.mxu0
  %v3348 = vadd.f32 %v3059, %v3347
  %v3349 = vpop.f32.mrf.mxu0
  %v3350 = vpop.f32.mrf.mxu0
  %v3351 = vadd.f32 %v3062, %v3350
  %v3352 = vpop.f32.mrf.mxu0
  %3353 = vdwg.mxu0
  %v3354 = vadd.f32 %v86, %v3100
  %v3355 = vadd.f32 %v87, %v3103
  %v3356 = vadd.f32 %v88, %v3108
  %v3357 = vadd.f32 %v89, %v3111
  %v3358 = vadd.f32 %v90, %v3116
  %v3359 = vadd.f32 %v91, %v3119
  %v3360 = vadd.f32 %v92, %v3124
  %v3361 = vadd.f32 %v93, %v3127
  %v3362 = vadd.f32 %v94, %v3132
  %v3363 = vadd.f32 %v95, %v3135
  %v3364 = vadd.f32 %v96, %v3140
  %v3365 = vadd.f32 %v97, %v3143
  %v3366 = vadd.f32 %v98, %v3148
  %v3367 = vadd.f32 %v99, %v3151
  %v3368 = vadd.f32 %v100, %v3156
  %v3369 = vadd.f32 %v101, %v3159
  %v3370 = vadd.f32 %v102, %v3164
  %v3371 = vadd.f32 %v103, %v3167
  %v3372 = vadd.f32 %v104, %v3172
  %v3373 = vadd.f32 %v105, %v3175
  %v3374 = vadd.f32 %v106, %v3180
  %v3375 = vadd.f32 %v107, %v3183
  %v3376 = vadd.f32 %v108, %v3188
  %v3377 = vadd.f32 %v109, %v3191
  %v3378 = vadd.f32 %v110, %v3196
  %v3379 = vadd.f32 %v111, %v3199
  %v3380 = vadd.f32 %v112, %v3204
  %v3381 = vadd.f32 %v113, %v3207
  %v3382 = vadd.f32 %v114, %v3212
  %v3383 = vadd.f32 %v115, %v3215
  %v3384 = vadd.f32 %v116, %v3220
  %v3385 = vadd.f32 %v117, %v3223
  %v3386 = vadd.f32 %v118, %v3228
  %v3387 = vadd.f32 %v119, %v3231
  %v3388 = vadd.f32 %v120, %v3236
  %v3389 = vadd.f32 %v121, %v3239
  %v3390 = vadd.f32 %v122, %v3244
  %v3391 = vadd.f32 %v123, %v3247
  %v3392 = vadd.f32 %v124, %v3252
  %v3393 = vadd.f32 %v125, %v3255
  %v3394 = vadd.f32 %v126, %v3260
  %v3395 = vadd.f32 %v127, %v3263
  %v3396 = vadd.f32 %v128, %v3268
  %v3397 = vadd.f32 %v129, %v3271
  %v3398 = vadd.f32 %v130, %v3276
  %v3399 = vadd.f32 %v131, %v3279
  %v3400 = vadd.f32 %v132, %v3284
  %v3401 = vadd.f32 %v133, %v3287
  %v3402 = vadd.f32 %v134, %v3292
  %v3403 = vadd.f32 %v135, %v3295
  %v3404 = vadd.f32 %v136, %v3300
  %v3405 = vadd.f32 %v137, %v3303
  %v3406 = vadd.f32 %v138, %v3308
  %v3407 = vadd.f32 %v139, %v3311
  %v3408 = vadd.f32 %v140, %v3316
  %v3409 = vadd.f32 %v141, %v3319
  %v3410 = vadd.f32 %v142, %v3324
  %v3411 = vadd.f32 %v143, %v3327
  %v3412 = vadd.f32 %v144, %v3332
  %v3413 = vadd.f32 %v145, %v3335
  %v3414 = vadd.f32 %v146, %v3340
  %v3415 = vadd.f32 %v147, %v3343
  %v3416 = vadd.f32 %v148, %v3348
  %v3417 = vadd.f32 %v149, %v3351
  %3418 = vst [vmem:[#allocation2] sm:$0xff] %v3354
  %3419 = vst [vmem:[#allocation2 + $0x8] sm:$0xff] %v3355
  %3420 = vst [vmem:[#allocation2 + $0x10] sm:$0xff] %v3356
  %3421 = vst [vmem:[#allocation2 + $0x18] sm:$0xff] %v3357
  %3422 = vst [vmem:[#allocation2 + $0x20] sm:$0xff] %v3358
  %3423 = vst [vmem:[#allocation2 + $0x28] sm:$0xff] %v3359
  %3424 = vst [vmem:[#allocation2 + $0x30] sm:$0xff] %v3360
  %3425 = vst [vmem:[#allocation2 + $0x38] sm:$0xff] %v3361
  %3426 = vst [vmem:[#allocation2 + $0x40] sm:$0xff] %v3362
  %3427 = vst [vmem:[#allocation2 + $0x48] sm:$0xff] %v3363
  %3428 = vst [vmem:[#allocation2 + $0x50] sm:$0xff] %v3364
  %3429 = vst [vmem:[#allocation2 + $0x58] sm:$0xff] %v3365
  %3430 = vst [vmem:[#allocation2 + $0x60] sm:$0xff] %v3366
  %3431 = vst [vmem:[#allocation2 + $0x68] sm:$0xff] %v3367
  %3432 = vst [vmem:[#allocation2 + $0x70] sm:$0xff] %v3368
  %3433 = vst [vmem:[#allocation2 + $0x78] sm:$0xff] %v3369
  %3434 = vst [vmem:[#allocation2 + $0x80] sm:$0xff] %v3370
  %3435 = vst [vmem:[#allocation2 + $0x88] sm:$0xff] %v3371
  %3436 = vst [vmem:[#allocation2 + $0x90] sm:$0xff] %v3372
  %3437 = vst [vmem:[#allocation2 + $0x98] sm:$0xff] %v3373
  %3438 = vst [vmem:[#allocation2 + $0xa0] sm:$0xff] %v3374
  %3439 = vst [vmem:[#allocation2 + $0xa8] sm:$0xff] %v3375
  %3440 = vst [vmem:[#allocation2 + $0xb0] sm:$0xff] %v3376
  %3441 = vst [vmem:[#allocation2 + $0xb8] sm:$0xff] %v3377
  %3442 = vst [vmem:[#allocation2 + $0xc0] sm:$0xff] %v3378
  %3443 = vst [vmem:[#allocation2 + $0xc8] sm:$0xff] %v3379
  %3444 = vst [vmem:[#allocation2 + $0xd0] sm:$0xff] %v3380
  %3445 = vst [vmem:[#allocation2 + $0xd8] sm:$0xff] %v3381
  %3446 = vst [vmem:[#allocation2 + $0xe0] sm:$0xff] %v3382
  %3447 = vst [vmem:[#allocation2 + $0xe8] sm:$0xff] %v3383
  %3448 = vst [vmem:[#allocation2 + $0xf0] sm:$0xff] %v3384
  %3449 = vst [vmem:[#allocation2 + $0xf8] sm:$0xff] %v3385
  %3450 = vst [vmem:[#allocation2 + $0x100] sm:$0xff] %v3386
  %3451 = vst [vmem:[#allocation2 + $0x108] sm:$0xff] %v3387
  %3452 = vst [vmem:[#allocation2 + $0x110] sm:$0xff] %v3388
  %3453 = vst [vmem:[#allocation2 + $0x118] sm:$0xff] %v3389
  %3454 = vst [vmem:[#allocation2 + $0x120] sm:$0xff] %v3390
  %3455 = vst [vmem:[#allocation2 + $0x128] sm:$0xff] %v3391
  %3456 = vst [vmem:[#allocation2 + $0x130] sm:$0xff] %v3392
  %3457 = vst [vmem:[#allocation2 + $0x138] sm:$0xff] %v3393
  %3458 = vst [vmem:[#allocation2 + $0x140] sm:$0xff] %v3394
  %3459 = vst [vmem:[#allocation2 + $0x148] sm:$0xff] %v3395
  %3460 = vst [vmem:[#allocation2 + $0x150] sm:$0xff] %v3396
  %3461 = vst [vmem:[#allocation2 + $0x158] sm:$0xff] %v3397
  %3462 = vst [vmem:[#allocation2 + $0x160] sm:$0xff] %v3398
  %3463 = vst [vmem:[#allocation2 + $0x168] sm:$0xff] %v3399
  %3464 = vst [vmem:[#allocation2 + $0x170] sm:$0xff] %v3400
  %3465 = vst [vmem:[#allocation2 + $0x178] sm:$0xff] %v3401
  %3466 = vst [vmem:[#allocation2 + $0x180] sm:$0xff] %v3402
  %3467 = vst [vmem:[#allocation2 + $0x188] sm:$0xff] %v3403
  %3468 = vst [vmem:[#allocation2 + $0x190] sm:$0xff] %v3404
  %3469 = vst [vmem:[#allocation2 + $0x198] sm:$0xff] %v3405
  %3470 = vst [vmem:[#allocation2 + $0x1a0] sm:$0xff] %v3406
  %3471 = vst [vmem:[#allocation2 + $0x1a8] sm:$0xff] %v3407
  %3472 = vst [vmem:[#allocation2 + $0x1b0] sm:$0xff] %v3408
  %3473 = vst [vmem:[#allocation2 + $0x1b8] sm:$0xff] %v3409
  %3474 = vst [vmem:[#allocation2 + $0x1c0] sm:$0xff] %v3410
  %3475 = vst [vmem:[#allocation2 + $0x1c8] sm:$0xff] %v3411
  %3476 = vst [vmem:[#allocation2 + $0x1d0] sm:$0xff] %v3412
  %3477 = vst [vmem:[#allocation2 + $0x1d8] sm:$0xff] %v3413
  %3478 = vst [vmem:[#allocation2 + $0x1e0] sm:$0xff] %v3414
  %3479 = vst [vmem:[#allocation2 + $0x1e8] sm:$0xff] %v3415
  %3480 = vst [vmem:[#allocation2 + $0x1f0] sm:$0xff] %v3416
  %3481 = vst [vmem:[#allocation2 + $0x1f8] sm:$0xff] %v3417
  // Predicated region
  $region22: #{critic_forward.6} parent=0 // pred_check
    %p3482 = pneg %p18
  $region23: #{critic_forward.6} parent=0 // pred_check_branch
    %3484 = sbr.rel (%p3482) target = $region25
  $region24: #{critic_forward.6} parent=0 // pred_region
    %v3485 = vld [vmem:[#allocation2] sm:$0xff]
    %v3486 = vld [vmem:[#allocation2 + $0x8] sm:$0xff]
    %v3487 = vld [vmem:[#allocation2 + $0x10] sm:$0xff]
    %v3488 = vld [vmem:[#allocation2 + $0x18] sm:$0xff]
    %v3489 = vld [vmem:[#allocation2 + $0x20] sm:$0xff]
    %v3490 = vld [vmem:[#allocation2 + $0x28] sm:$0xff]
    %v3491 = vld [vmem:[#allocation2 + $0x30] sm:$0xff]
    %v3492 = vld [vmem:[#allocation2 + $0x38] sm:$0xff]
    %v3493 = vld [vmem:[#allocation2 + $0x40] sm:$0xff]
    %v3494 = vld [vmem:[#allocation2 + $0x48] sm:$0xff]
    %v3495 = vld [vmem:[#allocation2 + $0x50] sm:$0xff]
    %v3496 = vld [vmem:[#allocation2 + $0x58] sm:$0xff]
    %v3497 = vld [vmem:[#allocation2 + $0x60] sm:$0xff]
    %v3498 = vld [vmem:[#allocation2 + $0x68] sm:$0xff]
    %v3499 = vld [vmem:[#allocation2 + $0x70] sm:$0xff]
    %v3500 = vld [vmem:[#allocation2 + $0x78] sm:$0xff]
    %v3501 = vld [vmem:[#allocation2 + $0x80] sm:$0xff]
    %v3502 = vld [vmem:[#allocation2 + $0x88] sm:$0xff]
    %v3503 = vld [vmem:[#allocation2 + $0x90] sm:$0xff]
    %v3504 = vld [vmem:[#allocation2 + $0x98] sm:$0xff]
    %v3505 = vld [vmem:[#allocation2 + $0xa0] sm:$0xff]
    %v3506 = vld [vmem:[#allocation2 + $0xa8] sm:$0xff]
    %v3507 = vld [vmem:[#allocation2 + $0xb0] sm:$0xff]
    %v3508 = vld [vmem:[#allocation2 + $0xb8] sm:$0xff]
    %v3509 = vld [vmem:[#allocation2 + $0xc0] sm:$0xff]
    %v3510 = vld [vmem:[#allocation2 + $0xc8] sm:$0xff]
    %v3511 = vld [vmem:[#allocation2 + $0xd0] sm:$0xff]
    %v3512 = vld [vmem:[#allocation2 + $0xd8] sm:$0xff]
    %v3513 = vld [vmem:[#allocation2 + $0xe0] sm:$0xff]
    %v3514 = vld [vmem:[#allocation2 + $0xe8] sm:$0xff]
    %v3515 = vld [vmem:[#allocation2 + $0xf0] sm:$0xff]
    %v3516 = vld [vmem:[#allocation2 + $0xf8] sm:$0xff]
    %v3517 = vld [vmem:[#allocation2 + $0x100] sm:$0xff]
    %v3518 = vld [vmem:[#allocation2 + $0x108] sm:$0xff]
    %v3519 = vld [vmem:[#allocation2 + $0x110] sm:$0xff]
    %v3520 = vld [vmem:[#allocation2 + $0x118] sm:$0xff]
    %v3521 = vld [vmem:[#allocation2 + $0x120] sm:$0xff]
    %v3522 = vld [vmem:[#allocation2 + $0x128] sm:$0xff]
    %v3523 = vld [vmem:[#allocation2 + $0x130] sm:$0xff]
    %v3524 = vld [vmem:[#allocation2 + $0x138] sm:$0xff]
    %v3525 = vld [vmem:[#allocation2 + $0x140] sm:$0xff]
    %v3526 = vld [vmem:[#allocation2 + $0x148] sm:$0xff]
    %v3527 = vld [vmem:[#allocation2 + $0x150] sm:$0xff]
    %v3528 = vld [vmem:[#allocation2 + $0x158] sm:$0xff]
    %v3529 = vld [vmem:[#allocation2 + $0x160] sm:$0xff]
    %v3530 = vld [vmem:[#allocation2 + $0x168] sm:$0xff]
    %v3531 = vld [vmem:[#allocation2 + $0x170] sm:$0xff]
    %v3532 = vld [vmem:[#allocation2 + $0x178] sm:$0xff]
    %v3533 = vld [vmem:[#allocation2 + $0x180] sm:$0xff]
    %v3534 = vld [vmem:[#allocation2 + $0x188] sm:$0xff]
    %v3535 = vld [vmem:[#allocation2 + $0x190] sm:$0xff]
    %v3536 = vld [vmem:[#allocation2 + $0x198] sm:$0xff]
    %v3537 = vld [vmem:[#allocation2 + $0x1a0] sm:$0xff]
    %v3538 = vld [vmem:[#allocation2 + $0x1a8] sm:$0xff]
    %v3539 = vld [vmem:[#allocation2 + $0x1b0] sm:$0xff]
    %v3540 = vld [vmem:[#allocation2 + $0x1b8] sm:$0xff]
    %v3541 = vld [vmem:[#allocation2 + $0x1c0] sm:$0xff]
    %v3542 = vld [vmem:[#allocation2 + $0x1c8] sm:$0xff]
    %v3543 = vld [vmem:[#allocation2 + $0x1d0] sm:$0xff]
    %v3544 = vld [vmem:[#allocation2 + $0x1d8] sm:$0xff]
    %v3545 = vld [vmem:[#allocation2 + $0x1e0] sm:$0xff]
    %v3546 = vld [vmem:[#allocation2 + $0x1e8] sm:$0xff]
    %v3547 = vld [vmem:[#allocation2 + $0x1f0] sm:$0xff]
    %v3548 = vld [vmem:[#allocation2 + $0x1f8] sm:$0xff]
    %v3549 = vadd.f32 %v3485, %v3486
    %v3550 = vadd.f32 %v3549, %v3487
    %v3551 = vadd.f32 %v3550, %v3488
    %v3552 = vadd.f32 %v3551, %v3489
    %v3553 = vadd.f32 %v3552, %v3490
    %v3554 = vadd.f32 %v3553, %v3491
    %v3555 = vadd.f32 %v3554, %v3492
    %v3556 = vadd.f32 %v3555, %v3493
    %v3557 = vadd.f32 %v3556, %v3494
    %v3558 = vadd.f32 %v3557, %v3495
    %v3559 = vadd.f32 %v3558, %v3496
    %v3560 = vadd.f32 %v3559, %v3497
    %v3561 = vadd.f32 %v3560, %v3498
    %v3562 = vadd.f32 %v3561, %v3499
    %v3563 = vadd.f32 %v3562, %v3500
    %v3564 = vadd.f32 %v3563, %v3501
    %v3565 = vadd.f32 %v3564, %v3502
    %v3566 = vadd.f32 %v3565, %v3503
    %v3567 = vadd.f32 %v3566, %v3504
    %v3568 = vadd.f32 %v3567, %v3505
    %v3569 = vadd.f32 %v3568, %v3506
    %v3570 = vadd.f32 %v3569, %v3507
    %v3571 = vadd.f32 %v3570, %v3508
    %v3572 = vadd.f32 %v3571, %v3509
    %v3573 = vadd.f32 %v3572, %v3510
    %v3574 = vadd.f32 %v3573, %v3511
    %v3575 = vadd.f32 %v3574, %v3512
    %v3576 = vadd.f32 %v3575, %v3513
    %v3577 = vadd.f32 %v3576, %v3514
    %v3578 = vadd.f32 %v3577, %v3515
    %v3579 = vadd.f32 %v3578, %v3516
    %v3580 = vadd.f32 %v3579, %v3517
    %v3581 = vadd.f32 %v3580, %v3518
    %v3582 = vadd.f32 %v3581, %v3519
    %v3583 = vadd.f32 %v3582, %v3520
    %v3584 = vadd.f32 %v3583, %v3521
    %v3585 = vadd.f32 %v3584, %v3522
    %v3586 = vadd.f32 %v3585, %v3523
    %v3587 = vadd.f32 %v3586, %v3524
    %v3588 = vadd.f32 %v3587, %v3525
    %v3589 = vadd.f32 %v3588, %v3526
    %v3590 = vadd.f32 %v3589, %v3527
    %v3591 = vadd.f32 %v3590, %v3528
    %v3592 = vadd.f32 %v3591, %v3529
    %v3593 = vadd.f32 %v3592, %v3530
    %v3594 = vadd.f32 %v3593, %v3531
    %v3595 = vadd.f32 %v3594, %v3532
    %v3596 = vadd.f32 %v3595, %v3533
    %v3597 = vadd.f32 %v3596, %v3534
    %v3598 = vadd.f32 %v3597, %v3535
    %v3599 = vadd.f32 %v3598, %v3536
    %v3600 = vadd.f32 %v3599, %v3537
    %v3601 = vadd.f32 %v3600, %v3538
    %v3602 = vadd.f32 %v3601, %v3539
    %v3603 = vadd.f32 %v3602, %v3540
    %v3604 = vadd.f32 %v3603, %v3541
    %v3605 = vadd.f32 %v3604, %v3542
    %v3606 = vadd.f32 %v3605, %v3543
    %v3607 = vadd.f32 %v3606, %v3544
    %v3608 = vadd.f32 %v3607, %v3545
    %v3609 = vadd.f32 %v3608, %v3546
    %v3610 = vadd.f32 %v3609, %v3547
    %v3611 = vadd.f32 %v3610, %v3548
    %v3612 = vrot.slane %v3611, 4
    %v3613 = vadd.f32 %v3611, %v3612
    %v3614 = vrot.slane %v3613, 2
    %v3615 = vadd.f32 %v3613, %v3614
    %v3616 = vrot.slane %v3615, 1
    %v3617 = vadd.f32 %v3615, %v3616
    %v3618 = vrcp.pop 512.0
    %v3619 = vmul.f32 %v3617, %v3618
    %v3620 = vsub.f32 %v3485, %v3619
    %v3621 = vsub.f32 %v3486, %v3619
    %v3622 = vsub.f32 %v3487, %v3619
    %v3623 = vsub.f32 %v3488, %v3619
    %v3624 = vsub.f32 %v3489, %v3619
    %v3625 = vsub.f32 %v3490, %v3619
    %v3626 = vsub.f32 %v3491, %v3619
    %v3627 = vsub.f32 %v3492, %v3619
    %v3628 = vsub.f32 %v3493, %v3619
    %v3629 = vsub.f32 %v3494, %v3619
    %v3630 = vsub.f32 %v3495, %v3619
    %v3631 = vsub.f32 %v3496, %v3619
    %v3632 = vsub.f32 %v3497, %v3619
    %v3633 = vsub.f32 %v3498, %v3619
    %v3634 = vsub.f32 %v3499, %v3619
    %v3635 = vsub.f32 %v3500, %v3619
    %v3636 = vsub.f32 %v3501, %v3619
    %v3637 = vsub.f32 %v3502, %v3619
    %v3638 = vsub.f32 %v3503, %v3619
    %v3639 = vsub.f32 %v3504, %v3619
    %v3640 = vsub.f32 %v3505, %v3619
    %v3641 = vsub.f32 %v3506, %v3619
    %v3642 = vsub.f32 %v3507, %v3619
    %v3643 = vsub.f32 %v3508, %v3619
    %v3644 = vsub.f32 %v3509, %v3619
    %v3645 = vsub.f32 %v3510, %v3619
    %v3646 = vsub.f32 %v3511, %v3619
    %v3647 = vsub.f32 %v3512, %v3619
    %v3648 = vsub.f32 %v3513, %v3619
    %v3649 = vsub.f32 %v3514, %v3619
    %v3650 = vsub.f32 %v3515, %v3619
    %v3651 = vsub.f32 %v3516, %v3619
    %v3652 = vsub.f32 %v3517, %v3619
    %v3653 = vsub.f32 %v3518, %v3619
    %v3654 = vsub.f32 %v3519, %v3619
    %v3655 = vsub.f32 %v3520, %v3619
    %v3656 = vsub.f32 %v3521, %v3619
    %v3657 = vsub.f32 %v3522, %v3619
    %v3658 = vsub.f32 %v3523, %v3619
    %v3659 = vsub.f32 %v3524, %v3619
    %v3660 = vsub.f32 %v3525, %v3619
    %v3661 = vsub.f32 %v3526, %v3619
    %v3662 = vsub.f32 %v3527, %v3619
    %v3663 = vsub.f32 %v3528, %v3619
    %v3664 = vsub.f32 %v3529, %v3619
    %v3665 = vsub.f32 %v3530, %v3619
    %v3666 = vsub.f32 %v3531, %v3619
    %v3667 = vsub.f32 %v3532, %v3619
    %v3668 = vsub.f32 %v3533, %v3619
    %v3669 = vsub.f32 %v3534, %v3619
    %v3670 = vsub.f32 %v3535, %v3619
    %v3671 = vsub.f32 %v3536, %v3619
    %v3672 = vsub.f32 %v3537, %v3619
    %v3673 = vsub.f32 %v3538, %v3619
    %v3674 = vsub.f32 %v3539, %v3619
    %v3675 = vsub.f32 %v3540, %v3619
    %v3676 = vsub.f32 %v3541, %v3619
    %v3677 = vsub.f32 %v3542, %v3619
    %v3678 = vsub.f32 %v3543, %v3619
    %v3679 = vsub.f32 %v3544, %v3619
    %v3680 = vsub.f32 %v3545, %v3619
    %v3681 = vsub.f32 %v3546, %v3619
    %v3682 = vsub.f32 %v3547, %v3619
    %v3683 = vsub.f32 %v3548, %v3619
    %v3684 = vmul.f32 %v3620, %v3620
    %v3685 = vmul.f32 %v3621, %v3621
    %v3686 = vmul.f32 %v3622, %v3622
    %v3687 = vmul.f32 %v3623, %v3623
    %v3688 = vmul.f32 %v3624, %v3624
    %v3689 = vmul.f32 %v3625, %v3625
    %v3690 = vmul.f32 %v3626, %v3626
    %v3691 = vmul.f32 %v3627, %v3627
    %v3692 = vmul.f32 %v3628, %v3628
    %v3693 = vmul.f32 %v3629, %v3629
    %v3694 = vmul.f32 %v3630, %v3630
    %v3695 = vmul.f32 %v3631, %v3631
    %v3696 = vmul.f32 %v3632, %v3632
    %v3697 = vmul.f32 %v3633, %v3633
    %v3698 = vmul.f32 %v3634, %v3634
    %v3699 = vmul.f32 %v3635, %v3635
    %v3700 = vmul.f32 %v3636, %v3636
    %v3701 = vmul.f32 %v3637, %v3637
    %v3702 = vmul.f32 %v3638, %v3638
    %v3703 = vmul.f32 %v3639, %v3639
    %v3704 = vmul.f32 %v3640, %v3640
    %v3705 = vmul.f32 %v3641, %v3641
    %v3706 = vmul.f32 %v3642, %v3642
    %v3707 = vmul.f32 %v3643, %v3643
    %v3708 = vmul.f32 %v3644, %v3644
    %v3709 = vmul.f32 %v3645, %v3645
    %v3710 = vmul.f32 %v3646, %v3646
    %v3711 = vmul.f32 %v3647, %v3647
    %v3712 = vmul.f32 %v3648, %v3648
    %v3713 = vmul.f32 %v3649, %v3649
    %v3714 = vmul.f32 %v3650, %v3650
    %v3715 = vmul.f32 %v3651, %v3651
    %v3716 = vmul.f32 %v3652, %v3652
    %v3717 = vmul.f32 %v3653, %v3653
    %v3718 = vmul.f32 %v3654, %v3654
    %v3719 = vmul.f32 %v3655, %v3655
    %v3720 = vmul.f32 %v3656, %v3656
    %v3721 = vmul.f32 %v3657, %v3657
    %v3722 = vmul.f32 %v3658, %v3658
    %v3723 = vmul.f32 %v3659, %v3659
    %v3724 = vmul.f32 %v3660, %v3660
    %v3725 = vmul.f32 %v3661, %v3661
    %v3726 = vmul.f32 %v3662, %v3662
    %v3727 = vmul.f32 %v3663, %v3663
    %v3728 = vmul.f32 %v3664, %v3664
    %v3729 = vmul.f32 %v3665, %v3665
    %v3730 = vmul.f32 %v3666, %v3666
    %v3731 = vmul.f32 %v3667, %v3667
    %v3732 = vmul.f32 %v3668, %v3668
    %v3733 = vmul.f32 %v3669, %v3669
    %v3734 = vmul.f32 %v3670, %v3670
    %v3735 = vmul.f32 %v3671, %v3671
    %v3736 = vmul.f32 %v3672, %v3672
    %v3737 = vmul.f32 %v3673, %v3673
    %v3738 = vmul.f32 %v3674, %v3674
    %v3739 = vmul.f32 %v3675, %v3675
    %v3740 = vmul.f32 %v3676, %v3676
    %v3741 = vmul.f32 %v3677, %v3677
    %v3742 = vmul.f32 %v3678, %v3678
    %v3743 = vmul.f32 %v3679, %v3679
    %v3744 = vmul.f32 %v3680, %v3680
    %v3745 = vmul.f32 %v3681, %v3681
    %v3746 = vmul.f32 %v3682, %v3682
    %v3747 = vmul.f32 %v3683, %v3683
    %v3748 = vadd.f32 %v3684, %v3685
    %v3749 = vadd.f32 %v3748, %v3686
    %v3750 = vadd.f32 %v3749, %v3687
    %v3751 = vadd.f32 %v3750, %v3688
    %v3752 = vadd.f32 %v3751, %v3689
    %v3753 = vadd.f32 %v3752, %v3690
    %v3754 = vadd.f32 %v3753, %v3691
    %v3755 = vadd.f32 %v3754, %v3692
    %v3756 = vadd.f32 %v3755, %v3693
    %v3757 = vadd.f32 %v3756, %v3694
    %v3758 = vadd.f32 %v3757, %v3695
    %v3759 = vadd.f32 %v3758, %v3696
    %v3760 = vadd.f32 %v3759, %v3697
    %v3761 = vadd.f32 %v3760, %v3698
    %v3762 = vadd.f32 %v3761, %v3699
    %v3763 = vadd.f32 %v3762, %v3700
    %v3764 = vadd.f32 %v3763, %v3701
    %v3765 = vadd.f32 %v3764, %v3702
    %v3766 = vadd.f32 %v3765, %v3703
    %v3767 = vadd.f32 %v3766, %v3704
    %v3768 = vadd.f32 %v3767, %v3705
    %v3769 = vadd.f32 %v3768, %v3706
    %v3770 = vadd.f32 %v3769, %v3707
    %v3771 = vadd.f32 %v3770, %v3708
    %v3772 = vadd.f32 %v3771, %v3709
    %v3773 = vadd.f32 %v3772, %v3710
    %v3774 = vadd.f32 %v3773, %v3711
    %v3775 = vadd.f32 %v3774, %v3712
    %v3776 = vadd.f32 %v3775, %v3713
    %v3777 = vadd.f32 %v3776, %v3714
    %v3778 = vadd.f32 %v3777, %v3715
    %v3779 = vadd.f32 %v3778, %v3716
    %v3780 = vadd.f32 %v3779, %v3717
    %v3781 = vadd.f32 %v3780, %v3718
    %v3782 = vadd.f32 %v3781, %v3719
    %v3783 = vadd.f32 %v3782, %v3720
    %v3784 = vadd.f32 %v3783, %v3721
    %v3785 = vadd.f32 %v3784, %v3722
    %v3786 = vadd.f32 %v3785, %v3723
    %v3787 = vadd.f32 %v3786, %v3724
    %v3788 = vadd.f32 %v3787, %v3725
    %v3789 = vadd.f32 %v3788, %v3726
    %v3790 = vadd.f32 %v3789, %v3727
    %v3791 = vadd.f32 %v3790, %v3728
    %v3792 = vadd.f32 %v3791, %v3729
    %v3793 = vadd.f32 %v3792, %v3730
    %v3794 = vadd.f32 %v3793, %v3731
    %v3795 = vadd.f32 %v3794, %v3732
    %v3796 = vadd.f32 %v3795, %v3733
    %v3797 = vadd.f32 %v3796, %v3734
    %v3798 = vadd.f32 %v3797, %v3735
    %v3799 = vadd.f32 %v3798, %v3736
    %v3800 = vadd.f32 %v3799, %v3737
    %v3801 = vadd.f32 %v3800, %v3738
    %v3802 = vadd.f32 %v3801, %v3739
    %v3803 = vadd.f32 %v3802, %v3740
    %v3804 = vadd.f32 %v3803, %v3741
    %v3805 = vadd.f32 %v3804, %v3742
    %v3806 = vadd.f32 %v3805, %v3743
    %v3807 = vadd.f32 %v3806, %v3744
    %v3808 = vadd.f32 %v3807, %v3745
    %v3809 = vadd.f32 %v3808, %v3746
    %v3810 = vadd.f32 %v3809, %v3747
    %v3811 = vrot.slane %v3810, 4
    %v3812 = vadd.f32 %v3810, %v3811
    %v3813 = vrot.slane %v3812, 2
    %v3814 = vadd.f32 %v3812, %v3813
    %v3815 = vrot.slane %v3814, 1
    %v3816 = vadd.f32 %v3814, %v3815
    %v3817 = vmul.f32 %v3816, %v3618
    %v3818 = vadd.f32 %v3817, 1e-05
    %v3819 = vrsqrt.pop %v3818
    %v3820 = vmul.f32 %v3620, %v3819
    %v3821 = vmul.f32 %v3621, %v3819
    %v3822 = vmul.f32 %v3622, %v3819
    %v3823 = vmul.f32 %v3623, %v3819
    %v3824 = vmul.f32 %v3624, %v3819
    %v3825 = vmul.f32 %v3625, %v3819
    %v3826 = vmul.f32 %v3626, %v3819
    %v3827 = vmul.f32 %v3627, %v3819
    %v3828 = vmul.f32 %v3628, %v3819
    %v3829 = vmul.f32 %v3629, %v3819
    %v3830 = vmul.f32 %v3630, %v3819
    %v3831 = vmul.f32 %v3631, %v3819
    %v3832 = vmul.f32 %v3632, %v3819
    %v3833 = vmul.f32 %v3633, %v3819
    %v3834 = vmul.f32 %v3634, %v3819
    %v3835 = vmul.f32 %v3635, %v3819
    %v3836 = vmul.f32 %v3636, %v3819
    %v3837 = vmul.f32 %v3637, %v3819
    %v3838 = vmul.f32 %v3638, %v3819
    %v3839 = vmul.f32 %v3639, %v3819
    %v3840 = vmul.f32 %v3640, %v3819
    %v3841 = vmul.f32 %v3641, %v3819
    %v3842 = vmul.f32 %v3642, %v3819
    %v3843 = vmul.f32 %v3643, %v3819
    %v3844 = vmul.f32 %v3644, %v3819
    %v3845 = vmul.f32 %v3645, %v3819
    %v3846 = vmul.f32 %v3646, %v3819
    %v3847 = vmul.f32 %v3647, %v3819
    %v3848 = vmul.f32 %v3648, %v3819
    %v3849 = vmul.f32 %v3649, %v3819
    %v3850 = vmul.f32 %v3650, %v3819
    %v3851 = vmul.f32 %v3651, %v3819
    %v3852 = vmul.f32 %v3652, %v3819
    %v3853 = vmul.f32 %v3653, %v3819
    %v3854 = vmul.f32 %v3654, %v3819
    %v3855 = vmul.f32 %v3655, %v3819
    %v3856 = vmul.f32 %v3656, %v3819
    %v3857 = vmul.f32 %v3657, %v3819
    %v3858 = vmul.f32 %v3658, %v3819
    %v3859 = vmul.f32 %v3659, %v3819
    %v3860 = vmul.f32 %v3660, %v3819
    %v3861 = vmul.f32 %v3661, %v3819
    %v3862 = vmul.f32 %v3662, %v3819
    %v3863 = vmul.f32 %v3663, %v3819
    %v3864 = vmul.f32 %v3664, %v3819
    %v3865 = vmul.f32 %v3665, %v3819
    %v3866 = vmul.f32 %v3666, %v3819
    %v3867 = vmul.f32 %v3667, %v3819
    %v3868 = vmul.f32 %v3668, %v3819
    %v3869 = vmul.f32 %v3669, %v3819
    %v3870 = vmul.f32 %v3670, %v3819
    %v3871 = vmul.f32 %v3671, %v3819
    %v3872 = vmul.f32 %v3672, %v3819
    %v3873 = vmul.f32 %v3673, %v3819
    %v3874 = vmul.f32 %v3674, %v3819
    %v3875 = vmul.f32 %v3675, %v3819
    %v3876 = vmul.f32 %v3676, %v3819
    %v3877 = vmul.f32 %v3677, %v3819
    %v3878 = vmul.f32 %v3678, %v3819
    %v3879 = vmul.f32 %v3679, %v3819
    %v3880 = vmul.f32 %v3680, %v3819
    %v3881 = vmul.f32 %v3681, %v3819
    %v3882 = vmul.f32 %v3682, %v3819
    %v3883 = vmul.f32 %v3683, %v3819
    %v3884 = vld [vmem:[%s2] sm:$0x1]
    %v3886 = vlaneseq
    %v3887 = vshrl.u32 %v3886, 7
    %v3888 = vsub.s32 0, %v3887
    %v3889 = vrot.slane %v3884, %v3888
    %v3891 = vmul.f32 %v3820, %v3889
    %v3892 = vmul.f32 %v3821, %v3889
    %v3893 = vmul.f32 %v3822, %v3889
    %v3894 = vmul.f32 %v3823, %v3889
    %v3895 = vmul.f32 %v3824, %v3889
    %v3896 = vmul.f32 %v3825, %v3889
    %v3897 = vmul.f32 %v3826, %v3889
    %v3898 = vmul.f32 %v3827, %v3889
    %v3899 = vmul.f32 %v3828, %v3889
    %v3900 = vmul.f32 %v3829, %v3889
    %v3901 = vmul.f32 %v3830, %v3889
    %v3902 = vmul.f32 %v3831, %v3889
    %v3903 = vmul.f32 %v3832, %v3889
    %v3904 = vmul.f32 %v3833, %v3889
    %v3905 = vmul.f32 %v3834, %v3889
    %v3906 = vmul.f32 %v3835, %v3889
    %v3907 = vmul.f32 %v3836, %v3889
    %v3908 = vmul.f32 %v3837, %v3889
    %v3909 = vmul.f32 %v3838, %v3889
    %v3910 = vmul.f32 %v3839, %v3889
    %v3911 = vmul.f32 %v3840, %v3889
    %v3912 = vmul.f32 %v3841, %v3889
    %v3913 = vmul.f32 %v3842, %v3889
    %v3914 = vmul.f32 %v3843, %v3889
    %v3915 = vmul.f32 %v3844, %v3889
    %v3916 = vmul.f32 %v3845, %v3889
    %v3917 = vmul.f32 %v3846, %v3889
    %v3918 = vmul.f32 %v3847, %v3889
    %v3919 = vmul.f32 %v3848, %v3889
    %v3920 = vmul.f32 %v3849, %v3889
    %v3921 = vmul.f32 %v3850, %v3889
    %v3922 = vmul.f32 %v3851, %v3889
    %v3923 = vmul.f32 %v3852, %v3889
    %v3924 = vmul.f32 %v3853, %v3889
    %v3925 = vmul.f32 %v3854, %v3889
    %v3926 = vmul.f32 %v3855, %v3889
    %v3927 = vmul.f32 %v3856, %v3889
    %v3928 = vmul.f32 %v3857, %v3889
    %v3929 = vmul.f32 %v3858, %v3889
    %v3930 = vmul.f32 %v3859, %v3889
    %v3931 = vmul.f32 %v3860, %v3889
    %v3932 = vmul.f32 %v3861, %v3889
    %v3933 = vmul.f32 %v3862, %v3889
    %v3934 = vmul.f32 %v3863, %v3889
    %v3935 = vmul.f32 %v3864, %v3889
    %v3936 = vmul.f32 %v3865, %v3889
    %v3937 = vmul.f32 %v3866, %v3889
    %v3938 = vmul.f32 %v3867, %v3889
    %v3939 = vmul.f32 %v3868, %v3889
    %v3940 = vmul.f32 %v3869, %v3889
    %v3941 = vmul.f32 %v3870, %v3889
    %v3942 = vmul.f32 %v3871, %v3889
    %v3943 = vmul.f32 %v3872, %v3889
    %v3944 = vmul.f32 %v3873, %v3889
    %v3945 = vmul.f32 %v3874, %v3889
    %v3946 = vmul.f32 %v3875, %v3889
    %v3947 = vmul.f32 %v3876, %v3889
    %v3948 = vmul.f32 %v3877, %v3889
    %v3949 = vmul.f32 %v3878, %v3889
    %v3950 = vmul.f32 %v3879, %v3889
    %v3951 = vmul.f32 %v3880, %v3889
    %v3952 = vmul.f32 %v3881, %v3889
    %v3953 = vmul.f32 %v3882, %v3889
    %v3954 = vmul.f32 %v3883, %v3889
    %v3955 = vld [vmem:[%s3] sm:$0x1]
    %v3957 = vlaneseq
    %v3958 = vshrl.u32 %v3957, 7
    %v3959 = vsub.s32 0, %v3958
    %v3960 = vrot.slane %v3955, %v3959
    %v3962 = vadd.f32 %v3891, %v3960
    %v3963 = vadd.f32 %v3892, %v3960
    %v3964 = vadd.f32 %v3893, %v3960
    %v3965 = vadd.f32 %v3894, %v3960
    %v3966 = vadd.f32 %v3895, %v3960
    %v3967 = vadd.f32 %v3896, %v3960
    %v3968 = vadd.f32 %v3897, %v3960
    %v3969 = vadd.f32 %v3898, %v3960
    %v3970 = vadd.f32 %v3899, %v3960
    %v3971 = vadd.f32 %v3900, %v3960
    %v3972 = vadd.f32 %v3901, %v3960
    %v3973 = vadd.f32 %v3902, %v3960
    %v3974 = vadd.f32 %v3903, %v3960
    %v3975 = vadd.f32 %v3904, %v3960
    %v3976 = vadd.f32 %v3905, %v3960
    %v3977 = vadd.f32 %v3906, %v3960
    %v3978 = vadd.f32 %v3907, %v3960
    %v3979 = vadd.f32 %v3908, %v3960
    %v3980 = vadd.f32 %v3909, %v3960
    %v3981 = vadd.f32 %v3910, %v3960
    %v3982 = vadd.f32 %v3911, %v3960
    %v3983 = vadd.f32 %v3912, %v3960
    %v3984 = vadd.f32 %v3913, %v3960
    %v3985 = vadd.f32 %v3914, %v3960
    %v3986 = vadd.f32 %v3915, %v3960
    %v3987 = vadd.f32 %v3916, %v3960
    %v3988 = vadd.f32 %v3917, %v3960
    %v3989 = vadd.f32 %v3918, %v3960
    %v3990 = vadd.f32 %v3919, %v3960
    %v3991 = vadd.f32 %v3920, %v3960
    %v3992 = vadd.f32 %v3921, %v3960
    %v3993 = vadd.f32 %v3922, %v3960
    %v3994 = vadd.f32 %v3923, %v3960
    %v3995 = vadd.f32 %v3924, %v3960
    %v3996 = vadd.f32 %v3925, %v3960
    %v3997 = vadd.f32 %v3926, %v3960
    %v3998 = vadd.f32 %v3927, %v3960
    %v3999 = vadd.f32 %v3928, %v3960
    %v4000 = vadd.f32 %v3929, %v3960
    %v4001 = vadd.f32 %v3930, %v3960
    %v4002 = vadd.f32 %v3931, %v3960
    %v4003 = vadd.f32 %v3932, %v3960
    %v4004 = vadd.f32 %v3933, %v3960
    %v4005 = vadd.f32 %v3934, %v3960
    %v4006 = vadd.f32 %v3935, %v3960
    %v4007 = vadd.f32 %v3936, %v3960
    %v4008 = vadd.f32 %v3937, %v3960
    %v4009 = vadd.f32 %v3938, %v3960
    %v4010 = vadd.f32 %v3939, %v3960
    %v4011 = vadd.f32 %v3940, %v3960
    %v4012 = vadd.f32 %v3941, %v3960
    %v4013 = vadd.f32 %v3942, %v3960
    %v4014 = vadd.f32 %v3943, %v3960
    %v4015 = vadd.f32 %v3944, %v3960
    %v4016 = vadd.f32 %v3945, %v3960
    %v4017 = vadd.f32 %v3946, %v3960
    %v4018 = vadd.f32 %v3947, %v3960
    %v4019 = vadd.f32 %v3948, %v3960
    %v4020 = vadd.f32 %v3949, %v3960
    %v4021 = vadd.f32 %v3950, %v3960
    %v4022 = vadd.f32 %v3951, %v3960
    %v4023 = vadd.f32 %v3952, %v3960
    %v4024 = vadd.f32 %v3953, %v3960
    %v4025 = vadd.f32 %v3954, %v3960
    %vm4026 = vcmp.ge.f32.partialorder %v3962, 0.0
    %vm4027 = vcmp.ge.f32.partialorder %v3963, 0.0
    %vm4028 = vcmp.ge.f32.partialorder %v3964, 0.0
    %vm4029 = vcmp.ge.f32.partialorder %v3965, 0.0
    %vm4030 = vcmp.ge.f32.partialorder %v3966, 0.0
    %vm4031 = vcmp.ge.f32.partialorder %v3967, 0.0
    %vm4032 = vcmp.ge.f32.partialorder %v3968, 0.0
    %vm4033 = vcmp.ge.f32.partialorder %v3969, 0.0
    %vm4034 = vcmp.ge.f32.partialorder %v3970, 0.0
    %vm4035 = vcmp.ge.f32.partialorder %v3971, 0.0
    %vm4036 = vcmp.ge.f32.partialorder %v3972, 0.0
    %vm4037 = vcmp.ge.f32.partialorder %v3973, 0.0
    %vm4038 = vcmp.ge.f32.partialorder %v3974, 0.0
    %vm4039 = vcmp.ge.f32.partialorder %v3975, 0.0
    %vm4040 = vcmp.ge.f32.partialorder %v3976, 0.0
    %vm4041 = vcmp.ge.f32.partialorder %v3977, 0.0
    %vm4042 = vcmp.ge.f32.partialorder %v3978, 0.0
    %vm4043 = vcmp.ge.f32.partialorder %v3979, 0.0
    %vm4044 = vcmp.ge.f32.partialorder %v3980, 0.0
    %vm4045 = vcmp.ge.f32.partialorder %v3981, 0.0
    %vm4046 = vcmp.ge.f32.partialorder %v3982, 0.0
    %vm4047 = vcmp.ge.f32.partialorder %v3983, 0.0
    %vm4048 = vcmp.ge.f32.partialorder %v3984, 0.0
    %vm4049 = vcmp.ge.f32.partialorder %v3985, 0.0
    %vm4050 = vcmp.ge.f32.partialorder %v3986, 0.0
    %vm4051 = vcmp.ge.f32.partialorder %v3987, 0.0
    %vm4052 = vcmp.ge.f32.partialorder %v3988, 0.0
    %vm4053 = vcmp.ge.f32.partialorder %v3989, 0.0
    %vm4054 = vcmp.ge.f32.partialorder %v3990, 0.0
    %vm4055 = vcmp.ge.f32.partialorder %v3991, 0.0
    %vm4056 = vcmp.ge.f32.partialorder %v3992, 0.0
    %vm4057 = vcmp.ge.f32.partialorder %v3993, 0.0
    %vm4058 = vcmp.ge.f32.partialorder %v3994, 0.0
    %vm4059 = vcmp.ge.f32.partialorder %v3995, 0.0
    %vm4060 = vcmp.ge.f32.partialorder %v3996, 0.0
    %vm4061 = vcmp.ge.f32.partialorder %v3997, 0.0
    %vm4062 = vcmp.ge.f32.partialorder %v3998, 0.0
    %vm4063 = vcmp.ge.f32.partialorder %v3999, 0.0
    %vm4064 = vcmp.ge.f32.partialorder %v4000, 0.0
    %vm4065 = vcmp.ge.f32.partialorder %v4001, 0.0
    %vm4066 = vcmp.ge.f32.partialorder %v4002, 0.0
    %vm4067 = vcmp.ge.f32.partialorder %v4003, 0.0
    %vm4068 = vcmp.ge.f32.partialorder %v4004, 0.0
    %vm4069 = vcmp.ge.f32.partialorder %v4005, 0.0
    %vm4070 = vcmp.ge.f32.partialorder %v4006, 0.0
    %vm4071 = vcmp.ge.f32.partialorder %v4007, 0.0
    %vm4072 = vcmp.ge.f32.partialorder %v4008, 0.0
    %vm4073 = vcmp.ge.f32.partialorder %v4009, 0.0
    %vm4074 = vcmp.ge.f32.partialorder %v4010, 0.0
    %vm4075 = vcmp.ge.f32.partialorder %v4011, 0.0
    %vm4076 = vcmp.ge.f32.partialorder %v4012, 0.0
    %vm4077 = vcmp.ge.f32.partialorder %v4013, 0.0
    %vm4078 = vcmp.ge.f32.partialorder %v4014, 0.0
    %vm4079 = vcmp.ge.f32.partialorder %v4015, 0.0
    %vm4080 = vcmp.ge.f32.partialorder %v4016, 0.0
    %vm4081 = vcmp.ge.f32.partialorder %v4017, 0.0
    %vm4082 = vcmp.ge.f32.partialorder %v4018, 0.0
    %vm4083 = vcmp.ge.f32.partialorder %v4019, 0.0
    %vm4084 = vcmp.ge.f32.partialorder %v4020, 0.0
    %vm4085 = vcmp.ge.f32.partialorder %v4021, 0.0
    %vm4086 = vcmp.ge.f32.partialorder %v4022, 0.0
    %vm4087 = vcmp.ge.f32.partialorder %v4023, 0.0
    %vm4088 = vcmp.ge.f32.partialorder %v4024, 0.0
    %vm4089 = vcmp.ge.f32.partialorder %v4025, 0.0
    %v4090 = vmul.f32 %v3962, 0.2
    %v4091 = vmul.f32 %v3963, 0.2
    %v4092 = vmul.f32 %v3964, 0.2
    %v4093 = vmul.f32 %v3965, 0.2
    %v4094 = vmul.f32 %v3966, 0.2
    %v4095 = vmul.f32 %v3967, 0.2
    %v4096 = vmul.f32 %v3968, 0.2
    %v4097 = vmul.f32 %v3969, 0.2
    %v4098 = vmul.f32 %v3970, 0.2
    %v4099 = vmul.f32 %v3971, 0.2
    %v4100 = vmul.f32 %v3972, 0.2
    %v4101 = vmul.f32 %v3973, 0.2
    %v4102 = vmul.f32 %v3974, 0.2
    %v4103 = vmul.f32 %v3975, 0.2
    %v4104 = vmul.f32 %v3976, 0.2
    %v4105 = vmul.f32 %v3977, 0.2
    %v4106 = vmul.f32 %v3978, 0.2
    %v4107 = vmul.f32 %v3979, 0.2
    %v4108 = vmul.f32 %v3980, 0.2
    %v4109 = vmul.f32 %v3981, 0.2
    %v4110 = vmul.f32 %v3982, 0.2
    %v4111 = vmul.f32 %v3983, 0.2
    %v4112 = vmul.f32 %v3984, 0.2
    %v4113 = vmul.f32 %v3985, 0.2
    %v4114 = vmul.f32 %v3986, 0.2
    %v4115 = vmul.f32 %v3987, 0.2
    %v4116 = vmul.f32 %v3988, 0.2
    %v4117 = vmul.f32 %v3989, 0.2
    %v4118 = vmul.f32 %v3990, 0.2
    %v4119 = vmul.f32 %v3991, 0.2
    %v4120 = vmul.f32 %v3992, 0.2
    %v4121 = vmul.f32 %v3993, 0.2
    %v4122 = vmul.f32 %v3994, 0.2
    %v4123 = vmul.f32 %v3995, 0.2
    %v4124 = vmul.f32 %v3996, 0.2
    %v4125 = vmul.f32 %v3997, 0.2
    %v4126 = vmul.f32 %v3998, 0.2
    %v4127 = vmul.f32 %v3999, 0.2
    %v4128 = vmul.f32 %v4000, 0.2
    %v4129 = vmul.f32 %v4001, 0.2
    %v4130 = vmul.f32 %v4002, 0.2
    %v4131 = vmul.f32 %v4003, 0.2
    %v4132 = vmul.f32 %v4004, 0.2
    %v4133 = vmul.f32 %v4005, 0.2
    %v4134 = vmul.f32 %v4006, 0.2
    %v4135 = vmul.f32 %v4007, 0.2
    %v4136 = vmul.f32 %v4008, 0.2
    %v4137 = vmul.f32 %v4009, 0.2
    %v4138 = vmul.f32 %v4010, 0.2
    %v4139 = vmul.f32 %v4011, 0.2
    %v4140 = vmul.f32 %v4012, 0.2
    %v4141 = vmul.f32 %v4013, 0.2
    %v4142 = vmul.f32 %v4014, 0.2
    %v4143 = vmul.f32 %v4015, 0.2
    %v4144 = vmul.f32 %v4016, 0.2
    %v4145 = vmul.f32 %v4017, 0.2
    %v4146 = vmul.f32 %v4018, 0.2
    %v4147 = vmul.f32 %v4019, 0.2
    %v4148 = vmul.f32 %v4020, 0.2
    %v4149 = vmul.f32 %v4021, 0.2
    %v4150 = vmul.f32 %v4022, 0.2
    %v4151 = vmul.f32 %v4023, 0.2
    %v4152 = vmul.f32 %v4024, 0.2
    %v4153 = vmul.f32 %v4025, 0.2
    %v4154 = vsel %vm4026, %v3962, %v4090
    %v4155 = vsel %vm4027, %v3963, %v4091
    %v4156 = vsel %vm4028, %v3964, %v4092
    %v4157 = vsel %vm4029, %v3965, %v4093
    %v4158 = vsel %vm4030, %v3966, %v4094
    %v4159 = vsel %vm4031, %v3967, %v4095
    %v4160 = vsel %vm4032, %v3968, %v4096
    %v4161 = vsel %vm4033, %v3969, %v4097
    %v4162 = vsel %vm4034, %v3970, %v4098
    %v4163 = vsel %vm4035, %v3971, %v4099
    %v4164 = vsel %vm4036, %v3972, %v4100
    %v4165 = vsel %vm4037, %v3973, %v4101
    %v4166 = vsel %vm4038, %v3974, %v4102
    %v4167 = vsel %vm4039, %v3975, %v4103
    %v4168 = vsel %vm4040, %v3976, %v4104
    %v4169 = vsel %vm4041, %v3977, %v4105
    %v4170 = vsel %vm4042, %v3978, %v4106
    %v4171 = vsel %vm4043, %v3979, %v4107
    %v4172 = vsel %vm4044, %v3980, %v4108
    %v4173 = vsel %vm4045, %v3981, %v4109
    %v4174 = vsel %vm4046, %v3982, %v4110
    %v4175 = vsel %vm4047, %v3983, %v4111
    %v4176 = vsel %vm4048, %v3984, %v4112
    %v4177 = vsel %vm4049, %v3985, %v4113
    %v4178 = vsel %vm4050, %v3986, %v4114
    %v4179 = vsel %vm4051, %v3987, %v4115
    %v4180 = vsel %vm4052, %v3988, %v4116
    %v4181 = vsel %vm4053, %v3989, %v4117
    %v4182 = vsel %vm4054, %v3990, %v4118
    %v4183 = vsel %vm4055, %v3991, %v4119
    %v4184 = vsel %vm4056, %v3992, %v4120
    %v4185 = vsel %vm4057, %v3993, %v4121
    %v4186 = vsel %vm4058, %v3994, %v4122
    %v4187 = vsel %vm4059, %v3995, %v4123
    %v4188 = vsel %vm4060, %v3996, %v4124
    %v4189 = vsel %vm4061, %v3997, %v4125
    %v4190 = vsel %vm4062, %v3998, %v4126
    %v4191 = vsel %vm4063, %v3999, %v4127
    %v4192 = vsel %vm4064, %v4000, %v4128
    %v4193 = vsel %vm4065, %v4001, %v4129
    %v4194 = vsel %vm4066, %v4002, %v4130
    %v4195 = vsel %vm4067, %v4003, %v4131
    %v4196 = vsel %vm4068, %v4004, %v4132
    %v4197 = vsel %vm4069, %v4005, %v4133
    %v4198 = vsel %vm4070, %v4006, %v4134
    %v4199 = vsel %vm4071, %v4007, %v4135
    %v4200 = vsel %vm4072, %v4008, %v4136
    %v4201 = vsel %vm4073, %v4009, %v4137
    %v4202 = vsel %vm4074, %v4010, %v4138
    %v4203 = vsel %vm4075, %v4011, %v4139
    %v4204 = vsel %vm4076, %v4012, %v4140
    %v4205 = vsel %vm4077, %v4013, %v4141
    %v4206 = vsel %vm4078, %v4014, %v4142
    %v4207 = vsel %vm4079, %v4015, %v4143
    %v4208 = vsel %vm4080, %v4016, %v4144
    %v4209 = vsel %vm4081, %v4017, %v4145
    %v4210 = vsel %vm4082, %v4018, %v4146
    %v4211 = vsel %vm4083, %v4019, %v4147
    %v4212 = vsel %vm4084, %v4020, %v4148
    %v4213 = vsel %vm4085, %v4021, %v4149
    %v4214 = vsel %vm4086, %v4022, %v4150
    %v4215 = vsel %vm4087, %v4023, %v4151
    %v4216 = vsel %vm4088, %v4024, %v4152
    %v4217 = vsel %vm4089, %v4025, %v4153
    %v4218 = vpack.c.bf16 %v4155, %v4154
    %v4219 = vpack.c.bf16 %v4157, %v4156
    %v4220 = vpack.c.bf16 %v4159, %v4158
    %v4221 = vpack.c.bf16 %v4161, %v4160
    %v4222 = vpack.c.bf16 %v4163, %v4162
    %v4223 = vpack.c.bf16 %v4165, %v4164
    %v4224 = vpack.c.bf16 %v4167, %v4166
    %v4225 = vpack.c.bf16 %v4169, %v4168
    %v4226 = vpack.c.bf16 %v4171, %v4170
    %v4227 = vpack.c.bf16 %v4173, %v4172
    %v4228 = vpack.c.bf16 %v4175, %v4174
    %v4229 = vpack.c.bf16 %v4177, %v4176
    %v4230 = vpack.c.bf16 %v4179, %v4178
    %v4231 = vpack.c.bf16 %v4181, %v4180
    %v4232 = vpack.c.bf16 %v4183, %v4182
    %v4233 = vpack.c.bf16 %v4185, %v4184
    %v4234 = vpack.c.bf16 %v4187, %v4186
    %v4235 = vpack.c.bf16 %v4189, %v4188
    %v4236 = vpack.c.bf16 %v4191, %v4190
    %v4237 = vpack.c.bf16 %v4193, %v4192
    %v4238 = vpack.c.bf16 %v4195, %v4194
    %v4239 = vpack.c.bf16 %v4197, %v4196
    %v4240 = vpack.c.bf16 %v4199, %v4198
    %v4241 = vpack.c.bf16 %v4201, %v4200
    %v4242 = vpack.c.bf16 %v4203, %v4202
    %v4243 = vpack.c.bf16 %v4205, %v4204
    %v4244 = vpack.c.bf16 %v4207, %v4206
    %v4245 = vpack.c.bf16 %v4209, %v4208
    %v4246 = vpack.c.bf16 %v4211, %v4210
    %v4247 = vpack.c.bf16 %v4213, %v4212
    %v4248 = vpack.c.bf16 %v4215, %v4214
    %v4249 = vpack.c.bf16 %v4217, %v4216
    %v4282 = vunpack.c.l.b16 %v4218
    %v4283 = vunpack.c.h.b16 %v4218
    %v4284 = vunpack.c.l.b16 %v4219
    %v4285 = vunpack.c.h.b16 %v4219
    %v4286 = vunpack.c.l.b16 %v4220
    %v4287 = vunpack.c.h.b16 %v4220
    %v4288 = vunpack.c.l.b16 %v4221
    %v4289 = vunpack.c.h.b16 %v4221
    %v4290 = vunpack.c.l.b16 %v4222
    %v4291 = vunpack.c.h.b16 %v4222
    %v4292 = vunpack.c.l.b16 %v4223
    %v4293 = vunpack.c.h.b16 %v4223
    %v4294 = vunpack.c.l.b16 %v4224
    %v4295 = vunpack.c.h.b16 %v4224
    %v4296 = vunpack.c.l.b16 %v4225
    %v4297 = vunpack.c.h.b16 %v4225
    %v4298 = vunpack.c.l.b16 %v4226
    %v4299 = vunpack.c.h.b16 %v4226
    %v4300 = vunpack.c.l.b16 %v4227
    %v4301 = vunpack.c.h.b16 %v4227
    %v4302 = vunpack.c.l.b16 %v4228
    %v4303 = vunpack.c.h.b16 %v4228
    %v4304 = vunpack.c.l.b16 %v4229
    %v4305 = vunpack.c.h.b16 %v4229
    %v4306 = vunpack.c.l.b16 %v4230
    %v4307 = vunpack.c.h.b16 %v4230
    %v4308 = vunpack.c.l.b16 %v4231
    %v4309 = vunpack.c.h.b16 %v4231
    %v4310 = vunpack.c.l.b16 %v4232
    %v4311 = vunpack.c.h.b16 %v4232
    %v4312 = vunpack.c.l.b16 %v4233
    %v4313 = vunpack.c.h.b16 %v4233
    %v4314 = vunpack.c.l.b16 %v4234
    %v4315 = vunpack.c.h.b16 %v4234
    %v4316 = vunpack.c.l.b16 %v4235
    %v4317 = vunpack.c.h.b16 %v4235
    %v4318 = vunpack.c.l.b16 %v4236
    %v4319 = vunpack.c.h.b16 %v4236
    %v4320 = vunpack.c.l.b16 %v4237
    %v4321 = vunpack.c.h.b16 %v4237
    %v4322 = vunpack.c.l.b16 %v4238
    %v4323 = vunpack.c.h.b16 %v4238
    %v4324 = vunpack.c.l.b16 %v4239
    %v4325 = vunpack.c.h.b16 %v4239
    %v4326 = vunpack.c.l.b16 %v4240
    %v4327 = vunpack.c.h.b16 %v4240
    %v4328 = vunpack.c.l.b16 %v4241
    %v4329 = vunpack.c.h.b16 %v4241
    %v4330 = vunpack.c.l.b16 %v4242
    %v4331 = vunpack.c.h.b16 %v4242
    %v4332 = vunpack.c.l.b16 %v4243
    %v4333 = vunpack.c.h.b16 %v4243
    %v4334 = vunpack.c.l.b16 %v4244
    %v4335 = vunpack.c.h.b16 %v4244
    %v4336 = vunpack.c.l.b16 %v4245
    %v4337 = vunpack.c.h.b16 %v4245
    %v4338 = vunpack.c.l.b16 %v4246
    %v4339 = vunpack.c.h.b16 %v4246
    %v4340 = vunpack.c.l.b16 %v4247
    %v4341 = vunpack.c.h.b16 %v4247
    %v4342 = vunpack.c.l.b16 %v4248
    %v4343 = vunpack.c.h.b16 %v4248
    %v4344 = vunpack.c.l.b16 %v4249
    %v4345 = vunpack.c.h.b16 %v4249
    %v4346 = vpack.c.b16 %v4282, %v4282
    %v4347 = vpack.c.b16 %v4283, %v4283
    %v4348 = vpack.c.b16 %v4284, %v4284
    %v4349 = vpack.c.b16 %v4285, %v4285
    %v4350 = vpack.c.b16 %v4286, %v4286
    %v4351 = vpack.c.b16 %v4287, %v4287
    %v4352 = vpack.c.b16 %v4288, %v4288
    %v4353 = vpack.c.b16 %v4289, %v4289
    %v4354 = vpack.c.b16 %v4290, %v4290
    %v4355 = vpack.c.b16 %v4291, %v4291
    %v4356 = vpack.c.b16 %v4292, %v4292
    %v4357 = vpack.c.b16 %v4293, %v4293
    %v4358 = vpack.c.b16 %v4294, %v4294
    %v4359 = vpack.c.b16 %v4295, %v4295
    %v4360 = vpack.c.b16 %v4296, %v4296
    %v4361 = vpack.c.b16 %v4297, %v4297
    %v4362 = vpack.c.b16 %v4298, %v4298
    %v4363 = vpack.c.b16 %v4299, %v4299
    %v4364 = vpack.c.b16 %v4300, %v4300
    %v4365 = vpack.c.b16 %v4301, %v4301
    %v4366 = vpack.c.b16 %v4302, %v4302
    %v4367 = vpack.c.b16 %v4303, %v4303
    %v4368 = vpack.c.b16 %v4304, %v4304
    %v4369 = vpack.c.b16 %v4305, %v4305
    %v4370 = vpack.c.b16 %v4306, %v4306
    %v4371 = vpack.c.b16 %v4307, %v4307
    %v4372 = vpack.c.b16 %v4308, %v4308
    %v4373 = vpack.c.b16 %v4309, %v4309
    %v4374 = vpack.c.b16 %v4310, %v4310
    %v4375 = vpack.c.b16 %v4311, %v4311
    %v4376 = vpack.c.b16 %v4312, %v4312
    %v4377 = vpack.c.b16 %v4313, %v4313
    %v4378 = vpack.c.b16 %v4314, %v4314
    %v4379 = vpack.c.b16 %v4315, %v4315
    %v4380 = vpack.c.b16 %v4316, %v4316
    %v4381 = vpack.c.b16 %v4317, %v4317
    %v4382 = vpack.c.b16 %v4318, %v4318
    %v4383 = vpack.c.b16 %v4319, %v4319
    %v4384 = vpack.c.b16 %v4320, %v4320
    %v4385 = vpack.c.b16 %v4321, %v4321
    %v4386 = vpack.c.b16 %v4322, %v4322
    %v4387 = vpack.c.b16 %v4323, %v4323
    %v4388 = vpack.c.b16 %v4324, %v4324
    %v4389 = vpack.c.b16 %v4325, %v4325
    %v4390 = vpack.c.b16 %v4326, %v4326
    %v4391 = vpack.c.b16 %v4327, %v4327
    %v4392 = vpack.c.b16 %v4328, %v4328
    %v4393 = vpack.c.b16 %v4329, %v4329
    %v4394 = vpack.c.b16 %v4330, %v4330
    %v4395 = vpack.c.b16 %v4331, %v4331
    %v4396 = vpack.c.b16 %v4332, %v4332
    %v4397 = vpack.c.b16 %v4333, %v4333
    %v4398 = vpack.c.b16 %v4334, %v4334
    %v4399 = vpack.c.b16 %v4335, %v4335
    %v4400 = vpack.c.b16 %v4336, %v4336
    %v4401 = vpack.c.b16 %v4337, %v4337
    %v4402 = vpack.c.b16 %v4338, %v4338
    %v4403 = vpack.c.b16 %v4339, %v4339
    %v4404 = vpack.c.b16 %v4340, %v4340
    %v4405 = vpack.c.b16 %v4341, %v4341
    %v4406 = vpack.c.b16 %v4342, %v4342
    %v4407 = vpack.c.b16 %v4343, %v4343
    %v4408 = vpack.c.b16 %v4344, %v4344
    %v4409 = vpack.c.b16 %v4345, %v4345
    %4474 = vst [vmem:[%s4] sm:$0xf] %v4346
    %4475 = vst [vmem:[%s4 + $0x4] sm:$0xf] %v4347
    %4476 = vst [vmem:[%s4 + $0x8] sm:$0xf] %v4348
    %4477 = vst [vmem:[%s4 + $0xc] sm:$0xf] %v4349
    %4478 = vst [vmem:[%s4 + $0x10] sm:$0xf] %v4350
    %4479 = vst [vmem:[%s4 + $0x14] sm:$0xf] %v4351
    %4480 = vst [vmem:[%s4 + $0x18] sm:$0xf] %v4352
    %4481 = vst [vmem:[%s4 + $0x1c] sm:$0xf] %v4353
    %4482 = vst [vmem:[%s4 + $0x20] sm:$0xf] %v4354
    %4483 = vst [vmem:[%s4 + $0x24] sm:$0xf] %v4355
    %4484 = vst [vmem:[%s4 + $0x28] sm:$0xf] %v4356
    %4485 = vst [vmem:[%s4 + $0x2c] sm:$0xf] %v4357
    %4486 = vst [vmem:[%s4 + $0x30] sm:$0xf] %v4358
    %4487 = vst [vmem:[%s4 + $0x34] sm:$0xf] %v4359
    %4488 = vst [vmem:[%s4 + $0x38] sm:$0xf] %v4360
    %4489 = vst [vmem:[%s4 + $0x3c] sm:$0xf] %v4361
    %4490 = vst [vmem:[%s4 + $0x40] sm:$0xf] %v4362
    %4491 = vst [vmem:[%s4 + $0x44] sm:$0xf] %v4363
    %4492 = vst [vmem:[%s4 + $0x48] sm:$0xf] %v4364
    %4493 = vst [vmem:[%s4 + $0x4c] sm:$0xf] %v4365
    %4494 = vst [vmem:[%s4 + $0x50] sm:$0xf] %v4366
    %4495 = vst [vmem:[%s4 + $0x54] sm:$0xf] %v4367
    %4496 = vst [vmem:[%s4 + $0x58] sm:$0xf] %v4368
    %4497 = vst [vmem:[%s4 + $0x5c] sm:$0xf] %v4369
    %4498 = vst [vmem:[%s4 + $0x60] sm:$0xf] %v4370
    %4499 = vst [vmem:[%s4 + $0x64] sm:$0xf] %v4371
    %4500 = vst [vmem:[%s4 + $0x68] sm:$0xf] %v4372
    %4501 = vst [vmem:[%s4 + $0x6c] sm:$0xf] %v4373
    %4502 = vst [vmem:[%s4 + $0x70] sm:$0xf] %v4374
    %4503 = vst [vmem:[%s4 + $0x74] sm:$0xf] %v4375
    %4504 = vst [vmem:[%s4 + $0x78] sm:$0xf] %v4376
    %4505 = vst [vmem:[%s4 + $0x7c] sm:$0xf] %v4377
    %4506 = vst [vmem:[%s4 + $0x80] sm:$0xf] %v4378
    %4507 = vst [vmem:[%s4 + $0x84] sm:$0xf] %v4379
    %4508 = vst [vmem:[%s4 + $0x88] sm:$0xf] %v4380
    %4509 = vst [vmem:[%s4 + $0x8c] sm:$0xf] %v4381
    %4510 = vst [vmem:[%s4 + $0x90] sm:$0xf] %v4382
    %4511 = vst [vmem:[%s4 + $0x94] sm:$0xf] %v4383
    %4512 = vst [vmem:[%s4 + $0x98] sm:$0xf] %v4384
    %4513 = vst [vmem:[%s4 + $0x9c] sm:$0xf] %v4385
    %4514 = vst [vmem:[%s4 + $0xa0] sm:$0xf] %v4386
    %4515 = vst [vmem:[%s4 + $0xa4] sm:$0xf] %v4387
    %4516 = vst [vmem:[%s4 + $0xa8] sm:$0xf] %v4388
    %4517 = vst [vmem:[%s4 + $0xac] sm:$0xf] %v4389
    %4518 = vst [vmem:[%s4 + $0xb0] sm:$0xf] %v4390
    %4519 = vst [vmem:[%s4 + $0xb4] sm:$0xf] %v4391
    %4520 = vst [vmem:[%s4 + $0xb8] sm:$0xf] %v4392
    %4521 = vst [vmem:[%s4 + $0xbc] sm:$0xf] %v4393
    %4522 = vst [vmem:[%s4 + $0xc0] sm:$0xf] %v4394
    %4523 = vst [vmem:[%s4 + $0xc4] sm:$0xf] %v4395
    %4524 = vst [vmem:[%s4 + $0xc8] sm:$0xf] %v4396
    %4525 = vst [vmem:[%s4 + $0xcc] sm:$0xf] %v4397
    %4526 = vst [vmem:[%s4 + $0xd0] sm:$0xf] %v4398
    %4527 = vst [vmem:[%s4 + $0xd4] sm:$0xf] %v4399
    %4528 = vst [vmem:[%s4 + $0xd8] sm:$0xf] %v4400
    %4529 = vst [vmem:[%s4 + $0xdc] sm:$0xf] %v4401
    %4530 = vst [vmem:[%s4 + $0xe0] sm:$0xf] %v4402
    %4531 = vst [vmem:[%s4 + $0xe4] sm:$0xf] %v4403
    %4532 = vst [vmem:[%s4 + $0xe8] sm:$0xf] %v4404
    %4533 = vst [vmem:[%s4 + $0xec] sm:$0xf] %v4405
    %4534 = vst [vmem:[%s4 + $0xf0] sm:$0xf] %v4406
    %4535 = vst [vmem:[%s4 + $0xf4] sm:$0xf] %v4407
    %4536 = vst [vmem:[%s4 + $0xf8] sm:$0xf] %v4408
    %4537 = vst [vmem:[%s4 + $0xfc] sm:$0xf] %v4409
  $region25: #{critic_forward.6} parent=0 // pred_fallthru
    _
  // Predicated region
  $region26: #{critic_forward.6} parent=0 // pred_check
    _
  $region27: #{critic_forward.6} parent=0 // pred_check_branch
    %4539 = sbr.rel (0) target = $region29
  $region28: #{critic_forward.6} parent=0 // pred_region
    _
  $region29: #{critic_forward.6} parent=0 // pred_fallthru
    _
  // Predicated region
  $region30: #{critic_forward.6} parent=0 // pred_check
    _
  $region31: #{critic_forward.6} parent=0 // pred_check_branch
    %4541 = sbr.rel (0) target = $region33
  $region32: #{critic_forward.6} parent=0 // pred_region
    _
  $region33: #{critic_forward.6} parent=0 // pred_fallthru
    _

// kernel: critic_forward.7
$region0: #{critic_forward.7}
  #allocation0 [shape = 'u32[]', space=smem, size = 0x4, offset = 0x4, fixed_abs, tag = 'smem constant byte address 0x4 - core index']
  #allocation1 [shape = 'u32[144,128]{1,0:T(1,128)}', space=vmem, size = 0x12000, scoped, tag = 'internal scratch']
  #allocation2 [shape = 'f32[128,128]{1,0:T(8,128)}', space=vmem, size = 0x10000, scoped, tag = 'scratch operand']
  %s0 = inlined_call_operand.vmem [shape: bf16[128,2048], index: 0, kind: input, shape index: {}]
  %s1 = inlined_call_operand.vmem [shape: bf16[2048,256], index: 1, kind: input, shape index: {}]
  %s2 = inlined_call_operand.vmem [shape: f32[1,256], index: 2, kind: input, shape index: {}]
  %s3 = inlined_call_operand.vmem [shape: f32[1,256], index: 3, kind: input, shape index: {}]
  %s4 = inlined_call_operand.vmem [shape: bf16[128,256], index: 4, kind: output, shape index: {}]
  %s5 = sld [smem:[#allocation0]]
  $region158: #{critic_forward.7} parent=0
    _
  %s7 = ssub.s32 1, %s5
  %s8 = scalar_select 0, %s7, %s5
  $region1: #{critic_forward.7} parent=0
    #allocation3 [shape = 'u8[524288]{0}', space=vmem, size = 0x80000, scoped, tag = 'input window, operand 0']
    #allocation4 [shape = 'u8[524288]{0}', space=vmem, size = 0x80000, scoped, tag = 'input window, operand 1']
    #allocation5 [shape = 'u8[65536]{0}', space=vmem, size = 0x10000, scoped, tag = 'output window, operand 0']
    loop: start=0, step=1, limit=6
    $region2: #{critic_forward.7} parent=1 // loop_pre_header
      _
    $region3: #{critic_forward.7} parent=1 // loop_header
      %s10 = sphi 0, %s14
      %p11 = scmp.ge.s32.totalorder %s10, 6
      %s17 = sphi 0, %s29
      %s18 = sphi 0, %s25
      %s19 = sphi 0, %s17
      %s20 = sphi 0, %s18
      %s21 = sphi 0, %s19
      %s22 = sphi 0, %s20
      %s32 = sphi 0, %s34
      %s35 = sphi 0, %s32
      %s36 = sphi 0, %s35
      %s52 = sphi 0, %s36
      %s60 = sphi 0, %s62
      %s63 = sphi 0, %s60
      %s64 = sphi 0, %s63
      %s80 = sphi 0, %s64
      %s86 = sphi 0, %s88
      %s89 = sphi 0, %s86
      %s90 = sphi 0, %s89
      %s106 = sphi 0, %s90
      %s112 = sphi 0, %s114
      %s115 = sphi 0, %s112
      %s116 = sphi 0, %s115
      %s132 = sphi 0, %s116
      %s138 = sphi 0, %s140
      %s141 = sphi 0, %s138
      %s142 = sphi 0, %s141
      %s158 = sphi 0, %s142
    $region4: #{critic_forward.7} parent=1 // loop_header_branch
      %13 = sbr.rel (%p11) target = $region8
    $region5: #{critic_forward.7} parent=1 // loop_body
      %s15 = ssub.s32 %s10, 1
      %s16 = ssub.s32 %s10, 2
      %s23 = sadd.s32 1, %s18
      %p24 = scmp.ge.s32.totalorder %s23, 2
      %s25 = scalar_select %p24, 0, %s23
      %s26 = sadd.s32 1, %s17
      %s27 = scalar_select %p24, %s26, %s17
      %p28 = scmp.ge.s32.totalorder %s27, 2
      %s29 = scalar_select %p28, 0, %s27
      %s30 = ssub.s32 %s18, %s25
      %p31 = scmp.eq.s32.totalorder %s30, 0
      %s33 = sadd.s32 %s32, 1
      %s34 = scalar_select %p31, %s32, %s33
      %p37 = pneg %p31
      %p38 = scmp.eq.s32.totalorder %s10, 3
      %p39 = por %p37, %p38
      %p40 = scmp.ne.s32.totalorder %s32, %s35
      %p41 = scmp.eq.s32.totalorder %s10, 0
      %p42 = por %p40, %p41
      %p43 = scmp.ne.s32.totalorder %s32, %s35
      %p44 = scmp.eq.s32.totalorder %s15, 3
      %p45 = por %p43, %p44
      %p46 = scmp.ne.s32.totalorder %s35, %s36
      %p47 = scmp.eq.s32.totalorder %s15, 0
      %p48 = por %p46, %p47
      %p49 = scmp.ne.s32.totalorder %s35, %s36
      %p50 = scmp.eq.s32.totalorder %s16, 3
      %p51 = por %p49, %p50
      %p53 = scmp.ne.s32.totalorder %s36, %s52
      %p54 = scmp.eq.s32.totalorder %s16, 0
      %p55 = por %p53, %p54
      %s56 = ssub.s32 %s18, %s25
      %s57 = ssub.s32 %s17, %s29
      %s58 = sor.u32 %s56, %s57
      %p59 = scmp.eq.s32.totalorder %s58, 0
      %s61 = sadd.s32 %s60, 1
      %s62 = scalar_select %p59, %s60, %s61
      %p65 = pneg %p59
      %p66 = scmp.eq.s32.totalorder %s10, 3
      %p67 = por %p65, %p66
      %p68 = scmp.ne.s32.totalorder %s60, %s63
      %p69 = scmp.eq.s32.totalorder %s10, 0
      %p70 = por %p68, %p69
      %p71 = scmp.ne.s32.totalorder %s60, %s63
      %p72 = scmp.eq.s32.totalorder %s15, 3
      %p73 = por %p71, %p72
      %p74 = scmp.ne.s32.totalorder %s63, %s64
      %p75 = scmp.eq.s32.totalorder %s15, 0
      %p76 = por %p74, %p75
      %p77 = scmp.ne.s32.totalorder %s63, %s64
      %p78 = scmp.eq.s32.totalorder %s16, 3
      %p79 = por %p77, %p78
      %p81 = scmp.ne.s32.totalorder %s64, %s80
      %p82 = scmp.eq.s32.totalorder %s16, 0
      %p83 = por %p81, %p82
      %s84 = ssub.s32 %s17, %s29
      %p85 = scmp.eq.s32.totalorder %s84, 0
      %s87 = sadd.s32 %s86, 1
      %s88 = scalar_select %p85, %s86, %s87
      %p91 = pneg %p85
      %p92 = scmp.eq.s32.totalorder %s10, 3
      %p93 = por %p91, %p92
      %p94 = scmp.ne.s32.totalorder %s86, %s89
      %p95 = scmp.eq.s32.totalorder %s10, 0
      %p96 = por %p94, %p95
      %p97 = scmp.ne.s32.totalorder %s86, %s89
      %p98 = scmp.eq.s32.totalorder %s15, 3
      %p99 = por %p97, %p98
      %p100 = scmp.ne.s32.totalorder %s89, %s90
      %p101 = scmp.eq.s32.totalorder %s15, 0
      %p102 = por %p100, %p101
      %p103 = scmp.ne.s32.totalorder %s89, %s90
      %p104 = scmp.eq.s32.totalorder %s16, 3
      %p105 = por %p103, %p104
      %p107 = scmp.ne.s32.totalorder %s90, %s106
      %p108 = scmp.eq.s32.totalorder %s16, 0
      %p109 = por %p107, %p108
      %s110 = ssub.s32 %s17, %s29
      %p111 = scmp.eq.s32.totalorder %s110, 0
      %s113 = sadd.s32 %s112, 1
      %s114 = scalar_select %p111, %s112, %s113
      %p117 = pneg %p111
      %p118 = scmp.eq.s32.totalorder %s10, 3
      %p119 = por %p117, %p118
      %p120 = scmp.ne.s32.totalorder %s112, %s115
      %p121 = scmp.eq.s32.totalorder %s10, 0
      %p122 = por %p120, %p121
      %p123 = scmp.ne.s32.totalorder %s112, %s115
      %p124 = scmp.eq.s32.totalorder %s15, 3
      %p125 = por %p123, %p124
      %p126 = scmp.ne.s32.totalorder %s115, %s116
      %p127 = scmp.eq.s32.totalorder %s15, 0
      %p128 = por %p126, %p127
      %p129 = scmp.ne.s32.totalorder %s115, %s116
      %p130 = scmp.eq.s32.totalorder %s16, 3
      %p131 = por %p129, %p130
      %p133 = scmp.ne.s32.totalorder %s116, %s132
      %p134 = scmp.eq.s32.totalorder %s16, 0
      %p135 = por %p133, %p134
      %s136 = ssub.s32 %s17, %s29
      %p137 = scmp.eq.s32.totalorder %s136, 0
      %s139 = sadd.s32 %s138, 1
      %s140 = scalar_select %p137, %s138, %s139
      %p143 = pneg %p137
      %p144 = scmp.eq.s32.totalorder %s10, 3
      %p145 = por %p143, %p144
      %p146 = scmp.ne.s32.totalorder %s138, %s141
      %p147 = scmp.eq.s32.totalorder %s10, 0
      %p148 = por %p146, %p147
      %p149 = scmp.ne.s32.totalorder %s138, %s141
      %p150 = scmp.eq.s32.totalorder %s15, 3
      %p151 = por %p149, %p150
      %p152 = scmp.ne.s32.totalorder %s141, %s142
      %p153 = scmp.eq.s32.totalorder %s15, 0
      %p154 = por %p152, %p153
      %p155 = scmp.ne.s32.totalorder %s141, %s142
      %p156 = scmp.eq.s32.totalorder %s16, 3
      %p157 = por %p155, %p156
      %p159 = scmp.ne.s32.totalorder %s142, %s158
      %p160 = scmp.eq.s32.totalorder %s16, 0
      %p161 = por %p159, %p160
      %p162 = scmp.le.s32.totalorder 1, %s10
      %p163 = scmp.lt.s32.totalorder %s10, 5
      %p164 = pnand %p162, %p163
      %p165 = pneg %p164
      // Predicated region
      $region9: #{critic_forward.7} parent=5 // pred_check
        _
      $region10: #{critic_forward.7} parent=5 // pred_check_branch
        %167 = sbr.rel (%p164) target = $region12
      $region11: #{critic_forward.7} parent=5 // pred_region
        %s168 = ssub.s32 %s10, 1
      $region12: #{critic_forward.7} parent=5 // pred_fallthru
        _
      %p169 = scmp.lt.s32.totalorder %s10, 4
      // Predicated region
      $region13: #{critic_forward.7} parent=5 // pred_check
        %p170 = pneg %p169
      $region14: #{critic_forward.7} parent=5 // pred_check_branch
        %172 = sbr.rel (%p170) target = $region16
      $region15: #{critic_forward.7} parent=5 // pred_region
        // Predicated region
        $region17: #{critic_forward.7} parent=15 // pred_check
          %p173 = pneg %p42
        $region18: #{critic_forward.7} parent=15 // pred_check_branch
          %175 = sbr.rel (%p173) target = $region20
        $region19: #{critic_forward.7} parent=15 // pred_region
          %s176 = sand.u32 %s32, 1
          %s177 = sand.u32 %s32, 1
          %s178 = smul.addr %s177, 512
          %s179 = scalar_lea.vmem [#allocation3], %s178
          %s180 = smul.u32 8, %s18
          %s181 = smul.addr %s180, 4
          %s182 = scalar_lea.vmem %s0, %s181
          // Predicated region
          $region21: #{critic_forward.7} parent=19 // pred_check
            _
          $region22: #{critic_forward.7} parent=19 // pred_check_branch
            %184 = sbr.rel (0) target = $region24
          $region23: #{critic_forward.7} parent=19 // pred_region
            // Predicated region
            $region25: #{critic_forward.7} parent=23 // pred_check
              _
            $region26: #{critic_forward.7} parent=23 // pred_check_branch
              %186 = sbr.rel (0) target = $region28
            $region27: #{critic_forward.7} parent=23 // pred_region
              loop: start=0, step=1, limit=1
              $region29: #{critic_forward.7} parent=27 // loop_pre_header
                _
              $region30: #{critic_forward.7} parent=27 // loop_header
                %s188 = sphi 0, %s192
                %p189 = scmp.ge.s32.totalorder %s188, 1
                %s193 = sphi %s182, %s182
                %s194 = sphi %s179, %s179
              $region31: #{critic_forward.7} parent=27 // loop_header_branch
                %191 = sbr.rel (%p189) target = $region35
              $region32: #{critic_forward.7} parent=27 // loop_body
                %v195 = vld [vmem:[%s193] sm:$0xff]
                %196 = vst [vmem:[%s194] sm:$0xff] %v195
                %v197 = vld [vmem:[%s193 + $0x8] sm:$0xff]
                %198 = vst [vmem:[%s194 + $0x8] sm:$0xff] %v197
                %v199 = vld [vmem:[%s193 + $0x10] sm:$0xff]
                %200 = vst [vmem:[%s194 + $0x10] sm:$0xff] %v199
                %v201 = vld [vmem:[%s193 + $0x18] sm:$0xff]
                %202 = vst [vmem:[%s194 + $0x18] sm:$0xff] %v201
                %v203 = vld [vmem:[%s193 + $0x40] sm:$0xff]
                %204 = vst [vmem:[%s194 + $0x20] sm:$0xff] %v203
                %v205 = vld [vmem:[%s193 + $0x48] sm:$0xff]
                %206 = vst [vmem:[%s194 + $0x28] sm:$0xff] %v205
                %v207 = vld [vmem:[%s193 + $0x50] sm:$0xff]
                %208 = vst [vmem:[%s194 + $0x30] sm:$0xff] %v207
                %v209 = vld [vmem:[%s193 + $0x58] sm:$0xff]
                %210 = vst [vmem:[%s194 + $0x38] sm:$0xff] %v209
                %v211 = vld [vmem:[%s193 + $0x80] sm:$0xff]
                %212 = vst [vmem:[%s194 + $0x40] sm:$0xff] %v211
                %v213 = vld [vmem:[%s193 + $0x88] sm:$0xff]
                %214 = vst [vmem:[%s194 + $0x48] sm:$0xff] %v213
                %v215 = vld [vmem:[%s193 + $0x90] sm:$0xff]
                %216 = vst [vmem:[%s194 + $0x50] sm:$0xff] %v215
                %v217 = vld [vmem:[%s193 + $0x98] sm:$0xff]
                %218 = vst [vmem:[%s194 + $0x58] sm:$0xff] %v217
                %v219 = vld [vmem:[%s193 + $0xc0] sm:$0xff]
                %220 = vst [vmem:[%s194 + $0x60] sm:$0xff] %v219
                %v221 = vld [vmem:[%s193 + $0xc8] sm:$0xff]
                %222 = vst [vmem:[%s194 + $0x68] sm:$0xff] %v221
                %v223 = vld [vmem:[%s193 + $0xd0] sm:$0xff]
                %224 = vst [vmem:[%s194 + $0x70] sm:$0xff] %v223
                %v225 = vld [vmem:[%s193 + $0xd8] sm:$0xff]
                %226 = vst [vmem:[%s194 + $0x78] sm:$0xff] %v225
                %v227 = vld [vmem:[%s193 + $0x100] sm:$0xff]
                %228 = vst [vmem:[%s194 + $0x80] sm:$0xff] %v227
                %v229 = vld [vmem:[%s193 + $0x108] sm:$0xff]
                %230 = vst [vmem:[%s194 + $0x88] sm:$0xff] %v229
                %v231 = vld [vmem:[%s193 + $0x110] sm:$0xff]
                %232 = vst [vmem:[%s194 + $0x90] sm:$0xff] %v231
                %v233 = vld [vmem:[%s193 + $0x118] sm:$0xff]
                %234 = vst [vmem:[%s194 + $0x98] sm:$0xff] %v233
                %v235 = vld [vmem:[%s193 + $0x140] sm:$0xff]
                %236 = vst [vmem:[%s194 + $0xa0] sm:$0xff] %v235
                %v237 = vld [vmem:[%s193 + $0x148] sm:$0xff]
                %238 = vst [vmem:[%s194 + $0xa8] sm:$0xff] %v237
                %v239 = vld [vmem:[%s193 + $0x150] sm:$0xff]
                %240 = vst [vmem:[%s194 + $0xb0] sm:$0xff] %v239
                %v241 = vld [vmem:[%s193 + $0x158] sm:$0xff]
                %242 = vst [vmem:[%s194 + $0xb8] sm:$0xff] %v241
                %v243 = vld [vmem:[%s193 + $0x180] sm:$0xff]
                %244 = vst [vmem:[%s194 + $0xc0] sm:$0xff] %v243
                %v245 = vld [vmem:[%s193 + $0x188] sm:$0xff]
                %246 = vst [vmem:[%s194 + $0xc8] sm:$0xff] %v245
                %v247 = vld [vmem:[%s193 + $0x190] sm:$0xff]
                %248 = vst [vmem:[%s194 + $0xd0] sm:$0xff] %v247
                %v249 = vld [vmem:[%s193 + $0x198] sm:$0xff]
                %250 = vst [vmem:[%s194 + $0xd8] sm:$0xff] %v249
                %v251 = vld [vmem:[%s193 + $0x1c0] sm:$0xff]
                %252 = vst [vmem:[%s194 + $0xe0] sm:$0xff] %v251
                %v253 = vld [vmem:[%s193 + $0x1c8] sm:$0xff]
                %254 = vst [vmem:[%s194 + $0xe8] sm:$0xff] %v253
                %v255 = vld [vmem:[%s193 + $0x1d0] sm:$0xff]
                %256 = vst [vmem:[%s194 + $0xf0] sm:$0xff] %v255
                %v257 = vld [vmem:[%s193 + $0x1d8] sm:$0xff]
                %258 = vst [vmem:[%s194 + $0xf8] sm:$0xff] %v257
                %v259 = vld [vmem:[%s193 + $0x200] sm:$0xff]
                %260 = vst [vmem:[%s194 + $0x100] sm:$0xff] %v259
                %v261 = vld [vmem:[%s193 + $0x208] sm:$0xff]
                %262 = vst [vmem:[%s194 + $0x108] sm:$0xff] %v261
                %v263 = vld [vmem:[%s193 + $0x210] sm:$0xff]
                %264 = vst [vmem:[%s194 + $0x110] sm:$0xff] %v263
                %v265 = vld [vmem:[%s193 + $0x218] sm:$0xff]
                %266 = vst [vmem:[%s194 + $0x118] sm:$0xff] %v265
                %v267 = vld [vmem:[%s193 + $0x240] sm:$0xff]
                %268 = vst [vmem:[%s194 + $0x120] sm:$0xff] %v267
                %v269 = vld [vmem:[%s193 + $0x248] sm:$0xff]
                %270 = vst [vmem:[%s194 + $0x128] sm:$0xff] %v269
                %v271 = vld [vmem:[%s193 + $0x250] sm:$0xff]
                %272 = vst [vmem:[%s194 + $0x130] sm:$0xff] %v271
                %v273 = vld [vmem:[%s193 + $0x258] sm:$0xff]
                %274 = vst [vmem:[%s194 + $0x138] sm:$0xff] %v273
                %v275 = vld [vmem:[%s193 + $0x280] sm:$0xff]
                %276 = vst [vmem:[%s194 + $0x140] sm:$0xff] %v275
                %v277 = vld [vmem:[%s193 + $0x288] sm:$0xff]
                %278 = vst [vmem:[%s194 + $0x148] sm:$0xff] %v277
                %v279 = vld [vmem:[%s193 + $0x290] sm:$0xff]
                %280 = vst [vmem:[%s194 + $0x150] sm:$0xff] %v279
                %v281 = vld [vmem:[%s193 + $0x298] sm:$0xff]
                %282 = vst [vmem:[%s194 + $0x158] sm:$0xff] %v281
                %v283 = vld [vmem:[%s193 + $0x2c0] sm:$0xff]
                %284 = vst [vmem:[%s194 + $0x160] sm:$0xff] %v283
                %v285 = vld [vmem:[%s193 + $0x2c8] sm:$0xff]
                %286 = vst [vmem:[%s194 + $0x168] sm:$0xff] %v285
                %v287 = vld [vmem:[%s193 + $0x2d0] sm:$0xff]
                %288 = vst [vmem:[%s194 + $0x170] sm:$0xff] %v287
                %v289 = vld [vmem:[%s193 + $0x2d8] sm:$0xff]
                %290 = vst [vmem:[%s194 + $0x178] sm:$0xff] %v289
                %v291 = vld [vmem:[%s193 + $0x300] sm:$0xff]
                %292 = vst [vmem:[%s194 + $0x180] sm:$0xff] %v291
                %v293 = vld [vmem:[%s193 + $0x308] sm:$0xff]
                %294 = vst [vmem:[%s194 + $0x188] sm:$0xff] %v293
                %v295 = vld [vmem:[%s193 + $0x310] sm:$0xff]
                %296 = vst [vmem:[%s194 + $0x190] sm:$0xff] %v295
                %v297 = vld [vmem:[%s193 + $0x318] sm:$0xff]
                %298 = vst [vmem:[%s194 + $0x198] sm:$0xff] %v297
                %v299 = vld [vmem:[%s193 + $0x340] sm:$0xff]
                %300 = vst [vmem:[%s194 + $0x1a0] sm:$0xff] %v299
                %v301 = vld [vmem:[%s193 + $0x348] sm:$0xff]
                %302 = vst [vmem:[%s194 + $0x1a8] sm:$0xff] %v301
                %v303 = vld [vmem:[%s193 + $0x350] sm:$0xff]
                %304 = vst [vmem:[%s194 + $0x1b0] sm:$0xff] %v303
                %v305 = vld [vmem:[%s193 + $0x358] sm:$0xff]
                %306 = vst [vmem:[%s194 + $0x1b8] sm:$0xff] %v305
                %v307 = vld [vmem:[%s193 + $0x380] sm:$0xff]
                %308 = vst [vmem:[%s194 + $0x1c0] sm:$0xff] %v307
                %v309 = vld [vmem:[%s193 + $0x388] sm:$0xff]
                %310 = vst [vmem:[%s194 + $0x1c8] sm:$0xff] %v309
                %v311 = vld [vmem:[%s193 + $0x390] sm:$0xff]
                %312 = vst [vmem:[%s194 + $0x1d0] sm:$0xff] %v311
                %v313 = vld [vmem:[%s193 + $0x398] sm:$0xff]
                %314 = vst [vmem:[%s194 + $0x1d8] sm:$0xff] %v313
                %v315 = vld [vmem:[%s193 + $0x3c0] sm:$0xff]
                %316 = vst [vmem:[%s194 + $0x1e0] sm:$0xff] %v315
                %v317 = vld [vmem:[%s193 + $0x3c8] sm:$0xff]
                %318 = vst [vmem:[%s194 + $0x1e8] sm:$0xff] %v317
                %v319 = vld [vmem:[%s193 + $0x3d0] sm:$0xff]
                %320 = vst [vmem:[%s194 + $0x1f0] sm:$0xff] %v319
                %v321 = vld [vmem:[%s193 + $0x3d8] sm:$0xff]
                %322 = vst [vmem:[%s194 + $0x1f8] sm:$0xff] %v321
              $region33: #{critic_forward.7} parent=27 // loop_footer
                %s192 = sadd.s32 1, %s188
              $region34: #{critic_forward.7} parent=27 // loop_footer_branch
                %187 = sbr.rel target = $region30
              $region35: #{critic_forward.7} parent=27 // loop_exit
                _
            $region28: #{critic_forward.7} parent=23 // pred_fallthru
              _
            // Predicated region
            $region36: #{critic_forward.7} parent=23 // pred_check
              _
            $region37: #{critic_forward.7} parent=23 // pred_check_branch
              %324 = sbr.rel target = $region39
            $region38: #{critic_forward.7} parent=23 // pred_region
              _
            $region39: #{critic_forward.7} parent=23 // pred_fallthru
              _
          $region24: #{critic_forward.7} parent=19 // pred_fallthru
            _
          %325 = vnop
        $region20: #{critic_forward.7} parent=15 // pred_fallthru
          _
        // Predicated region
        $region40: #{critic_forward.7} parent=15 // pred_check
          %p326 = pneg %p70
        $region41: #{critic_forward.7} parent=15 // pred_check_branch
          %328 = sbr.rel (%p326) target = $region43
        $region42: #{critic_forward.7} parent=15 // pred_region
          %s329 = sand.u32 %s60, 1
          %s330 = sand.u32 %s60, 1
          %s331 = smul.addr %s330, 512
          %s332 = scalar_lea.vmem [#allocation4], %s331
          %s333 = smul.u32 128, %s18
          %s334 = smul.addr %s333, 2
          %s335 = sadd.s32 %s17, %s334
          %s336 = smul.addr %s335, 4
          %s337 = scalar_lea.vmem %s1, %s336
          // Predicated region
          $region44: #{critic_forward.7} parent=42 // pred_check
            _
          $region45: #{critic_forward.7} parent=42 // pred_check_branch
            %339 = sbr.rel (0) target = $region47
          $region46: #{critic_forward.7} parent=42 // pred_region
            // Predicated region
            $region48: #{critic_forward.7} parent=46 // pred_check
              _
            $region49: #{critic_forward.7} parent=46 // pred_check_branch
              %341 = sbr.rel target = $region51
            $region50: #{critic_forward.7} parent=46 // pred_region
              // Predicated region
              $region63: #{critic_forward.7} parent=50 // pred_check
                _
              $region64: #{critic_forward.7} parent=50 // pred_check_branch
                %611 = sbr.rel (0) target = $region66
              $region65: #{critic_forward.7} parent=50 // pred_region
                loop: start=0, step=1, limit=1
                $region67: #{critic_forward.7} parent=65 // loop_pre_header
                  _
                $region68: #{critic_forward.7} parent=65 // loop_header
                  %s613 = sphi 0, %s617
                  %p614 = scmp.ge.s32.totalorder %s613, 1
                  %s618 = sphi %s337, %s337
                  %s619 = sphi %s332, %s332
                $region69: #{critic_forward.7} parent=65 // loop_header_branch
                  %616 = sbr.rel (%p614) target = $region73
                $region70: #{critic_forward.7} parent=65 // loop_body
                  _
                $region71: #{critic_forward.7} parent=65 // loop_footer
                  %s617 = sadd.s32 1, %s613
                $region72: #{critic_forward.7} parent=65 // loop_footer_branch
                  %612 = sbr.rel target = $region68
                $region73: #{critic_forward.7} parent=65 // loop_exit
                  _
                %s621 = ssub.s32 16, 1
                loop: start=0, step=1, limit=1
                $region74: #{critic_forward.7} parent=65 // loop_pre_header
                  _
                $region75: #{critic_forward.7} parent=65 // loop_header
                  %s623 = sphi 0, %s627
                  %p624 = scmp.ge.s32.totalorder %s623, 1
                  %s628 = sphi %s337, %s337
                  %s629 = sphi %s332, %s332
                $region76: #{critic_forward.7} parent=65 // loop_header_branch
                  %626 = sbr.rel (%p624) target = $region80
                $region77: #{critic_forward.7} parent=65 // loop_body
                  %v630 = vld [vmem:[%s628] sm:%s621]
                  %631 = vst [vmem:[%s629] sm:%s621] %v630
                  %v632 = vld [vmem:[%s628 + $0x8] sm:%s621]
                  %633 = vst [vmem:[%s629 + $0x4] sm:%s621] %v632
                  %v634 = vld [vmem:[%s628 + $0x10] sm:%s621]
                  %635 = vst [vmem:[%s629 + $0x8] sm:%s621] %v634
                  %v636 = vld [vmem:[%s628 + $0x18] sm:%s621]
                  %637 = vst [vmem:[%s629 + $0xc] sm:%s621] %v636
                  %v638 = vld [vmem:[%s628 + $0x20] sm:%s621]
                  %639 = vst [vmem:[%s629 + $0x10] sm:%s621] %v638
                  %v640 = vld [vmem:[%s628 + $0x28] sm:%s621]
                  %641 = vst [vmem:[%s629 + $0x14] sm:%s621] %v640
                  %v642 = vld [vmem:[%s628 + $0x30] sm:%s621]
                  %643 = vst [vmem:[%s629 + $0x18] sm:%s621] %v642
                  %v644 = vld [vmem:[%s628 + $0x38] sm:%s621]
                  %645 = vst [vmem:[%s629 + $0x1c] sm:%s621] %v644
                  %v646 = vld [vmem:[%s628 + $0x40] sm:%s621]
                  %647 = vst [vmem:[%s629 + $0x20] sm:%s621] %v646
                  %v648 = vld [vmem:[%s628 + $0x48] sm:%s621]
                  %649 = vst [vmem:[%s629 + $0x24] sm:%s621] %v648
                  %v650 = vld [vmem:[%s628 + $0x50] sm:%s621]
                  %651 = vst [vmem:[%s629 + $0x28] sm:%s621] %v650
                  %v652 = vld [vmem:[%s628 + $0x58] sm:%s621]
                  %653 = vst [vmem:[%s629 + $0x2c] sm:%s621] %v652
                  %v654 = vld [vmem:[%s628 + $0x60] sm:%s621]
                  %655 = vst [vmem:[%s629 + $0x30] sm:%s621] %v654
                  %v656 = vld [vmem:[%s628 + $0x68] sm:%s621]
                  %657 = vst [vmem:[%s629 + $0x34] sm:%s621] %v656
                  %v658 = vld [vmem:[%s628 + $0x70] sm:%s621]
                  %659 = vst [vmem:[%s629 + $0x38] sm:%s621] %v658
                  %v660 = vld [vmem:[%s628 + $0x78] sm:%s621]
                  %661 = vst [vmem:[%s629 + $0x3c] sm:%s621] %v660
                  %v662 = vld [vmem:[%s628 + $0x80] sm:%s621]
                  %663 = vst [vmem:[%s629 + $0x40] sm:%s621] %v662
                  %v664 = vld [vmem:[%s628 + $0x88] sm:%s621]
                  %665 = vst [vmem:[%s629 + $0x44] sm:%s621] %v664
                  %v666 = vld [vmem:[%s628 + $0x90] sm:%s621]
                  %667 = vst [vmem:[%s629 + $0x48] sm:%s621] %v666
                  %v668 = vld [vmem:[%s628 + $0x98] sm:%s621]
                  %669 = vst [vmem:[%s629 + $0x4c] sm:%s621] %v668
                  %v670 = vld [vmem:[%s628 + $0xa0] sm:%s621]
                  %671 = vst [vmem:[%s629 + $0x50] sm:%s621] %v670
                  %v672 = vld [vmem:[%s628 + $0xa8] sm:%s621]
                  %673 = vst [vmem:[%s629 + $0x54] sm:%s621] %v672
                  %v674 = vld [vmem:[%s628 + $0xb0] sm:%s621]
                  %675 = vst [vmem:[%s629 + $0x58] sm:%s621] %v674
                  %v676 = vld [vmem:[%s628 + $0xb8] sm:%s621]
                  %677 = vst [vmem:[%s629 + $0x5c] sm:%s621] %v676
                  %v678 = vld [vmem:[%s628 + $0xc0] sm:%s621]
                  %679 = vst [vmem:[%s629 + $0x60] sm:%s621] %v678
                  %v680 = vld [vmem:[%s628 + $0xc8] sm:%s621]
                  %681 = vst [vmem:[%s629 + $0x64] sm:%s621] %v680
                  %v682 = vld [vmem:[%s628 + $0xd0] sm:%s621]
                  %683 = vst [vmem:[%s629 + $0x68] sm:%s621] %v682
                  %v684 = vld [vmem:[%s628 + $0xd8] sm:%s621]
                  %685 = vst [vmem:[%s629 + $0x6c] sm:%s621] %v684
                  %v686 = vld [vmem:[%s628 + $0xe0] sm:%s621]
                  %687 = vst [vmem:[%s629 + $0x70] sm:%s621] %v686
                  %v688 = vld [vmem:[%s628 + $0xe8] sm:%s621]
                  %689 = vst [vmem:[%s629 + $0x74] sm:%s621] %v688
                  %v690 = vld [vmem:[%s628 + $0xf0] sm:%s621]
                  %691 = vst [vmem:[%s629 + $0x78] sm:%s621] %v690
                  %v692 = vld [vmem:[%s628 + $0xf8] sm:%s621]
                  %693 = vst [vmem:[%s629 + $0x7c] sm:%s621] %v692
                  %v694 = vld [vmem:[%s628 + $0x100] sm:%s621]
                  %695 = vst [vmem:[%s629 + $0x80] sm:%s621] %v694
                  %v696 = vld [vmem:[%s628 + $0x108] sm:%s621]
                  %697 = vst [vmem:[%s629 + $0x84] sm:%s621] %v696
                  %v698 = vld [vmem:[%s628 + $0x110] sm:%s621]
                  %699 = vst [vmem:[%s629 + $0x88] sm:%s621] %v698
                  %v700 = vld [vmem:[%s628 + $0x118] sm:%s621]
                  %701 = vst [vmem:[%s629 + $0x8c] sm:%s621] %v700
                  %v702 = vld [vmem:[%s628 + $0x120] sm:%s621]
                  %703 = vst [vmem:[%s629 + $0x90] sm:%s621] %v702
                  %v704 = vld [vmem:[%s628 + $0x128] sm:%s621]
                  %705 = vst [vmem:[%s629 + $0x94] sm:%s621] %v704
                  %v706 = vld [vmem:[%s628 + $0x130] sm:%s621]
                  %707 = vst [vmem:[%s629 + $0x98] sm:%s621] %v706
                  %v708 = vld [vmem:[%s628 + $0x138] sm:%s621]
                  %709 = vst [vmem:[%s629 + $0x9c] sm:%s621] %v708
                  %v710 = vld [vmem:[%s628 + $0x140] sm:%s621]
                  %711 = vst [vmem:[%s629 + $0xa0] sm:%s621] %v710
                  %v712 = vld [vmem:[%s628 + $0x148] sm:%s621]
                  %713 = vst [vmem:[%s629 + $0xa4] sm:%s621] %v712
                  %v714 = vld [vmem:[%s628 + $0x150] sm:%s621]
                  %715 = vst [vmem:[%s629 + $0xa8] sm:%s621] %v714
                  %v716 = vld [vmem:[%s628 + $0x158] sm:%s621]
                  %717 = vst [vmem:[%s629 + $0xac] sm:%s621] %v716
                  %v718 = vld [vmem:[%s628 + $0x160] sm:%s621]
                  %719 = vst [vmem:[%s629 + $0xb0] sm:%s621] %v718
                  %v720 = vld [vmem:[%s628 + $0x168] sm:%s621]
                  %721 = vst [vmem:[%s629 + $0xb4] sm:%s621] %v720
                  %v722 = vld [vmem:[%s628 + $0x170] sm:%s621]
                  %723 = vst [vmem:[%s629 + $0xb8] sm:%s621] %v722
                  %v724 = vld [vmem:[%s628 + $0x178] sm:%s621]
                  %725 = vst [vmem:[%s629 + $0xbc] sm:%s621] %v724
                  %v726 = vld [vmem:[%s628 + $0x180] sm:%s621]
                  %727 = vst [vmem:[%s629 + $0xc0] sm:%s621] %v726
                  %v728 = vld [vmem:[%s628 + $0x188] sm:%s621]
                  %729 = vst [vmem:[%s629 + $0xc4] sm:%s621] %v728
                  %v730 = vld [vmem:[%s628 + $0x190] sm:%s621]
                  %731 = vst [vmem:[%s629 + $0xc8] sm:%s621] %v730
                  %v732 = vld [vmem:[%s628 + $0x198] sm:%s621]
                  %733 = vst [vmem:[%s629 + $0xcc] sm:%s621] %v732
                  %v734 = vld [vmem:[%s628 + $0x1a0] sm:%s621]
                  %735 = vst [vmem:[%s629 + $0xd0] sm:%s621] %v734
                  %v736 = vld [vmem:[%s628 + $0x1a8] sm:%s621]
                  %737 = vst [vmem:[%s629 + $0xd4] sm:%s621] %v736
                  %v738 = vld [vmem:[%s628 + $0x1b0] sm:%s621]
                  %739 = vst [vmem:[%s629 + $0xd8] sm:%s621] %v738
                  %v740 = vld [vmem:[%s628 + $0x1b8] sm:%s621]
                  %741 = vst [vmem:[%s629 + $0xdc] sm:%s621] %v740
                  %v742 = vld [vmem:[%s628 + $0x1c0] sm:%s621]
                  %743 = vst [vmem:[%s629 + $0xe0] sm:%s621] %v742
                  %v744 = vld [vmem:[%s628 + $0x1c8] sm:%s621]
                  %745 = vst [vmem:[%s629 + $0xe4] sm:%s621] %v744
                  %v746 = vld [vmem:[%s628 + $0x1d0] sm:%s621]
                  %747 = vst [vmem:[%s629 + $0xe8] sm:%s621] %v746
                  %v748 = vld [vmem:[%s628 + $0x1d8] sm:%s621]
                  %749 = vst [vmem:[%s629 + $0xec] sm:%s621] %v748
                  %v750 = vld [vmem:[%s628 + $0x1e0] sm:%s621]
                  %751 = vst [vmem:[%s629 + $0xf0] sm:%s621] %v750
                  %v752 = vld [vmem:[%s628 + $0x1e8] sm:%s621]
                  %753 = vst [vmem:[%s629 + $0xf4] sm:%s621] %v752
                  %v754 = vld [vmem:[%s628 + $0x1f0] sm:%s621]
                  %755 = vst [vmem:[%s629 + $0xf8] sm:%s621] %v754
                  %v756 = vld [vmem:[%s628 + $0x1f8] sm:%s621]
                  %757 = vst [vmem:[%s629 + $0xfc] sm:%s621] %v756
                  %v758 = vld [vmem:[%s628 + $0x200] sm:%s621]
                  %759 = vst [vmem:[%s629 + $0x100] sm:%s621] %v758
                  %v760 = vld [vmem:[%s628 + $0x208] sm:%s621]
                  %761 = vst [vmem:[%s629 + $0x104] sm:%s621] %v760
                  %v762 = vld [vmem:[%s628 + $0x210] sm:%s621]
                  %763 = vst [vmem:[%s629 + $0x108] sm:%s621] %v762
                  %v764 = vld [vmem:[%s628 + $0x218] sm:%s621]
                  %765 = vst [vmem:[%s629 + $0x10c] sm:%s621] %v764
                  %v766 = vld [vmem:[%s628 + $0x220] sm:%s621]
                  %767 = vst [vmem:[%s629 + $0x110] sm:%s621] %v766
                  %v768 = vld [vmem:[%s628 + $0x228] sm:%s621]
                  %769 = vst [vmem:[%s629 + $0x114] sm:%s621] %v768
                  %v770 = vld [vmem:[%s628 + $0x230] sm:%s621]
                  %771 = vst [vmem:[%s629 + $0x118] sm:%s621] %v770
                  %v772 = vld [vmem:[%s628 + $0x238] sm:%s621]
                  %773 = vst [vmem:[%s629 + $0x11c] sm:%s621] %v772
                  %v774 = vld [vmem:[%s628 + $0x240] sm:%s621]
                  %775 = vst [vmem:[%s629 + $0x120] sm:%s621] %v774
                  %v776 = vld [vmem:[%s628 + $0x248] sm:%s621]
                  %777 = vst [vmem:[%s629 + $0x124] sm:%s621] %v776
                  %v778 = vld [vmem:[%s628 + $0x250] sm:%s621]
                  %779 = vst [vmem:[%s629 + $0x128] sm:%s621] %v778
                  %v780 = vld [vmem:[%s628 + $0x258] sm:%s621]
                  %781 = vst [vmem:[%s629 + $0x12c] sm:%s621] %v780
                  %v782 = vld [vmem:[%s628 + $0x260] sm:%s621]
                  %783 = vst [vmem:[%s629 + $0x130] sm:%s621] %v782
                  %v784 = vld [vmem:[%s628 + $0x268] sm:%s621]
                  %785 = vst [vmem:[%s629 + $0x134] sm:%s621] %v784
                  %v786 = vld [vmem:[%s628 + $0x270] sm:%s621]
                  %787 = vst [vmem:[%s629 + $0x138] sm:%s621] %v786
                  %v788 = vld [vmem:[%s628 + $0x278] sm:%s621]
                  %789 = vst [vmem:[%s629 + $0x13c] sm:%s621] %v788
                  %v790 = vld [vmem:[%s628 + $0x280] sm:%s621]
                  %791 = vst [vmem:[%s629 + $0x140] sm:%s621] %v790
                  %v792 = vld [vmem:[%s628 + $0x288] sm:%s621]
                  %793 = vst [vmem:[%s629 + $0x144] sm:%s621] %v792
                  %v794 = vld [vmem:[%s628 + $0x290] sm:%s621]
                  %795 = vst [vmem:[%s629 + $0x148] sm:%s621] %v794
                  %v796 = vld [vmem:[%s628 + $0x298] sm:%s621]
                  %797 = vst [vmem:[%s629 + $0x14c] sm:%s621] %v796
                  %v798 = vld [vmem:[%s628 + $0x2a0] sm:%s621]
                  %799 = vst [vmem:[%s629 + $0x150] sm:%s621] %v798
                  %v800 = vld [vmem:[%s628 + $0x2a8] sm:%s621]
                  %801 = vst [vmem:[%s629 + $0x154] sm:%s621] %v800
                  %v802 = vld [vmem:[%s628 + $0x2b0] sm:%s621]
                  %803 = vst [vmem:[%s629 + $0x158] sm:%s621] %v802
                  %v804 = vld [vmem:[%s628 + $0x2b8] sm:%s621]
                  %805 = vst [vmem:[%s629 + $0x15c] sm:%s621] %v804
                  %v806 = vld [vmem:[%s628 + $0x2c0] sm:%s621]
                  %807 = vst [vmem:[%s629 + $0x160] sm:%s621] %v806
                  %v808 = vld [vmem:[%s628 + $0x2c8] sm:%s621]
                  %809 = vst [vmem:[%s629 + $0x164] sm:%s621] %v808
                  %v810 = vld [vmem:[%s628 + $0x2d0] sm:%s621]
                  %811 = vst [vmem:[%s629 + $0x168] sm:%s621] %v810
                  %v812 = vld [vmem:[%s628 + $0x2d8] sm:%s621]
                  %813 = vst [vmem:[%s629 + $0x16c] sm:%s621] %v812
                  %v814 = vld [vmem:[%s628 + $0x2e0] sm:%s621]
                  %815 = vst [vmem:[%s629 + $0x170] sm:%s621] %v814
                  %v816 = vld [vmem:[%s628 + $0x2e8] sm:%s621]
                  %817 = vst [vmem:[%s629 + $0x174] sm:%s621] %v816
                  %v818 = vld [vmem:[%s628 + $0x2f0] sm:%s621]
                  %819 = vst [vmem:[%s629 + $0x178] sm:%s621] %v818
                  %v820 = vld [vmem:[%s628 + $0x2f8] sm:%s621]
                  %821 = vst [vmem:[%s629 + $0x17c] sm:%s621] %v820
                  %v822 = vld [vmem:[%s628 + $0x300] sm:%s621]
                  %823 = vst [vmem:[%s629 + $0x180] sm:%s621] %v822
                  %v824 = vld [vmem:[%s628 + $0x308] sm:%s621]
                  %825 = vst [vmem:[%s629 + $0x184] sm:%s621] %v824
                  %v826 = vld [vmem:[%s628 + $0x310] sm:%s621]
                  %827 = vst [vmem:[%s629 + $0x188] sm:%s621] %v826
                  %v828 = vld [vmem:[%s628 + $0x318] sm:%s621]
                  %829 = vst [vmem:[%s629 + $0x18c] sm:%s621] %v828
                  %v830 = vld [vmem:[%s628 + $0x320] sm:%s621]
                  %831 = vst [vmem:[%s629 + $0x190] sm:%s621] %v830
                  %v832 = vld [vmem:[%s628 + $0x328] sm:%s621]
                  %833 = vst [vmem:[%s629 + $0x194] sm:%s621] %v832
                  %v834 = vld [vmem:[%s628 + $0x330] sm:%s621]
                  %835 = vst [vmem:[%s629 + $0x198] sm:%s621] %v834
                  %v836 = vld [vmem:[%s628 + $0x338] sm:%s621]
                  %837 = vst [vmem:[%s629 + $0x19c] sm:%s621] %v836
                  %v838 = vld [vmem:[%s628 + $0x340] sm:%s621]
                  %839 = vst [vmem:[%s629 + $0x1a0] sm:%s621] %v838
                  %v840 = vld [vmem:[%s628 + $0x348] sm:%s621]
                  %841 = vst [vmem:[%s629 + $0x1a4] sm:%s621] %v840
                  %v842 = vld [vmem:[%s628 + $0x350] sm:%s621]
                  %843 = vst [vmem:[%s629 + $0x1a8] sm:%s621] %v842
                  %v844 = vld [vmem:[%s628 + $0x358] sm:%s621]
                  %845 = vst [vmem:[%s629 + $0x1ac] sm:%s621] %v844
                  %v846 = vld [vmem:[%s628 + $0x360] sm:%s621]
                  %847 = vst [vmem:[%s629 + $0x1b0] sm:%s621] %v846
                  %v848 = vld [vmem:[%s628 + $0x368] sm:%s621]
                  %849 = vst [vmem:[%s629 + $0x1b4] sm:%s621] %v848
                  %v850 = vld [vmem:[%s628 + $0x370] sm:%s621]
                  %851 = vst [vmem:[%s629 + $0x1b8] sm:%s621] %v850
                  %v852 = vld [vmem:[%s628 + $0x378] sm:%s621]
                  %853 = vst [vmem:[%s629 + $0x1bc] sm:%s621] %v852
                  %v854 = vld [vmem:[%s628 + $0x380] sm:%s621]
                  %855 = vst [vmem:[%s629 + $0x1c0] sm:%s621] %v854
                  %v856 = vld [vmem:[%s628 + $0x388] sm:%s621]
                  %857 = vst [vmem:[%s629 + $0x1c4] sm:%s621] %v856
                  %v858 = vld [vmem:[%s628 + $0x390] sm:%s621]
                  %859 = vst [vmem:[%s629 + $0x1c8] sm:%s621] %v858
                  %v860 = vld [vmem:[%s628 + $0x398] sm:%s621]
                  %861 = vst [vmem:[%s629 + $0x1cc] sm:%s621] %v860
                  %v862 = vld [vmem:[%s628 + $0x3a0] sm:%s621]
                  %863 = vst [vmem:[%s629 + $0x1d0] sm:%s621] %v862
                  %v864 = vld [vmem:[%s628 + $0x3a8] sm:%s621]
                  %865 = vst [vmem:[%s629 + $0x1d4] sm:%s621] %v864
                  %v866 = vld [vmem:[%s628 + $0x3b0] sm:%s621]
                  %867 = vst [vmem:[%s629 + $0x1d8] sm:%s621] %v866
                  %v868 = vld [vmem:[%s628 + $0x3b8] sm:%s621]
                  %869 = vst [vmem:[%s629 + $0x1dc] sm:%s621] %v868
                  %v870 = vld [vmem:[%s628 + $0x3c0] sm:%s621]
                  %871 = vst [vmem:[%s629 + $0x1e0] sm:%s621] %v870
                  %v872 = vld [vmem:[%s628 + $0x3c8] sm:%s621]
                  %873 = vst [vmem:[%s629 + $0x1e4] sm:%s621] %v872
                  %v874 = vld [vmem:[%s628 + $0x3d0] sm:%s621]
                  %875 = vst [vmem:[%s629 + $0x1e8] sm:%s621] %v874
                  %v876 = vld [vmem:[%s628 + $0x3d8] sm:%s621]
                  %877 = vst [vmem:[%s629 + $0x1ec] sm:%s621] %v876
                  %v878 = vld [vmem:[%s628 + $0x3e0] sm:%s621]
                  %879 = vst [vmem:[%s629 + $0x1f0] sm:%s621] %v878
                  %v880 = vld [vmem:[%s628 + $0x3e8] sm:%s621]
                  %881 = vst [vmem:[%s629 + $0x1f4] sm:%s621] %v880
                  %v882 = vld [vmem:[%s628 + $0x3f0] sm:%s621]
                  %883 = vst [vmem:[%s629 + $0x1f8] sm:%s621] %v882
                  %v884 = vld [vmem:[%s628 + $0x3f8] sm:%s621]
                  %885 = vst [vmem:[%s629 + $0x1fc] sm:%s621] %v884
                $region78: #{critic_forward.7} parent=65 // loop_footer
                  %s627 = sadd.s32 1, %s623
                $region79: #{critic_forward.7} parent=65 // loop_footer_branch
                  %622 = sbr.rel target = $region75
                $region80: #{critic_forward.7} parent=65 // loop_exit
                  _
              $region66: #{critic_forward.7} parent=50 // pred_fallthru
                _
            $region51: #{critic_forward.7} parent=46 // pred_fallthru
              _
            // Predicated region
            $region52: #{critic_forward.7} parent=46 // pred_check
              _
            $region53: #{critic_forward.7} parent=46 // pred_check_branch
              %343 = sbr.rel (0) target = $region55
            $region54: #{critic_forward.7} parent=46 // pred_region
              %s345 = ssub.s32 16, 1
              loop: start=0, step=1, limit=1
              $region56: #{critic_forward.7} parent=54 // loop_pre_header
                _
              $region57: #{critic_forward.7} parent=54 // loop_header
                %s347 = sphi 0, %s351
                %p348 = scmp.ge.s32.totalorder %s347, 1
                %s352 = sphi %s337, %s337
                %s353 = sphi %s332, %s332
              $region58: #{critic_forward.7} parent=54 // loop_header_branch
                %350 = sbr.rel (%p348) target = $region62
              $region59: #{critic_forward.7} parent=54 // loop_body
                %v354 = vld [vmem:[%s352] sm:%s345]
                %355 = vst [vmem:[%s353] sm:%s345] %v354
                %v356 = vld [vmem:[%s352 + $0x8] sm:%s345]
                %357 = vst [vmem:[%s353 + $0x4] sm:%s345] %v356
                %v358 = vld [vmem:[%s352 + $0x10] sm:%s345]
                %359 = vst [vmem:[%s353 + $0x8] sm:%s345] %v358
                %v360 = vld [vmem:[%s352 + $0x18] sm:%s345]
                %361 = vst [vmem:[%s353 + $0xc] sm:%s345] %v360
                %v362 = vld [vmem:[%s352 + $0x20] sm:%s345]
                %363 = vst [vmem:[%s353 + $0x10] sm:%s345] %v362
                %v364 = vld [vmem:[%s352 + $0x28] sm:%s345]
                %365 = vst [vmem:[%s353 + $0x14] sm:%s345] %v364
                %v366 = vld [vmem:[%s352 + $0x30] sm:%s345]
                %367 = vst [vmem:[%s353 + $0x18] sm:%s345] %v366
                %v368 = vld [vmem:[%s352 + $0x38] sm:%s345]
                %369 = vst [vmem:[%s353 + $0x1c] sm:%s345] %v368
                %v370 = vld [vmem:[%s352 + $0x40] sm:%s345]
                %371 = vst [vmem:[%s353 + $0x20] sm:%s345] %v370
                %v372 = vld [vmem:[%s352 + $0x48] sm:%s345]
                %373 = vst [vmem:[%s353 + $0x24] sm:%s345] %v372
                %v374 = vld [vmem:[%s352 + $0x50] sm:%s345]
                %375 = vst [vmem:[%s353 + $0x28] sm:%s345] %v374
                %v376 = vld [vmem:[%s352 + $0x58] sm:%s345]
                %377 = vst [vmem:[%s353 + $0x2c] sm:%s345] %v376
                %v378 = vld [vmem:[%s352 + $0x60] sm:%s345]
                %379 = vst [vmem:[%s353 + $0x30] sm:%s345] %v378
                %v380 = vld [vmem:[%s352 + $0x68] sm:%s345]
                %381 = vst [vmem:[%s353 + $0x34] sm:%s345] %v380
                %v382 = vld [vmem:[%s352 + $0x70] sm:%s345]
                %383 = vst [vmem:[%s353 + $0x38] sm:%s345] %v382
                %v384 = vld [vmem:[%s352 + $0x78] sm:%s345]
                %385 = vst [vmem:[%s353 + $0x3c] sm:%s345] %v384
                %v386 = vld [vmem:[%s352 + $0x80] sm:%s345]
                %387 = vst [vmem:[%s353 + $0x40] sm:%s345] %v386
                %v388 = vld [vmem:[%s352 + $0x88] sm:%s345]
                %389 = vst [vmem:[%s353 + $0x44] sm:%s345] %v388
                %v390 = vld [vmem:[%s352 + $0x90] sm:%s345]
                %391 = vst [vmem:[%s353 + $0x48] sm:%s345] %v390
                %v392 = vld [vmem:[%s352 + $0x98] sm:%s345]
                %393 = vst [vmem:[%s353 + $0x4c] sm:%s345] %v392
                %v394 = vld [vmem:[%s352 + $0xa0] sm:%s345]
                %395 = vst [vmem:[%s353 + $0x50] sm:%s345] %v394
                %v396 = vld [vmem:[%s352 + $0xa8] sm:%s345]
                %397 = vst [vmem:[%s353 + $0x54] sm:%s345] %v396
                %v398 = vld [vmem:[%s352 + $0xb0] sm:%s345]
                %399 = vst [vmem:[%s353 + $0x58] sm:%s345] %v398
                %v400 = vld [vmem:[%s352 + $0xb8] sm:%s345]
                %401 = vst [vmem:[%s353 + $0x5c] sm:%s345] %v400
                %v402 = vld [vmem:[%s352 + $0xc0] sm:%s345]
                %403 = vst [vmem:[%s353 + $0x60] sm:%s345] %v402
                %v404 = vld [vmem:[%s352 + $0xc8] sm:%s345]
                %405 = vst [vmem:[%s353 + $0x64] sm:%s345] %v404
                %v406 = vld [vmem:[%s352 + $0xd0] sm:%s345]
                %407 = vst [vmem:[%s353 + $0x68] sm:%s345] %v406
                %v408 = vld [vmem:[%s352 + $0xd8] sm:%s345]
                %409 = vst [vmem:[%s353 + $0x6c] sm:%s345] %v408
                %v410 = vld [vmem:[%s352 + $0xe0] sm:%s345]
                %411 = vst [vmem:[%s353 + $0x70] sm:%s345] %v410
                %v412 = vld [vmem:[%s352 + $0xe8] sm:%s345]
                %413 = vst [vmem:[%s353 + $0x74] sm:%s345] %v412
                %v414 = vld [vmem:[%s352 + $0xf0] sm:%s345]
                %415 = vst [vmem:[%s353 + $0x78] sm:%s345] %v414
                %v416 = vld [vmem:[%s352 + $0xf8] sm:%s345]
                %417 = vst [vmem:[%s353 + $0x7c] sm:%s345] %v416
                %v418 = vld [vmem:[%s352 + $0x100] sm:%s345]
                %419 = vst [vmem:[%s353 + $0x80] sm:%s345] %v418
                %v420 = vld [vmem:[%s352 + $0x108] sm:%s345]
                %421 = vst [vmem:[%s353 + $0x84] sm:%s345] %v420
                %v422 = vld [vmem:[%s352 + $0x110] sm:%s345]
                %423 = vst [vmem:[%s353 + $0x88] sm:%s345] %v422
                %v424 = vld [vmem:[%s352 + $0x118] sm:%s345]
                %425 = vst [vmem:[%s353 + $0x8c] sm:%s345] %v424
                %v426 = vld [vmem:[%s352 + $0x120] sm:%s345]
                %427 = vst [vmem:[%s353 + $0x90] sm:%s345] %v426
                %v428 = vld [vmem:[%s352 + $0x128] sm:%s345]
                %429 = vst [vmem:[%s353 + $0x94] sm:%s345] %v428
                %v430 = vld [vmem:[%s352 + $0x130] sm:%s345]
                %431 = vst [vmem:[%s353 + $0x98] sm:%s345] %v430
                %v432 = vld [vmem:[%s352 + $0x138] sm:%s345]
                %433 = vst [vmem:[%s353 + $0x9c] sm:%s345] %v432
                %v434 = vld [vmem:[%s352 + $0x140] sm:%s345]
                %435 = vst [vmem:[%s353 + $0xa0] sm:%s345] %v434
                %v436 = vld [vmem:[%s352 + $0x148] sm:%s345]
                %437 = vst [vmem:[%s353 + $0xa4] sm:%s345] %v436
                %v438 = vld [vmem:[%s352 + $0x150] sm:%s345]
                %439 = vst [vmem:[%s353 + $0xa8] sm:%s345] %v438
                %v440 = vld [vmem:[%s352 + $0x158] sm:%s345]
                %441 = vst [vmem:[%s353 + $0xac] sm:%s345] %v440
                %v442 = vld [vmem:[%s352 + $0x160] sm:%s345]
                %443 = vst [vmem:[%s353 + $0xb0] sm:%s345] %v442
                %v444 = vld [vmem:[%s352 + $0x168] sm:%s345]
                %445 = vst [vmem:[%s353 + $0xb4] sm:%s345] %v444
                %v446 = vld [vmem:[%s352 + $0x170] sm:%s345]
                %447 = vst [vmem:[%s353 + $0xb8] sm:%s345] %v446
                %v448 = vld [vmem:[%s352 + $0x178] sm:%s345]
                %449 = vst [vmem:[%s353 + $0xbc] sm:%s345] %v448
                %v450 = vld [vmem:[%s352 + $0x180] sm:%s345]
                %451 = vst [vmem:[%s353 + $0xc0] sm:%s345] %v450
                %v452 = vld [vmem:[%s352 + $0x188] sm:%s345]
                %453 = vst [vmem:[%s353 + $0xc4] sm:%s345] %v452
                %v454 = vld [vmem:[%s352 + $0x190] sm:%s345]
                %455 = vst [vmem:[%s353 + $0xc8] sm:%s345] %v454
                %v456 = vld [vmem:[%s352 + $0x198] sm:%s345]
                %457 = vst [vmem:[%s353 + $0xcc] sm:%s345] %v456
                %v458 = vld [vmem:[%s352 + $0x1a0] sm:%s345]
                %459 = vst [vmem:[%s353 + $0xd0] sm:%s345] %v458
                %v460 = vld [vmem:[%s352 + $0x1a8] sm:%s345]
                %461 = vst [vmem:[%s353 + $0xd4] sm:%s345] %v460
                %v462 = vld [vmem:[%s352 + $0x1b0] sm:%s345]
                %463 = vst [vmem:[%s353 + $0xd8] sm:%s345] %v462
                %v464 = vld [vmem:[%s352 + $0x1b8] sm:%s345]
                %465 = vst [vmem:[%s353 + $0xdc] sm:%s345] %v464
                %v466 = vld [vmem:[%s352 + $0x1c0] sm:%s345]
                %467 = vst [vmem:[%s353 + $0xe0] sm:%s345] %v466
                %v468 = vld [vmem:[%s352 + $0x1c8] sm:%s345]
                %469 = vst [vmem:[%s353 + $0xe4] sm:%s345] %v468
                %v470 = vld [vmem:[%s352 + $0x1d0] sm:%s345]
                %471 = vst [vmem:[%s353 + $0xe8] sm:%s345] %v470
                %v472 = vld [vmem:[%s352 + $0x1d8] sm:%s345]
                %473 = vst [vmem:[%s353 + $0xec] sm:%s345] %v472
                %v474 = vld [vmem:[%s352 + $0x1e0] sm:%s345]
                %475 = vst [vmem:[%s353 + $0xf0] sm:%s345] %v474
                %v476 = vld [vmem:[%s352 + $0x1e8] sm:%s345]
                %477 = vst [vmem:[%s353 + $0xf4] sm:%s345] %v476
                %v478 = vld [vmem:[%s352 + $0x1f0] sm:%s345]
                %479 = vst [vmem:[%s353 + $0xf8] sm:%s345] %v478
                %v480 = vld [vmem:[%s352 + $0x1f8] sm:%s345]
                %481 = vst [vmem:[%s353 + $0xfc] sm:%s345] %v480
                %v482 = vld [vmem:[%s352 + $0x200] sm:%s345]
                %483 = vst [vmem:[%s353 + $0x100] sm:%s345] %v482
                %v484 = vld [vmem:[%s352 + $0x208] sm:%s345]
                %485 = vst [vmem:[%s353 + $0x104] sm:%s345] %v484
                %v486 = vld [vmem:[%s352 + $0x210] sm:%s345]
                %487 = vst [vmem:[%s353 + $0x108] sm:%s345] %v486
                %v488 = vld [vmem:[%s352 + $0x218] sm:%s345]
                %489 = vst [vmem:[%s353 + $0x10c] sm:%s345] %v488
                %v490 = vld [vmem:[%s352 + $0x220] sm:%s345]
                %491 = vst [vmem:[%s353 + $0x110] sm:%s345] %v490
                %v492 = vld [vmem:[%s352 + $0x228] sm:%s345]
                %493 = vst [vmem:[%s353 + $0x114] sm:%s345] %v492
                %v494 = vld [vmem:[%s352 + $0x230] sm:%s345]
                %495 = vst [vmem:[%s353 + $0x118] sm:%s345] %v494
                %v496 = vld [vmem:[%s352 + $0x238] sm:%s345]
                %497 = vst [vmem:[%s353 + $0x11c] sm:%s345] %v496
                %v498 = vld [vmem:[%s352 + $0x240] sm:%s345]
                %499 = vst [vmem:[%s353 + $0x120] sm:%s345] %v498
                %v500 = vld [vmem:[%s352 + $0x248] sm:%s345]
                %501 = vst [vmem:[%s353 + $0x124] sm:%s345] %v500
                %v502 = vld [vmem:[%s352 + $0x250] sm:%s345]
                %503 = vst [vmem:[%s353 + $0x128] sm:%s345] %v502
                %v504 = vld [vmem:[%s352 + $0x258] sm:%s345]
                %505 = vst [vmem:[%s353 + $0x12c] sm:%s345] %v504
                %v506 = vld [vmem:[%s352 + $0x260] sm:%s345]
                %507 = vst [vmem:[%s353 + $0x130] sm:%s345] %v506
                %v508 = vld [vmem:[%s352 + $0x268] sm:%s345]
                %509 = vst [vmem:[%s353 + $0x134] sm:%s345] %v508
                %v510 = vld [vmem:[%s352 + $0x270] sm:%s345]
                %511 = vst [vmem:[%s353 + $0x138] sm:%s345] %v510
                %v512 = vld [vmem:[%s352 + $0x278] sm:%s345]
                %513 = vst [vmem:[%s353 + $0x13c] sm:%s345] %v512
                %v514 = vld [vmem:[%s352 + $0x280] sm:%s345]
                %515 = vst [vmem:[%s353 + $0x140] sm:%s345] %v514
                %v516 = vld [vmem:[%s352 + $0x288] sm:%s345]
                %517 = vst [vmem:[%s353 + $0x144] sm:%s345] %v516
                %v518 = vld [vmem:[%s352 + $0x290] sm:%s345]
                %519 = vst [vmem:[%s353 + $0x148] sm:%s345] %v518
                %v520 = vld [vmem:[%s352 + $0x298] sm:%s345]
                %521 = vst [vmem:[%s353 + $0x14c] sm:%s345] %v520
                %v522 = vld [vmem:[%s352 + $0x2a0] sm:%s345]
                %523 = vst [vmem:[%s353 + $0x150] sm:%s345] %v522
                %v524 = vld [vmem:[%s352 + $0x2a8] sm:%s345]
                %525 = vst [vmem:[%s353 + $0x154] sm:%s345] %v524
                %v526 = vld [vmem:[%s352 + $0x2b0] sm:%s345]
                %527 = vst [vmem:[%s353 + $0x158] sm:%s345] %v526
                %v528 = vld [vmem:[%s352 + $0x2b8] sm:%s345]
                %529 = vst [vmem:[%s353 + $0x15c] sm:%s345] %v528
                %v530 = vld [vmem:[%s352 + $0x2c0] sm:%s345]
                %531 = vst [vmem:[%s353 + $0x160] sm:%s345] %v530
                %v532 = vld [vmem:[%s352 + $0x2c8] sm:%s345]
                %533 = vst [vmem:[%s353 + $0x164] sm:%s345] %v532
                %v534 = vld [vmem:[%s352 + $0x2d0] sm:%s345]
                %535 = vst [vmem:[%s353 + $0x168] sm:%s345] %v534
                %v536 = vld [vmem:[%s352 + $0x2d8] sm:%s345]
                %537 = vst [vmem:[%s353 + $0x16c] sm:%s345] %v536
                %v538 = vld [vmem:[%s352 + $0x2e0] sm:%s345]
                %539 = vst [vmem:[%s353 + $0x170] sm:%s345] %v538
                %v540 = vld [vmem:[%s352 + $0x2e8] sm:%s345]
                %541 = vst [vmem:[%s353 + $0x174] sm:%s345] %v540
                %v542 = vld [vmem:[%s352 + $0x2f0] sm:%s345]
                %543 = vst [vmem:[%s353 + $0x178] sm:%s345] %v542
                %v544 = vld [vmem:[%s352 + $0x2f8] sm:%s345]
                %545 = vst [vmem:[%s353 + $0x17c] sm:%s345] %v544
                %v546 = vld [vmem:[%s352 + $0x300] sm:%s345]
                %547 = vst [vmem:[%s353 + $0x180] sm:%s345] %v546
                %v548 = vld [vmem:[%s352 + $0x308] sm:%s345]
                %549 = vst [vmem:[%s353 + $0x184] sm:%s345] %v548
                %v550 = vld [vmem:[%s352 + $0x310] sm:%s345]
                %551 = vst [vmem:[%s353 + $0x188] sm:%s345] %v550
                %v552 = vld [vmem:[%s352 + $0x318] sm:%s345]
                %553 = vst [vmem:[%s353 + $0x18c] sm:%s345] %v552
                %v554 = vld [vmem:[%s352 + $0x320] sm:%s345]
                %555 = vst [vmem:[%s353 + $0x190] sm:%s345] %v554
                %v556 = vld [vmem:[%s352 + $0x328] sm:%s345]
                %557 = vst [vmem:[%s353 + $0x194] sm:%s345] %v556
                %v558 = vld [vmem:[%s352 + $0x330] sm:%s345]
                %559 = vst [vmem:[%s353 + $0x198] sm:%s345] %v558
                %v560 = vld [vmem:[%s352 + $0x338] sm:%s345]
                %561 = vst [vmem:[%s353 + $0x19c] sm:%s345] %v560
                %v562 = vld [vmem:[%s352 + $0x340] sm:%s345]
                %563 = vst [vmem:[%s353 + $0x1a0] sm:%s345] %v562
                %v564 = vld [vmem:[%s352 + $0x348] sm:%s345]
                %565 = vst [vmem:[%s353 + $0x1a4] sm:%s345] %v564
                %v566 = vld [vmem:[%s352 + $0x350] sm:%s345]
                %567 = vst [vmem:[%s353 + $0x1a8] sm:%s345] %v566
                %v568 = vld [vmem:[%s352 + $0x358] sm:%s345]
                %569 = vst [vmem:[%s353 + $0x1ac] sm:%s345] %v568
                %v570 = vld [vmem:[%s352 + $0x360] sm:%s345]
                %571 = vst [vmem:[%s353 + $0x1b0] sm:%s345] %v570
                %v572 = vld [vmem:[%s352 + $0x368] sm:%s345]
                %573 = vst [vmem:[%s353 + $0x1b4] sm:%s345] %v572
                %v574 = vld [vmem:[%s352 + $0x370] sm:%s345]
                %575 = vst [vmem:[%s353 + $0x1b8] sm:%s345] %v574
                %v576 = vld [vmem:[%s352 + $0x378] sm:%s345]
                %577 = vst [vmem:[%s353 + $0x1bc] sm:%s345] %v576
                %v578 = vld [vmem:[%s352 + $0x380] sm:%s345]
                %579 = vst [vmem:[%s353 + $0x1c0] sm:%s345] %v578
                %v580 = vld [vmem:[%s352 + $0x388] sm:%s345]
                %581 = vst [vmem:[%s353 + $0x1c4] sm:%s345] %v580
                %v582 = vld [vmem:[%s352 + $0x390] sm:%s345]
                %583 = vst [vmem:[%s353 + $0x1c8] sm:%s345] %v582
                %v584 = vld [vmem:[%s352 + $0x398] sm:%s345]
                %585 = vst [vmem:[%s353 + $0x1cc] sm:%s345] %v584
                %v586 = vld [vmem:[%s352 + $0x3a0] sm:%s345]
                %587 = vst [vmem:[%s353 + $0x1d0] sm:%s345] %v586
                %v588 = vld [vmem:[%s352 + $0x3a8] sm:%s345]
                %589 = vst [vmem:[%s353 + $0x1d4] sm:%s345] %v588
                %v590 = vld [vmem:[%s352 + $0x3b0] sm:%s345]
                %591 = vst [vmem:[%s353 + $0x1d8] sm:%s345] %v590
                %v592 = vld [vmem:[%s352 + $0x3b8] sm:%s345]
                %593 = vst [vmem:[%s353 + $0x1dc] sm:%s345] %v592
                %v594 = vld [vmem:[%s352 + $0x3c0] sm:%s345]
                %595 = vst [vmem:[%s353 + $0x1e0] sm:%s345] %v594
                %v596 = vld [vmem:[%s352 + $0x3c8] sm:%s345]
                %597 = vst [vmem:[%s353 + $0x1e4] sm:%s345] %v596
                %v598 = vld [vmem:[%s352 + $0x3d0] sm:%s345]
                %599 = vst [vmem:[%s353 + $0x1e8] sm:%s345] %v598
                %v600 = vld [vmem:[%s352 + $0x3d8] sm:%s345]
                %601 = vst [vmem:[%s353 + $0x1ec] sm:%s345] %v600
                %v602 = vld [vmem:[%s352 + $0x3e0] sm:%s345]
                %603 = vst [vmem:[%s353 + $0x1f0] sm:%s345] %v602
                %v604 = vld [vmem:[%s352 + $0x3e8] sm:%s345]
                %605 = vst [vmem:[%s353 + $0x1f4] sm:%s345] %v604
                %v606 = vld [vmem:[%s352 + $0x3f0] sm:%s345]
                %607 = vst [vmem:[%s353 + $0x1f8] sm:%s345] %v606
                %v608 = vld [vmem:[%s352 + $0x3f8] sm:%s345]
                %609 = vst [vmem:[%s353 + $0x1fc] sm:%s345] %v608
              $region60: #{critic_forward.7} parent=54 // loop_footer
                %s351 = sadd.s32 1, %s347
              $region61: #{critic_forward.7} parent=54 // loop_footer_branch
                %346 = sbr.rel target = $region57
              $region62: #{critic_forward.7} parent=54 // loop_exit
                _
            $region55: #{critic_forward.7} parent=46 // pred_fallthru
              _
          $region47: #{critic_forward.7} parent=42 // pred_fallthru
            _
          %886 = vnop
        $region43: #{critic_forward.7} parent=15 // pred_fallthru
          _
        // Predicated region
        $region81: #{critic_forward.7} parent=15 // pred_check
          %p887 = pneg %p96
        $region82: #{critic_forward.7} parent=15 // pred_check_branch
          %889 = sbr.rel (%p887) target = $region84
        $region83: #{critic_forward.7} parent=15 // pred_region
          %p890 = scmp.lt.s32.totalorder %s17, 1
          %s891 = scalar_select %p890, %s17, 1
          %s892 = scalar_lea.vmem %s2, %s891
        $region84: #{critic_forward.7} parent=15 // pred_fallthru
          _
        // Predicated region
        $region85: #{critic_forward.7} parent=15 // pred_check
          %p893 = pneg %p122
        $region86: #{critic_forward.7} parent=15 // pred_check_branch
          %895 = sbr.rel (%p893) target = $region88
        $region87: #{critic_forward.7} parent=15 // pred_region
          %p896 = scmp.lt.s32.totalorder %s17, 1
          %s897 = scalar_select %p896, %s17, 1
          %s898 = scalar_lea.vmem %s3, %s897
        $region88: #{critic_forward.7} parent=15 // pred_fallthru
          _
      $region16: #{critic_forward.7} parent=5 // pred_fallthru
        _
      %p899 = scmp.le.s32.totalorder 1, %s10
      %p900 = scmp.lt.s32.totalorder %s10, 5
      %p901 = pnand %p899, %p900
      %p902 = pneg %p901
      // Predicated region
      $region89: #{critic_forward.7} parent=5 // pred_check
        _
      $region90: #{critic_forward.7} parent=5 // pred_check_branch
        %904 = sbr.rel (%p901) target = $region92
      $region91: #{critic_forward.7} parent=5 // pred_region
        %s905 = ssub.s32 %s10, 1
        %s906 = sand.u32 %s35, 1
        %s907 = sand.u32 %s35, 1
        %s908 = smul.addr %s907, 512
        %s909 = scalar_lea.vmem [#allocation3], %s908
        // Predicated region
        $region93: #{critic_forward.7} parent=91 // pred_check
          %p910 = pneg %p48
        $region94: #{critic_forward.7} parent=91 // pred_check_branch
          %912 = sbr.rel (%p910) target = $region96
        $region95: #{critic_forward.7} parent=91 // pred_region
          _
        $region96: #{critic_forward.7} parent=91 // pred_fallthru
          _
        %s913 = sand.u32 %s63, 1
        %s914 = sand.u32 %s63, 1
        %s915 = smul.addr %s914, 512
        %s916 = scalar_lea.vmem [#allocation4], %s915
        // Predicated region
        $region97: #{critic_forward.7} parent=91 // pred_check
          %p917 = pneg %p76
        $region98: #{critic_forward.7} parent=91 // pred_check_branch
          %919 = sbr.rel (%p917) target = $region100
        $region99: #{critic_forward.7} parent=91 // pred_region
          _
        $region100: #{critic_forward.7} parent=91 // pred_fallthru
          _
        %s920 = sand.u32 %s35, 1
        %s921 = sand.u32 %s35, 1
        %s922 = smul.addr %s921, 512
        %s923 = scalar_lea.vmem [#allocation3], %s922
        %p924 = pneg %p48
        %p925 = pneg %p45
        %s926 = sand.u32 %s63, 1
        %s927 = sand.u32 %s63, 1
        %s928 = smul.addr %s927, 512
        %s929 = scalar_lea.vmem [#allocation4], %s928
        %p930 = pneg %p76
        %p931 = pneg %p73
        %p932 = scmp.lt.s32.totalorder %s19, 1
        %s933 = scalar_select %p932, %s19, 1
        %s934 = scalar_lea.vmem %s2, %s933
        %p935 = pneg %p102
        %p936 = pneg %p99
        %p937 = scmp.lt.s32.totalorder %s19, 1
        %s938 = scalar_select %p937, %s19, 1
        %s939 = scalar_lea.vmem %s3, %s938
        %p940 = pneg %p128
        %p941 = pneg %p125
        %p942 = pneg %p154
        %p943 = pneg %p151
        %s944 = sand.u32 %s141, 1
        %s945 = sand.u32 %s141, 1
        %s946 = smul.addr %s945, 64
        %s947 = scalar_lea.vmem [#allocation5], %s946
        %s948 = smul.u32 8, %s20
        %s949 = smul.u32 128, %s20
        %p950 = scmp.lt.s32.totalorder %s19, 1
        %s951 = scalar_select %p950, %s19, 1
        %s952 = scalar_lea.vmem %s2, %s951
        %p953 = scmp.lt.s32.totalorder %s19, 1
        %s954 = scalar_select %p953, %s19, 1
        %s955 = scalar_lea.vmem %s3, %s954
        %p957 = scmp.eq.s32.totalorder %s20, 0
        // Predicated region
        $region101: #{critic_forward.7} parent=91 // pred_check
          %p958 = pneg %p957
        $region102: #{critic_forward.7} parent=91 // pred_check_branch
          %960 = sbr.rel (%p958) target = $region104
        $region103: #{critic_forward.7} parent=91 // pred_region
          %961 = vst [vmem:[#allocation2] sm:$0xff] 0.0
          %962 = vst [vmem:[#allocation2 + $0x8] sm:$0xff] 0.0
          %963 = vst [vmem:[#allocation2 + $0x10] sm:$0xff] 0.0
          %964 = vst [vmem:[#allocation2 + $0x18] sm:$0xff] 0.0
          %965 = vst [vmem:[#allocation2 + $0x20] sm:$0xff] 0.0
          %966 = vst [vmem:[#allocation2 + $0x28] sm:$0xff] 0.0
          %967 = vst [vmem:[#allocation2 + $0x30] sm:$0xff] 0.0
          %968 = vst [vmem:[#allocation2 + $0x38] sm:$0xff] 0.0
          %969 = vst [vmem:[#allocation2 + $0x40] sm:$0xff] 0.0
          %970 = vst [vmem:[#allocation2 + $0x48] sm:$0xff] 0.0
          %971 = vst [vmem:[#allocation2 + $0x50] sm:$0xff] 0.0
          %972 = vst [vmem:[#allocation2 + $0x58] sm:$0xff] 0.0
          %973 = vst [vmem:[#allocation2 + $0x60] sm:$0xff] 0.0
          %974 = vst [vmem:[#allocation2 + $0x68] sm:$0xff] 0.0
          %975 = vst [vmem:[#allocation2 + $0x70] sm:$0xff] 0.0
          %976 = vst [vmem:[#allocation2 + $0x78] sm:$0xff] 0.0
        $region104: #{critic_forward.7} parent=91 // pred_fallthru
          _
        %v977 = vld [vmem:[#allocation2] sm:$0xff]
        %v978 = vld [vmem:[#allocation2 + $0x8] sm:$0xff]
        %v979 = vld [vmem:[#allocation2 + $0x10] sm:$0xff]
        %v980 = vld [vmem:[#allocation2 + $0x18] sm:$0xff]
        %v981 = vld [vmem:[#allocation2 + $0x20] sm:$0xff]
        %v982 = vld [vmem:[#allocation2 + $0x28] sm:$0xff]
        %v983 = vld [vmem:[#allocation2 + $0x30] sm:$0xff]
        %v984 = vld [vmem:[#allocation2 + $0x38] sm:$0xff]
        %v985 = vld [vmem:[#allocation2 + $0x40] sm:$0xff]
        %v986 = vld [vmem:[#allocation2 + $0x48] sm:$0xff]
        %v987 = vld [vmem:[#allocation2 + $0x50] sm:$0xff]
        %v988 = vld [vmem:[#allocation2 + $0x58] sm:$0xff]
        %v989 = vld [vmem:[#allocation2 + $0x60] sm:$0xff]
        %v990 = vld [vmem:[#allocation2 + $0x68] sm:$0xff]
        %v991 = vld [vmem:[#allocation2 + $0x70] sm:$0xff]
        %v992 = vld [vmem:[#allocation2 + $0x78] sm:$0xff]
        %v993 = vld [vmem:[%s909] sm:$0xff]
        %v994 = vld [vmem:[%s909 + $0x8] sm:$0xff]
        %v995 = vld [vmem:[%s909 + $0x10] sm:$0xff]
        %v996 = vld [vmem:[%s909 + $0x18] sm:$0xff]
        %v997 = vld [vmem:[%s909 + $0x20] sm:$0xff]
        %v998 = vld [vmem:[%s909 + $0x28] sm:$0xff]
        %v999 = vld [vmem:[%s909 + $0x30] sm:$0xff]
        %v1000 = vld [vmem:[%s909 + $0x38] sm:$0xff]
        %v1001 = vld [vmem:[%s909 + $0x40] sm:$0xff]
        %v1002 = vld [vmem:[%s909 + $0x48] sm:$0xff]
        %v1003 = vld [vmem:[%s909 + $0x50] sm:$0xff]
        %v1004 = vld [vmem:[%s909 + $0x58] sm:$0xff]
        %v1005 = vld [vmem:[%s909 + $0x60] sm:$0xff]
        %v1006 = vld [vmem:[%s909 + $0x68] sm:$0xff]
        %v1007 = vld [vmem:[%s909 + $0x70] sm:$0xff]
        %v1008 = vld [vmem:[%s909 + $0x78] sm:$0xff]
        %v1009 = vld [vmem:[%s909 + $0x80] sm:$0xff]
        %v1010 = vld [vmem:[%s909 + $0x88] sm:$0xff]
        %v1011 = vld [vmem:[%s909 + $0x90] sm:$0xff]
        %v1012 = vld [vmem:[%s909 + $0x98] sm:$0xff]
        %v1013 = vld [vmem:[%s909 + $0xa0] sm:$0xff]
        %v1014 = vld [vmem:[%s909 + $0xa8] sm:$0xff]
        %v1015 = vld [vmem:[%s909 + $0xb0] sm:$0xff]
        %v1016 = vld [vmem:[%s909 + $0xb8] sm:$0xff]
        %v1017 = vld [vmem:[%s909 + $0xc0] sm:$0xff]
        %v1018 = vld [vmem:[%s909 + $0xc8] sm:$0xff]
        %v1019 = vld [vmem:[%s909 + $0xd0] sm:$0xff]
        %v1020 = vld [vmem:[%s909 + $0xd8] sm:$0xff]
        %v1021 = vld [vmem:[%s909 + $0xe0] sm:$0xff]
        %v1022 = vld [vmem:[%s909 + $0xe8] sm:$0xff]
        %v1023 = vld [vmem:[%s909 + $0xf0] sm:$0xff]
        %v1024 = vld [vmem:[%s909 + $0xf8] sm:$0xff]
        %v1025 = vld [vmem:[%s909 + $0x100] sm:$0xff]
        %v1026 = vld [vmem:[%s909 + $0x108] sm:$0xff]
        %v1027 = vld [vmem:[%s909 + $0x110] sm:$0xff]
        %v1028 = vld [vmem:[%s909 + $0x118] sm:$0xff]
        %v1029 = vld [vmem:[%s909 + $0x120] sm:$0xff]
        %v1030 = vld [vmem:[%s909 + $0x128] sm:$0xff]
        %v1031 = vld [vmem:[%s909 + $0x130] sm:$0xff]
        %v1032 = vld [vmem:[%s909 + $0x138] sm:$0xff]
        %v1033 = vld [vmem:[%s909 + $0x140] sm:$0xff]
        %v1034 = vld [vmem:[%s909 + $0x148] sm:$0xff]
        %v1035 = vld [vmem:[%s909 + $0x150] sm:$0xff]
        %v1036 = vld [vmem:[%s909 + $0x158] sm:$0xff]
        %v1037 = vld [vmem:[%s909 + $0x160] sm:$0xff]
        %v1038 = vld [vmem:[%s909 + $0x168] sm:$0xff]
        %v1039 = vld [vmem:[%s909 + $0x170] sm:$0xff]
        %v1040 = vld [vmem:[%s909 + $0x178] sm:$0xff]
        %v1041 = vld [vmem:[%s909 + $0x180] sm:$0xff]
        %v1042 = vld [vmem:[%s909 + $0x188] sm:$0xff]
        %v1043 = vld [vmem:[%s909 + $0x190] sm:$0xff]
        %v1044 = vld [vmem:[%s909 + $0x198] sm:$0xff]
        %v1045 = vld [vmem:[%s909 + $0x1a0] sm:$0xff]
        %v1046 = vld [vmem:[%s909 + $0x1a8] sm:$0xff]
        %v1047 = vld [vmem:[%s909 + $0x1b0] sm:$0xff]
        %v1048 = vld [vmem:[%s909 + $0x1b8] sm:$0xff]
        %v1049 = vld [vmem:[%s909 + $0x1c0] sm:$0xff]
        %v1050 = vld [vmem:[%s909 + $0x1c8] sm:$0xff]
        %v1051 = vld [vmem:[%s909 + $0x1d0] sm:$0xff]
        %v1052 = vld [vmem:[%s909 + $0x1d8] sm:$0xff]
        %v1053 = vld [vmem:[%s909 + $0x1e0] sm:$0xff]
        %v1054 = vld [vmem:[%s909 + $0x1e8] sm:$0xff]
        %v1055 = vld [vmem:[%s909 + $0x1f0] sm:$0xff]
        %v1056 = vld [vmem:[%s909 + $0x1f8] sm:$0xff]
        %v1057 = vld [vmem:[%s916] sm:$0xf]
        %v1058 = vld [vmem:[%s916 + $0x4] sm:$0xf]
        %v1059 = vld [vmem:[%s916 + $0x8] sm:$0xf]
        %v1060 = vld [vmem:[%s916 + $0xc] sm:$0xf]
        %v1061 = vld [vmem:[%s916 + $0x10] sm:$0xf]
        %v1062 = vld [vmem:[%s916 + $0x14] sm:$0xf]
        %v1063 = vld [vmem:[%s916 + $0x18] sm:$0xf]
        %v1064 = vld [vmem:[%s916 + $0x1c] sm:$0xf]
        %v1065 = vld [vmem:[%s916 + $0x20] sm:$0xf]
        %v1066 = vld [vmem:[%s916 + $0x24] sm:$0xf]
        %v1067 = vld [vmem:[%s916 + $0x28] sm:$0xf]
        %v1068 = vld [vmem:[%s916 + $0x2c] sm:$0xf]
        %v1069 = vld [vmem:[%s916 + $0x30] sm:$0xf]
        %v1070 = vld [vmem:[%s916 + $0x34] sm:$0xf]
        %v1071 = vld [vmem:[%s916 + $0x38] sm:$0xf]
        %v1072 = vld [vmem:[%s916 + $0x3c] sm:$0xf]
        %v1073 = vld [vmem:[%s916 + $0x40] sm:$0xf]
        %v1074 = vld [vmem:[%s916 + $0x44] sm:$0xf]
        %v1075 = vld [vmem:[%s916 + $0x48] sm:$0xf]
        %v1076 = vld [vmem:[%s916 + $0x4c] sm:$0xf]
        %v1077 = vld [vmem:[%s916 + $0x50] sm:$0xf]
        %v1078 = vld [vmem:[%s916 + $0x54] sm:$0xf]
        %v1079 = vld [vmem:[%s916 + $0x58] sm:$0xf]
        %v1080 = vld [vmem:[%s916 + $0x5c] sm:$0xf]
        %v1081 = vld [vmem:[%s916 + $0x60] sm:$0xf]
        %v1082 = vld [vmem:[%s916 + $0x64] sm:$0xf]
        %v1083 = vld [vmem:[%s916 + $0x68] sm:$0xf]
        %v1084 = vld [vmem:[%s916 + $0x6c] sm:$0xf]
        %v1085 = vld [vmem:[%s916 + $0x70] sm:$0xf]
        %v1086 = vld [vmem:[%s916 + $0x74] sm:$0xf]
        %v1087 = vld [vmem:[%s916 + $0x78] sm:$0xf]
        %v1088 = vld [vmem:[%s916 + $0x7c] sm:$0xf]
        %v1089 = vld [vmem:[%s916 + $0x80] sm:$0xf]
        %v1090 = vld [vmem:[%s916 + $0x84] sm:$0xf]
        %v1091 = vld [vmem:[%s916 + $0x88] sm:$0xf]
        %v1092 = vld [vmem:[%s916 + $0x8c] sm:$0xf]
        %v1093 = vld [vmem:[%s916 + $0x90] sm:$0xf]
        %v1094 = vld [vmem:[%s916 + $0x94] sm:$0xf]
        %v1095 = vld [vmem:[%s916 + $0x98] sm:$0xf]
        %v1096 = vld [vmem:[%s916 + $0x9c] sm:$0xf]
        %v1097 = vld [vmem:[%s916 + $0xa0] sm:$0xf]
        %v1098 = vld [vmem:[%s916 + $0xa4] sm:$0xf]
        %v1099 = vld [vmem:[%s916 + $0xa8] sm:$0xf]
        %v1100 = vld [vmem:[%s916 + $0xac] sm:$0xf]
        %v1101 = vld [vmem:[%s916 + $0xb0] sm:$0xf]
        %v1102 = vld [vmem:[%s916 + $0xb4] sm:$0xf]
        %v1103 = vld [vmem:[%s916 + $0xb8] sm:$0xf]
        %v1104 = vld [vmem:[%s916 + $0xbc] sm:$0xf]
        %v1105 = vld [vmem:[%s916 + $0xc0] sm:$0xf]
        %v1106 = vld [vmem:[%s916 + $0xc4] sm:$0xf]
        %v1107 = vld [vmem:[%s916 + $0xc8] sm:$0xf]
        %v1108 = vld [vmem:[%s916 + $0xcc] sm:$0xf]
        %v1109 = vld [vmem:[%s916 + $0xd0] sm:$0xf]
        %v1110 = vld [vmem:[%s916 + $0xd4] sm:$0xf]
        %v1111 = vld [vmem:[%s916 + $0xd8] sm:$0xf]
        %v1112 = vld [vmem:[%s916 + $0xdc] sm:$0xf]
        %v1113 = vld [vmem:[%s916 + $0xe0] sm:$0xf]
        %v1114 = vld [vmem:[%s916 + $0xe4] sm:$0xf]
        %v1115 = vld [vmem:[%s916 + $0xe8] sm:$0xf]
        %v1116 = vld [vmem:[%s916 + $0xec] sm:$0xf]
        %v1117 = vld [vmem:[%s916 + $0xf0] sm:$0xf]
        %v1118 = vld [vmem:[%s916 + $0xf4] sm:$0xf]
        %v1119 = vld [vmem:[%s916 + $0xf8] sm:$0xf]
        %v1120 = vld [vmem:[%s916 + $0xfc] sm:$0xf]
        %v1121 = vld [vmem:[%s916 + $0x100] sm:$0xf]
        %v1122 = vld [vmem:[%s916 + $0x104] sm:$0xf]
        %v1123 = vld [vmem:[%s916 + $0x108] sm:$0xf]
        %v1124 = vld [vmem:[%s916 + $0x10c] sm:$0xf]
        %v1125 = vld [vmem:[%s916 + $0x110] sm:$0xf]
        %v1126 = vld [vmem:[%s916 + $0x114] sm:$0xf]
        %v1127 = vld [vmem:[%s916 + $0x118] sm:$0xf]
        %v1128 = vld [vmem:[%s916 + $0x11c] sm:$0xf]
        %v1129 = vld [vmem:[%s916 + $0x120] sm:$0xf]
        %v1130 = vld [vmem:[%s916 + $0x124] sm:$0xf]
        %v1131 = vld [vmem:[%s916 + $0x128] sm:$0xf]
        %v1132 = vld [vmem:[%s916 + $0x12c] sm:$0xf]
        %v1133 = vld [vmem:[%s916 + $0x130] sm:$0xf]
        %v1134 = vld [vmem:[%s916 + $0x134] sm:$0xf]
        %v1135 = vld [vmem:[%s916 + $0x138] sm:$0xf]
        %v1136 = vld [vmem:[%s916 + $0x13c] sm:$0xf]
        %v1137 = vld [vmem:[%s916 + $0x140] sm:$0xf]
        %v1138 = vld [vmem:[%s916 + $0x144] sm:$0xf]
        %v1139 = vld [vmem:[%s916 + $0x148] sm:$0xf]
        %v1140 = vld [vmem:[%s916 + $0x14c] sm:$0xf]
        %v1141 = vld [vmem:[%s916 + $0x150] sm:$0xf]
        %v1142 = vld [vmem:[%s916 + $0x154] sm:$0xf]
        %v1143 = vld [vmem:[%s916 + $0x158] sm:$0xf]
        %v1144 = vld [vmem:[%s916 + $0x15c] sm:$0xf]
        %v1145 = vld [vmem:[%s916 + $0x160] sm:$0xf]
        %v1146 = vld [vmem:[%s916 + $0x164] sm:$0xf]
        %v1147 = vld [vmem:[%s916 + $0x168] sm:$0xf]
        %v1148 = vld [vmem:[%s916 + $0x16c] sm:$0xf]
        %v1149 = vld [vmem:[%s916 + $0x170] sm:$0xf]
        %v1150 = vld [vmem:[%s916 + $0x174] sm:$0xf]
        %v1151 = vld [vmem:[%s916 + $0x178] sm:$0xf]
        %v1152 = vld [vmem:[%s916 + $0x17c] sm:$0xf]
        %v1153 = vld [vmem:[%s916 + $0x180] sm:$0xf]
        %v1154 = vld [vmem:[%s916 + $0x184] sm:$0xf]
        %v1155 = vld [vmem:[%s916 + $0x188] sm:$0xf]
        %v1156 = vld [vmem:[%s916 + $0x18c] sm:$0xf]
        %v1157 = vld [vmem:[%s916 + $0x190] sm:$0xf]
        %v1158 = vld [vmem:[%s916 + $0x194] sm:$0xf]
        %v1159 = vld [vmem:[%s916 + $0x198] sm:$0xf]
        %v1160 = vld [vmem:[%s916 + $0x19c] sm:$0xf]
        %v1161 = vld [vmem:[%s916 + $0x1a0] sm:$0xf]
        %v1162 = vld [vmem:[%s916 + $0x1a4] sm:$0xf]
        %v1163 = vld [vmem:[%s916 + $0x1a8] sm:$0xf]
        %v1164 = vld [vmem:[%s916 + $0x1ac] sm:$0xf]
        %v1165 = vld [vmem:[%s916 + $0x1b0] sm:$0xf]
        %v1166 = vld [vmem:[%s916 + $0x1b4] sm:$0xf]
        %v1167 = vld [vmem:[%s916 + $0x1b8] sm:$0xf]
        %v1168 = vld [vmem:[%s916 + $0x1bc] sm:$0xf]
        %v1169 = vld [vmem:[%s916 + $0x1c0] sm:$0xf]
        %v1170 = vld [vmem:[%s916 + $0x1c4] sm:$0xf]
        %v1171 = vld [vmem:[%s916 + $0x1c8] sm:$0xf]
        %v1172 = vld [vmem:[%s916 + $0x1cc] sm:$0xf]
        %v1173 = vld [vmem:[%s916 + $0x1d0] sm:$0xf]
        %v1174 = vld [vmem:[%s916 + $0x1d4] sm:$0xf]
        %v1175 = vld [vmem:[%s916 + $0x1d8] sm:$0xf]
        %v1176 = vld [vmem:[%s916 + $0x1dc] sm:$0xf]
        %v1177 = vld [vmem:[%s916 + $0x1e0] sm:$0xf]
        %v1178 = vld [vmem:[%s916 + $0x1e4] sm:$0xf]
        %v1179 = vld [vmem:[%s916 + $0x1e8] sm:$0xf]
        %v1180 = vld [vmem:[%s916 + $0x1ec] sm:$0xf]
        %v1181 = vld [vmem:[%s916 + $0x1f0] sm:$0xf]
        %v1182 = vld [vmem:[%s916 + $0x1f4] sm:$0xf]
        %v1183 = vld [vmem:[%s916 + $0x1f8] sm:$0xf]
        %v1184 = vld [vmem:[%s916 + $0x1fc] sm:$0xf]
        %v1249 = vunpack.c.l.b16 %v993
        %v1250 = vunpack.c.h.b16 %v993
        %v1251 = vunpack.c.l.b16 %v994
        %v1252 = vunpack.c.h.b16 %v994
        %v1253 = vunpack.c.l.b16 %v995
        %v1254 = vunpack.c.h.b16 %v995
        %v1255 = vunpack.c.l.b16 %v996
        %v1256 = vunpack.c.h.b16 %v996
        %v1257 = vunpack.c.l.b16 %v997
        %v1258 = vunpack.c.h.b16 %v997
        %v1259 = vunpack.c.l.b16 %v998
        %v1260 = vunpack.c.h.b16 %v998
        %v1261 = vunpack.c.l.b16 %v999
        %v1262 = vunpack.c.h.b16 %v999
        %v1263 = vunpack.c.l.b16 %v1000
        %v1264 = vunpack.c.h.b16 %v1000
        %v1265 = vunpack.c.l.b16 %v1001
        %v1266 = vunpack.c.h.b16 %v1001
        %v1267 = vunpack.c.l.b16 %v1002
        %v1268 = vunpack.c.h.b16 %v1002
        %v1269 = vunpack.c.l.b16 %v1003
        %v1270 = vunpack.c.h.b16 %v1003
        %v1271 = vunpack.c.l.b16 %v1004
        %v1272 = vunpack.c.h.b16 %v1004
        %v1273 = vunpack.c.l.b16 %v1005
        %v1274 = vunpack.c.h.b16 %v1005
        %v1275 = vunpack.c.l.b16 %v1006
        %v1276 = vunpack.c.h.b16 %v1006
        %v1277 = vunpack.c.l.b16 %v1007
        %v1278 = vunpack.c.h.b16 %v1007
        %v1279 = vunpack.c.l.b16 %v1008
        %v1280 = vunpack.c.h.b16 %v1008
        %v1281 = vunpack.c.l.b16 %v1009
        %v1282 = vunpack.c.h.b16 %v1009
        %v1283 = vunpack.c.l.b16 %v1010
        %v1284 = vunpack.c.h.b16 %v1010
        %v1285 = vunpack.c.l.b16 %v1011
        %v1286 = vunpack.c.h.b16 %v1011
        %v1287 = vunpack.c.l.b16 %v1012
        %v1288 = vunpack.c.h.b16 %v1012
        %v1289 = vunpack.c.l.b16 %v1013
        %v1290 = vunpack.c.h.b16 %v1013
        %v1291 = vunpack.c.l.b16 %v1014
        %v1292 = vunpack.c.h.b16 %v1014
        %v1293 = vunpack.c.l.b16 %v1015
        %v1294 = vunpack.c.h.b16 %v1015
        %v1295 = vunpack.c.l.b16 %v1016
        %v1296 = vunpack.c.h.b16 %v1016
        %v1297 = vunpack.c.l.b16 %v1017
        %v1298 = vunpack.c.h.b16 %v1017
        %v1299 = vunpack.c.l.b16 %v1018
        %v1300 = vunpack.c.h.b16 %v1018
        %v1301 = vunpack.c.l.b16 %v1019
        %v1302 = vunpack.c.h.b16 %v1019
        %v1303 = vunpack.c.l.b16 %v1020
        %v1304 = vunpack.c.h.b16 %v1020
        %v1305 = vunpack.c.l.b16 %v1021
        %v1306 = vunpack.c.h.b16 %v1021
        %v1307 = vunpack.c.l.b16 %v1022
        %v1308 = vunpack.c.h.b16 %v1022
        %v1309 = vunpack.c.l.b16 %v1023
        %v1310 = vunpack.c.h.b16 %v1023
        %v1311 = vunpack.c.l.b16 %v1024
        %v1312 = vunpack.c.h.b16 %v1024
        %v1313 = vunpack.c.l.b16 %v1025
        %v1314 = vunpack.c.h.b16 %v1025
        %v1315 = vunpack.c.l.b16 %v1026
        %v1316 = vunpack.c.h.b16 %v1026
        %v1317 = vunpack.c.l.b16 %v1027
        %v1318 = vunpack.c.h.b16 %v1027
        %v1319 = vunpack.c.l.b16 %v1028
        %v1320 = vunpack.c.h.b16 %v1028
        %v1321 = vunpack.c.l.b16 %v1029
        %v1322 = vunpack.c.h.b16 %v1029
        %v1323 = vunpack.c.l.b16 %v1030
        %v1324 = vunpack.c.h.b16 %v1030
        %v1325 = vunpack.c.l.b16 %v1031
        %v1326 = vunpack.c.h.b16 %v1031
        %v1327 = vunpack.c.l.b16 %v1032
        %v1328 = vunpack.c.h.b16 %v1032
        %v1329 = vunpack.c.l.b16 %v1033
        %v1330 = vunpack.c.h.b16 %v1033
        %v1331 = vunpack.c.l.b16 %v1034
        %v1332 = vunpack.c.h.b16 %v1034
        %v1333 = vunpack.c.l.b16 %v1035
        %v1334 = vunpack.c.h.b16 %v1035
        %v1335 = vunpack.c.l.b16 %v1036
        %v1336 = vunpack.c.h.b16 %v1036
        %v1337 = vunpack.c.l.b16 %v1037
        %v1338 = vunpack.c.h.b16 %v1037
        %v1339 = vunpack.c.l.b16 %v1038
        %v1340 = vunpack.c.h.b16 %v1038
        %v1341 = vunpack.c.l.b16 %v1039
        %v1342 = vunpack.c.h.b16 %v1039
        %v1343 = vunpack.c.l.b16 %v1040
        %v1344 = vunpack.c.h.b16 %v1040
        %v1345 = vunpack.c.l.b16 %v1041
        %v1346 = vunpack.c.h.b16 %v1041
        %v1347 = vunpack.c.l.b16 %v1042
        %v1348 = vunpack.c.h.b16 %v1042
        %v1349 = vunpack.c.l.b16 %v1043
        %v1350 = vunpack.c.h.b16 %v1043
        %v1351 = vunpack.c.l.b16 %v1044
        %v1352 = vunpack.c.h.b16 %v1044
        %v1353 = vunpack.c.l.b16 %v1045
        %v1354 = vunpack.c.h.b16 %v1045
        %v1355 = vunpack.c.l.b16 %v1046
        %v1356 = vunpack.c.h.b16 %v1046
        %v1357 = vunpack.c.l.b16 %v1047
        %v1358 = vunpack.c.h.b16 %v1047
        %v1359 = vunpack.c.l.b16 %v1048
        %v1360 = vunpack.c.h.b16 %v1048
        %v1361 = vunpack.c.l.b16 %v1049
        %v1362 = vunpack.c.h.b16 %v1049
        %v1363 = vunpack.c.l.b16 %v1050
        %v1364 = vunpack.c.h.b16 %v1050
        %v1365 = vunpack.c.l.b16 %v1051
        %v1366 = vunpack.c.h.b16 %v1051
        %v1367 = vunpack.c.l.b16 %v1052
        %v1368 = vunpack.c.h.b16 %v1052
        %v1369 = vunpack.c.l.b16 %v1053
        %v1370 = vunpack.c.h.b16 %v1053
        %v1371 = vunpack.c.l.b16 %v1054
        %v1372 = vunpack.c.h.b16 %v1054
        %v1373 = vunpack.c.l.b16 %v1055
        %v1374 = vunpack.c.h.b16 %v1055
        %v1375 = vunpack.c.l.b16 %v1056
        %v1376 = vunpack.c.h.b16 %v1056
        %v1377 = vpack.c.b16 %v1257, %v1249
        %v1378 = vpack.c.b16 %v1258, %v1250
        %v1379 = vpack.c.b16 %v1259, %v1251
        %v1380 = vpack.c.b16 %v1260, %v1252
        %v1381 = vpack.c.b16 %v1261, %v1253
        %v1382 = vpack.c.b16 %v1262, %v1254
        %v1383 = vpack.c.b16 %v1263, %v1255
        %v1384 = vpack.c.b16 %v1264, %v1256
        %v1385 = vpack.c.b16 %v1273, %v1265
        %v1386 = vpack.c.b16 %v1274, %v1266
        %v1387 = vpack.c.b16 %v1275, %v1267
        %v1388 = vpack.c.b16 %v1276, %v1268
        %v1389 = vpack.c.b16 %v1277, %v1269
        %v1390 = vpack.c.b16 %v1278, %v1270
        %v1391 = vpack.c.b16 %v1279, %v1271
        %v1392 = vpack.c.b16 %v1280, %v1272
        %v1393 = vpack.c.b16 %v1289, %v1281
        %v1394 = vpack.c.b16 %v1290, %v1282
        %v1395 = vpack.c.b16 %v1291, %v1283
        %v1396 = vpack.c.b16 %v1292, %v1284
        %v1397 = vpack.c.b16 %v1293, %v1285
        %v1398 = vpack.c.b16 %v1294, %v1286
        %v1399 = vpack.c.b16 %v1295, %v1287
        %v1400 = vpack.c.b16 %v1296, %v1288
        %v1401 = vpack.c.b16 %v1305, %v1297
        %v1402 = vpack.c.b16 %v1306, %v1298
        %v1403 = vpack.c.b16 %v1307, %v1299
        %v1404 = vpack.c.b16 %v1308, %v1300
        %v1405 = vpack.c.b16 %v1309, %v1301
        %v1406 = vpack.c.b16 %v1310, %v1302
        %v1407 = vpack.c.b16 %v1311, %v1303
        %v1408 = vpack.c.b16 %v1312, %v1304
        %v1409 = vpack.c.b16 %v1321, %v1313
        %v1410 = vpack.c.b16 %v1322, %v1314
        %v1411 = vpack.c.b16 %v1323, %v1315
        %v1412 = vpack.c.b16 %v1324, %v1316
        %v1413 = vpack.c.b16 %v1325, %v1317
        %v1414 = vpack.c.b16 %v1326, %v1318
        %v1415 = vpack.c.b16 %v1327, %v1319
        %v1416 = vpack.c.b16 %v1328, %v1320
        %v1417 = vpack.c.b16 %v1337, %v1329
        %v1418 = vpack.c.b16 %v1338, %v1330
        %v1419 = vpack.c.b16 %v1339, %v1331
        %v1420 = vpack.c.b16 %v1340, %v1332
        %v1421 = vpack.c.b16 %v1341, %v1333
        %v1422 = vpack.c.b16 %v1342, %v1334
        %v1423 = vpack.c.b16 %v1343, %v1335
        %v1424 = vpack.c.b16 %v1344, %v1336
        %v1425 = vpack.c.b16 %v1353, %v1345
        %v1426 = vpack.c.b16 %v1354, %v1346
        %v1427 = vpack.c.b16 %v1355, %v1347
        %v1428 = vpack.c.b16 %v1356, %v1348
        %v1429 = vpack.c.b16 %v1357, %v1349
        %v1430 = vpack.c.b16 %v1358, %v1350
        %v1431 = vpack.c.b16 %v1359, %v1351
        %v1432 = vpack.c.b16 %v1360, %v1352
        %v1433 = vpack.c.b16 %v1369, %v1361
        %v1434 = vpack.c.b16 %v1370, %v1362
        %v1435 = vpack.c.b16 %v1371, %v1363
        %v1436 = vpack.c.b16 %v1372, %v1364
        %v1437 = vpack.c.b16 %v1373, %v1365
        %v1438 = vpack.c.b16 %v1374, %v1366
        %v1439 = vpack.c.b16 %v1375, %v1367
        %v1440 = vpack.c.b16 %v1376, %v1368
        %v1633 = vunpack.c.l.b16 %v1057
        %v1634 = vunpack.c.l.b16 %v1058
        %v1635 = vunpack.c.l.b16 %v1059
        %v1636 = vunpack.c.l.b16 %v1060
        %v1637 = vunpack.c.l.b16 %v1061
        %v1638 = vunpack.c.l.b16 %v1062
        %v1639 = vunpack.c.l.b16 %v1063
        %v1640 = vunpack.c.l.b16 %v1064
        %v1641 = vunpack.c.l.b16 %v1065
        %v1642 = vunpack.c.l.b16 %v1066
        %v1643 = vunpack.c.l.b16 %v1067
        %v1644 = vunpack.c.l.b16 %v1068
        %v1645 = vunpack.c.l.b16 %v1069
        %v1646 = vunpack.c.l.b16 %v1070
        %v1647 = vunpack.c.l.b16 %v1071
        %v1648 = vunpack.c.l.b16 %v1072
        %v1649 = vunpack.c.l.b16 %v1073
        %v1650 = vunpack.c.l.b16 %v1074
        %v1651 = vunpack.c.l.b16 %v1075
        %v1652 = vunpack.c.l.b16 %v1076
        %v1653 = vunpack.c.l.b16 %v1077
        %v1654 = vunpack.c.l.b16 %v1078
        %v1655 = vunpack.c.l.b16 %v1079
        %v1656 = vunpack.c.l.b16 %v1080
        %v1657 = vunpack.c.l.b16 %v1081
        %v1658 = vunpack.c.l.b16 %v1082
        %v1659 = vunpack.c.l.b16 %v1083
        %v1660 = vunpack.c.l.b16 %v1084
        %v1661 = vunpack.c.l.b16 %v1085
        %v1662 = vunpack.c.l.b16 %v1086
        %v1663 = vunpack.c.l.b16 %v1087
        %v1664 = vunpack.c.l.b16 %v1088
        %v1665 = vunpack.c.l.b16 %v1089
        %v1666 = vunpack.c.l.b16 %v1090
        %v1667 = vunpack.c.l.b16 %v1091
        %v1668 = vunpack.c.l.b16 %v1092
        %v1669 = vunpack.c.l.b16 %v1093
        %v1670 = vunpack.c.l.b16 %v1094
        %v1671 = vunpack.c.l.b16 %v1095
        %v1672 = vunpack.c.l.b16 %v1096
        %v1673 = vunpack.c.l.b16 %v1097
        %v1674 = vunpack.c.l.b16 %v1098
        %v1675 = vunpack.c.l.b16 %v1099
        %v1676 = vunpack.c.l.b16 %v1100
        %v1677 = vunpack.c.l.b16 %v1101
        %v1678 = vunpack.c.l.b16 %v1102
        %v1679 = vunpack.c.l.b16 %v1103
        %v1680 = vunpack.c.l.b16 %v1104
        %v1681 = vunpack.c.l.b16 %v1105
        %v1682 = vunpack.c.l.b16 %v1106
        %v1683 = vunpack.c.l.b16 %v1107
        %v1684 = vunpack.c.l.b16 %v1108
        %v1685 = vunpack.c.l.b16 %v1109
        %v1686 = vunpack.c.l.b16 %v1110
        %v1687 = vunpack.c.l.b16 %v1111
        %v1688 = vunpack.c.l.b16 %v1112
        %v1689 = vunpack.c.l.b16 %v1113
        %v1690 = vunpack.c.l.b16 %v1114
        %v1691 = vunpack.c.l.b16 %v1115
        %v1692 = vunpack.c.l.b16 %v1116
        %v1693 = vunpack.c.l.b16 %v1117
        %v1694 = vunpack.c.l.b16 %v1118
        %v1695 = vunpack.c.l.b16 %v1119
        %v1696 = vunpack.c.l.b16 %v1120
        %v1697 = vunpack.c.l.b16 %v1121
        %v1698 = vunpack.c.l.b16 %v1122
        %v1699 = vunpack.c.l.b16 %v1123
        %v1700 = vunpack.c.l.b16 %v1124
        %v1701 = vunpack.c.l.b16 %v1125
        %v1702 = vunpack.c.l.b16 %v1126
        %v1703 = vunpack.c.l.b16 %v1127
        %v1704 = vunpack.c.l.b16 %v1128
        %v1705 = vunpack.c.l.b16 %v1129
        %v1706 = vunpack.c.l.b16 %v1130
        %v1707 = vunpack.c.l.b16 %v1131
        %v1708 = vunpack.c.l.b16 %v1132
        %v1709 = vunpack.c.l.b16 %v1133
        %v1710 = vunpack.c.l.b16 %v1134
        %v1711 = vunpack.c.l.b16 %v1135
        %v1712 = vunpack.c.l.b16 %v1136
        %v1713 = vunpack.c.l.b16 %v1137
        %v1714 = vunpack.c.l.b16 %v1138
        %v1715 = vunpack.c.l.b16 %v1139
        %v1716 = vunpack.c.l.b16 %v1140
        %v1717 = vunpack.c.l.b16 %v1141
        %v1718 = vunpack.c.l.b16 %v1142
        %v1719 = vunpack.c.l.b16 %v1143
        %v1720 = vunpack.c.l.b16 %v1144
        %v1721 = vunpack.c.l.b16 %v1145
        %v1722 = vunpack.c.l.b16 %v1146
        %v1723 = vunpack.c.l.b16 %v1147
        %v1724 = vunpack.c.l.b16 %v1148
        %v1725 = vunpack.c.l.b16 %v1149
        %v1726 = vunpack.c.l.b16 %v1150
        %v1727 = vunpack.c.l.b16 %v1151
        %v1728 = vunpack.c.l.b16 %v1152
        %v1729 = vunpack.c.l.b16 %v1153
        %v1730 = vunpack.c.l.b16 %v1154
        %v1731 = vunpack.c.l.b16 %v1155
        %v1732 = vunpack.c.l.b16 %v1156
        %v1733 = vunpack.c.l.b16 %v1157
        %v1734 = vunpack.c.l.b16 %v1158
        %v1735 = vunpack.c.l.b16 %v1159
        %v1736 = vunpack.c.l.b16 %v1160
        %v1737 = vunpack.c.l.b16 %v1161
        %v1738 = vunpack.c.l.b16 %v1162
        %v1739 = vunpack.c.l.b16 %v1163
        %v1740 = vunpack.c.l.b16 %v1164
        %v1741 = vunpack.c.l.b16 %v1165
        %v1742 = vunpack.c.l.b16 %v1166
        %v1743 = vunpack.c.l.b16 %v1167
        %v1744 = vunpack.c.l.b16 %v1168
        %v1745 = vunpack.c.l.b16 %v1169
        %v1746 = vunpack.c.l.b16 %v1170
        %v1747 = vunpack.c.l.b16 %v1171
        %v1748 = vunpack.c.l.b16 %v1172
        %v1749 = vunpack.c.l.b16 %v1173
        %v1750 = vunpack.c.l.b16 %v1174
        %v1751 = vunpack.c.l.b16 %v1175
        %v1752 = vunpack.c.l.b16 %v1176
        %v1753 = vunpack.c.l.b16 %v1177
        %v1754 = vunpack.c.l.b16 %v1178
        %v1755 = vunpack.c.l.b16 %v1179
        %v1756 = vunpack.c.l.b16 %v1180
        %v1757 = vunpack.c.l.b16 %v1181
        %v1758 = vunpack.c.l.b16 %v1182
        %v1759 = vunpack.c.l.b16 %v1183
        %v1760 = vunpack.c.l.b16 %v1184
        %v1761 = vpack.c.b16 %v1634, %v1633
        %v1762 = vpack.c.b16 %v1636, %v1635
        %v1763 = vpack.c.b16 %v1638, %v1637
        %v1764 = vpack.c.b16 %v1640, %v1639
        %v1765 = vpack.c.b16 %v1642, %v1641
        %v1766 = vpack.c.b16 %v1644, %v1643
        %v1767 = vpack.c.b16 %v1646, %v1645
        %v1768 = vpack.c.b16 %v1648, %v1647
        %v1769 = vpack.c.b16 %v1650, %v1649
        %v1770 = vpack.c.b16 %v1652, %v1651
        %v1771 = vpack.c.b16 %v1654, %v1653
        %v1772 = vpack.c.b16 %v1656, %v1655
        %v1773 = vpack.c.b16 %v1658, %v1657
        %v1774 = vpack.c.b16 %v1660, %v1659
        %v1775 = vpack.c.b16 %v1662, %v1661
        %v1776 = vpack.c.b16 %v1664, %v1663
        %v1777 = vpack.c.b16 %v1666, %v1665
        %v1778 = vpack.c.b16 %v1668, %v1667
        %v1779 = vpack.c.b16 %v1670, %v1669
        %v1780 = vpack.c.b16 %v1672, %v1671
        %v1781 = vpack.c.b16 %v1674, %v1673
        %v1782 = vpack.c.b16 %v1676, %v1675
        %v1783 = vpack.c.b16 %v1678, %v1677
        %v1784 = vpack.c.b16 %v1680, %v1679
        %v1785 = vpack.c.b16 %v1682, %v1681
        %v1786 = vpack.c.b16 %v1684, %v1683
        %v1787 = vpack.c.b16 %v1686, %v1685
        %v1788 = vpack.c.b16 %v1688, %v1687
        %v1789 = vpack.c.b16 %v1690, %v1689
        %v1790 = vpack.c.b16 %v1692, %v1691
        %v1791 = vpack.c.b16 %v1694, %v1693
        %v1792 = vpack.c.b16 %v1696, %v1695
        %v1793 = vpack.c.b16 %v1698, %v1697
        %v1794 = vpack.c.b16 %v1700, %v1699
        %v1795 = vpack.c.b16 %v1702, %v1701
        %v1796 = vpack.c.b16 %v1704, %v1703
        %v1797 = vpack.c.b16 %v1706, %v1705
        %v1798 = vpack.c.b16 %v1708, %v1707
        %v1799 = vpack.c.b16 %v1710, %v1709
        %v1800 = vpack.c.b16 %v1712, %v1711
        %v1801 = vpack.c.b16 %v1714, %v1713
        %v1802 = vpack.c.b16 %v1716, %v1715
        %v1803 = vpack.c.b16 %v1718, %v1717
        %v1804 = vpack.c.b16 %v1720, %v1719
        %v1805 = vpack.c.b16 %v1722, %v1721
        %v1806 = vpack.c.b16 %v1724, %v1723
        %v1807 = vpack.c.b16 %v1726, %v1725
        %v1808 = vpack.c.b16 %v1728, %v1727
        %v1809 = vpack.c.b16 %v1730, %v1729
        %v1810 = vpack.c.b16 %v1732, %v1731
        %v1811 = vpack.c.b16 %v1734, %v1733
        %v1812 = vpack.c.b16 %v1736, %v1735
        %v1813 = vpack.c.b16 %v1738, %v1737
        %v1814 = vpack.c.b16 %v1740, %v1739
        %v1815 = vpack.c.b16 %v1742, %v1741
        %v1816 = vpack.c.b16 %v1744, %v1743
        %v1817 = vpack.c.b16 %v1746, %v1745
        %v1818 = vpack.c.b16 %v1748, %v1747
        %v1819 = vpack.c.b16 %v1750, %v1749
        %v1820 = vpack.c.b16 %v1752, %v1751
        %v1821 = vpack.c.b16 %v1754, %v1753
        %v1822 = vpack.c.b16 %v1756, %v1755
        %v1823 = vpack.c.b16 %v1758, %v1757
        %v1824 = vpack.c.b16 %v1760, %v1759
        %1889 = vmatprep.subr.bf16.mxu0 0
        %1890 = vmatpush1.bf16.msra.mxu0 %v1768
        %1891 = vmatprep.subr.bf16.mxu0 0
        %1892 = vmatpush1.bf16.msra.mxu0 %v1767
        %1893 = vmatprep.subr.bf16.mxu0 0
        %1894 = vmatpush1.bf16.msra.mxu0 %v1766
        %1895 = vmatprep.subr.bf16.mxu0 0
        %1896 = vmatpush1.bf16.msra.mxu0 %v1765
        %1897 = vmatprep.subr.bf16.mxu0 0
        %1898 = vmatpush1.bf16.msra.mxu0 %v1764
        %1899 = vmatprep.subr.bf16.mxu0 0
        %1900 = vmatpush1.bf16.msra.mxu0 %v1763
        %1901 = vmatprep.subr.bf16.mxu0 0
        %1902 = vmatpush1.bf16.msra.mxu0 %v1762
        %1903 = vmatprep.subr.bf16.mxu0 0
        %1904 = vmatpush1.bf16.msra.mxu0 %v1761
        %1905 = vmatprep.subr.bf16.mxu0 0
        %1906 = vmatpush2.bf16.msra.mxu0 %v1776
        %1907 = vmatprep.subr.bf16.mxu0 0
        %1908 = vmatpush2.bf16.msra.mxu0 %v1775
        %1909 = vmatprep.subr.bf16.mxu0 0
        %1910 = vmatpush2.bf16.msra.mxu0 %v1774
        %1911 = vmatprep.subr.bf16.mxu0 0
        %1912 = vmatpush2.bf16.msra.mxu0 %v1773
        %1913 = vmatprep.subr.bf16.mxu0 0
        %1914 = vmatpush2.bf16.msra.mxu0 %v1772
        %1915 = vmatprep.subr.bf16.mxu0 0
        %1916 = vmatpush2.bf16.msra.mxu0 %v1771
        %1917 = vmatprep.subr.bf16.mxu0 0
        %1918 = vmatpush2.bf16.msra.mxu0 %v1770
        %1919 = vmatprep.subr.bf16.mxu0 0
        %1920 = vmatpush2.bf16.msra.mxu0 %v1769
        %1921 = vmatprep.mubr.bf16.mxu0 %v1378
        %1922 = vmatmul.mubr.bf16.gmra.mxu0 %v1377
        %v1923 = vpop.f32.mrf.mxu0
        %v1924 = vadd.f32 0.0, %v1923
        %v1925 = vpop.f32.mrf.mxu0
        %v1926 = vpop.f32.mrf.mxu0
        %v1927 = vadd.f32 0.0, %v1926
        %v1928 = vpop.f32.mrf.mxu0
        %1929 = vmatprep.mubr.bf16.mxu0 %v1386
        %1930 = vmatmul.mubr.bf16.gmra.mxu0 %v1385
        %v1931 = vpop.f32.mrf.mxu0
        %v1932 = vadd.f32 0.0, %v1931
        %v1933 = vpop.f32.mrf.mxu0
        %v1934 = vpop.f32.mrf.mxu0
        %v1935 = vadd.f32 0.0, %v1934
        %v1936 = vpop.f32.mrf.mxu0
        %1937 = vmatprep.mubr.bf16.mxu0 %v1394
        %1938 = vmatmul.mubr.bf16.gmra.mxu0 %v1393
        %v1939 = vpop.f32.mrf.mxu0
        %v1940 = vadd.f32 0.0, %v1939
        %v1941 = vpop.f32.mrf.mxu0
        %v1942 = vpop.f32.mrf.mxu0
        %v1943 = vadd.f32 0.0, %v1942
        %v1944 = vpop.f32.mrf.mxu0
        %1945 = vmatprep.mubr.bf16.mxu0 %v1402
        %1946 = vmatmul.mubr.bf16.gmra.mxu0 %v1401
        %v1947 = vpop.f32.mrf.mxu0
        %v1948 = vadd.f32 0.0, %v1947
        %v1949 = vpop.f32.mrf.mxu0
        %v1950 = vpop.f32.mrf.mxu0
        %v1951 = vadd.f32 0.0, %v1950
        %v1952 = vpop.f32.mrf.mxu0
        %1953 = vmatprep.mubr.bf16.mxu0 %v1410
        %1954 = vmatmul.mubr.bf16.gmra.mxu0 %v1409
        %v1955 = vpop.f32.mrf.mxu0
        %v1956 = vadd.f32 0.0, %v1955
        %v1957 = vpop.f32.mrf.mxu0
        %v1958 = vpop.f32.mrf.mxu0
        %v1959 = vadd.f32 0.0, %v1958
        %v1960 = vpop.f32.mrf.mxu0
        %1961 = vmatprep.mubr.bf16.mxu0 %v1418
        %1962 = vmatmul.mubr.bf16.gmra.mxu0 %v1417
        %v1963 = vpop.f32.mrf.mxu0
        %v1964 = vadd.f32 0.0, %v1963
        %v1965 = vpop.f32.mrf.mxu0
        %v1966 = vpop.f32.mrf.mxu0
        %v1967 = vadd.f32 0.0, %v1966
        %v1968 = vpop.f32.mrf.mxu0
        %1969 = vmatprep.mubr.bf16.mxu0 %v1426
        %1970 = vmatmul.mubr.bf16.gmra.mxu0 %v1425
        %v1971 = vpop.f32.mrf.mxu0
        %v1972 = vadd.f32 0.0, %v1971
        %v1973 = vpop.f32.mrf.mxu0
        %v1974 = vpop.f32.mrf.mxu0
        %v1975 = vadd.f32 0.0, %v1974
        %v1976 = vpop.f32.mrf.mxu0
        %1977 = vmatprep.mubr.bf16.mxu0 %v1434
        %1978 = vmatmul.mubr.bf16.gmra.mxu0 %v1433
        %v1979 = vpop.f32.mrf.mxu0
        %v1980 = vadd.f32 0.0, %v1979
        %v1981 = vpop.f32.mrf.mxu0
        %v1982 = vpop.f32.mrf.mxu0
        %v1983 = vadd.f32 0.0, %v1982
        %v1984 = vpop.f32.mrf.mxu0
        %1985 = vdwg.mxu0
        %1986 = vmatprep.subr.bf16.mxu0 0
        %1987 = vmatpush1.bf16.msra.mxu0 %v1784
        %1988 = vmatprep.subr.bf16.mxu0 0
        %1989 = vmatpush1.bf16.msra.mxu0 %v1783
        %1990 = vmatprep.subr.bf16.mxu0 0
        %1991 = vmatpush1.bf16.msra.mxu0 %v1782
        %1992 = vmatprep.subr.bf16.mxu0 0
        %1993 = vmatpush1.bf16.msra.mxu0 %v1781
        %1994 = vmatprep.subr.bf16.mxu0 0
        %1995 = vmatpush1.bf16.msra.mxu0 %v1780
        %1996 = vmatprep.subr.bf16.mxu0 0
        %1997 = vmatpush1.bf16.msra.mxu0 %v1779
        %1998 = vmatprep.subr.bf16.mxu0 0
        %1999 = vmatpush1.bf16.msra.mxu0 %v1778
        %2000 = vmatprep.subr.bf16.mxu0 0
        %2001 = vmatpush1.bf16.msra.mxu0 %v1777
        %2002 = vmatprep.subr.bf16.mxu0 0
        %2003 = vmatpush2.bf16.msra.mxu0 %v1792
        %2004 = vmatprep.subr.bf16.mxu0 0
        %2005 = vmatpush2.bf16.msra.mxu0 %v1791
        %2006 = vmatprep.subr.bf16.mxu0 0
        %2007 = vmatpush2.bf16.msra.mxu0 %v1790
        %2008 = vmatprep.subr.bf16.mxu0 0
        %2009 = vmatpush2.bf16.msra.mxu0 %v1789
        %2010 = vmatprep.subr.bf16.mxu0 0
        %2011 = vmatpush2.bf16.msra.mxu0 %v1788
        %2012 = vmatprep.subr.bf16.mxu0 0
        %2013 = vmatpush2.bf16.msra.mxu0 %v1787
        %2014 = vmatprep.subr.bf16.mxu0 0
        %2015 = vmatpush2.bf16.msra.mxu0 %v1786
        %2016 = vmatprep.subr.bf16.mxu0 0
        %2017 = vmatpush2.bf16.msra.mxu0 %v1785
        %2018 = vmatprep.mubr.bf16.mxu0 %v1380
        %2019 = vmatmul.mubr.bf16.gmra.mxu0 %v1379
        %v2020 = vpop.f32.mrf.mxu0
        %v2021 = vadd.f32 %v1924, %v2020
        %v2022 = vpop.f32.mrf.mxu0
        %v2023 = vpop.f32.mrf.mxu0
        %v2024 = vadd.f32 %v1927, %v2023
        %v2025 = vpop.f32.mrf.mxu0
        %2026 = vmatprep.mubr.bf16.mxu0 %v1388
        %2027 = vmatmul.mubr.bf16.gmra.mxu0 %v1387
        %v2028 = vpop.f32.mrf.mxu0
        %v2029 = vadd.f32 %v1932, %v2028
        %v2030 = vpop.f32.mrf.mxu0
        %v2031 = vpop.f32.mrf.mxu0
        %v2032 = vadd.f32 %v1935, %v2031
        %v2033 = vpop.f32.mrf.mxu0
        %2034 = vmatprep.mubr.bf16.mxu0 %v1396
        %2035 = vmatmul.mubr.bf16.gmra.mxu0 %v1395
        %v2036 = vpop.f32.mrf.mxu0
        %v2037 = vadd.f32 %v1940, %v2036
        %v2038 = vpop.f32.mrf.mxu0
        %v2039 = vpop.f32.mrf.mxu0
        %v2040 = vadd.f32 %v1943, %v2039
        %v2041 = vpop.f32.mrf.mxu0
        %2042 = vmatprep.mubr.bf16.mxu0 %v1404
        %2043 = vmatmul.mubr.bf16.gmra.mxu0 %v1403
        %v2044 = vpop.f32.mrf.mxu0
        %v2045 = vadd.f32 %v1948, %v2044
        %v2046 = vpop.f32.mrf.mxu0
        %v2047 = vpop.f32.mrf.mxu0
        %v2048 = vadd.f32 %v1951, %v2047
        %v2049 = vpop.f32.mrf.mxu0
        %2050 = vmatprep.mubr.bf16.mxu0 %v1412
        %2051 = vmatmul.mubr.bf16.gmra.mxu0 %v1411
        %v2052 = vpop.f32.mrf.mxu0
        %v2053 = vadd.f32 %v1956, %v2052
        %v2054 = vpop.f32.mrf.mxu0
        %v2055 = vpop.f32.mrf.mxu0
        %v2056 = vadd.f32 %v1959, %v2055
        %v2057 = vpop.f32.mrf.mxu0
        %2058 = vmatprep.mubr.bf16.mxu0 %v1420
        %2059 = vmatmul.mubr.bf16.gmra.mxu0 %v1419
        %v2060 = vpop.f32.mrf.mxu0
        %v2061 = vadd.f32 %v1964, %v2060
        %v2062 = vpop.f32.mrf.mxu0
        %v2063 = vpop.f32.mrf.mxu0
        %v2064 = vadd.f32 %v1967, %v2063
        %v2065 = vpop.f32.mrf.mxu0
        %2066 = vmatprep.mubr.bf16.mxu0 %v1428
        %2067 = vmatmul.mubr.bf16.gmra.mxu0 %v1427
        %v2068 = vpop.f32.mrf.mxu0
        %v2069 = vadd.f32 %v1972, %v2068
        %v2070 = vpop.f32.mrf.mxu0
        %v2071 = vpop.f32.mrf.mxu0
        %v2072 = vadd.f32 %v1975, %v2071
        %v2073 = vpop.f32.mrf.mxu0
        %2074 = vmatprep.mubr.bf16.mxu0 %v1436
        %2075 = vmatmul.mubr.bf16.gmra.mxu0 %v1435
        %v2076 = vpop.f32.mrf.mxu0
        %v2077 = vadd.f32 %v1980, %v2076
        %v2078 = vpop.f32.mrf.mxu0
        %v2079 = vpop.f32.mrf.mxu0
        %v2080 = vadd.f32 %v1983, %v2079
        %v2081 = vpop.f32.mrf.mxu0
        %2082 = vdwg.mxu0
        %2083 = vmatprep.subr.bf16.mxu0 0
        %2084 = vmatpush1.bf16.msra.mxu0 %v1800
        %2085 = vmatprep.subr.bf16.mxu0 0
        %2086 = vmatpush1.bf16.msra.mxu0 %v1799
        %2087 = vmatprep.subr.bf16.mxu0 0
        %2088 = vmatpush1.bf16.msra.mxu0 %v1798
        %2089 = vmatprep.subr.bf16.mxu0 0
        %2090 = vmatpush1.bf16.msra.mxu0 %v1797
        %2091 = vmatprep.subr.bf16.mxu0 0
        %2092 = vmatpush1.bf16.msra.mxu0 %v1796
        %2093 = vmatprep.subr.bf16.mxu0 0
        %2094 = vmatpush1.bf16.msra.mxu0 %v1795
        %2095 = vmatprep.subr.bf16.mxu0 0
        %2096 = vmatpush1.bf16.msra.mxu0 %v1794
        %2097 = vmatprep.subr.bf16.mxu0 0
        %2098 = vmatpush1.bf16.msra.mxu0 %v1793
        %2099 = vmatprep.subr.bf16.mxu0 0
        %2100 = vmatpush2.bf16.msra.mxu0 %v1808
        %2101 = vmatprep.subr.bf16.mxu0 0
        %2102 = vmatpush2.bf16.msra.mxu0 %v1807
        %2103 = vmatprep.subr.bf16.mxu0 0
        %2104 = vmatpush2.bf16.msra.mxu0 %v1806
        %2105 = vmatprep.subr.bf16.mxu0 0
        %2106 = vmatpush2.bf16.msra.mxu0 %v1805
        %2107 = vmatprep.subr.bf16.mxu0 0
        %2108 = vmatpush2.bf16.msra.mxu0 %v1804
        %2109 = vmatprep.subr.bf16.mxu0 0
        %2110 = vmatpush2.bf16.msra.mxu0 %v1803
        %2111 = vmatprep.subr.bf16.mxu0 0
        %2112 = vmatpush2.bf16.msra.mxu0 %v1802
        %2113 = vmatprep.subr.bf16.mxu0 0
        %2114 = vmatpush2.bf16.msra.mxu0 %v1801
        %2115 = vmatprep.mubr.bf16.mxu0 %v1382
        %2116 = vmatmul.mubr.bf16.gmra.mxu0 %v1381
        %v2117 = vpop.f32.mrf.mxu0
        %v2118 = vadd.f32 %v2021, %v2117
        %v2119 = vpop.f32.mrf.mxu0
        %v2120 = vpop.f32.mrf.mxu0
        %v2121 = vadd.f32 %v2024, %v2120
        %v2122 = vpop.f32.mrf.mxu0
        %2123 = vmatprep.mubr.bf16.mxu0 %v1390
        %2124 = vmatmul.mubr.bf16.gmra.mxu0 %v1389
        %v2125 = vpop.f32.mrf.mxu0
        %v2126 = vadd.f32 %v2029, %v2125
        %v2127 = vpop.f32.mrf.mxu0
        %v2128 = vpop.f32.mrf.mxu0
        %v2129 = vadd.f32 %v2032, %v2128
        %v2130 = vpop.f32.mrf.mxu0
        %2131 = vmatprep.mubr.bf16.mxu0 %v1398
        %2132 = vmatmul.mubr.bf16.gmra.mxu0 %v1397
        %v2133 = vpop.f32.mrf.mxu0
        %v2134 = vadd.f32 %v2037, %v2133
        %v2135 = vpop.f32.mrf.mxu0
        %v2136 = vpop.f32.mrf.mxu0
        %v2137 = vadd.f32 %v2040, %v2136
        %v2138 = vpop.f32.mrf.mxu0
        %2139 = vmatprep.mubr.bf16.mxu0 %v1406
        %2140 = vmatmul.mubr.bf16.gmra.mxu0 %v1405
        %v2141 = vpop.f32.mrf.mxu0
        %v2142 = vadd.f32 %v2045, %v2141
        %v2143 = vpop.f32.mrf.mxu0
        %v2144 = vpop.f32.mrf.mxu0
        %v2145 = vadd.f32 %v2048, %v2144
        %v2146 = vpop.f32.mrf.mxu0
        %2147 = vmatprep.mubr.bf16.mxu0 %v1414
        %2148 = vmatmul.mubr.bf16.gmra.mxu0 %v1413
        %v2149 = vpop.f32.mrf.mxu0
        %v2150 = vadd.f32 %v2053, %v2149
        %v2151 = vpop.f32.mrf.mxu0
        %v2152 = vpop.f32.mrf.mxu0
        %v2153 = vadd.f32 %v2056, %v2152
        %v2154 = vpop.f32.mrf.mxu0
        %2155 = vmatprep.mubr.bf16.mxu0 %v1422
        %2156 = vmatmul.mubr.bf16.gmra.mxu0 %v1421
        %v2157 = vpop.f32.mrf.mxu0
        %v2158 = vadd.f32 %v2061, %v2157
        %v2159 = vpop.f32.mrf.mxu0
        %v2160 = vpop.f32.mrf.mxu0
        %v2161 = vadd.f32 %v2064, %v2160
        %v2162 = vpop.f32.mrf.mxu0
        %2163 = vmatprep.mubr.bf16.mxu0 %v1430
        %2164 = vmatmul.mubr.bf16.gmra.mxu0 %v1429
        %v2165 = vpop.f32.mrf.mxu0
        %v2166 = vadd.f32 %v2069, %v2165
        %v2167 = vpop.f32.mrf.mxu0
        %v2168 = vpop.f32.mrf.mxu0
        %v2169 = vadd.f32 %v2072, %v2168
        %v2170 = vpop.f32.mrf.mxu0
        %2171 = vmatprep.mubr.bf16.mxu0 %v1438
        %2172 = vmatmul.mubr.bf16.gmra.mxu0 %v1437
        %v2173 = vpop.f32.mrf.mxu0
        %v2174 = vadd.f32 %v2077, %v2173
        %v2175 = vpop.f32.mrf.mxu0
        %v2176 = vpop.f32.mrf.mxu0
        %v2177 = vadd.f32 %v2080, %v2176
        %v2178 = vpop.f32.mrf.mxu0
        %2179 = vdwg.mxu0
        %2180 = vmatprep.subr.bf16.mxu0 0
        %2181 = vmatpush1.bf16.msra.mxu0 %v1816
        %2182 = vmatprep.subr.bf16.mxu0 0
        %2183 = vmatpush1.bf16.msra.mxu0 %v1815
        %2184 = vmatprep.subr.bf16.mxu0 0
        %2185 = vmatpush1.bf16.msra.mxu0 %v1814
        %2186 = vmatprep.subr.bf16.mxu0 0
        %2187 = vmatpush1.bf16.msra.mxu0 %v1813
        %2188 = vmatprep.subr.bf16.mxu0 0
        %2189 = vmatpush1.bf16.msra.mxu0 %v1812
        %2190 = vmatprep.subr.bf16.mxu0 0
        %2191 = vmatpush1.bf16.msra.mxu0 %v1811
        %2192 = vmatprep.subr.bf16.mxu0 0
        %2193 = vmatpush1.bf16.msra.mxu0 %v1810
        %2194 = vmatprep.subr.bf16.mxu0 0
        %2195 = vmatpush1.bf16.msra.mxu0 %v1809
        %2196 = vmatprep.subr.bf16.mxu0 0
        %2197 = vmatpush2.bf16.msra.mxu0 %v1824
        %2198 = vmatprep.subr.bf16.mxu0 0
        %2199 = vmatpush2.bf16.msra.mxu0 %v1823
        %2200 = vmatprep.subr.bf16.mxu0 0
        %2201 = vmatpush2.bf16.msra.mxu0 %v1822
        %2202 = vmatprep.subr.bf16.mxu0 0
        %2203 = vmatpush2.bf16.msra.mxu0 %v1821
        %2204 = vmatprep.subr.bf16.mxu0 0
        %2205 = vmatpush2.bf16.msra.mxu0 %v1820
        %2206 = vmatprep.subr.bf16.mxu0 0
        %2207 = vmatpush2.bf16.msra.mxu0 %v1819
        %2208 = vmatprep.subr.bf16.mxu0 0
        %2209 = vmatpush2.bf16.msra.mxu0 %v1818
        %2210 = vmatprep.subr.bf16.mxu0 0
        %2211 = vmatpush2.bf16.msra.mxu0 %v1817
        %2212 = vmatprep.mubr.bf16.mxu0 %v1384
        %2213 = vmatmul.mubr.bf16.gmra.mxu0 %v1383
        %v2214 = vpop.f32.mrf.mxu0
        %v2215 = vadd.f32 %v2118, %v2214
        %v2216 = vpop.f32.mrf.mxu0
        %v2217 = vpop.f32.mrf.mxu0
        %v2218 = vadd.f32 %v2121, %v2217
        %v2219 = vpop.f32.mrf.mxu0
        %2220 = vmatprep.mubr.bf16.mxu0 %v1392
        %2221 = vmatmul.mubr.bf16.gmra.mxu0 %v1391
        %v2222 = vpop.f32.mrf.mxu0
        %v2223 = vadd.f32 %v2126, %v2222
        %v2224 = vpop.f32.mrf.mxu0
        %v2225 = vpop.f32.mrf.mxu0
        %v2226 = vadd.f32 %v2129, %v2225
        %v2227 = vpop.f32.mrf.mxu0
        %2228 = vmatprep.mubr.bf16.mxu0 %v1400
        %2229 = vmatmul.mubr.bf16.gmra.mxu0 %v1399
        %v2230 = vpop.f32.mrf.mxu0
        %v2231 = vadd.f32 %v2134, %v2230
        %v2232 = vpop.f32.mrf.mxu0
        %v2233 = vpop.f32.mrf.mxu0
        %v2234 = vadd.f32 %v2137, %v2233
        %v2235 = vpop.f32.mrf.mxu0
        %2236 = vmatprep.mubr.bf16.mxu0 %v1408
        %2237 = vmatmul.mubr.bf16.gmra.mxu0 %v1407
        %v2238 = vpop.f32.mrf.mxu0
        %v2239 = vadd.f32 %v2142, %v2238
        %v2240 = vpop.f32.mrf.mxu0
        %v2241 = vpop.f32.mrf.mxu0
        %v2242 = vadd.f32 %v2145, %v2241
        %v2243 = vpop.f32.mrf.mxu0
        %2244 = vmatprep.mubr.bf16.mxu0 %v1416
        %2245 = vmatmul.mubr.bf16.gmra.mxu0 %v1415
        %v2246 = vpop.f32.mrf.mxu0
        %v2247 = vadd.f32 %v2150, %v2246
        %v2248 = vpop.f32.mrf.mxu0
        %v2249 = vpop.f32.mrf.mxu0
        %v2250 = vadd.f32 %v2153, %v2249
        %v2251 = vpop.f32.mrf.mxu0
        %2252 = vmatprep.mubr.bf16.mxu0 %v1424
        %2253 = vmatmul.mubr.bf16.gmra.mxu0 %v1423
        %v2254 = vpop.f32.mrf.mxu0
        %v2255 = vadd.f32 %v2158, %v2254
        %v2256 = vpop.f32.mrf.mxu0
        %v2257 = vpop.f32.mrf.mxu0
        %v2258 = vadd.f32 %v2161, %v2257
        %v2259 = vpop.f32.mrf.mxu0
        %2260 = vmatprep.mubr.bf16.mxu0 %v1432
        %2261 = vmatmul.mubr.bf16.gmra.mxu0 %v1431
        %v2262 = vpop.f32.mrf.mxu0
        %v2263 = vadd.f32 %v2166, %v2262
        %v2264 = vpop.f32.mrf.mxu0
        %v2265 = vpop.f32.mrf.mxu0
        %v2266 = vadd.f32 %v2169, %v2265
        %v2267 = vpop.f32.mrf.mxu0
        %2268 = vmatprep.mubr.bf16.mxu0 %v1440
        %2269 = vmatmul.mubr.bf16.gmra.mxu0 %v1439
        %v2270 = vpop.f32.mrf.mxu0
        %v2271 = vadd.f32 %v2174, %v2270
        %v2272 = vpop.f32.mrf.mxu0
        %v2273 = vpop.f32.mrf.mxu0
        %v2274 = vadd.f32 %v2177, %v2273
        %v2275 = vpop.f32.mrf.mxu0
        %2276 = vdwg.mxu0
        %v2277 = vadd.f32 %v977, %v2215
        %v2278 = vadd.f32 %v978, %v2218
        %v2279 = vadd.f32 %v979, %v2223
        %v2280 = vadd.f32 %v980, %v2226
        %v2281 = vadd.f32 %v981, %v2231
        %v2282 = vadd.f32 %v982, %v2234
        %v2283 = vadd.f32 %v983, %v2239
        %v2284 = vadd.f32 %v984, %v2242
        %v2285 = vadd.f32 %v985, %v2247
        %v2286 = vadd.f32 %v986, %v2250
        %v2287 = vadd.f32 %v987, %v2255
        %v2288 = vadd.f32 %v988, %v2258
        %v2289 = vadd.f32 %v989, %v2263
        %v2290 = vadd.f32 %v990, %v2266
        %v2291 = vadd.f32 %v991, %v2271
        %v2292 = vadd.f32 %v992, %v2274
        %2293 = vst [vmem:[#allocation2] sm:$0xff] %v2277
        %2294 = vst [vmem:[#allocation2 + $0x8] sm:$0xff] %v2278
        %2295 = vst [vmem:[#allocation2 + $0x10] sm:$0xff] %v2279
        %2296 = vst [vmem:[#allocation2 + $0x18] sm:$0xff] %v2280
        %2297 = vst [vmem:[#allocation2 + $0x20] sm:$0xff] %v2281
        %2298 = vst [vmem:[#allocation2 + $0x28] sm:$0xff] %v2282
        %2299 = vst [vmem:[#allocation2 + $0x30] sm:$0xff] %v2283
        %2300 = vst [vmem:[#allocation2 + $0x38] sm:$0xff] %v2284
        %2301 = vst [vmem:[#allocation2 + $0x40] sm:$0xff] %v2285
        %2302 = vst [vmem:[#allocation2 + $0x48] sm:$0xff] %v2286
        %2303 = vst [vmem:[#allocation2 + $0x50] sm:$0xff] %v2287
        %2304 = vst [vmem:[#allocation2 + $0x58] sm:$0xff] %v2288
        %2305 = vst [vmem:[#allocation2 + $0x60] sm:$0xff] %v2289
        %2306 = vst [vmem:[#allocation2 + $0x68] sm:$0xff] %v2290
        %2307 = vst [vmem:[#allocation2 + $0x70] sm:$0xff] %v2291
        %2308 = vst [vmem:[#allocation2 + $0x78] sm:$0xff] %v2292
        %p2309 = scmp.eq.s32.totalorder %s20, 1
        // Predicated region
        $region105: #{critic_forward.7} parent=91 // pred_check
          %p2310 = pneg %p2309
        $region106: #{critic_forward.7} parent=91 // pred_check_branch
          %2312 = sbr.rel (%p2310) target = $region108
        $region107: #{critic_forward.7} parent=91 // pred_region
          %v2313 = vld [vmem:[#allocation2] sm:$0xff]
          %v2314 = vld [vmem:[#allocation2 + $0x8] sm:$0xff]
          %v2315 = vld [vmem:[#allocation2 + $0x10] sm:$0xff]
          %v2316 = vld [vmem:[#allocation2 + $0x18] sm:$0xff]
          %v2317 = vld [vmem:[#allocation2 + $0x20] sm:$0xff]
          %v2318 = vld [vmem:[#allocation2 + $0x28] sm:$0xff]
          %v2319 = vld [vmem:[#allocation2 + $0x30] sm:$0xff]
          %v2320 = vld [vmem:[#allocation2 + $0x38] sm:$0xff]
          %v2321 = vld [vmem:[#allocation2 + $0x40] sm:$0xff]
          %v2322 = vld [vmem:[#allocation2 + $0x48] sm:$0xff]
          %v2323 = vld [vmem:[#allocation2 + $0x50] sm:$0xff]
          %v2324 = vld [vmem:[#allocation2 + $0x58] sm:$0xff]
          %v2325 = vld [vmem:[#allocation2 + $0x60] sm:$0xff]
          %v2326 = vld [vmem:[#allocation2 + $0x68] sm:$0xff]
          %v2327 = vld [vmem:[#allocation2 + $0x70] sm:$0xff]
          %v2328 = vld [vmem:[#allocation2 + $0x78] sm:$0xff]
          %v2329 = vadd.f32 %v2313, %v2314
          %v2330 = vadd.f32 %v2329, %v2315
          %v2331 = vadd.f32 %v2330, %v2316
          %v2332 = vadd.f32 %v2331, %v2317
          %v2333 = vadd.f32 %v2332, %v2318
          %v2334 = vadd.f32 %v2333, %v2319
          %v2335 = vadd.f32 %v2334, %v2320
          %v2336 = vadd.f32 %v2335, %v2321
          %v2337 = vadd.f32 %v2336, %v2322
          %v2338 = vadd.f32 %v2337, %v2323
          %v2339 = vadd.f32 %v2338, %v2324
          %v2340 = vadd.f32 %v2339, %v2325
          %v2341 = vadd.f32 %v2340, %v2326
          %v2342 = vadd.f32 %v2341, %v2327
          %v2343 = vadd.f32 %v2342, %v2328
          %v2344 = vrot.slane %v2343, 4
          %v2345 = vadd.f32 %v2343, %v2344
          %v2346 = vrot.slane %v2345, 2
          %v2347 = vadd.f32 %v2345, %v2346
          %v2348 = vrot.slane %v2347, 1
          %v2349 = vadd.f32 %v2347, %v2348
          %v2350 = vrcp.pop 128.0
          %v2351 = vmul.f32 %v2349, %v2350
          %v2352 = vsub.f32 %v2313, %v2351
          %v2353 = vsub.f32 %v2314, %v2351
          %v2354 = vsub.f32 %v2315, %v2351
          %v2355 = vsub.f32 %v2316, %v2351
          %v2356 = vsub.f32 %v2317, %v2351
          %v2357 = vsub.f32 %v2318, %v2351
          %v2358 = vsub.f32 %v2319, %v2351
          %v2359 = vsub.f32 %v2320, %v2351
          %v2360 = vsub.f32 %v2321, %v2351
          %v2361 = vsub.f32 %v2322, %v2351
          %v2362 = vsub.f32 %v2323, %v2351
          %v2363 = vsub.f32 %v2324, %v2351
          %v2364 = vsub.f32 %v2325, %v2351
          %v2365 = vsub.f32 %v2326, %v2351
          %v2366 = vsub.f32 %v2327, %v2351
          %v2367 = vsub.f32 %v2328, %v2351
          %v2368 = vmul.f32 %v2352, %v2352
          %v2369 = vmul.f32 %v2353, %v2353
          %v2370 = vmul.f32 %v2354, %v2354
          %v2371 = vmul.f32 %v2355, %v2355
          %v2372 = vmul.f32 %v2356, %v2356
          %v2373 = vmul.f32 %v2357, %v2357
          %v2374 = vmul.f32 %v2358, %v2358
          %v2375 = vmul.f32 %v2359, %v2359
          %v2376 = vmul.f32 %v2360, %v2360
          %v2377 = vmul.f32 %v2361, %v2361
          %v2378 = vmul.f32 %v2362, %v2362
          %v2379 = vmul.f32 %v2363, %v2363
          %v2380 = vmul.f32 %v2364, %v2364
          %v2381 = vmul.f32 %v2365, %v2365
          %v2382 = vmul.f32 %v2366, %v2366
          %v2383 = vmul.f32 %v2367, %v2367
          %v2384 = vadd.f32 %v2368, %v2369
          %v2385 = vadd.f32 %v2384, %v2370
          %v2386 = vadd.f32 %v2385, %v2371
          %v2387 = vadd.f32 %v2386, %v2372
          %v2388 = vadd.f32 %v2387, %v2373
          %v2389 = vadd.f32 %v2388, %v2374
          %v2390 = vadd.f32 %v2389, %v2375
          %v2391 = vadd.f32 %v2390, %v2376
          %v2392 = vadd.f32 %v2391, %v2377
          %v2393 = vadd.f32 %v2392, %v2378
          %v2394 = vadd.f32 %v2393, %v2379
          %v2395 = vadd.f32 %v2394, %v2380
          %v2396 = vadd.f32 %v2395, %v2381
          %v2397 = vadd.f32 %v2396, %v2382
          %v2398 = vadd.f32 %v2397, %v2383
          %v2399 = vrot.slane %v2398, 4
          %v2400 = vadd.f32 %v2398, %v2399
          %v2401 = vrot.slane %v2400, 2
          %v2402 = vadd.f32 %v2400, %v2401
          %v2403 = vrot.slane %v2402, 1
          %v2404 = vadd.f32 %v2402, %v2403
          %v2405 = vmul.f32 %v2404, %v2350
          %v2406 = vadd.f32 %v2405, 1e-05
          %v2407 = vrsqrt.pop %v2406
          %v2408 = vmul.f32 %v2352, %v2407
          %v2409 = vmul.f32 %v2353, %v2407
          %v2410 = vmul.f32 %v2354, %v2407
          %v2411 = vmul.f32 %v2355, %v2407
          %v2412 = vmul.f32 %v2356, %v2407
          %v2413 = vmul.f32 %v2357, %v2407
          %v2414 = vmul.f32 %v2358, %v2407
          %v2415 = vmul.f32 %v2359, %v2407
          %v2416 = vmul.f32 %v2360, %v2407
          %v2417 = vmul.f32 %v2361, %v2407
          %v2418 = vmul.f32 %v2362, %v2407
          %v2419 = vmul.f32 %v2363, %v2407
          %v2420 = vmul.f32 %v2364, %v2407
          %v2421 = vmul.f32 %v2365, %v2407
          %v2422 = vmul.f32 %v2366, %v2407
          %v2423 = vmul.f32 %v2367, %v2407
          %v2424 = vld [vmem:[%s952] sm:$0x1]
          %v2426 = vlaneseq
          %v2427 = vshrl.u32 %v2426, 7
          %v2428 = vsub.s32 0, %v2427
          %v2429 = vrot.slane %v2424, %v2428
          %v2431 = vmul.f32 %v2408, %v2429
          %v2432 = vmul.f32 %v2409, %v2429
          %v2433 = vmul.f32 %v2410, %v2429
          %v2434 = vmul.f32 %v2411, %v2429
          %v2435 = vmul.f32 %v2412, %v2429
          %v2436 = vmul.f32 %v2413, %v2429
          %v2437 = vmul.f32 %v2414, %v2429
          %v2438 = vmul.f32 %v2415, %v2429
          %v2439 = vmul.f32 %v2416, %v2429
          %v2440 = vmul.f32 %v2417, %v2429
          %v2441 = vmul.f32 %v2418, %v2429
          %v2442 = vmul.f32 %v2419, %v2429
          %v2443 = vmul.f32 %v2420, %v2429
          %v2444 = vmul.f32 %v2421, %v2429
          %v2445 = vmul.f32 %v2422, %v2429
          %v2446 = vmul.f32 %v2423, %v2429
          %v2447 = vld [vmem:[%s955] sm:$0x1]
          %v2449 = vlaneseq
          %v2450 = vshrl.u32 %v2449, 7
          %v2451 = vsub.s32 0, %v2450
          %v2452 = vrot.slane %v2447, %v2451
          %v2454 = vadd.f32 %v2431, %v2452
          %v2455 = vadd.f32 %v2432, %v2452
          %v2456 = vadd.f32 %v2433, %v2452
          %v2457 = vadd.f32 %v2434, %v2452
          %v2458 = vadd.f32 %v2435, %v2452
          %v2459 = vadd.f32 %v2436, %v2452
          %v2460 = vadd.f32 %v2437, %v2452
          %v2461 = vadd.f32 %v2438, %v2452
          %v2462 = vadd.f32 %v2439, %v2452
          %v2463 = vadd.f32 %v2440, %v2452
          %v2464 = vadd.f32 %v2441, %v2452
          %v2465 = vadd.f32 %v2442, %v2452
          %v2466 = vadd.f32 %v2443, %v2452
          %v2467 = vadd.f32 %v2444, %v2452
          %v2468 = vadd.f32 %v2445, %v2452
          %v2469 = vadd.f32 %v2446, %v2452
          %vm2470 = vcmp.ge.f32.partialorder %v2454, 0.0
          %vm2471 = vcmp.ge.f32.partialorder %v2455, 0.0
          %vm2472 = vcmp.ge.f32.partialorder %v2456, 0.0
          %vm2473 = vcmp.ge.f32.partialorder %v2457, 0.0
          %vm2474 = vcmp.ge.f32.partialorder %v2458, 0.0
          %vm2475 = vcmp.ge.f32.partialorder %v2459, 0.0
          %vm2476 = vcmp.ge.f32.partialorder %v2460, 0.0
          %vm2477 = vcmp.ge.f32.partialorder %v2461, 0.0
          %vm2478 = vcmp.ge.f32.partialorder %v2462, 0.0
          %vm2479 = vcmp.ge.f32.partialorder %v2463, 0.0
          %vm2480 = vcmp.ge.f32.partialorder %v2464, 0.0
          %vm2481 = vcmp.ge.f32.partialorder %v2465, 0.0
          %vm2482 = vcmp.ge.f32.partialorder %v2466, 0.0
          %vm2483 = vcmp.ge.f32.partialorder %v2467, 0.0
          %vm2484 = vcmp.ge.f32.partialorder %v2468, 0.0
          %vm2485 = vcmp.ge.f32.partialorder %v2469, 0.0
          %v2486 = vmul.f32 %v2454, 0.2
          %v2487 = vmul.f32 %v2455, 0.2
          %v2488 = vmul.f32 %v2456, 0.2
          %v2489 = vmul.f32 %v2457, 0.2
          %v2490 = vmul.f32 %v2458, 0.2
          %v2491 = vmul.f32 %v2459, 0.2
          %v2492 = vmul.f32 %v2460, 0.2
          %v2493 = vmul.f32 %v2461, 0.2
          %v2494 = vmul.f32 %v2462, 0.2
          %v2495 = vmul.f32 %v2463, 0.2
          %v2496 = vmul.f32 %v2464, 0.2
          %v2497 = vmul.f32 %v2465, 0.2
          %v2498 = vmul.f32 %v2466, 0.2
          %v2499 = vmul.f32 %v2467, 0.2
          %v2500 = vmul.f32 %v2468, 0.2
          %v2501 = vmul.f32 %v2469, 0.2
          %v2502 = vsel %vm2470, %v2454, %v2486
          %v2503 = vsel %vm2471, %v2455, %v2487
          %v2504 = vsel %vm2472, %v2456, %v2488
          %v2505 = vsel %vm2473, %v2457, %v2489
          %v2506 = vsel %vm2474, %v2458, %v2490
          %v2507 = vsel %vm2475, %v2459, %v2491
          %v2508 = vsel %vm2476, %v2460, %v2492
          %v2509 = vsel %vm2477, %v2461, %v2493
          %v2510 = vsel %vm2478, %v2462, %v2494
          %v2511 = vsel %vm2479, %v2463, %v2495
          %v2512 = vsel %vm2480, %v2464, %v2496
          %v2513 = vsel %vm2481, %v2465, %v2497
          %v2514 = vsel %vm2482, %v2466, %v2498
          %v2515 = vsel %vm2483, %v2467, %v2499
          %v2516 = vsel %vm2484, %v2468, %v2500
          %v2517 = vsel %vm2485, %v2469, %v2501
          %v2518 = vpack.c.bf16 %v2503, %v2502
          %v2519 = vpack.c.bf16 %v2505, %v2504
          %v2520 = vpack.c.bf16 %v2507, %v2506
          %v2521 = vpack.c.bf16 %v2509, %v2508
          %v2522 = vpack.c.bf16 %v2511, %v2510
          %v2523 = vpack.c.bf16 %v2513, %v2512
          %v2524 = vpack.c.bf16 %v2515, %v2514
          %v2525 = vpack.c.bf16 %v2517, %v2516
          %v2534 = vunpack.c.l.b16 %v2518
          %v2535 = vunpack.c.h.b16 %v2518
          %v2536 = vunpack.c.l.b16 %v2519
          %v2537 = vunpack.c.h.b16 %v2519
          %v2538 = vunpack.c.l.b16 %v2520
          %v2539 = vunpack.c.h.b16 %v2520
          %v2540 = vunpack.c.l.b16 %v2521
          %v2541 = vunpack.c.h.b16 %v2521
          %v2542 = vunpack.c.l.b16 %v2522
          %v2543 = vunpack.c.h.b16 %v2522
          %v2544 = vunpack.c.l.b16 %v2523
          %v2545 = vunpack.c.h.b16 %v2523
          %v2546 = vunpack.c.l.b16 %v2524
          %v2547 = vunpack.c.h.b16 %v2524
          %v2548 = vunpack.c.l.b16 %v2525
          %v2549 = vunpack.c.h.b16 %v2525
          %v2550 = vpack.c.b16 %v2534, %v2534
          %v2551 = vpack.c.b16 %v2535, %v2535
          %v2552 = vpack.c.b16 %v2536, %v2536
          %v2553 = vpack.c.b16 %v2537, %v2537
          %v2554 = vpack.c.b16 %v2538, %v2538
          %v2555 = vpack.c.b16 %v2539, %v2539
          %v2556 = vpack.c.b16 %v2540, %v2540
          %v2557 = vpack.c.b16 %v2541, %v2541
          %v2558 = vpack.c.b16 %v2542, %v2542
          %v2559 = vpack.c.b16 %v2543, %v2543
          %v2560 = vpack.c.b16 %v2544, %v2544
          %v2561 = vpack.c.b16 %v2545, %v2545
          %v2562 = vpack.c.b16 %v2546, %v2546
          %v2563 = vpack.c.b16 %v2547, %v2547
          %v2564 = vpack.c.b16 %v2548, %v2548
          %v2565 = vpack.c.b16 %v2549, %v2549
          %2582 = vst [vmem:[%s947] sm:$0xf] %v2550
          %2583 = vst [vmem:[%s947 + $0x4] sm:$0xf] %v2551
          %2584 = vst [vmem:[%s947 + $0x8] sm:$0xf] %v2552
          %2585 = vst [vmem:[%s947 + $0xc] sm:$0xf] %v2553
          %2586 = vst [vmem:[%s947 + $0x10] sm:$0xf] %v2554
          %2587 = vst [vmem:[%s947 + $0x14] sm:$0xf] %v2555
          %2588 = vst [vmem:[%s947 + $0x18] sm:$0xf] %v2556
          %2589 = vst [vmem:[%s947 + $0x1c] sm:$0xf] %v2557
          %2590 = vst [vmem:[%s947 + $0x20] sm:$0xf] %v2558
          %2591 = vst [vmem:[%s947 + $0x24] sm:$0xf] %v2559
          %2592 = vst [vmem:[%s947 + $0x28] sm:$0xf] %v2560
          %2593 = vst [vmem:[%s947 + $0x2c] sm:$0xf] %v2561
          %2594 = vst [vmem:[%s947 + $0x30] sm:$0xf] %v2562
          %2595 = vst [vmem:[%s947 + $0x34] sm:$0xf] %v2563
          %2596 = vst [vmem:[%s947 + $0x38] sm:$0xf] %v2564
          %2597 = vst [vmem:[%s947 + $0x3c] sm:$0xf] %v2565
        $region108: #{critic_forward.7} parent=91 // pred_fallthru
          _
        %s2598 = sand.u32 %s141, 1
        %s2599 = sand.u32 %s141, 1
        %s2600 = smul.addr %s2599, 64
        %s2601 = scalar_lea.vmem [#allocation5], %s2600
        // Predicated region
        $region109: #{critic_forward.7} parent=91 // pred_check
          %p2602 = pneg %p151
        $region110: #{critic_forward.7} parent=91 // pred_check_branch
          %2604 = sbr.rel (%p2602) target = $region112
        $region111: #{critic_forward.7} parent=91 // pred_region
          %s2605 = smul.addr %s19, 4
          %s2606 = scalar_lea.vmem %s4, %s2605
          // Predicated region
          $region113: #{critic_forward.7} parent=111 // pred_check
            _
          $region114: #{critic_forward.7} parent=111 // pred_check_branch
            %2608 = sbr.rel (0) target = $region116
          $region115: #{critic_forward.7} parent=111 // pred_region
            // Predicated region
            $region117: #{critic_forward.7} parent=115 // pred_check
              _
            $region118: #{critic_forward.7} parent=115 // pred_check_branch
              %2610 = sbr.rel target = $region120
            $region119: #{critic_forward.7} parent=115 // pred_region
              // Predicated region
              $region132: #{critic_forward.7} parent=119 // pred_check
                _
              $region133: #{critic_forward.7} parent=119 // pred_check_branch
                %2656 = sbr.rel (0) target = $region135
              $region134: #{critic_forward.7} parent=119 // pred_region
                loop: start=0, step=1, limit=1
                $region136: #{critic_forward.7} parent=134 // loop_pre_header
                  _
                $region137: #{critic_forward.7} parent=134 // loop_header
                  %s2658 = sphi 0, %s2662
                  %p2659 = scmp.ge.s32.totalorder %s2658, 1
                  %s2663 = sphi %s2601, %s2601
                  %s2664 = sphi %s2606, %s2606
                $region138: #{critic_forward.7} parent=134 // loop_header_branch
                  %2661 = sbr.rel (%p2659) target = $region142
                $region139: #{critic_forward.7} parent=134 // loop_body
                  _
                $region140: #{critic_forward.7} parent=134 // loop_footer
                  %s2662 = sadd.s32 1, %s2658
                $region141: #{critic_forward.7} parent=134 // loop_footer_branch
                  %2657 = sbr.rel target = $region137
                $region142: #{critic_forward.7} parent=134 // loop_exit
                  _
                %s2666 = ssub.s32 16, 1
                loop: start=0, step=1, limit=1
                $region143: #{critic_forward.7} parent=134 // loop_pre_header
                  _
                $region144: #{critic_forward.7} parent=134 // loop_header
                  %s2668 = sphi 0, %s2672
                  %p2669 = scmp.ge.s32.totalorder %s2668, 1
                  %s2673 = sphi %s2601, %s2601
                  %s2674 = sphi %s2606, %s2606
                $region145: #{critic_forward.7} parent=134 // loop_header_branch
                  %2671 = sbr.rel (%p2669) target = $region149
                $region146: #{critic_forward.7} parent=134 // loop_body
                  %v2675 = vld [vmem:[%s2673] sm:%s2666]
                  %2676 = vst [vmem:[%s2674] sm:%s2666] %v2675
                  %v2677 = vld [vmem:[%s2673 + $0x4] sm:%s2666]
                  %2678 = vst [vmem:[%s2674 + $0x8] sm:%s2666] %v2677
                  %v2679 = vld [vmem:[%s2673 + $0x8] sm:%s2666]
                  %2680 = vst [vmem:[%s2674 + $0x10] sm:%s2666] %v2679
                  %v2681 = vld [vmem:[%s2673 + $0xc] sm:%s2666]
                  %2682 = vst [vmem:[%s2674 + $0x18] sm:%s2666] %v2681
                  %v2683 = vld [vmem:[%s2673 + $0x10] sm:%s2666]
                  %2684 = vst [vmem:[%s2674 + $0x20] sm:%s2666] %v2683
                  %v2685 = vld [vmem:[%s2673 + $0x14] sm:%s2666]
                  %2686 = vst [vmem:[%s2674 + $0x28] sm:%s2666] %v2685
                  %v2687 = vld [vmem:[%s2673 + $0x18] sm:%s2666]
                  %2688 = vst [vmem:[%s2674 + $0x30] sm:%s2666] %v2687
                  %v2689 = vld [vmem:[%s2673 + $0x1c] sm:%s2666]
                  %2690 = vst [vmem:[%s2674 + $0x38] sm:%s2666] %v2689
                  %v2691 = vld [vmem:[%s2673 + $0x20] sm:%s2666]
                  %2692 = vst [vmem:[%s2674 + $0x40] sm:%s2666] %v2691
                  %v2693 = vld [vmem:[%s2673 + $0x24] sm:%s2666]
                  %2694 = vst [vmem:[%s2674 + $0x48] sm:%s2666] %v2693
                  %v2695 = vld [vmem:[%s2673 + $0x28] sm:%s2666]
                  %2696 = vst [vmem:[%s2674 + $0x50] sm:%s2666] %v2695
                  %v2697 = vld [vmem:[%s2673 + $0x2c] sm:%s2666]
                  %2698 = vst [vmem:[%s2674 + $0x58] sm:%s2666] %v2697
                  %v2699 = vld [vmem:[%s2673 + $0x30] sm:%s2666]
                  %2700 = vst [vmem:[%s2674 + $0x60] sm:%s2666] %v2699
                  %v2701 = vld [vmem:[%s2673 + $0x34] sm:%s2666]
                  %2702 = vst [vmem:[%s2674 + $0x68] sm:%s2666] %v2701
                  %v2703 = vld [vmem:[%s2673 + $0x38] sm:%s2666]
                  %2704 = vst [vmem:[%s2674 + $0x70] sm:%s2666] %v2703
                  %v2705 = vld [vmem:[%s2673 + $0x3c] sm:%s2666]
                  %2706 = vst [vmem:[%s2674 + $0x78] sm:%s2666] %v2705
                $region147: #{critic_forward.7} parent=134 // loop_footer
                  %s2672 = sadd.s32 1, %s2668
                $region148: #{critic_forward.7} parent=134 // loop_footer_branch
                  %2667 = sbr.rel target = $region144
                $region149: #{critic_forward.7} parent=134 // loop_exit
                  _
              $region135: #{critic_forward.7} parent=119 // pred_fallthru
                _
            $region120: #{critic_forward.7} parent=115 // pred_fallthru
              _
            // Predicated region
            $region121: #{critic_forward.7} parent=115 // pred_check
              _
            $region122: #{critic_forward.7} parent=115 // pred_check_branch
              %2612 = sbr.rel (0) target = $region124
            $region123: #{critic_forward.7} parent=115 // pred_region
              %s2614 = ssub.s32 16, 1
              loop: start=0, step=1, limit=1
              $region125: #{critic_forward.7} parent=123 // loop_pre_header
                _
              $region126: #{critic_forward.7} parent=123 // loop_header
                %s2616 = sphi 0, %s2620
                %p2617 = scmp.ge.s32.totalorder %s2616, 1
                %s2621 = sphi %s2601, %s2601
                %s2622 = sphi %s2606, %s2606
              $region127: #{critic_forward.7} parent=123 // loop_header_branch
                %2619 = sbr.rel (%p2617) target = $region131
              $region128: #{critic_forward.7} parent=123 // loop_body
                %v2623 = vld [vmem:[%s2621] sm:%s2614]
                %2624 = vst [vmem:[%s2622] sm:%s2614] %v2623
                %v2625 = vld [vmem:[%s2621 + $0x4] sm:%s2614]
                %2626 = vst [vmem:[%s2622 + $0x8] sm:%s2614] %v2625
                %v2627 = vld [vmem:[%s2621 + $0x8] sm:%s2614]
                %2628 = vst [vmem:[%s2622 + $0x10] sm:%s2614] %v2627
                %v2629 = vld [vmem:[%s2621 + $0xc] sm:%s2614]
                %2630 = vst [vmem:[%s2622 + $0x18] sm:%s2614] %v2629
                %v2631 = vld [vmem:[%s2621 + $0x10] sm:%s2614]
                %2632 = vst [vmem:[%s2622 + $0x20] sm:%s2614] %v2631
                %v2633 = vld [vmem:[%s2621 + $0x14] sm:%s2614]
                %2634 = vst [vmem:[%s2622 + $0x28] sm:%s2614] %v2633
                %v2635 = vld [vmem:[%s2621 + $0x18] sm:%s2614]
                %2636 = vst [vmem:[%s2622 + $0x30] sm:%s2614] %v2635
                %v2637 = vld [vmem:[%s2621 + $0x1c] sm:%s2614]
                %2638 = vst [vmem:[%s2622 + $0x38] sm:%s2614] %v2637
                %v2639 = vld [vmem:[%s2621 + $0x20] sm:%s2614]
                %2640 = vst [vmem:[%s2622 + $0x40] sm:%s2614] %v2639
                %v2641 = vld [vmem:[%s2621 + $0x24] sm:%s2614]
                %2642 = vst [vmem:[%s2622 + $0x48] sm:%s2614] %v2641
                %v2643 = vld [vmem:[%s2621 + $0x28] sm:%s2614]
                %2644 = vst [vmem:[%s2622 + $0x50] sm:%s2614] %v2643
                %v2645 = vld [vmem:[%s2621 + $0x2c] sm:%s2614]
                %2646 = vst [vmem:[%s2622 + $0x58] sm:%s2614] %v2645
                %v2647 = vld [vmem:[%s2621 + $0x30] sm:%s2614]
                %2648 = vst [vmem:[%s2622 + $0x60] sm:%s2614] %v2647
                %v2649 = vld [vmem:[%s2621 + $0x34] sm:%s2614]
                %2650 = vst [vmem:[%s2622 + $0x68] sm:%s2614] %v2649
                %v2651 = vld [vmem:[%s2621 + $0x38] sm:%s2614]
                %2652 = vst [vmem:[%s2622 + $0x70] sm:%s2614] %v2651
                %v2653 = vld [vmem:[%s2621 + $0x3c] sm:%s2614]
                %2654 = vst [vmem:[%s2622 + $0x78] sm:%s2614] %v2653
              $region129: #{critic_forward.7} parent=123 // loop_footer
                %s2620 = sadd.s32 1, %s2616
              $region130: #{critic_forward.7} parent=123 // loop_footer_branch
                %2615 = sbr.rel target = $region126
              $region131: #{critic_forward.7} parent=123 // loop_exit
                _
            $region124: #{critic_forward.7} parent=115 // pred_fallthru
              _
          $region116: #{critic_forward.7} parent=111 // pred_fallthru
            _
          %2707 = vnop
        $region112: #{critic_forward.7} parent=91 // pred_fallthru
          _
      $region92: #{critic_forward.7} parent=5 // pred_fallthru
        _
      %p2708 = scmp.le.s32.totalorder 2, %s10
      // Predicated region
      $region150: #{critic_forward.7} parent=5 // pred_check
        %p2709 = pneg %p2708
      $region151: #{critic_forward.7} parent=5 // pred_check_branch
        %2711 = sbr.rel (%p2709) target = $region153
      $region152: #{critic_forward.7} parent=5 // pred_region
        %s2712 = ssub.s32 %s10, 2
        // Predicated region
        $region154: #{critic_forward.7} parent=152 // pred_check
          %p2713 = pneg %p157
        $region155: #{critic_forward.7} parent=152 // pred_check_branch
          %2715 = sbr.rel (%p2713) target = $region157
        $region156: #{critic_forward.7} parent=152 // pred_region
          %s2716 = sand.u32 %s142, 1
          %s2717 = sand.u32 %s142, 1
          %s2718 = smul.addr %s2717, 64
          %s2719 = scalar_lea.vmem [#allocation5], %s2718
        $region157: #{critic_forward.7} parent=152 // pred_fallthru
          _
      $region153: #{critic_forward.7} parent=5 // pred_fallthru
        _
    $region6: #{critic_forward.7} parent=1 // loop_footer
      %s14 = sadd.s32 1, %s10
    $region7: #{critic_forward.7} parent=1 // loop_footer_branch
      %9 = sbr.rel target = $region3
    $region8: #{critic_forward.7} parent=1 // loop_exit
      _

// kernel: critic_forward.9
$region0: #{critic_forward.9}
  #allocation0 [shape = 'u32[]', space=smem, size = 0x4, offset = 0x4, fixed_abs, tag = 'smem constant byte address 0x4 - core index']
  #allocation1 [shape = 'u32[144,128]{1,0:T(1,128)}', space=vmem, size = 0x12000, scoped, tag = 'internal scratch']
  %s0 = inlined_call_operand.vmem [shape: bf16[8,8192], index: 0, kind: input, shape index: {}]
  %s1 = inlined_call_operand.vmem [shape: bf16[1,8192], index: 1, kind: input, shape index: {}]
  %s2 = inlined_call_operand.vmem [shape: f32[8,1], index: 2, kind: output, shape index: {}]
  %s3 = sld [smem:[#allocation0]]
  $region18: #{critic_forward.9} parent=0
    _
  %s5 = ssub.s32 1, %s3
  %s6 = scalar_select 0, %s5, %s3
  // Predicated region
  $region2: #{critic_forward.9} parent=0 // pred_check
    _
  $region3: #{critic_forward.9} parent=0 // pred_check_branch
    %8 = sbr.rel (0) target = $region5
  $region4: #{critic_forward.9} parent=0 // pred_region
    _
  $region5: #{critic_forward.9} parent=0 // pred_fallthru
    _
  // Predicated region
  $region6: #{critic_forward.9} parent=0 // pred_check
    _
  $region7: #{critic_forward.9} parent=0 // pred_check_branch
    %10 = sbr.rel (0) target = $region9
  $region8: #{critic_forward.9} parent=0 // pred_region
    _
  $region9: #{critic_forward.9} parent=0 // pred_fallthru
    _
  %v11 = vld [vmem:[%s0] sm:$0xff]
  %v12 = vld [vmem:[%s0 + $0x8] sm:$0xff]
  %v13 = vld [vmem:[%s0 + $0x10] sm:$0xff]
  %v14 = vld [vmem:[%s0 + $0x18] sm:$0xff]
  %v15 = vld [vmem:[%s0 + $0x20] sm:$0xff]
  %v16 = vld [vmem:[%s0 + $0x28] sm:$0xff]
  %v17 = vld [vmem:[%s0 + $0x30] sm:$0xff]
  %v18 = vld [vmem:[%s0 + $0x38] sm:$0xff]
  %v19 = vld [vmem:[%s0 + $0x40] sm:$0xff]
  %v20 = vld [vmem:[%s0 + $0x48] sm:$0xff]
  %v21 = vld [vmem:[%s0 + $0x50] sm:$0xff]
  %v22 = vld [vmem:[%s0 + $0x58] sm:$0xff]
  %v23 = vld [vmem:[%s0 + $0x60] sm:$0xff]
  %v24 = vld [vmem:[%s0 + $0x68] sm:$0xff]
  %v25 = vld [vmem:[%s0 + $0x70] sm:$0xff]
  %v26 = vld [vmem:[%s0 + $0x78] sm:$0xff]
  %v27 = vld [vmem:[%s0 + $0x80] sm:$0xff]
  %v28 = vld [vmem:[%s0 + $0x88] sm:$0xff]
  %v29 = vld [vmem:[%s0 + $0x90] sm:$0xff]
  %v30 = vld [vmem:[%s0 + $0x98] sm:$0xff]
  %v31 = vld [vmem:[%s0 + $0xa0] sm:$0xff]
  %v32 = vld [vmem:[%s0 + $0xa8] sm:$0xff]
  %v33 = vld [vmem:[%s0 + $0xb0] sm:$0xff]
  %v34 = vld [vmem:[%s0 + $0xb8] sm:$0xff]
  %v35 = vld [vmem:[%s0 + $0xc0] sm:$0xff]
  %v36 = vld [vmem:[%s0 + $0xc8] sm:$0xff]
  %v37 = vld [vmem:[%s0 + $0xd0] sm:$0xff]
  %v38 = vld [vmem:[%s0 + $0xd8] sm:$0xff]
  %v39 = vld [vmem:[%s0 + $0xe0] sm:$0xff]
  %v40 = vld [vmem:[%s0 + $0xe8] sm:$0xff]
  %v41 = vld [vmem:[%s0 + $0xf0] sm:$0xff]
  %v42 = vld [vmem:[%s0 + $0xf8] sm:$0xff]
  %v43 = vunpack.c.l.bf16 %v11
  %v44 = vunpack.c.h.bf16 %v11
  %v45 = vunpack.c.l.bf16 %v12
  %v46 = vunpack.c.h.bf16 %v12
  %v47 = vunpack.c.l.bf16 %v13
  %v48 = vunpack.c.h.bf16 %v13
  %v49 = vunpack.c.l.bf16 %v14
  %v50 = vunpack.c.h.bf16 %v14
  %v51 = vunpack.c.l.bf16 %v15
  %v52 = vunpack.c.h.bf16 %v15
  %v53 = vunpack.c.l.bf16 %v16
  %v54 = vunpack.c.h.bf16 %v16
  %v55 = vunpack.c.l.bf16 %v17
  %v56 = vunpack.c.h.bf16 %v17
  %v57 = vunpack.c.l.bf16 %v18
  %v58 = vunpack.c.h.bf16 %v18
  %v59 = vunpack.c.l.bf16 %v19
  %v60 = vunpack.c.h.bf16 %v19
  %v61 = vunpack.c.l.bf16 %v20
  %v62 = vunpack.c.h.bf16 %v20
  %v63 = vunpack.c.l.bf16 %v21
  %v64 = vunpack.c.h.bf16 %v21
  %v65 = vunpack.c.l.bf16 %v22
  %v66 = vunpack.c.h.bf16 %v22
  %v67 = vunpack.c.l.bf16 %v23
  %v68 = vunpack.c.h.bf16 %v23
  %v69 = vunpack.c.l.bf16 %v24
  %v70 = vunpack.c.h.bf16 %v24
  %v71 = vunpack.c.l.bf16 %v25
  %v72 = vunpack.c.h.bf16 %v25
  %v73 = vunpack.c.l.bf16 %v26
  %v74 = vunpack.c.h.bf16 %v26
  %v75 = vunpack.c.l.bf16 %v27
  %v76 = vunpack.c.h.bf16 %v27
  %v77 = vunpack.c.l.bf16 %v28
  %v78 = vunpack.c.h.bf16 %v28
  %v79 = vunpack.c.l.bf16 %v29
  %v80 = vunpack.c.h.bf16 %v29
  %v81 = vunpack.c.l.bf16 %v30
  %v82 = vunpack.c.h.bf16 %v30
  %v83 = vunpack.c.l.bf16 %v31
  %v84 = vunpack.c.h.bf16 %v31
  %v85 = vunpack.c.l.bf16 %v32
  %v86 = vunpack.c.h.bf16 %v32
  %v87 = vunpack.c.l.bf16 %v33
  %v88 = vunpack.c.h.bf16 %v33
  %v89 = vunpack.c.l.bf16 %v34
  %v90 = vunpack.c.h.bf16 %v34
  %v91 = vunpack.c.l.bf16 %v35
  %v92 = vunpack.c.h.bf16 %v35
  %v93 = vunpack.c.l.bf16 %v36
  %v94 = vunpack.c.h.bf16 %v36
  %v95 = vunpack.c.l.bf16 %v37
  %v96 = vunpack.c.h.bf16 %v37
  %v97 = vunpack.c.l.bf16 %v38
  %v98 = vunpack.c.h.bf16 %v38
  %v99 = vunpack.c.l.bf16 %v39
  %v100 = vunpack.c.h.bf16 %v39
  %v101 = vunpack.c.l.bf16 %v40
  %v102 = vunpack.c.h.bf16 %v40
  %v103 = vunpack.c.l.bf16 %v41
  %v104 = vunpack.c.h.bf16 %v41
  %v105 = vunpack.c.l.bf16 %v42
  %v106 = vunpack.c.h.bf16 %v42
  %v107 = vld [vmem:[%s1] sm:$0xff]
  %v108 = vld [vmem:[%s1 + $0x8] sm:$0xff]
  %v109 = vld [vmem:[%s1 + $0x10] sm:$0xff]
  %v110 = vld [vmem:[%s1 + $0x18] sm:$0xff]
  %v111 = vld [vmem:[%s1 + $0x20] sm:$0xff]
  %v112 = vld [vmem:[%s1 + $0x28] sm:$0xff]
  %v113 = vld [vmem:[%s1 + $0x30] sm:$0xff]
  %v114 = vld [vmem:[%s1 + $0x38] sm:$0xff]
  %v115 = vunpack.c.l.bf16 %v107
  %v116 = vunpack.c.h.bf16 %v107
  %v117 = vunpack.c.l.bf16 %v108
  %v118 = vunpack.c.h.bf16 %v108
  %v119 = vunpack.c.l.bf16 %v109
  %v120 = vunpack.c.h.bf16 %v109
  %v121 = vunpack.c.l.bf16 %v110
  %v122 = vunpack.c.h.bf16 %v110
  %v123 = vunpack.c.l.bf16 %v111
  %v124 = vunpack.c.h.bf16 %v111
  %v125 = vunpack.c.l.bf16 %v112
  %v126 = vunpack.c.h.bf16 %v112
  %v127 = vunpack.c.l.bf16 %v113
  %v128 = vunpack.c.h.bf16 %v113
  %v129 = vunpack.c.l.bf16 %v114
  %v130 = vunpack.c.h.bf16 %v114
  %v147 = vlaneseq
  %v148 = vshrl.u32 %v147, 7
  %v149 = vsub.s32 0, %v148
  %v150 = vrot.slane %v115, %v149
  %v151 = vlaneseq
  %v152 = vshrl.u32 %v151, 7
  %v153 = vsub.s32 2, %v152
  %v154 = vrot.slane %v115, %v153
  %v155 = vlaneseq
  %v156 = vshrl.u32 %v155, 7
  %v157 = vsub.s32 4, %v156
  %v158 = vrot.slane %v115, %v157
  %v159 = vlaneseq
  %v160 = vshrl.u32 %v159, 7
  %v161 = vsub.s32 6, %v160
  %v162 = vrot.slane %v115, %v161
  %v163 = vlaneseq
  %v164 = vshrl.u32 %v163, 7
  %v165 = vsub.s32 0, %v164
  %v166 = vrot.slane %v116, %v165
  %v167 = vlaneseq
  %v168 = vshrl.u32 %v167, 7
  %v169 = vsub.s32 2, %v168
  %v170 = vrot.slane %v116, %v169
  %v171 = vlaneseq
  %v172 = vshrl.u32 %v171, 7
  %v173 = vsub.s32 4, %v172
  %v174 = vrot.slane %v116, %v173
  %v175 = vlaneseq
  %v176 = vshrl.u32 %v175, 7
  %v177 = vsub.s32 6, %v176
  %v178 = vrot.slane %v116, %v177
  %v179 = vlaneseq
  %v180 = vshrl.u32 %v179, 7
  %v181 = vsub.s32 0, %v180
  %v182 = vrot.slane %v117, %v181
  %v183 = vlaneseq
  %v184 = vshrl.u32 %v183, 7
  %v185 = vsub.s32 2, %v184
  %v186 = vrot.slane %v117, %v185
  %v187 = vlaneseq
  %v188 = vshrl.u32 %v187, 7
  %v189 = vsub.s32 4, %v188
  %v190 = vrot.slane %v117, %v189
  %v191 = vlaneseq
  %v192 = vshrl.u32 %v191, 7
  %v193 = vsub.s32 6, %v192
  %v194 = vrot.slane %v117, %v193
  %v195 = vlaneseq
  %v196 = vshrl.u32 %v195, 7
  %v197 = vsub.s32 0, %v196
  %v198 = vrot.slane %v118, %v197
  %v199 = vlaneseq
  %v200 = vshrl.u32 %v199, 7
  %v201 = vsub.s32 2, %v200
  %v202 = vrot.slane %v118, %v201
  %v203 = vlaneseq
  %v204 = vshrl.u32 %v203, 7
  %v205 = vsub.s32 4, %v204
  %v206 = vrot.slane %v118, %v205
  %v207 = vlaneseq
  %v208 = vshrl.u32 %v207, 7
  %v209 = vsub.s32 6, %v208
  %v210 = vrot.slane %v118, %v209
  %v211 = vlaneseq
  %v212 = vshrl.u32 %v211, 7
  %v213 = vsub.s32 0, %v212
  %v214 = vrot.slane %v119, %v213
  %v215 = vlaneseq
  %v216 = vshrl.u32 %v215, 7
  %v217 = vsub.s32 2, %v216
  %v218 = vrot.slane %v119, %v217
  %v219 = vlaneseq
  %v220 = vshrl.u32 %v219, 7
  %v221 = vsub.s32 4, %v220
  %v222 = vrot.slane %v119, %v221
  %v223 = vlaneseq
  %v224 = vshrl.u32 %v223, 7
  %v225 = vsub.s32 6, %v224
  %v226 = vrot.slane %v119, %v225
  %v227 = vlaneseq
  %v228 = vshrl.u32 %v227, 7
  %v229 = vsub.s32 0, %v228
  %v230 = vrot.slane %v120, %v229
  %v231 = vlaneseq
  %v232 = vshrl.u32 %v231, 7
  %v233 = vsub.s32 2, %v232
  %v234 = vrot.slane %v120, %v233
  %v235 = vlaneseq
  %v236 = vshrl.u32 %v235, 7
  %v237 = vsub.s32 4, %v236
  %v238 = vrot.slane %v120, %v237
  %v239 = vlaneseq
  %v240 = vshrl.u32 %v239, 7
  %v241 = vsub.s32 6, %v240
  %v242 = vrot.slane %v120, %v241
  %v243 = vlaneseq
  %v244 = vshrl.u32 %v243, 7
  %v245 = vsub.s32 0, %v244
  %v246 = vrot.slane %v121, %v245
  %v247 = vlaneseq
  %v248 = vshrl.u32 %v247, 7
  %v249 = vsub.s32 2, %v248
  %v250 = vrot.slane %v121, %v249
  %v251 = vlaneseq
  %v252 = vshrl.u32 %v251, 7
  %v253 = vsub.s32 4, %v252
  %v254 = vrot.slane %v121, %v253
  %v255 = vlaneseq
  %v256 = vshrl.u32 %v255, 7
  %v257 = vsub.s32 6, %v256
  %v258 = vrot.slane %v121, %v257
  %v259 = vlaneseq
  %v260 = vshrl.u32 %v259, 7
  %v261 = vsub.s32 0, %v260
  %v262 = vrot.slane %v122, %v261
  %v263 = vlaneseq
  %v264 = vshrl.u32 %v263, 7
  %v265 = vsub.s32 2, %v264
  %v266 = vrot.slane %v122, %v265
  %v267 = vlaneseq
  %v268 = vshrl.u32 %v267, 7
  %v269 = vsub.s32 4, %v268
  %v270 = vrot.slane %v122, %v269
  %v271 = vlaneseq
  %v272 = vshrl.u32 %v271, 7
  %v273 = vsub.s32 6, %v272
  %v274 = vrot.slane %v122, %v273
  %v275 = vlaneseq
  %v276 = vshrl.u32 %v275, 7
  %v277 = vsub.s32 0, %v276
  %v278 = vrot.slane %v123, %v277
  %v279 = vlaneseq
  %v280 = vshrl.u32 %v279, 7
  %v281 = vsub.s32 2, %v280
  %v282 = vrot.slane %v123, %v281
  %v283 = vlaneseq
  %v284 = vshrl.u32 %v283, 7
  %v285 = vsub.s32 4, %v284
  %v286 = vrot.slane %v123, %v285
  %v287 = vlaneseq
  %v288 = vshrl.u32 %v287, 7
  %v289 = vsub.s32 6, %v288
  %v290 = vrot.slane %v123, %v289
  %v291 = vlaneseq
  %v292 = vshrl.u32 %v291, 7
  %v293 = vsub.s32 0, %v292
  %v294 = vrot.slane %v124, %v293
  %v295 = vlaneseq
  %v296 = vshrl.u32 %v295, 7
  %v297 = vsub.s32 2, %v296
  %v298 = vrot.slane %v124, %v297
  %v299 = vlaneseq
  %v300 = vshrl.u32 %v299, 7
  %v301 = vsub.s32 4, %v300
  %v302 = vrot.slane %v124, %v301
  %v303 = vlaneseq
  %v304 = vshrl.u32 %v303, 7
  %v305 = vsub.s32 6, %v304
  %v306 = vrot.slane %v124, %v305
  %v307 = vlaneseq
  %v308 = vshrl.u32 %v307, 7
  %v309 = vsub.s32 0, %v308
  %v310 = vrot.slane %v125, %v309
  %v311 = vlaneseq
  %v312 = vshrl.u32 %v311, 7
  %v313 = vsub.s32 2, %v312
  %v314 = vrot.slane %v125, %v313
  %v315 = vlaneseq
  %v316 = vshrl.u32 %v315, 7
  %v317 = vsub.s32 4, %v316
  %v318 = vrot.slane %v125, %v317
  %v319 = vlaneseq
  %v320 = vshrl.u32 %v319, 7
  %v321 = vsub.s32 6, %v320
  %v322 = vrot.slane %v125, %v321
  %v323 = vlaneseq
  %v324 = vshrl.u32 %v323, 7
  %v325 = vsub.s32 0, %v324
  %v326 = vrot.slane %v126, %v325
  %v327 = vlaneseq
  %v328 = vshrl.u32 %v327, 7
  %v329 = vsub.s32 2, %v328
  %v330 = vrot.slane %v126, %v329
  %v331 = vlaneseq
  %v332 = vshrl.u32 %v331, 7
  %v333 = vsub.s32 4, %v332
  %v334 = vrot.slane %v126, %v333
  %v335 = vlaneseq
  %v336 = vshrl.u32 %v335, 7
  %v337 = vsub.s32 6, %v336
  %v338 = vrot.slane %v126, %v337
  %v339 = vlaneseq
  %v340 = vshrl.u32 %v339, 7
  %v341 = vsub.s32 0, %v340
  %v342 = vrot.slane %v127, %v341
  %v343 = vlaneseq
  %v344 = vshrl.u32 %v343, 7
  %v345 = vsub.s32 2, %v344
  %v346 = vrot.slane %v127, %v345
  %v347 = vlaneseq
  %v348 = vshrl.u32 %v347, 7
  %v349 = vsub.s32 4, %v348
  %v350 = vrot.slane %v127, %v349
  %v351 = vlaneseq
  %v352 = vshrl.u32 %v351, 7
  %v353 = vsub.s32 6, %v352
  %v354 = vrot.slane %v127, %v353
  %v355 = vlaneseq
  %v356 = vshrl.u32 %v355, 7
  %v357 = vsub.s32 0, %v356
  %v358 = vrot.slane %v128, %v357
  %v359 = vlaneseq
  %v360 = vshrl.u32 %v359, 7
  %v361 = vsub.s32 2, %v360
  %v362 = vrot.slane %v128, %v361
  %v363 = vlaneseq
  %v364 = vshrl.u32 %v363, 7
  %v365 = vsub.s32 4, %v364
  %v366 = vrot.slane %v128, %v365
  %v367 = vlaneseq
  %v368 = vshrl.u32 %v367, 7
  %v369 = vsub.s32 6, %v368
  %v370 = vrot.slane %v128, %v369
  %v371 = vlaneseq
  %v372 = vshrl.u32 %v371, 7
  %v373 = vsub.s32 0, %v372
  %v374 = vrot.slane %v129, %v373
  %v375 = vlaneseq
  %v376 = vshrl.u32 %v375, 7
  %v377 = vsub.s32 2, %v376
  %v378 = vrot.slane %v129, %v377
  %v379 = vlaneseq
  %v380 = vshrl.u32 %v379, 7
  %v381 = vsub.s32 4, %v380
  %v382 = vrot.slane %v129, %v381
  %v383 = vlaneseq
  %v384 = vshrl.u32 %v383, 7
  %v385 = vsub.s32 6, %v384
  %v386 = vrot.slane %v129, %v385
  %v387 = vlaneseq
  %v388 = vshrl.u32 %v387, 7
  %v389 = vsub.s32 0, %v388
  %v390 = vrot.slane %v130, %v389
  %v391 = vlaneseq
  %v392 = vshrl.u32 %v391, 7
  %v393 = vsub.s32 2, %v392
  %v394 = vrot.slane %v130, %v393
  %v395 = vlaneseq
  %v396 = vshrl.u32 %v395, 7
  %v397 = vsub.s32 4, %v396
  %v398 = vrot.slane %v130, %v397
  %v399 = vlaneseq
  %v400 = vshrl.u32 %v399, 7
  %v401 = vsub.s32 6, %v400
  %v402 = vrot.slane %v130, %v401
  %v467 = vlaneseq
  %v468 = vshrl.u32 %v467, 7
  %v469 = vsub.s32 0, %v468
  %v470 = vrot.slane %v150, %v469
  %v471 = vlaneseq
  %v472 = vshrl.u32 %v471, 7
  %v473 = vsub.s32 0, %v472
  %v474 = vrot.slane %v154, %v473
  %v475 = vlaneseq
  %v476 = vshrl.u32 %v475, 7
  %v477 = vsub.s32 0, %v476
  %v478 = vrot.slane %v158, %v477
  %v479 = vlaneseq
  %v480 = vshrl.u32 %v479, 7
  %v481 = vsub.s32 0, %v480
  %v482 = vrot.slane %v162, %v481
  %v483 = vlaneseq
  %v484 = vshrl.u32 %v483, 7
  %v485 = vsub.s32 0, %v484
  %v486 = vrot.slane %v166, %v485
  %v487 = vlaneseq
  %v488 = vshrl.u32 %v487, 7
  %v489 = vsub.s32 0, %v488
  %v490 = vrot.slane %v170, %v489
  %v491 = vlaneseq
  %v492 = vshrl.u32 %v491, 7
  %v493 = vsub.s32 0, %v492
  %v494 = vrot.slane %v174, %v493
  %v495 = vlaneseq
  %v496 = vshrl.u32 %v495, 7
  %v497 = vsub.s32 0, %v496
  %v498 = vrot.slane %v178, %v497
  %v499 = vlaneseq
  %v500 = vshrl.u32 %v499, 7
  %v501 = vsub.s32 0, %v500
  %v502 = vrot.slane %v182, %v501
  %v503 = vlaneseq
  %v504 = vshrl.u32 %v503, 7
  %v505 = vsub.s32 0, %v504
  %v506 = vrot.slane %v186, %v505
  %v507 = vlaneseq
  %v508 = vshrl.u32 %v507, 7
  %v509 = vsub.s32 0, %v508
  %v510 = vrot.slane %v190, %v509
  %v511 = vlaneseq
  %v512 = vshrl.u32 %v511, 7
  %v513 = vsub.s32 0, %v512
  %v514 = vrot.slane %v194, %v513
  %v515 = vlaneseq
  %v516 = vshrl.u32 %v515, 7
  %v517 = vsub.s32 0, %v516
  %v518 = vrot.slane %v198, %v517
  %v519 = vlaneseq
  %v520 = vshrl.u32 %v519, 7
  %v521 = vsub.s32 0, %v520
  %v522 = vrot.slane %v202, %v521
  %v523 = vlaneseq
  %v524 = vshrl.u32 %v523, 7
  %v525 = vsub.s32 0, %v524
  %v526 = vrot.slane %v206, %v525
  %v527 = vlaneseq
  %v528 = vshrl.u32 %v527, 7
  %v529 = vsub.s32 0, %v528
  %v530 = vrot.slane %v210, %v529
  %v531 = vlaneseq
  %v532 = vshrl.u32 %v531, 7
  %v533 = vsub.s32 0, %v532
  %v534 = vrot.slane %v214, %v533
  %v535 = vlaneseq
  %v536 = vshrl.u32 %v535, 7
  %v537 = vsub.s32 0, %v536
  %v538 = vrot.slane %v218, %v537
  %v539 = vlaneseq
  %v540 = vshrl.u32 %v539, 7
  %v541 = vsub.s32 0, %v540
  %v542 = vrot.slane %v222, %v541
  %v543 = vlaneseq
  %v544 = vshrl.u32 %v543, 7
  %v545 = vsub.s32 0, %v544
  %v546 = vrot.slane %v226, %v545
  %v547 = vlaneseq
  %v548 = vshrl.u32 %v547, 7
  %v549 = vsub.s32 0, %v548
  %v550 = vrot.slane %v230, %v549
  %v551 = vlaneseq
  %v552 = vshrl.u32 %v551, 7
  %v553 = vsub.s32 0, %v552
  %v554 = vrot.slane %v234, %v553
  %v555 = vlaneseq
  %v556 = vshrl.u32 %v555, 7
  %v557 = vsub.s32 0, %v556
  %v558 = vrot.slane %v238, %v557
  %v559 = vlaneseq
  %v560 = vshrl.u32 %v559, 7
  %v561 = vsub.s32 0, %v560
  %v562 = vrot.slane %v242, %v561
  %v563 = vlaneseq
  %v564 = vshrl.u32 %v563, 7
  %v565 = vsub.s32 0, %v564
  %v566 = vrot.slane %v246, %v565
  %v567 = vlaneseq
  %v568 = vshrl.u32 %v567, 7
  %v569 = vsub.s32 0, %v568
  %v570 = vrot.slane %v250, %v569
  %v571 = vlaneseq
  %v572 = vshrl.u32 %v571, 7
  %v573 = vsub.s32 0, %v572
  %v574 = vrot.slane %v254, %v573
  %v575 = vlaneseq
  %v576 = vshrl.u32 %v575, 7
  %v577 = vsub.s32 0, %v576
  %v578 = vrot.slane %v258, %v577
  %v579 = vlaneseq
  %v580 = vshrl.u32 %v579, 7
  %v581 = vsub.s32 0, %v580
  %v582 = vrot.slane %v262, %v581
  %v583 = vlaneseq
  %v584 = vshrl.u32 %v583, 7
  %v585 = vsub.s32 0, %v584
  %v586 = vrot.slane %v266, %v585
  %v587 = vlaneseq
  %v588 = vshrl.u32 %v587, 7
  %v589 = vsub.s32 0, %v588
  %v590 = vrot.slane %v270, %v589
  %v591 = vlaneseq
  %v592 = vshrl.u32 %v591, 7
  %v593 = vsub.s32 0, %v592
  %v594 = vrot.slane %v274, %v593
  %v595 = vlaneseq
  %v596 = vshrl.u32 %v595, 7
  %v597 = vsub.s32 0, %v596
  %v598 = vrot.slane %v278, %v597
  %v599 = vlaneseq
  %v600 = vshrl.u32 %v599, 7
  %v601 = vsub.s32 0, %v600
  %v602 = vrot.slane %v282, %v601
  %v603 = vlaneseq
  %v604 = vshrl.u32 %v603, 7
  %v605 = vsub.s32 0, %v604
  %v606 = vrot.slane %v286, %v605
  %v607 = vlaneseq
  %v608 = vshrl.u32 %v607, 7
  %v609 = vsub.s32 0, %v608
  %v610 = vrot.slane %v290, %v609
  %v611 = vlaneseq
  %v612 = vshrl.u32 %v611, 7
  %v613 = vsub.s32 0, %v612
  %v614 = vrot.slane %v294, %v613
  %v615 = vlaneseq
  %v616 = vshrl.u32 %v615, 7
  %v617 = vsub.s32 0, %v616
  %v618 = vrot.slane %v298, %v617
  %v619 = vlaneseq
  %v620 = vshrl.u32 %v619, 7
  %v621 = vsub.s32 0, %v620
  %v622 = vrot.slane %v302, %v621
  %v623 = vlaneseq
  %v624 = vshrl.u32 %v623, 7
  %v625 = vsub.s32 0, %v624
  %v626 = vrot.slane %v306, %v625
  %v627 = vlaneseq
  %v628 = vshrl.u32 %v627, 7
  %v629 = vsub.s32 0, %v628
  %v630 = vrot.slane %v310, %v629
  %v631 = vlaneseq
  %v632 = vshrl.u32 %v631, 7
  %v633 = vsub.s32 0, %v632
  %v634 = vrot.slane %v314, %v633
  %v635 = vlaneseq
  %v636 = vshrl.u32 %v635, 7
  %v637 = vsub.s32 0, %v636
  %v638 = vrot.slane %v318, %v637
  %v639 = vlaneseq
  %v640 = vshrl.u32 %v639, 7
  %v641 = vsub.s32 0, %v640
  %v642 = vrot.slane %v322, %v641
  %v643 = vlaneseq
  %v644 = vshrl.u32 %v643, 7
  %v645 = vsub.s32 0, %v644
  %v646 = vrot.slane %v326, %v645
  %v647 = vlaneseq
  %v648 = vshrl.u32 %v647, 7
  %v649 = vsub.s32 0, %v648
  %v650 = vrot.slane %v330, %v649
  %v651 = vlaneseq
  %v652 = vshrl.u32 %v651, 7
  %v653 = vsub.s32 0, %v652
  %v654 = vrot.slane %v334, %v653
  %v655 = vlaneseq
  %v656 = vshrl.u32 %v655, 7
  %v657 = vsub.s32 0, %v656
  %v658 = vrot.slane %v338, %v657
  %v659 = vlaneseq
  %v660 = vshrl.u32 %v659, 7
  %v661 = vsub.s32 0, %v660
  %v662 = vrot.slane %v342, %v661
  %v663 = vlaneseq
  %v664 = vshrl.u32 %v663, 7
  %v665 = vsub.s32 0, %v664
  %v666 = vrot.slane %v346, %v665
  %v667 = vlaneseq
  %v668 = vshrl.u32 %v667, 7
  %v669 = vsub.s32 0, %v668
  %v670 = vrot.slane %v350, %v669
  %v671 = vlaneseq
  %v672 = vshrl.u32 %v671, 7
  %v673 = vsub.s32 0, %v672
  %v674 = vrot.slane %v354, %v673
  %v675 = vlaneseq
  %v676 = vshrl.u32 %v675, 7
  %v677 = vsub.s32 0, %v676
  %v678 = vrot.slane %v358, %v677
  %v679 = vlaneseq
  %v680 = vshrl.u32 %v679, 7
  %v681 = vsub.s32 0, %v680
  %v682 = vrot.slane %v362, %v681
  %v683 = vlaneseq
  %v684 = vshrl.u32 %v683, 7
  %v685 = vsub.s32 0, %v684
  %v686 = vrot.slane %v366, %v685
  %v687 = vlaneseq
  %v688 = vshrl.u32 %v687, 7
  %v689 = vsub.s32 0, %v688
  %v690 = vrot.slane %v370, %v689
  %v691 = vlaneseq
  %v692 = vshrl.u32 %v691, 7
  %v693 = vsub.s32 0, %v692
  %v694 = vrot.slane %v374, %v693
  %v695 = vlaneseq
  %v696 = vshrl.u32 %v695, 7
  %v697 = vsub.s32 0, %v696
  %v698 = vrot.slane %v378, %v697
  %v699 = vlaneseq
  %v700 = vshrl.u32 %v699, 7
  %v701 = vsub.s32 0, %v700
  %v702 = vrot.slane %v382, %v701
  %v703 = vlaneseq
  %v704 = vshrl.u32 %v703, 7
  %v705 = vsub.s32 0, %v704
  %v706 = vrot.slane %v386, %v705
  %v707 = vlaneseq
  %v708 = vshrl.u32 %v707, 7
  %v709 = vsub.s32 0, %v708
  %v710 = vrot.slane %v390, %v709
  %v711 = vlaneseq
  %v712 = vshrl.u32 %v711, 7
  %v713 = vsub.s32 0, %v712
  %v714 = vrot.slane %v394, %v713
  %v715 = vlaneseq
  %v716 = vshrl.u32 %v715, 7
  %v717 = vsub.s32 0, %v716
  %v718 = vrot.slane %v398, %v717
  %v719 = vlaneseq
  %v720 = vshrl.u32 %v719, 7
  %v721 = vsub.s32 0, %v720
  %v722 = vrot.slane %v402, %v721
  %v723 = vmul.f32 %v43, %v470
  %v724 = vmul.f32 %v44, %v474
  %v725 = vmul.f32 %v45, %v478
  %v726 = vmul.f32 %v46, %v482
  %v727 = vmul.f32 %v47, %v486
  %v728 = vmul.f32 %v48, %v490
  %v729 = vmul.f32 %v49, %v494
  %v730 = vmul.f32 %v50, %v498
  %v731 = vmul.f32 %v51, %v502
  %v732 = vmul.f32 %v52, %v506
  %v733 = vmul.f32 %v53, %v510
  %v734 = vmul.f32 %v54, %v514
  %v735 = vmul.f32 %v55, %v518
  %v736 = vmul.f32 %v56, %v522
  %v737 = vmul.f32 %v57, %v526
  %v738 = vmul.f32 %v58, %v530
  %v739 = vmul.f32 %v59, %v534
  %v740 = vmul.f32 %v60, %v538
  %v741 = vmul.f32 %v61, %v542
  %v742 = vmul.f32 %v62, %v546
  %v743 = vmul.f32 %v63, %v550
  %v744 = vmul.f32 %v64, %v554
  %v745 = vmul.f32 %v65, %v558
  %v746 = vmul.f32 %v66, %v562
  %v747 = vmul.f32 %v67, %v566
  %v748 = vmul.f32 %v68, %v570
  %v749 = vmul.f32 %v69, %v574
  %v750 = vmul.f32 %v70, %v578
  %v751 = vmul.f32 %v71, %v582
  %v752 = vmul.f32 %v72, %v586
  %v753 = vmul.f32 %v73, %v590
  %v754 = vmul.f32 %v74, %v594
  %v755 = vmul.f32 %v75, %v598
  %v756 = vmul.f32 %v76, %v602
  %v757 = vmul.f32 %v77, %v606
  %v758 = vmul.f32 %v78, %v610
  %v759 = vmul.f32 %v79, %v614
  %v760 = vmul.f32 %v80, %v618
  %v761 = vmul.f32 %v81, %v622
  %v762 = vmul.f32 %v82, %v626
  %v763 = vmul.f32 %v83, %v630
  %v764 = vmul.f32 %v84, %v634
  %v765 = vmul.f32 %v85, %v638
  %v766 = vmul.f32 %v86, %v642
  %v767 = vmul.f32 %v87, %v646
  %v768 = vmul.f32 %v88, %v650
  %v769 = vmul.f32 %v89, %v654
  %v770 = vmul.f32 %v90, %v658
  %v771 = vmul.f32 %v91, %v662
  %v772 = vmul.f32 %v92, %v666
  %v773 = vmul.f32 %v93, %v670
  %v774 = vmul.f32 %v94, %v674
  %v775 = vmul.f32 %v95, %v678
  %v776 = vmul.f32 %v96, %v682
  %v777 = vmul.f32 %v97, %v686
  %v778 = vmul.f32 %v98, %v690
  %v779 = vmul.f32 %v99, %v694
  %v780 = vmul.f32 %v100, %v698
  %v781 = vmul.f32 %v101, %v702
  %v782 = vmul.f32 %v102, %v706
  %v783 = vmul.f32 %v103, %v710
  %v784 = vmul.f32 %v104, %v714
  %v785 = vmul.f32 %v105, %v718
  %v786 = vmul.f32 %v106, %v722
  %v787 = vadd.f32 %v723, %v724
  %v788 = vadd.f32 %v787, %v725
  %v789 = vadd.f32 %v788, %v726
  %v790 = vadd.f32 %v789, %v727
  %v791 = vadd.f32 %v790, %v728
  %v792 = vadd.f32 %v791, %v729
  %v793 = vadd.f32 %v792, %v730
  %v794 = vadd.f32 %v793, %v731
  %v795 = vadd.f32 %v794, %v732
  %v796 = vadd.f32 %v795, %v733
  %v797 = vadd.f32 %v796, %v734
  %v798 = vadd.f32 %v797, %v735
  %v799 = vadd.f32 %v798, %v736
  %v800 = vadd.f32 %v799, %v737
  %v801 = vadd.f32 %v800, %v738
  %v802 = vadd.f32 %v801, %v739
  %v803 = vadd.f32 %v802, %v740
  %v804 = vadd.f32 %v803, %v741
  %v805 = vadd.f32 %v804, %v742
  %v806 = vadd.f32 %v805, %v743
  %v807 = vadd.f32 %v806, %v744
  %v808 = vadd.f32 %v807, %v745
  %v809 = vadd.f32 %v808, %v746
  %v810 = vadd.f32 %v809, %v747
  %v811 = vadd.f32 %v810, %v748
  %v812 = vadd.f32 %v811, %v749
  %v813 = vadd.f32 %v812, %v750
  %v814 = vadd.f32 %v813, %v751
  %v815 = vadd.f32 %v814, %v752
  %v816 = vadd.f32 %v815, %v753
  %v817 = vadd.f32 %v816, %v754
  %v818 = vadd.f32 %v817, %v755
  %v819 = vadd.f32 %v818, %v756
  %v820 = vadd.f32 %v819, %v757
  %v821 = vadd.f32 %v820, %v758
  %v822 = vadd.f32 %v821, %v759
  %v823 = vadd.f32 %v822, %v760
  %v824 = vadd.f32 %v823, %v761
  %v825 = vadd.f32 %v824, %v762
  %v826 = vadd.f32 %v825, %v763
  %v827 = vadd.f32 %v826, %v764
  %v828 = vadd.f32 %v827, %v765
  %v829 = vadd.f32 %v828, %v766
  %v830 = vadd.f32 %v829, %v767
  %v831 = vadd.f32 %v830, %v768
  %v832 = vadd.f32 %v831, %v769
  %v833 = vadd.f32 %v832, %v770
  %v834 = vadd.f32 %v833, %v771
  %v835 = vadd.f32 %v834, %v772
  %v836 = vadd.f32 %v835, %v773
  %v837 = vadd.f32 %v836, %v774
  %v838 = vadd.f32 %v837, %v775
  %v839 = vadd.f32 %v838, %v776
  %v840 = vadd.f32 %v839, %v777
  %v841 = vadd.f32 %v840, %v778
  %v842 = vadd.f32 %v841, %v779
  %v843 = vadd.f32 %v842, %v780
  %v844 = vadd.f32 %v843, %v781
  %v845 = vadd.f32 %v844, %v782
  %v846 = vadd.f32 %v845, %v783
  %v847 = vadd.f32 %v846, %v784
  %v848 = vadd.f32 %v847, %v785
  %v849 = vadd.f32 %v848, %v786
  %850 = vadd.xlane.f32.xlu0 %v849
  %v851 = vpop.xlane.xlu0 %850
  %vm852 = vcmask 7168
  %853 = vst.msk [vmem:[%s2] sm:$0xff] %vm852, %v851
  // Predicated region
  $region10: #{critic_forward.9} parent=0 // pred_check
    _
  $region11: #{critic_forward.9} parent=0 // pred_check_branch
    %855 = sbr.rel (0) target = $region13
  $region12: #{critic_forward.9} parent=0 // pred_region
    _
  $region13: #{critic_forward.9} parent=0 // pred_fallthru
    _
  // Predicated region
  $region14: #{critic_forward.9} parent=0 // pred_check
    _
  $region15: #{critic_forward.9} parent=0 // pred_check_branch
    %857 = sbr.rel (0) target = $region17
  $region16: #{critic_forward.9} parent=0 // pred_region
    _
  $region17: #{critic_forward.9} parent=0 // pred_fallthru
    _

// kernel: critic_forward.8
$region0: #{critic_forward.8}
  #allocation0 [shape = 'u32[]', space=smem, size = 0x4, offset = 0x4, fixed_abs, tag = 'smem constant byte address 0x4 - core index']
  #allocation1 [shape = 'u32[144,128]{1,0:T(1,128)}', space=vmem, size = 0x12000, scoped, tag = 'internal scratch']
  #allocation2 [shape = 'f32[32,256]{1,0:T(8,128)}', space=vmem, size = 0x8000, scoped, tag = 'scratch operand']
  %s0 = inlined_call_operand.vmem [shape: bf16[32,4096], index: 0, kind: input, shape index: {}]
  %s1 = inlined_call_operand.vmem [shape: bf16[4096,512], index: 1, kind: input, shape index: {}]
  %s2 = inlined_call_operand.vmem [shape: f32[1,512], index: 2, kind: input, shape index: {}]
  %s3 = inlined_call_operand.vmem [shape: f32[1,512], index: 3, kind: input, shape index: {}]
  %s4 = inlined_call_operand.vmem [shape: bf16[32,512], index: 4, kind: output, shape index: {}]
  %s5 = sld [smem:[#allocation0]]
  $region152: #{critic_forward.8} parent=0
    _
  %s7 = ssub.s32 1, %s5
  %s8 = scalar_select 0, %s7, %s5
  $region1: #{critic_forward.8} parent=0
    #allocation3 [shape = 'u8[131072]{0}', space=vmem, size = 0x20000, scoped, tag = 'input window, operand 0']
    #allocation4 [shape = 'u8[1048576]{0}', space=vmem, size = 0x100000, scoped, tag = 'input window, operand 1']
    #allocation5 [shape = 'u8[32768]{0}', space=vmem, size = 0x8000, scoped, tag = 'output window, operand 0']
    loop: start=0, step=1, limit=10
    $region2: #{critic_forward.8} parent=1 // loop_pre_header
      _
    $region3: #{critic_forward.8} parent=1 // loop_header
      %s10 = sphi 0, %s14
      %p11 = scmp.ge.s32.totalorder %s10, 10
      %s17 = sphi 0, %s29
      %s18 = sphi 0, %s25
      %s19 = sphi 0, %s17
      %s20 = sphi 0, %s18
      %s21 = sphi 0, %s19
      %s22 = sphi 0, %s20
      %s32 = sphi 0, %s34
      %s35 = sphi 0, %s32
      %s36 = sphi 0, %s35
      %s52 = sphi 0, %s36
      %s60 = sphi 0, %s62
      %s63 = sphi 0, %s60
      %s64 = sphi 0, %s63
      %s80 = sphi 0, %s64
      %s86 = sphi 0, %s88
      %s89 = sphi 0, %s86
      %s90 = sphi 0, %s89
      %s106 = sphi 0, %s90
      %s112 = sphi 0, %s114
      %s115 = sphi 0, %s112
      %s116 = sphi 0, %s115
      %s132 = sphi 0, %s116
      %s138 = sphi 0, %s140
      %s141 = sphi 0, %s138
      %s142 = sphi 0, %s141
      %s158 = sphi 0, %s142
    $region4: #{critic_forward.8} parent=1 // loop_header_branch
      %13 = sbr.rel (%p11) target = $region8
    $region5: #{critic_forward.8} parent=1 // loop_body
      %s15 = ssub.s32 %s10, 1
      %s16 = ssub.s32 %s10, 2
      %s23 = sadd.s32 1, %s18
      %p24 = scmp.ge.s32.totalorder %s23, 4
      %s25 = scalar_select %p24, 0, %s23
      %s26 = sadd.s32 1, %s17
      %s27 = scalar_select %p24, %s26, %s17
      %p28 = scmp.ge.s32.totalorder %s27, 2
      %s29 = scalar_select %p28, 0, %s27
      %s30 = ssub.s32 %s18, %s25
      %p31 = scmp.eq.s32.totalorder %s30, 0
      %s33 = sadd.s32 %s32, 1
      %s34 = scalar_select %p31, %s32, %s33
      %p37 = pneg %p31
      %p38 = scmp.eq.s32.totalorder %s10, 7
      %p39 = por %p37, %p38
      %p40 = scmp.ne.s32.totalorder %s32, %s35
      %p41 = scmp.eq.s32.totalorder %s10, 0
      %p42 = por %p40, %p41
      %p43 = scmp.ne.s32.totalorder %s32, %s35
      %p44 = scmp.eq.s32.totalorder %s15, 7
      %p45 = por %p43, %p44
      %p46 = scmp.ne.s32.totalorder %s35, %s36
      %p47 = scmp.eq.s32.totalorder %s15, 0
      %p48 = por %p46, %p47
      %p49 = scmp.ne.s32.totalorder %s35, %s36
      %p50 = scmp.eq.s32.totalorder %s16, 7
      %p51 = por %p49, %p50
      %p53 = scmp.ne.s32.totalorder %s36, %s52
      %p54 = scmp.eq.s32.totalorder %s16, 0
      %p55 = por %p53, %p54
      %s56 = ssub.s32 %s18, %s25
      %s57 = ssub.s32 %s17, %s29
      %s58 = sor.u32 %s56, %s57
      %p59 = scmp.eq.s32.totalorder %s58, 0
      %s61 = sadd.s32 %s60, 1
      %s62 = scalar_select %p59, %s60, %s61
      %p65 = pneg %p59
      %p66 = scmp.eq.s32.totalorder %s10, 7
      %p67 = por %p65, %p66
      %p68 = scmp.ne.s32.totalorder %s60, %s63
      %p69 = scmp.eq.s32.totalorder %s10, 0
      %p70 = por %p68, %p69
      %p71 = scmp.ne.s32.totalorder %s60, %s63
      %p72 = scmp.eq.s32.totalorder %s15, 7
      %p73 = por %p71, %p72
      %p74 = scmp.ne.s32.totalorder %s63, %s64
      %p75 = scmp.eq.s32.totalorder %s15, 0
      %p76 = por %p74, %p75
      %p77 = scmp.ne.s32.totalorder %s63, %s64
      %p78 = scmp.eq.s32.totalorder %s16, 7
      %p79 = por %p77, %p78
      %p81 = scmp.ne.s32.totalorder %s64, %s80
      %p82 = scmp.eq.s32.totalorder %s16, 0
      %p83 = por %p81, %p82
      %s84 = ssub.s32 %s17, %s29
      %p85 = scmp.eq.s32.totalorder %s84, 0
      %s87 = sadd.s32 %s86, 1
      %s88 = scalar_select %p85, %s86, %s87
      %p91 = pneg %p85
      %p92 = scmp.eq.s32.totalorder %s10, 7
      %p93 = por %p91, %p92
      %p94 = scmp.ne.s32.totalorder %s86, %s89
      %p95 = scmp.eq.s32.totalorder %s10, 0
      %p96 = por %p94, %p95
      %p97 = scmp.ne.s32.totalorder %s86, %s89
      %p98 = scmp.eq.s32.totalorder %s15, 7
      %p99 = por %p97, %p98
      %p100 = scmp.ne.s32.totalorder %s89, %s90
      %p101 = scmp.eq.s32.totalorder %s15, 0
      %p102 = por %p100, %p101
      %p103 = scmp.ne.s32.totalorder %s89, %s90
      %p104 = scmp.eq.s32.totalorder %s16, 7
      %p105 = por %p103, %p104
      %p107 = scmp.ne.s32.totalorder %s90, %s106
      %p108 = scmp.eq.s32.totalorder %s16, 0
      %p109 = por %p107, %p108
      %s110 = ssub.s32 %s17, %s29
      %p111 = scmp.eq.s32.totalorder %s110, 0
      %s113 = sadd.s32 %s112, 1
      %s114 = scalar_select %p111, %s112, %s113
      %p117 = pneg %p111
      %p118 = scmp.eq.s32.totalorder %s10, 7
      %p119 = por %p117, %p118
      %p120 = scmp.ne.s32.totalorder %s112, %s115
      %p121 = scmp.eq.s32.totalorder %s10, 0
      %p122 = por %p120, %p121
      %p123 = scmp.ne.s32.totalorder %s112, %s115
      %p124 = scmp.eq.s32.totalorder %s15, 7
      %p125 = por %p123, %p124
      %p126 = scmp.ne.s32.totalorder %s115, %s116
      %p127 = scmp.eq.s32.totalorder %s15, 0
      %p128 = por %p126, %p127
      %p129 = scmp.ne.s32.totalorder %s115, %s116
      %p130 = scmp.eq.s32.totalorder %s16, 7
      %p131 = por %p129, %p130
      %p133 = scmp.ne.s32.totalorder %s116, %s132
      %p134 = scmp.eq.s32.totalorder %s16, 0
      %p135 = por %p133, %p134
      %s136 = ssub.s32 %s17, %s29
      %p137 = scmp.eq.s32.totalorder %s136, 0
      %s139 = sadd.s32 %s138, 1
      %s140 = scalar_select %p137, %s138, %s139
      %p143 = pneg %p137
      %p144 = scmp.eq.s32.totalorder %s10, 7
      %p145 = por %p143, %p144
      %p146 = scmp.ne.s32.totalorder %s138, %s141
      %p147 = scmp.eq.s32.totalorder %s10, 0
      %p148 = por %p146, %p147
      %p149 = scmp.ne.s32.totalorder %s138, %s141
      %p150 = scmp.eq.s32.totalorder %s15, 7
      %p151 = por %p149, %p150
      %p152 = scmp.ne.s32.totalorder %s141, %s142
      %p153 = scmp.eq.s32.totalorder %s15, 0
      %p154 = por %p152, %p153
      %p155 = scmp.ne.s32.totalorder %s141, %s142
      %p156 = scmp.eq.s32.totalorder %s16, 7
      %p157 = por %p155, %p156
      %p159 = scmp.ne.s32.totalorder %s142, %s158
      %p160 = scmp.eq.s32.totalorder %s16, 0
      %p161 = por %p159, %p160
      %p162 = scmp.le.s32.totalorder 1, %s10
      %p163 = scmp.lt.s32.totalorder %s10, 9
      %p164 = pnand %p162, %p163
      %p165 = pneg %p164
      // Predicated region
      $region9: #{critic_forward.8} parent=5 // pred_check
        _
      $region10: #{critic_forward.8} parent=5 // pred_check_branch
        %167 = sbr.rel (%p164) target = $region12
      $region11: #{critic_forward.8} parent=5 // pred_region
        %s168 = ssub.s32 %s10, 1
      $region12: #{critic_forward.8} parent=5 // pred_fallthru
        _
      %p169 = scmp.lt.s32.totalorder %s10, 8
      // Predicated region
      $region13: #{critic_forward.8} parent=5 // pred_check
        %p170 = pneg %p169
      $region14: #{critic_forward.8} parent=5 // pred_check_branch
        %172 = sbr.rel (%p170) target = $region16
      $region15: #{critic_forward.8} parent=5 // pred_region
        // Predicated region
        $region17: #{critic_forward.8} parent=15 // pred_check
          %p173 = pneg %p42
        $region18: #{critic_forward.8} parent=15 // pred_check_branch
          %175 = sbr.rel (%p173) target = $region20
        $region19: #{critic_forward.8} parent=15 // pred_region
          %s176 = sand.u32 %s32, 1
          %s177 = sand.u32 %s32, 1
          %s178 = smul.addr %s177, 128
          %s179 = scalar_lea.vmem [#allocation3], %s178
          %s180 = smul.u32 8, %s18
          %s181 = smul.addr %s180, 4
          %s182 = scalar_lea.vmem %s0, %s181
          // Predicated region
          $region21: #{critic_forward.8} parent=19 // pred_check
            _
          $region22: #{critic_forward.8} parent=19 // pred_check_branch
            %184 = sbr.rel (0) target = $region24
          $region23: #{critic_forward.8} parent=19 // pred_region
            // Predicated region
            $region25: #{critic_forward.8} parent=23 // pred_check
              _
            $region26: #{critic_forward.8} parent=23 // pred_check_branch
              %186 = sbr.rel (0) target = $region28
            $region27: #{critic_forward.8} parent=23 // pred_region
              loop: start=0, step=1, limit=1
              $region29: #{critic_forward.8} parent=27 // loop_pre_header
                _
              $region30: #{critic_forward.8} parent=27 // loop_header
                %s188 = sphi 0, %s192
                %p189 = scmp.ge.s32.totalorder %s188, 1
                %s193 = sphi %s182, %s182
                %s194 = sphi %s179, %s179
              $region31: #{critic_forward.8} parent=27 // loop_header_branch
                %191 = sbr.rel (%p189) target = $region35
              $region32: #{critic_forward.8} parent=27 // loop_body
                %v195 = vld [vmem:[%s193] sm:$0xff]
                %196 = vst [vmem:[%s194] sm:$0xff] %v195
                %v197 = vld [vmem:[%s193 + $0x8] sm:$0xff]
                %198 = vst [vmem:[%s194 + $0x8] sm:$0xff] %v197
                %v199 = vld [vmem:[%s193 + $0x10] sm:$0xff]
                %200 = vst [vmem:[%s194 + $0x10] sm:$0xff] %v199
                %v201 = vld [vmem:[%s193 + $0x18] sm:$0xff]
                %202 = vst [vmem:[%s194 + $0x18] sm:$0xff] %v201
                %v203 = vld [vmem:[%s193 + $0x80] sm:$0xff]
                %204 = vst [vmem:[%s194 + $0x20] sm:$0xff] %v203
                %v205 = vld [vmem:[%s193 + $0x88] sm:$0xff]
                %206 = vst [vmem:[%s194 + $0x28] sm:$0xff] %v205
                %v207 = vld [vmem:[%s193 + $0x90] sm:$0xff]
                %208 = vst [vmem:[%s194 + $0x30] sm:$0xff] %v207
                %v209 = vld [vmem:[%s193 + $0x98] sm:$0xff]
                %210 = vst [vmem:[%s194 + $0x38] sm:$0xff] %v209
                %v211 = vld [vmem:[%s193 + $0x100] sm:$0xff]
                %212 = vst [vmem:[%s194 + $0x40] sm:$0xff] %v211
                %v213 = vld [vmem:[%s193 + $0x108] sm:$0xff]
                %214 = vst [vmem:[%s194 + $0x48] sm:$0xff] %v213
                %v215 = vld [vmem:[%s193 + $0x110] sm:$0xff]
                %216 = vst [vmem:[%s194 + $0x50] sm:$0xff] %v215
                %v217 = vld [vmem:[%s193 + $0x118] sm:$0xff]
                %218 = vst [vmem:[%s194 + $0x58] sm:$0xff] %v217
                %v219 = vld [vmem:[%s193 + $0x180] sm:$0xff]
                %220 = vst [vmem:[%s194 + $0x60] sm:$0xff] %v219
                %v221 = vld [vmem:[%s193 + $0x188] sm:$0xff]
                %222 = vst [vmem:[%s194 + $0x68] sm:$0xff] %v221
                %v223 = vld [vmem:[%s193 + $0x190] sm:$0xff]
                %224 = vst [vmem:[%s194 + $0x70] sm:$0xff] %v223
                %v225 = vld [vmem:[%s193 + $0x198] sm:$0xff]
                %226 = vst [vmem:[%s194 + $0x78] sm:$0xff] %v225
              $region33: #{critic_forward.8} parent=27 // loop_footer
                %s192 = sadd.s32 1, %s188
              $region34: #{critic_forward.8} parent=27 // loop_footer_branch
                %187 = sbr.rel target = $region30
              $region35: #{critic_forward.8} parent=27 // loop_exit
                _
            $region28: #{critic_forward.8} parent=23 // pred_fallthru
              _
            // Predicated region
            $region36: #{critic_forward.8} parent=23 // pred_check
              _
            $region37: #{critic_forward.8} parent=23 // pred_check_branch
              %228 = sbr.rel target = $region39
            $region38: #{critic_forward.8} parent=23 // pred_region
              _
            $region39: #{critic_forward.8} parent=23 // pred_fallthru
              _
          $region24: #{critic_forward.8} parent=19 // pred_fallthru
            _
          %229 = vnop
        $region20: #{critic_forward.8} parent=15 // pred_fallthru
          _
        // Predicated region
        $region40: #{critic_forward.8} parent=15 // pred_check
          %p230 = pneg %p70
        $region41: #{critic_forward.8} parent=15 // pred_check_branch
          %232 = sbr.rel (%p230) target = $region43
        $region42: #{critic_forward.8} parent=15 // pred_region
          %s233 = sand.u32 %s60, 1
          %s234 = sand.u32 %s60, 1
          %s235 = smul.addr %s234, 1024
          %s236 = scalar_lea.vmem [#allocation4], %s235
          %s237 = smul.u32 128, %s18
          %s238 = smul.u32 2, %s17
          %s239 = smul.addr %s237, 4
          %s240 = sadd.s32 %s238, %s239
          %s241 = smul.addr %s240, 4
          %s242 = scalar_lea.vmem %s1, %s241
          // Predicated region
          $region44: #{critic_forward.8} parent=42 // pred_check
            _
          $region45: #{critic_forward.8} parent=42 // pred_check_branch
            %244 = sbr.rel (0) target = $region47
          $region46: #{critic_forward.8} parent=42 // pred_region
            // Predicated region
            $region48: #{critic_forward.8} parent=46 // pred_check
              _
            $region49: #{critic_forward.8} parent=46 // pred_check_branch
              %246 = sbr.rel (0) target = $region51
            $region50: #{critic_forward.8} parent=46 // pred_region
              // Predicated region
              $region63: #{critic_forward.8} parent=50 // pred_check
                _
              $region64: #{critic_forward.8} parent=50 // pred_check_branch
                %516 = sbr.rel (0) target = $region66
              $region65: #{critic_forward.8} parent=50 // pred_region
                loop: start=0, step=1, limit=1
                $region67: #{critic_forward.8} parent=65 // loop_pre_header
                  _
                $region68: #{critic_forward.8} parent=65 // loop_header
                  %s518 = sphi 0, %s522
                  %p519 = scmp.ge.s32.totalorder %s518, 1
                  %s523 = sphi %s242, %s242
                  %s524 = sphi %s236, %s236
                $region69: #{critic_forward.8} parent=65 // loop_header_branch
                  %521 = sbr.rel (%p519) target = $region73
                $region70: #{critic_forward.8} parent=65 // loop_body
                  %v525 = vld [vmem:[%s523] sm:$0xff]
                  %526 = vst [vmem:[%s524] sm:$0xff] %v525
                  %v527 = vld [vmem:[%s523 + $0x10] sm:$0xff]
                  %528 = vst [vmem:[%s524 + $0x8] sm:$0xff] %v527
                  %v529 = vld [vmem:[%s523 + $0x20] sm:$0xff]
                  %530 = vst [vmem:[%s524 + $0x10] sm:$0xff] %v529
                  %v531 = vld [vmem:[%s523 + $0x30] sm:$0xff]
                  %532 = vst [vmem:[%s524 + $0x18] sm:$0xff] %v531
                  %v533 = vld [vmem:[%s523 + $0x40] sm:$0xff]
                  %534 = vst [vmem:[%s524 + $0x20] sm:$0xff] %v533
                  %v535 = vld [vmem:[%s523 + $0x50] sm:$0xff]
                  %536 = vst [vmem:[%s524 + $0x28] sm:$0xff] %v535
                  %v537 = vld [vmem:[%s523 + $0x60] sm:$0xff]
                  %538 = vst [vmem:[%s524 + $0x30] sm:$0xff] %v537
                  %v539 = vld [vmem:[%s523 + $0x70] sm:$0xff]
                  %540 = vst [vmem:[%s524 + $0x38] sm:$0xff] %v539
                  %v541 = vld [vmem:[%s523 + $0x80] sm:$0xff]
                  %542 = vst [vmem:[%s524 + $0x40] sm:$0xff] %v541
                  %v543 = vld [vmem:[%s523 + $0x90] sm:$0xff]
                  %544 = vst [vmem:[%s524 + $0x48] sm:$0xff] %v543
                  %v545 = vld [vmem:[%s523 + $0xa0] sm:$0xff]
                  %546 = vst [vmem:[%s524 + $0x50] sm:$0xff] %v545
                  %v547 = vld [vmem:[%s523 + $0xb0] sm:$0xff]
                  %548 = vst [vmem:[%s524 + $0x58] sm:$0xff] %v547
                  %v549 = vld [vmem:[%s523 + $0xc0] sm:$0xff]
                  %550 = vst [vmem:[%s524 + $0x60] sm:$0xff] %v549
                  %v551 = vld [vmem:[%s523 + $0xd0] sm:$0xff]
                  %552 = vst [vmem:[%s524 + $0x68] sm:$0xff] %v551
                  %v553 = vld [vmem:[%s523 + $0xe0] sm:$0xff]
                  %554 = vst [vmem:[%s524 + $0x70] sm:$0xff] %v553
                  %v555 = vld [vmem:[%s523 + $0xf0] sm:$0xff]
                  %556 = vst [vmem:[%s524 + $0x78] sm:$0xff] %v555
                  %v557 = vld [vmem:[%s523 + $0x100] sm:$0xff]
                  %558 = vst [vmem:[%s524 + $0x80] sm:$0xff] %v557
                  %v559 = vld [vmem:[%s523 + $0x110] sm:$0xff]
                  %560 = vst [vmem:[%s524 + $0x88] sm:$0xff] %v559
                  %v561 = vld [vmem:[%s523 + $0x120] sm:$0xff]
                  %562 = vst [vmem:[%s524 + $0x90] sm:$0xff] %v561
                  %v563 = vld [vmem:[%s523 + $0x130] sm:$0xff]
                  %564 = vst [vmem:[%s524 + $0x98] sm:$0xff] %v563
                  %v565 = vld [vmem:[%s523 + $0x140] sm:$0xff]
                  %566 = vst [vmem:[%s524 + $0xa0] sm:$0xff] %v565
                  %v567 = vld [vmem:[%s523 + $0x150] sm:$0xff]
                  %568 = vst [vmem:[%s524 + $0xa8] sm:$0xff] %v567
                  %v569 = vld [vmem:[%s523 + $0x160] sm:$0xff]
                  %570 = vst [vmem:[%s524 + $0xb0] sm:$0xff] %v569
                  %v571 = vld [vmem:[%s523 + $0x170] sm:$0xff]
                  %572 = vst [vmem:[%s524 + $0xb8] sm:$0xff] %v571
                  %v573 = vld [vmem:[%s523 + $0x180] sm:$0xff]
                  %574 = vst [vmem:[%s524 + $0xc0] sm:$0xff] %v573
                  %v575 = vld [vmem:[%s523 + $0x190] sm:$0xff]
                  %576 = vst [vmem:[%s524 + $0xc8] sm:$0xff] %v575
                  %v577 = vld [vmem:[%s523 + $0x1a0] sm:$0xff]
                  %578 = vst [vmem:[%s524 + $0xd0] sm:$0xff] %v577
                  %v579 = vld [vmem:[%s523 + $0x1b0] sm:$0xff]
                  %580 = vst [vmem:[%s524 + $0xd8] sm:$0xff] %v579
                  %v581 = vld [vmem:[%s523 + $0x1c0] sm:$0xff]
                  %582 = vst [vmem:[%s524 + $0xe0] sm:$0xff] %v581
                  %v583 = vld [vmem:[%s523 + $0x1d0] sm:$0xff]
                  %584 = vst [vmem:[%s524 + $0xe8] sm:$0xff] %v583
                  %v585 = vld [vmem:[%s523 + $0x1e0] sm:$0xff]
                  %586 = vst [vmem:[%s524 + $0xf0] sm:$0xff] %v585
                  %v587 = vld [vmem:[%s523 + $0x1f0] sm:$0xff]
                  %588 = vst [vmem:[%s524 + $0xf8] sm:$0xff] %v587
                  %v589 = vld [vmem:[%s523 + $0x200] sm:$0xff]
                  %590 = vst [vmem:[%s524 + $0x100] sm:$0xff] %v589
                  %v591 = vld [vmem:[%s523 + $0x210] sm:$0xff]
                  %592 = vst [vmem:[%s524 + $0x108] sm:$0xff] %v591
                  %v593 = vld [vmem:[%s523 + $0x220] sm:$0xff]
                  %594 = vst [vmem:[%s524 + $0x110] sm:$0xff] %v593
                  %v595 = vld [vmem:[%s523 + $0x230] sm:$0xff]
                  %596 = vst [vmem:[%s524 + $0x118] sm:$0xff] %v595
                  %v597 = vld [vmem:[%s523 + $0x240] sm:$0xff]
                  %598 = vst [vmem:[%s524 + $0x120] sm:$0xff] %v597
                  %v599 = vld [vmem:[%s523 + $0x250] sm:$0xff]
                  %600 = vst [vmem:[%s524 + $0x128] sm:$0xff] %v599
                  %v601 = vld [vmem:[%s523 + $0x260] sm:$0xff]
                  %602 = vst [vmem:[%s524 + $0x130] sm:$0xff] %v601
                  %v603 = vld [vmem:[%s523 + $0x270] sm:$0xff]
                  %604 = vst [vmem:[%s524 + $0x138] sm:$0xff] %v603
                  %v605 = vld [vmem:[%s523 + $0x280] sm:$0xff]
                  %606 = vst [vmem:[%s524 + $0x140] sm:$0xff] %v605
                  %v607 = vld [vmem:[%s523 + $0x290] sm:$0xff]
                  %608 = vst [vmem:[%s524 + $0x148] sm:$0xff] %v607
                  %v609 = vld [vmem:[%s523 + $0x2a0] sm:$0xff]
                  %610 = vst [vmem:[%s524 + $0x150] sm:$0xff] %v609
                  %v611 = vld [vmem:[%s523 + $0x2b0] sm:$0xff]
                  %612 = vst [vmem:[%s524 + $0x158] sm:$0xff] %v611
                  %v613 = vld [vmem:[%s523 + $0x2c0] sm:$0xff]
                  %614 = vst [vmem:[%s524 + $0x160] sm:$0xff] %v613
                  %v615 = vld [vmem:[%s523 + $0x2d0] sm:$0xff]
                  %616 = vst [vmem:[%s524 + $0x168] sm:$0xff] %v615
                  %v617 = vld [vmem:[%s523 + $0x2e0] sm:$0xff]
                  %618 = vst [vmem:[%s524 + $0x170] sm:$0xff] %v617
                  %v619 = vld [vmem:[%s523 + $0x2f0] sm:$0xff]
                  %620 = vst [vmem:[%s524 + $0x178] sm:$0xff] %v619
                  %v621 = vld [vmem:[%s523 + $0x300] sm:$0xff]
                  %622 = vst [vmem:[%s524 + $0x180] sm:$0xff] %v621
                  %v623 = vld [vmem:[%s523 + $0x310] sm:$0xff]
                  %624 = vst [vmem:[%s524 + $0x188] sm:$0xff] %v623
                  %v625 = vld [vmem:[%s523 + $0x320] sm:$0xff]
                  %626 = vst [vmem:[%s524 + $0x190] sm:$0xff] %v625
                  %v627 = vld [vmem:[%s523 + $0x330] sm:$0xff]
                  %628 = vst [vmem:[%s524 + $0x198] sm:$0xff] %v627
                  %v629 = vld [vmem:[%s523 + $0x340] sm:$0xff]
                  %630 = vst [vmem:[%s524 + $0x1a0] sm:$0xff] %v629
                  %v631 = vld [vmem:[%s523 + $0x350] sm:$0xff]
                  %632 = vst [vmem:[%s524 + $0x1a8] sm:$0xff] %v631
                  %v633 = vld [vmem:[%s523 + $0x360] sm:$0xff]
                  %634 = vst [vmem:[%s524 + $0x1b0] sm:$0xff] %v633
                  %v635 = vld [vmem:[%s523 + $0x370] sm:$0xff]
                  %636 = vst [vmem:[%s524 + $0x1b8] sm:$0xff] %v635
                  %v637 = vld [vmem:[%s523 + $0x380] sm:$0xff]
                  %638 = vst [vmem:[%s524 + $0x1c0] sm:$0xff] %v637
                  %v639 = vld [vmem:[%s523 + $0x390] sm:$0xff]
                  %640 = vst [vmem:[%s524 + $0x1c8] sm:$0xff] %v639
                  %v641 = vld [vmem:[%s523 + $0x3a0] sm:$0xff]
                  %642 = vst [vmem:[%s524 + $0x1d0] sm:$0xff] %v641
                  %v643 = vld [vmem:[%s523 + $0x3b0] sm:$0xff]
                  %644 = vst [vmem:[%s524 + $0x1d8] sm:$0xff] %v643
                  %v645 = vld [vmem:[%s523 + $0x3c0] sm:$0xff]
                  %646 = vst [vmem:[%s524 + $0x1e0] sm:$0xff] %v645
                  %v647 = vld [vmem:[%s523 + $0x3d0] sm:$0xff]
                  %648 = vst [vmem:[%s524 + $0x1e8] sm:$0xff] %v647
                  %v649 = vld [vmem:[%s523 + $0x3e0] sm:$0xff]
                  %650 = vst [vmem:[%s524 + $0x1f0] sm:$0xff] %v649
                  %v651 = vld [vmem:[%s523 + $0x3f0] sm:$0xff]
                  %652 = vst [vmem:[%s524 + $0x1f8] sm:$0xff] %v651
                  %v653 = vld [vmem:[%s523 + $0x400] sm:$0xff]
                  %654 = vst [vmem:[%s524 + $0x200] sm:$0xff] %v653
                  %v655 = vld [vmem:[%s523 + $0x410] sm:$0xff]
                  %656 = vst [vmem:[%s524 + $0x208] sm:$0xff] %v655
                  %v657 = vld [vmem:[%s523 + $0x420] sm:$0xff]
                  %658 = vst [vmem:[%s524 + $0x210] sm:$0xff] %v657
                  %v659 = vld [vmem:[%s523 + $0x430] sm:$0xff]
                  %660 = vst [vmem:[%s524 + $0x218] sm:$0xff] %v659
                  %v661 = vld [vmem:[%s523 + $0x440] sm:$0xff]
                  %662 = vst [vmem:[%s524 + $0x220] sm:$0xff] %v661
                  %v663 = vld [vmem:[%s523 + $0x450] sm:$0xff]
                  %664 = vst [vmem:[%s524 + $0x228] sm:$0xff] %v663
                  %v665 = vld [vmem:[%s523 + $0x460] sm:$0xff]
                  %666 = vst [vmem:[%s524 + $0x230] sm:$0xff] %v665
                  %v667 = vld [vmem:[%s523 + $0x470] sm:$0xff]
                  %668 = vst [vmem:[%s524 + $0x238] sm:$0xff] %v667
                  %v669 = vld [vmem:[%s523 + $0x480] sm:$0xff]
                  %670 = vst [vmem:[%s524 + $0x240] sm:$0xff] %v669
                  %v671 = vld [vmem:[%s523 + $0x490] sm:$0xff]
                  %672 = vst [vmem:[%s524 + $0x248] sm:$0xff] %v671
                  %v673 = vld [vmem:[%s523 + $0x4a0] sm:$0xff]
                  %674 = vst [vmem:[%s524 + $0x250] sm:$0xff] %v673
                  %v675 = vld [vmem:[%s523 + $0x4b0] sm:$0xff]
                  %676 = vst [vmem:[%s524 + $0x258] sm:$0xff] %v675
                  %v677 = vld [vmem:[%s523 + $0x4c0] sm:$0xff]
                  %678 = vst [vmem:[%s524 + $0x260] sm:$0xff] %v677
                  %v679 = vld [vmem:[%s523 + $0x4d0] sm:$0xff]
                  %680 = vst [vmem:[%s524 + $0x268] sm:$0xff] %v679
                  %v681 = vld [vmem:[%s523 + $0x4e0] sm:$0xff]
                  %682 = vst [vmem:[%s524 + $0x270] sm:$0xff] %v681
                  %v683 = vld [vmem:[%s523 + $0x4f0] sm:$0xff]
                  %684 = vst [vmem:[%s524 + $0x278] sm:$0xff] %v683
                  %v685 = vld [vmem:[%s523 + $0x500] sm:$0xff]
                  %686 = vst [vmem:[%s524 + $0x280] sm:$0xff] %v685
                  %v687 = vld [vmem:[%s523 + $0x510] sm:$0xff]
                  %688 = vst [vmem:[%s524 + $0x288] sm:$0xff] %v687
                  %v689 = vld [vmem:[%s523 + $0x520] sm:$0xff]
                  %690 = vst [vmem:[%s524 + $0x290] sm:$0xff] %v689
                  %v691 = vld [vmem:[%s523 + $0x530] sm:$0xff]
                  %692 = vst [vmem:[%s524 + $0x298] sm:$0xff] %v691
                  %v693 = vld [vmem:[%s523 + $0x540] sm:$0xff]
                  %694 = vst [vmem:[%s524 + $0x2a0] sm:$0xff] %v693
                  %v695 = vld [vmem:[%s523 + $0x550] sm:$0xff]
                  %696 = vst [vmem:[%s524 + $0x2a8] sm:$0xff] %v695
                  %v697 = vld [vmem:[%s523 + $0x560] sm:$0xff]
                  %698 = vst [vmem:[%s524 + $0x2b0] sm:$0xff] %v697
                  %v699 = vld [vmem:[%s523 + $0x570] sm:$0xff]
                  %700 = vst [vmem:[%s524 + $0x2b8] sm:$0xff] %v699
                  %v701 = vld [vmem:[%s523 + $0x580] sm:$0xff]
                  %702 = vst [vmem:[%s524 + $0x2c0] sm:$0xff] %v701
                  %v703 = vld [vmem:[%s523 + $0x590] sm:$0xff]
                  %704 = vst [vmem:[%s524 + $0x2c8] sm:$0xff] %v703
                  %v705 = vld [vmem:[%s523 + $0x5a0] sm:$0xff]
                  %706 = vst [vmem:[%s524 + $0x2d0] sm:$0xff] %v705
                  %v707 = vld [vmem:[%s523 + $0x5b0] sm:$0xff]
                  %708 = vst [vmem:[%s524 + $0x2d8] sm:$0xff] %v707
                  %v709 = vld [vmem:[%s523 + $0x5c0] sm:$0xff]
                  %710 = vst [vmem:[%s524 + $0x2e0] sm:$0xff] %v709
                  %v711 = vld [vmem:[%s523 + $0x5d0] sm:$0xff]
                  %712 = vst [vmem:[%s524 + $0x2e8] sm:$0xff] %v711
                  %v713 = vld [vmem:[%s523 + $0x5e0] sm:$0xff]
                  %714 = vst [vmem:[%s524 + $0x2f0] sm:$0xff] %v713
                  %v715 = vld [vmem:[%s523 + $0x5f0] sm:$0xff]
                  %716 = vst [vmem:[%s524 + $0x2f8] sm:$0xff] %v715
                  %v717 = vld [vmem:[%s523 + $0x600] sm:$0xff]
                  %718 = vst [vmem:[%s524 + $0x300] sm:$0xff] %v717
                  %v719 = vld [vmem:[%s523 + $0x610] sm:$0xff]
                  %720 = vst [vmem:[%s524 + $0x308] sm:$0xff] %v719
                  %v721 = vld [vmem:[%s523 + $0x620] sm:$0xff]
                  %722 = vst [vmem:[%s524 + $0x310] sm:$0xff] %v721
                  %v723 = vld [vmem:[%s523 + $0x630] sm:$0xff]
                  %724 = vst [vmem:[%s524 + $0x318] sm:$0xff] %v723
                  %v725 = vld [vmem:[%s523 + $0x640] sm:$0xff]
                  %726 = vst [vmem:[%s524 + $0x320] sm:$0xff] %v725
                  %v727 = vld [vmem:[%s523 + $0x650] sm:$0xff]
                  %728 = vst [vmem:[%s524 + $0x328] sm:$0xff] %v727
                  %v729 = vld [vmem:[%s523 + $0x660] sm:$0xff]
                  %730 = vst [vmem:[%s524 + $0x330] sm:$0xff] %v729
                  %v731 = vld [vmem:[%s523 + $0x670] sm:$0xff]
                  %732 = vst [vmem:[%s524 + $0x338] sm:$0xff] %v731
                  %v733 = vld [vmem:[%s523 + $0x680] sm:$0xff]
                  %734 = vst [vmem:[%s524 + $0x340] sm:$0xff] %v733
                  %v735 = vld [vmem:[%s523 + $0x690] sm:$0xff]
                  %736 = vst [vmem:[%s524 + $0x348] sm:$0xff] %v735
                  %v737 = vld [vmem:[%s523 + $0x6a0] sm:$0xff]
                  %738 = vst [vmem:[%s524 + $0x350] sm:$0xff] %v737
                  %v739 = vld [vmem:[%s523 + $0x6b0] sm:$0xff]
                  %740 = vst [vmem:[%s524 + $0x358] sm:$0xff] %v739
                  %v741 = vld [vmem:[%s523 + $0x6c0] sm:$0xff]
                  %742 = vst [vmem:[%s524 + $0x360] sm:$0xff] %v741
                  %v743 = vld [vmem:[%s523 + $0x6d0] sm:$0xff]
                  %744 = vst [vmem:[%s524 + $0x368] sm:$0xff] %v743
                  %v745 = vld [vmem:[%s523 + $0x6e0] sm:$0xff]
                  %746 = vst [vmem:[%s524 + $0x370] sm:$0xff] %v745
                  %v747 = vld [vmem:[%s523 + $0x6f0] sm:$0xff]
                  %748 = vst [vmem:[%s524 + $0x378] sm:$0xff] %v747
                  %v749 = vld [vmem:[%s523 + $0x700] sm:$0xff]
                  %750 = vst [vmem:[%s524 + $0x380] sm:$0xff] %v749
                  %v751 = vld [vmem:[%s523 + $0x710] sm:$0xff]
                  %752 = vst [vmem:[%s524 + $0x388] sm:$0xff] %v751
                  %v753 = vld [vmem:[%s523 + $0x720] sm:$0xff]
                  %754 = vst [vmem:[%s524 + $0x390] sm:$0xff] %v753
                  %v755 = vld [vmem:[%s523 + $0x730] sm:$0xff]
                  %756 = vst [vmem:[%s524 + $0x398] sm:$0xff] %v755
                  %v757 = vld [vmem:[%s523 + $0x740] sm:$0xff]
                  %758 = vst [vmem:[%s524 + $0x3a0] sm:$0xff] %v757
                  %v759 = vld [vmem:[%s523 + $0x750] sm:$0xff]
                  %760 = vst [vmem:[%s524 + $0x3a8] sm:$0xff] %v759
                  %v761 = vld [vmem:[%s523 + $0x760] sm:$0xff]
                  %762 = vst [vmem:[%s524 + $0x3b0] sm:$0xff] %v761
                  %v763 = vld [vmem:[%s523 + $0x770] sm:$0xff]
                  %764 = vst [vmem:[%s524 + $0x3b8] sm:$0xff] %v763
                  %v765 = vld [vmem:[%s523 + $0x780] sm:$0xff]
                  %766 = vst [vmem:[%s524 + $0x3c0] sm:$0xff] %v765
                  %v767 = vld [vmem:[%s523 + $0x790] sm:$0xff]
                  %768 = vst [vmem:[%s524 + $0x3c8] sm:$0xff] %v767
                  %v769 = vld [vmem:[%s523 + $0x7a0] sm:$0xff]
                  %770 = vst [vmem:[%s524 + $0x3d0] sm:$0xff] %v769
                  %v771 = vld [vmem:[%s523 + $0x7b0] sm:$0xff]
                  %772 = vst [vmem:[%s524 + $0x3d8] sm:$0xff] %v771
                  %v773 = vld [vmem:[%s523 + $0x7c0] sm:$0xff]
                  %774 = vst [vmem:[%s524 + $0x3e0] sm:$0xff] %v773
                  %v775 = vld [vmem:[%s523 + $0x7d0] sm:$0xff]
                  %776 = vst [vmem:[%s524 + $0x3e8] sm:$0xff] %v775
                  %v777 = vld [vmem:[%s523 + $0x7e0] sm:$0xff]
                  %778 = vst [vmem:[%s524 + $0x3f0] sm:$0xff] %v777
                  %v779 = vld [vmem:[%s523 + $0x7f0] sm:$0xff]
                  %780 = vst [vmem:[%s524 + $0x3f8] sm:$0xff] %v779
                $region71: #{critic_forward.8} parent=65 // loop_footer
                  %s522 = sadd.s32 1, %s518
                $region72: #{critic_forward.8} parent=65 // loop_footer_branch
                  %517 = sbr.rel target = $region68
                $region73: #{critic_forward.8} parent=65 // loop_exit
                  _
              $region66: #{critic_forward.8} parent=50 // pred_fallthru
                _
              // Predicated region
              $region74: #{critic_forward.8} parent=50 // pred_check
                _
              $region75: #{critic_forward.8} parent=50 // pred_check_branch
                %782 = sbr.rel target = $region77
              $region76: #{critic_forward.8} parent=50 // pred_region
                _
              $region77: #{critic_forward.8} parent=50 // pred_fallthru
                _
            $region51: #{critic_forward.8} parent=46 // pred_fallthru
              _
            // Predicated region
            $region52: #{critic_forward.8} parent=46 // pred_check
              _
            $region53: #{critic_forward.8} parent=46 // pred_check_branch
              %248 = sbr.rel target = $region55
            $region54: #{critic_forward.8} parent=46 // pred_region
              %s250 = ssub.s32 256, 1
              loop: start=0, step=1, limit=1
              $region56: #{critic_forward.8} parent=54 // loop_pre_header
                _
              $region57: #{critic_forward.8} parent=54 // loop_header
                %s252 = sphi 0, %s256
                %p253 = scmp.ge.s32.totalorder %s252, 1
                %s257 = sphi %s242, %s242
                %s258 = sphi %s236, %s236
              $region58: #{critic_forward.8} parent=54 // loop_header_branch
                %255 = sbr.rel (%p253) target = $region62
              $region59: #{critic_forward.8} parent=54 // loop_body
                %v259 = vld [vmem:[%s257] sm:%s250]
                %260 = vst [vmem:[%s258] sm:%s250] %v259
                %v261 = vld [vmem:[%s257 + $0x10] sm:%s250]
                %262 = vst [vmem:[%s258 + $0x8] sm:%s250] %v261
                %v263 = vld [vmem:[%s257 + $0x20] sm:%s250]
                %264 = vst [vmem:[%s258 + $0x10] sm:%s250] %v263
                %v265 = vld [vmem:[%s257 + $0x30] sm:%s250]
                %266 = vst [vmem:[%s258 + $0x18] sm:%s250] %v265
                %v267 = vld [vmem:[%s257 + $0x40] sm:%s250]
                %268 = vst [vmem:[%s258 + $0x20] sm:%s250] %v267
                %v269 = vld [vmem:[%s257 + $0x50] sm:%s250]
                %270 = vst [vmem:[%s258 + $0x28] sm:%s250] %v269
                %v271 = vld [vmem:[%s257 + $0x60] sm:%s250]
                %272 = vst [vmem:[%s258 + $0x30] sm:%s250] %v271
                %v273 = vld [vmem:[%s257 + $0x70] sm:%s250]
                %274 = vst [vmem:[%s258 + $0x38] sm:%s250] %v273
                %v275 = vld [vmem:[%s257 + $0x80] sm:%s250]
                %276 = vst [vmem:[%s258 + $0x40] sm:%s250] %v275
                %v277 = vld [vmem:[%s257 + $0x90] sm:%s250]
                %278 = vst [vmem:[%s258 + $0x48] sm:%s250] %v277
                %v279 = vld [vmem:[%s257 + $0xa0] sm:%s250]
                %280 = vst [vmem:[%s258 + $0x50] sm:%s250] %v279
                %v281 = vld [vmem:[%s257 + $0xb0] sm:%s250]
                %282 = vst [vmem:[%s258 + $0x58] sm:%s250] %v281
                %v283 = vld [vmem:[%s257 + $0xc0] sm:%s250]
                %284 = vst [vmem:[%s258 + $0x60] sm:%s250] %v283
                %v285 = vld [vmem:[%s257 + $0xd0] sm:%s250]
                %286 = vst [vmem:[%s258 + $0x68] sm:%s250] %v285
                %v287 = vld [vmem:[%s257 + $0xe0] sm:%s250]
                %288 = vst [vmem:[%s258 + $0x70] sm:%s250] %v287
                %v289 = vld [vmem:[%s257 + $0xf0] sm:%s250]
                %290 = vst [vmem:[%s258 + $0x78] sm:%s250] %v289
                %v291 = vld [vmem:[%s257 + $0x100] sm:%s250]
                %292 = vst [vmem:[%s258 + $0x80] sm:%s250] %v291
                %v293 = vld [vmem:[%s257 + $0x110] sm:%s250]
                %294 = vst [vmem:[%s258 + $0x88] sm:%s250] %v293
                %v295 = vld [vmem:[%s257 + $0x120] sm:%s250]
                %296 = vst [vmem:[%s258 + $0x90] sm:%s250] %v295
                %v297 = vld [vmem:[%s257 + $0x130] sm:%s250]
                %298 = vst [vmem:[%s258 + $0x98] sm:%s250] %v297
                %v299 = vld [vmem:[%s257 + $0x140] sm:%s250]
                %300 = vst [vmem:[%s258 + $0xa0] sm:%s250] %v299
                %v301 = vld [vmem:[%s257 + $0x150] sm:%s250]
                %302 = vst [vmem:[%s258 + $0xa8] sm:%s250] %v301
                %v303 = vld [vmem:[%s257 + $0x160] sm:%s250]
                %304 = vst [vmem:[%s258 + $0xb0] sm:%s250] %v303
                %v305 = vld [vmem:[%s257 + $0x170] sm:%s250]
                %306 = vst [vmem:[%s258 + $0xb8] sm:%s250] %v305
                %v307 = vld [vmem:[%s257 + $0x180] sm:%s250]
                %308 = vst [vmem:[%s258 + $0xc0] sm:%s250] %v307
                %v309 = vld [vmem:[%s257 + $0x190] sm:%s250]
                %310 = vst [vmem:[%s258 + $0xc8] sm:%s250] %v309
                %v311 = vld [vmem:[%s257 + $0x1a0] sm:%s250]
                %312 = vst [vmem:[%s258 + $0xd0] sm:%s250] %v311
                %v313 = vld [vmem:[%s257 + $0x1b0] sm:%s250]
                %314 = vst [vmem:[%s258 + $0xd8] sm:%s250] %v313
                %v315 = vld [vmem:[%s257 + $0x1c0] sm:%s250]
                %316 = vst [vmem:[%s258 + $0xe0] sm:%s250] %v315
                %v317 = vld [vmem:[%s257 + $0x1d0] sm:%s250]
                %318 = vst [vmem:[%s258 + $0xe8] sm:%s250] %v317
                %v319 = vld [vmem:[%s257 + $0x1e0] sm:%s250]
                %320 = vst [vmem:[%s258 + $0xf0] sm:%s250] %v319
                %v321 = vld [vmem:[%s257 + $0x1f0] sm:%s250]
                %322 = vst [vmem:[%s258 + $0xf8] sm:%s250] %v321
                %v323 = vld [vmem:[%s257 + $0x200] sm:%s250]
                %324 = vst [vmem:[%s258 + $0x100] sm:%s250] %v323
                %v325 = vld [vmem:[%s257 + $0x210] sm:%s250]
                %326 = vst [vmem:[%s258 + $0x108] sm:%s250] %v325
                %v327 = vld [vmem:[%s257 + $0x220] sm:%s250]
                %328 = vst [vmem:[%s258 + $0x110] sm:%s250] %v327
                %v329 = vld [vmem:[%s257 + $0x230] sm:%s250]
                %330 = vst [vmem:[%s258 + $0x118] sm:%s250] %v329
                %v331 = vld [vmem:[%s257 + $0x240] sm:%s250]
                %332 = vst [vmem:[%s258 + $0x120] sm:%s250] %v331
                %v333 = vld [vmem:[%s257 + $0x250] sm:%s250]
                %334 = vst [vmem:[%s258 + $0x128] sm:%s250] %v333
                %v335 = vld [vmem:[%s257 + $0x260] sm:%s250]
                %336 = vst [vmem:[%s258 + $0x130] sm:%s250] %v335
                %v337 = vld [vmem:[%s257 + $0x270] sm:%s250]
                %338 = vst [vmem:[%s258 + $0x138] sm:%s250] %v337
                %v339 = vld [vmem:[%s257 + $0x280] sm:%s250]
                %340 = vst [vmem:[%s258 + $0x140] sm:%s250] %v339
                %v341 = vld [vmem:[%s257 + $0x290] sm:%s250]
                %342 = vst [vmem:[%s258 + $0x148] sm:%s250] %v341
                %v343 = vld [vmem:[%s257 + $0x2a0] sm:%s250]
                %344 = vst [vmem:[%s258 + $0x150] sm:%s250] %v343
                %v345 = vld [vmem:[%s257 + $0x2b0] sm:%s250]
                %346 = vst [vmem:[%s258 + $0x158] sm:%s250] %v345
                %v347 = vld [vmem:[%s257 + $0x2c0] sm:%s250]
                %348 = vst [vmem:[%s258 + $0x160] sm:%s250] %v347
                %v349 = vld [vmem:[%s257 + $0x2d0] sm:%s250]
                %350 = vst [vmem:[%s258 + $0x168] sm:%s250] %v349
                %v351 = vld [vmem:[%s257 + $0x2e0] sm:%s250]
                %352 = vst [vmem:[%s258 + $0x170] sm:%s250] %v351
                %v353 = vld [vmem:[%s257 + $0x2f0] sm:%s250]
                %354 = vst [vmem:[%s258 + $0x178] sm:%s250] %v353
                %v355 = vld [vmem:[%s257 + $0x300] sm:%s250]
                %356 = vst [vmem:[%s258 + $0x180] sm:%s250] %v355
                %v357 = vld [vmem:[%s257 + $0x310] sm:%s250]
                %358 = vst [vmem:[%s258 + $0x188] sm:%s250] %v357
                %v359 = vld [vmem:[%s257 + $0x320] sm:%s250]
                %360 = vst [vmem:[%s258 + $0x190] sm:%s250] %v359
                %v361 = vld [vmem:[%s257 + $0x330] sm:%s250]
                %362 = vst [vmem:[%s258 + $0x198] sm:%s250] %v361
                %v363 = vld [vmem:[%s257 + $0x340] sm:%s250]
                %364 = vst [vmem:[%s258 + $0x1a0] sm:%s250] %v363
                %v365 = vld [vmem:[%s257 + $0x350] sm:%s250]
                %366 = vst [vmem:[%s258 + $0x1a8] sm:%s250] %v365
                %v367 = vld [vmem:[%s257 + $0x360] sm:%s250]
                %368 = vst [vmem:[%s258 + $0x1b0] sm:%s250] %v367
                %v369 = vld [vmem:[%s257 + $0x370] sm:%s250]
                %370 = vst [vmem:[%s258 + $0x1b8] sm:%s250] %v369
                %v371 = vld [vmem:[%s257 + $0x380] sm:%s250]
                %372 = vst [vmem:[%s258 + $0x1c0] sm:%s250] %v371
                %v373 = vld [vmem:[%s257 + $0x390] sm:%s250]
                %374 = vst [vmem:[%s258 + $0x1c8] sm:%s250] %v373
                %v375 = vld [vmem:[%s257 + $0x3a0] sm:%s250]
                %376 = vst [vmem:[%s258 + $0x1d0] sm:%s250] %v375
                %v377 = vld [vmem:[%s257 + $0x3b0] sm:%s250]
                %378 = vst [vmem:[%s258 + $0x1d8] sm:%s250] %v377
                %v379 = vld [vmem:[%s257 + $0x3c0] sm:%s250]
                %380 = vst [vmem:[%s258 + $0x1e0] sm:%s250] %v379
                %v381 = vld [vmem:[%s257 + $0x3d0] sm:%s250]
                %382 = vst [vmem:[%s258 + $0x1e8] sm:%s250] %v381
                %v383 = vld [vmem:[%s257 + $0x3e0] sm:%s250]
                %384 = vst [vmem:[%s258 + $0x1f0] sm:%s250] %v383
                %v385 = vld [vmem:[%s257 + $0x3f0] sm:%s250]
                %386 = vst [vmem:[%s258 + $0x1f8] sm:%s250] %v385
                %v387 = vld [vmem:[%s257 + $0x400] sm:%s250]
                %388 = vst [vmem:[%s258 + $0x200] sm:%s250] %v387
                %v389 = vld [vmem:[%s257 + $0x410] sm:%s250]
                %390 = vst [vmem:[%s258 + $0x208] sm:%s250] %v389
                %v391 = vld [vmem:[%s257 + $0x420] sm:%s250]
                %392 = vst [vmem:[%s258 + $0x210] sm:%s250] %v391
                %v393 = vld [vmem:[%s257 + $0x430] sm:%s250]
                %394 = vst [vmem:[%s258 + $0x218] sm:%s250] %v393
                %v395 = vld [vmem:[%s257 + $0x440] sm:%s250]
                %396 = vst [vmem:[%s258 + $0x220] sm:%s250] %v395
                %v397 = vld [vmem:[%s257 + $0x450] sm:%s250]
                %398 = vst [vmem:[%s258 + $0x228] sm:%s250] %v397
                %v399 = vld [vmem:[%s257 + $0x460] sm:%s250]
                %400 = vst [vmem:[%s258 + $0x230] sm:%s250] %v399
                %v401 = vld [vmem:[%s257 + $0x470] sm:%s250]
                %402 = vst [vmem:[%s258 + $0x238] sm:%s250] %v401
                %v403 = vld [vmem:[%s257 + $0x480] sm:%s250]
                %404 = vst [vmem:[%s258 + $0x240] sm:%s250] %v403
                %v405 = vld [vmem:[%s257 + $0x490] sm:%s250]
                %406 = vst [vmem:[%s258 + $0x248] sm:%s250] %v405
                %v407 = vld [vmem:[%s257 + $0x4a0] sm:%s250]
                %408 = vst [vmem:[%s258 + $0x250] sm:%s250] %v407
                %v409 = vld [vmem:[%s257 + $0x4b0] sm:%s250]
                %410 = vst [vmem:[%s258 + $0x258] sm:%s250] %v409
                %v411 = vld [vmem:[%s257 + $0x4c0] sm:%s250]
                %412 = vst [vmem:[%s258 + $0x260] sm:%s250] %v411
                %v413 = vld [vmem:[%s257 + $0x4d0] sm:%s250]
                %414 = vst [vmem:[%s258 + $0x268] sm:%s250] %v413
                %v415 = vld [vmem:[%s257 + $0x4e0] sm:%s250]
                %416 = vst [vmem:[%s258 + $0x270] sm:%s250] %v415
                %v417 = vld [vmem:[%s257 + $0x4f0] sm:%s250]
                %418 = vst [vmem:[%s258 + $0x278] sm:%s250] %v417
                %v419 = vld [vmem:[%s257 + $0x500] sm:%s250]
                %420 = vst [vmem:[%s258 + $0x280] sm:%s250] %v419
                %v421 = vld [vmem:[%s257 + $0x510] sm:%s250]
                %422 = vst [vmem:[%s258 + $0x288] sm:%s250] %v421
                %v423 = vld [vmem:[%s257 + $0x520] sm:%s250]
                %424 = vst [vmem:[%s258 + $0x290] sm:%s250] %v423
                %v425 = vld [vmem:[%s257 + $0x530] sm:%s250]
                %426 = vst [vmem:[%s258 + $0x298] sm:%s250] %v425
                %v427 = vld [vmem:[%s257 + $0x540] sm:%s250]
                %428 = vst [vmem:[%s258 + $0x2a0] sm:%s250] %v427
                %v429 = vld [vmem:[%s257 + $0x550] sm:%s250]
                %430 = vst [vmem:[%s258 + $0x2a8] sm:%s250] %v429
                %v431 = vld [vmem:[%s257 + $0x560] sm:%s250]
                %432 = vst [vmem:[%s258 + $0x2b0] sm:%s250] %v431
                %v433 = vld [vmem:[%s257 + $0x570] sm:%s250]
                %434 = vst [vmem:[%s258 + $0x2b8] sm:%s250] %v433
                %v435 = vld [vmem:[%s257 + $0x580] sm:%s250]
                %436 = vst [vmem:[%s258 + $0x2c0] sm:%s250] %v435
                %v437 = vld [vmem:[%s257 + $0x590] sm:%s250]
                %438 = vst [vmem:[%s258 + $0x2c8] sm:%s250] %v437
                %v439 = vld [vmem:[%s257 + $0x5a0] sm:%s250]
                %440 = vst [vmem:[%s258 + $0x2d0] sm:%s250] %v439
                %v441 = vld [vmem:[%s257 + $0x5b0] sm:%s250]
                %442 = vst [vmem:[%s258 + $0x2d8] sm:%s250] %v441
                %v443 = vld [vmem:[%s257 + $0x5c0] sm:%s250]
                %444 = vst [vmem:[%s258 + $0x2e0] sm:%s250] %v443
                %v445 = vld [vmem:[%s257 + $0x5d0] sm:%s250]
                %446 = vst [vmem:[%s258 + $0x2e8] sm:%s250] %v445
                %v447 = vld [vmem:[%s257 + $0x5e0] sm:%s250]
                %448 = vst [vmem:[%s258 + $0x2f0] sm:%s250] %v447
                %v449 = vld [vmem:[%s257 + $0x5f0] sm:%s250]
                %450 = vst [vmem:[%s258 + $0x2f8] sm:%s250] %v449
                %v451 = vld [vmem:[%s257 + $0x600] sm:%s250]
                %452 = vst [vmem:[%s258 + $0x300] sm:%s250] %v451
                %v453 = vld [vmem:[%s257 + $0x610] sm:%s250]
                %454 = vst [vmem:[%s258 + $0x308] sm:%s250] %v453
                %v455 = vld [vmem:[%s257 + $0x620] sm:%s250]
                %456 = vst [vmem:[%s258 + $0x310] sm:%s250] %v455
                %v457 = vld [vmem:[%s257 + $0x630] sm:%s250]
                %458 = vst [vmem:[%s258 + $0x318] sm:%s250] %v457
                %v459 = vld [vmem:[%s257 + $0x640] sm:%s250]
                %460 = vst [vmem:[%s258 + $0x320] sm:%s250] %v459
                %v461 = vld [vmem:[%s257 + $0x650] sm:%s250]
                %462 = vst [vmem:[%s258 + $0x328] sm:%s250] %v461
                %v463 = vld [vmem:[%s257 + $0x660] sm:%s250]
                %464 = vst [vmem:[%s258 + $0x330] sm:%s250] %v463
                %v465 = vld [vmem:[%s257 + $0x670] sm:%s250]
                %466 = vst [vmem:[%s258 + $0x338] sm:%s250] %v465
                %v467 = vld [vmem:[%s257 + $0x680] sm:%s250]
                %468 = vst [vmem:[%s258 + $0x340] sm:%s250] %v467
                %v469 = vld [vmem:[%s257 + $0x690] sm:%s250]
                %470 = vst [vmem:[%s258 + $0x348] sm:%s250] %v469
                %v471 = vld [vmem:[%s257 + $0x6a0] sm:%s250]
                %472 = vst [vmem:[%s258 + $0x350] sm:%s250] %v471
                %v473 = vld [vmem:[%s257 + $0x6b0] sm:%s250]
                %474 = vst [vmem:[%s258 + $0x358] sm:%s250] %v473
                %v475 = vld [vmem:[%s257 + $0x6c0] sm:%s250]
                %476 = vst [vmem:[%s258 + $0x360] sm:%s250] %v475
                %v477 = vld [vmem:[%s257 + $0x6d0] sm:%s250]
                %478 = vst [vmem:[%s258 + $0x368] sm:%s250] %v477
                %v479 = vld [vmem:[%s257 + $0x6e0] sm:%s250]
                %480 = vst [vmem:[%s258 + $0x370] sm:%s250] %v479
                %v481 = vld [vmem:[%s257 + $0x6f0] sm:%s250]
                %482 = vst [vmem:[%s258 + $0x378] sm:%s250] %v481
                %v483 = vld [vmem:[%s257 + $0x700] sm:%s250]
                %484 = vst [vmem:[%s258 + $0x380] sm:%s250] %v483
                %v485 = vld [vmem:[%s257 + $0x710] sm:%s250]
                %486 = vst [vmem:[%s258 + $0x388] sm:%s250] %v485
                %v487 = vld [vmem:[%s257 + $0x720] sm:%s250]
                %488 = vst [vmem:[%s258 + $0x390] sm:%s250] %v487
                %v489 = vld [vmem:[%s257 + $0x730] sm:%s250]
                %490 = vst [vmem:[%s258 + $0x398] sm:%s250] %v489
                %v491 = vld [vmem:[%s257 + $0x740] sm:%s250]
                %492 = vst [vmem:[%s258 + $0x3a0] sm:%s250] %v491
                %v493 = vld [vmem:[%s257 + $0x750] sm:%s250]
                %494 = vst [vmem:[%s258 + $0x3a8] sm:%s250] %v493
                %v495 = vld [vmem:[%s257 + $0x760] sm:%s250]
                %496 = vst [vmem:[%s258 + $0x3b0] sm:%s250] %v495
                %v497 = vld [vmem:[%s257 + $0x770] sm:%s250]
                %498 = vst [vmem:[%s258 + $0x3b8] sm:%s250] %v497
                %v499 = vld [vmem:[%s257 + $0x780] sm:%s250]
                %500 = vst [vmem:[%s258 + $0x3c0] sm:%s250] %v499
                %v501 = vld [vmem:[%s257 + $0x790] sm:%s250]
                %502 = vst [vmem:[%s258 + $0x3c8] sm:%s250] %v501
                %v503 = vld [vmem:[%s257 + $0x7a0] sm:%s250]
                %504 = vst [vmem:[%s258 + $0x3d0] sm:%s250] %v503
                %v505 = vld [vmem:[%s257 + $0x7b0] sm:%s250]
                %506 = vst [vmem:[%s258 + $0x3d8] sm:%s250] %v505
                %v507 = vld [vmem:[%s257 + $0x7c0] sm:%s250]
                %508 = vst [vmem:[%s258 + $0x3e0] sm:%s250] %v507
                %v509 = vld [vmem:[%s257 + $0x7d0] sm:%s250]
                %510 = vst [vmem:[%s258 + $0x3e8] sm:%s250] %v509
                %v511 = vld [vmem:[%s257 + $0x7e0] sm:%s250]
                %512 = vst [vmem:[%s258 + $0x3f0] sm:%s250] %v511
                %v513 = vld [vmem:[%s257 + $0x7f0] sm:%s250]
                %514 = vst [vmem:[%s258 + $0x3f8] sm:%s250] %v513
              $region60: #{critic_forward.8} parent=54 // loop_footer
                %s256 = sadd.s32 1, %s252
              $region61: #{critic_forward.8} parent=54 // loop_footer_branch
                %251 = sbr.rel target = $region57
              $region62: #{critic_forward.8} parent=54 // loop_exit
                _
            $region55: #{critic_forward.8} parent=46 // pred_fallthru
              _
          $region47: #{critic_forward.8} parent=42 // pred_fallthru
            _
          %783 = vnop
        $region43: #{critic_forward.8} parent=15 // pred_fallthru
          _
        // Predicated region
        $region78: #{critic_forward.8} parent=15 // pred_check
          %p784 = pneg %p96
        $region79: #{critic_forward.8} parent=15 // pred_check_branch
          %786 = sbr.rel (%p784) target = $region81
        $region80: #{critic_forward.8} parent=15 // pred_region
          %s787 = smul.u32 2, %s17
          %p788 = scmp.lt.s32.totalorder %s787, 3
          %s789 = scalar_select %p788, %s787, 3
          %s790 = scalar_lea.vmem %s2, %s789
          %s791 = smul.u32 2, %s17
        $region81: #{critic_forward.8} parent=15 // pred_fallthru
          _
        // Predicated region
        $region82: #{critic_forward.8} parent=15 // pred_check
          %p792 = pneg %p122
        $region83: #{critic_forward.8} parent=15 // pred_check_branch
          %794 = sbr.rel (%p792) target = $region85
        $region84: #{critic_forward.8} parent=15 // pred_region
          %s795 = smul.u32 2, %s17
          %p796 = scmp.lt.s32.totalorder %s795, 3
          %s797 = scalar_select %p796, %s795, 3
          %s798 = scalar_lea.vmem %s3, %s797
          %s799 = smul.u32 2, %s17
        $region85: #{critic_forward.8} parent=15 // pred_fallthru
          _
      $region16: #{critic_forward.8} parent=5 // pred_fallthru
        _
      %p800 = scmp.le.s32.totalorder 1, %s10
      %p801 = scmp.lt.s32.totalorder %s10, 9
      %p802 = pnand %p800, %p801
      %p803 = pneg %p802
      // Predicated region
      $region86: #{critic_forward.8} parent=5 // pred_check
        _
      $region87: #{critic_forward.8} parent=5 // pred_check_branch
        %805 = sbr.rel (%p802) target = $region89
      $region88: #{critic_forward.8} parent=5 // pred_region
        %s806 = ssub.s32 %s10, 1
        %s807 = sand.u32 %s35, 1
        %s808 = sand.u32 %s35, 1
        %s809 = smul.addr %s808, 128
        %s810 = scalar_lea.vmem [#allocation3], %s809
        // Predicated region
        $region90: #{critic_forward.8} parent=88 // pred_check
          %p811 = pneg %p48
        $region91: #{critic_forward.8} parent=88 // pred_check_branch
          %813 = sbr.rel (%p811) target = $region93
        $region92: #{critic_forward.8} parent=88 // pred_region
          _
        $region93: #{critic_forward.8} parent=88 // pred_fallthru
          _
        %s814 = sand.u32 %s63, 1
        %s815 = sand.u32 %s63, 1
        %s816 = smul.addr %s815, 1024
        %s817 = scalar_lea.vmem [#allocation4], %s816
        // Predicated region
        $region94: #{critic_forward.8} parent=88 // pred_check
          %p818 = pneg %p76
        $region95: #{critic_forward.8} parent=88 // pred_check_branch
          %820 = sbr.rel (%p818) target = $region97
        $region96: #{critic_forward.8} parent=88 // pred_region
          _
        $region97: #{critic_forward.8} parent=88 // pred_fallthru
          _
        %s821 = sand.u32 %s35, 1
        %s822 = sand.u32 %s35, 1
        %s823 = smul.addr %s822, 128
        %s824 = scalar_lea.vmem [#allocation3], %s823
        %p825 = pneg %p48
        %p826 = pneg %p45
        %s827 = sand.u32 %s63, 1
        %s828 = sand.u32 %s63, 1
        %s829 = smul.addr %s828, 1024
        %s830 = scalar_lea.vmem [#allocation4], %s829
        %p831 = pneg %p76
        %p832 = pneg %p73
        %s833 = smul.u32 2, %s19
        %p834 = scmp.lt.s32.totalorder %s833, 3
        %s835 = scalar_select %p834, %s833, 3
        %s836 = scalar_lea.vmem %s2, %s835
        %p837 = pneg %p102
        %p838 = pneg %p99
        %s839 = smul.u32 2, %s19
        %p840 = scmp.lt.s32.totalorder %s839, 3
        %s841 = scalar_select %p840, %s839, 3
        %s842 = scalar_lea.vmem %s3, %s841
        %p843 = pneg %p128
        %p844 = pneg %p125
        %p845 = pneg %p154
        %p846 = pneg %p151
        %s847 = sand.u32 %s141, 1
        %s848 = sand.u32 %s141, 1
        %s849 = smul.addr %s848, 32
        %s850 = scalar_lea.vmem [#allocation5], %s849
        %s851 = smul.u32 8, %s20
        %s852 = smul.u32 128, %s20
        %s853 = smul.u32 2, %s19
        %s854 = smul.u32 2, %s19
        %p855 = scmp.lt.s32.totalorder %s854, 3
        %s856 = scalar_select %p855, %s854, 3
        %s857 = scalar_lea.vmem %s2, %s856
        %s858 = smul.u32 2, %s19
        %s859 = smul.u32 2, %s19
        %p860 = scmp.lt.s32.totalorder %s859, 3
        %s861 = scalar_select %p860, %s859, 3
        %s862 = scalar_lea.vmem %s3, %s861
        %s863 = smul.u32 2, %s19
        %s864 = smul.u32 2, %s19
        %p865 = scmp.eq.s32.totalorder %s20, 0
        // Predicated region
        $region98: #{critic_forward.8} parent=88 // pred_check
          %p866 = pneg %p865
        $region99: #{critic_forward.8} parent=88 // pred_check_branch
          %868 = sbr.rel (%p866) target = $region101
        $region100: #{critic_forward.8} parent=88 // pred_region
          %869 = vst [vmem:[#allocation2] sm:$0xff] 0.0
          %870 = vst [vmem:[#allocation2 + $0x8] sm:$0xff] 0.0
          %871 = vst [vmem:[#allocation2 + $0x10] sm:$0xff] 0.0
          %872 = vst [vmem:[#allocation2 + $0x18] sm:$0xff] 0.0
          %873 = vst [vmem:[#allocation2 + $0x20] sm:$0xff] 0.0
          %874 = vst [vmem:[#allocation2 + $0x28] sm:$0xff] 0.0
          %875 = vst [vmem:[#allocation2 + $0x30] sm:$0xff] 0.0
          %876 = vst [vmem:[#allocation2 + $0x38] sm:$0xff] 0.0
        $region101: #{critic_forward.8} parent=88 // pred_fallthru
          _
        %v877 = vld [vmem:[#allocation2] sm:$0xff]
        %v878 = vld [vmem:[#allocation2 + $0x8] sm:$0xff]
        %v879 = vld [vmem:[#allocation2 + $0x10] sm:$0xff]
        %v880 = vld [vmem:[#allocation2 + $0x18] sm:$0xff]
        %v881 = vld [vmem:[#allocation2 + $0x20] sm:$0xff]
        %v882 = vld [vmem:[#allocation2 + $0x28] sm:$0xff]
        %v883 = vld [vmem:[#allocation2 + $0x30] sm:$0xff]
        %v884 = vld [vmem:[#allocation2 + $0x38] sm:$0xff]
        %v885 = vld [vmem:[%s810] sm:$0xff]
        %v886 = vld [vmem:[%s810 + $0x8] sm:$0xff]
        %v887 = vld [vmem:[%s810 + $0x10] sm:$0xff]
        %v888 = vld [vmem:[%s810 + $0x18] sm:$0xff]
        %v889 = vld [vmem:[%s810 + $0x20] sm:$0xff]
        %v890 = vld [vmem:[%s810 + $0x28] sm:$0xff]
        %v891 = vld [vmem:[%s810 + $0x30] sm:$0xff]
        %v892 = vld [vmem:[%s810 + $0x38] sm:$0xff]
        %v893 = vld [vmem:[%s810 + $0x40] sm:$0xff]
        %v894 = vld [vmem:[%s810 + $0x48] sm:$0xff]
        %v895 = vld [vmem:[%s810 + $0x50] sm:$0xff]
        %v896 = vld [vmem:[%s810 + $0x58] sm:$0xff]
        %v897 = vld [vmem:[%s810 + $0x60] sm:$0xff]
        %v898 = vld [vmem:[%s810 + $0x68] sm:$0xff]
        %v899 = vld [vmem:[%s810 + $0x70] sm:$0xff]
        %v900 = vld [vmem:[%s810 + $0x78] sm:$0xff]
        %v901 = vld [vmem:[%s817] sm:$0xff]
        %v902 = vld [vmem:[%s817 + $0x8] sm:$0xff]
        %v903 = vld [vmem:[%s817 + $0x10] sm:$0xff]
        %v904 = vld [vmem:[%s817 + $0x18] sm:$0xff]
        %v905 = vld [vmem:[%s817 + $0x20] sm:$0xff]
        %v906 = vld [vmem:[%s817 + $0x28] sm:$0xff]
        %v907 = vld [vmem:[%s817 + $0x30] sm:$0xff]
        %v908 = vld [vmem:[%s817 + $0x38] sm:$0xff]
        %v909 = vld [vmem:[%s817 + $0x40] sm:$0xff]
        %v910 = vld [vmem:[%s817 + $0x48] sm:$0xff]
        %v911 = vld [vmem:[%s817 + $0x50] sm:$0xff]
        %v912 = vld [vmem:[%s817 + $0x58] sm:$0xff]
        %v913 = vld [vmem:[%s817 + $0x60] sm:$0xff]
        %v914 = vld [vmem:[%s817 + $0x68] sm:$0xff]
        %v915 = vld [vmem:[%s817 + $0x70] sm:$0xff]
        %v916 = vld [vmem:[%s817 + $0x78] sm:$0xff]
        %v917 = vld [vmem:[%s817 + $0x80] sm:$0xff]
        %v918 = vld [vmem:[%s817 + $0x88] sm:$0xff]
        %v919 = vld [vmem:[%s817 + $0x90] sm:$0xff]
        %v920 = vld [vmem:[%s817 + $0x98] sm:$0xff]
        %v921 = vld [vmem:[%s817 + $0xa0] sm:$0xff]
        %v922 = vld [vmem:[%s817 + $0xa8] sm:$0xff]
        %v923 = vld [vmem:[%s817 + $0xb0] sm:$0xff]
        %v924 = vld [vmem:[%s817 + $0xb8] sm:$0xff]
        %v925 = vld [vmem:[%s817 + $0xc0] sm:$0xff]
        %v926 = vld [vmem:[%s817 + $0xc8] sm:$0xff]
        %v927 = vld [vmem:[%s817 + $0xd0] sm:$0xff]
        %v928 = vld [vmem:[%s817 + $0xd8] sm:$0xff]
        %v929 = vld [vmem:[%s817 + $0xe0] sm:$0xff]
        %v930 = vld [vmem:[%s817 + $0xe8] sm:$0xff]
        %v931 = vld [vmem:[%s817 + $0xf0] sm:$0xff]
        %v932 = vld [vmem:[%s817 + $0xf8] sm:$0xff]
        %v933 = vld [vmem:[%s817 + $0x100] sm:$0xff]
        %v934 = vld [vmem:[%s817 + $0x108] sm:$0xff]
        %v935 = vld [vmem:[%s817 + $0x110] sm:$0xff]
        %v936 = vld [vmem:[%s817 + $0x118] sm:$0xff]
        %v937 = vld [vmem:[%s817 + $0x120] sm:$0xff]
        %v938 = vld [vmem:[%s817 + $0x128] sm:$0xff]
        %v939 = vld [vmem:[%s817 + $0x130] sm:$0xff]
        %v940 = vld [vmem:[%s817 + $0x138] sm:$0xff]
        %v941 = vld [vmem:[%s817 + $0x140] sm:$0xff]
        %v942 = vld [vmem:[%s817 + $0x148] sm:$0xff]
        %v943 = vld [vmem:[%s817 + $0x150] sm:$0xff]
        %v944 = vld [vmem:[%s817 + $0x158] sm:$0xff]
        %v945 = vld [vmem:[%s817 + $0x160] sm:$0xff]
        %v946 = vld [vmem:[%s817 + $0x168] sm:$0xff]
        %v947 = vld [vmem:[%s817 + $0x170] sm:$0xff]
        %v948 = vld [vmem:[%s817 + $0x178] sm:$0xff]
        %v949 = vld [vmem:[%s817 + $0x180] sm:$0xff]
        %v950 = vld [vmem:[%s817 + $0x188] sm:$0xff]
        %v951 = vld [vmem:[%s817 + $0x190] sm:$0xff]
        %v952 = vld [vmem:[%s817 + $0x198] sm:$0xff]
        %v953 = vld [vmem:[%s817 + $0x1a0] sm:$0xff]
        %v954 = vld [vmem:[%s817 + $0x1a8] sm:$0xff]
        %v955 = vld [vmem:[%s817 + $0x1b0] sm:$0xff]
        %v956 = vld [vmem:[%s817 + $0x1b8] sm:$0xff]
        %v957 = vld [vmem:[%s817 + $0x1c0] sm:$0xff]
        %v958 = vld [vmem:[%s817 + $0x1c8] sm:$0xff]
        %v959 = vld [vmem:[%s817 + $0x1d0] sm:$0xff]
        %v960 = vld [vmem:[%s817 + $0x1d8] sm:$0xff]
        %v961 = vld [vmem:[%s817 + $0x1e0] sm:$0xff]
        %v962 = vld [vmem:[%s817 + $0x1e8] sm:$0xff]
        %v963 = vld [vmem:[%s817 + $0x1f0] sm:$0xff]
        %v964 = vld [vmem:[%s817 + $0x1f8] sm:$0xff]
        %v965 = vld [vmem:[%s817 + $0x200] sm:$0xff]
        %v966 = vld [vmem:[%s817 + $0x208] sm:$0xff]
        %v967 = vld [vmem:[%s817 + $0x210] sm:$0xff]
        %v968 = vld [vmem:[%s817 + $0x218] sm:$0xff]
        %v969 = vld [vmem:[%s817 + $0x220] sm:$0xff]
        %v970 = vld [vmem:[%s817 + $0x228] sm:$0xff]
        %v971 = vld [vmem:[%s817 + $0x230] sm:$0xff]
        %v972 = vld [vmem:[%s817 + $0x238] sm:$0xff]
        %v973 = vld [vmem:[%s817 + $0x240] sm:$0xff]
        %v974 = vld [vmem:[%s817 + $0x248] sm:$0xff]
        %v975 = vld [vmem:[%s817 + $0x250] sm:$0xff]
        %v976 = vld [vmem:[%s817 + $0x258] sm:$0xff]
        %v977 = vld [vmem:[%s817 + $0x260] sm:$0xff]
        %v978 = vld [vmem:[%s817 + $0x268] sm:$0xff]
        %v979 = vld [vmem:[%s817 + $0x270] sm:$0xff]
        %v980 = vld [vmem:[%s817 + $0x278] sm:$0xff]
        %v981 = vld [vmem:[%s817 + $0x280] sm:$0xff]
        %v982 = vld [vmem:[%s817 + $0x288] sm:$0xff]
        %v983 = vld [vmem:[%s817 + $0x290] sm:$0xff]
        %v984 = vld [vmem:[%s817 + $0x298] sm:$0xff]
        %v985 = vld [vmem:[%s817 + $0x2a0] sm:$0xff]
        %v986 = vld [vmem:[%s817 + $0x2a8] sm:$0xff]
        %v987 = vld [vmem:[%s817 + $0x2b0] sm:$0xff]
        %v988 = vld [vmem:[%s817 + $0x2b8] sm:$0xff]
        %v989 = vld [vmem:[%s817 + $0x2c0] sm:$0xff]
        %v990 = vld [vmem:[%s817 + $0x2c8] sm:$0xff]
        %v991 = vld [vmem:[%s817 + $0x2d0] sm:$0xff]
        %v992 = vld [vmem:[%s817 + $0x2d8] sm:$0xff]
        %v993 = vld [vmem:[%s817 + $0x2e0] sm:$0xff]
        %v994 = vld [vmem:[%s817 + $0x2e8] sm:$0xff]
        %v995 = vld [vmem:[%s817 + $0x2f0] sm:$0xff]
        %v996 = vld [vmem:[%s817 + $0x2f8] sm:$0xff]
        %v997 = vld [vmem:[%s817 + $0x300] sm:$0xff]
        %v998 = vld [vmem:[%s817 + $0x308] sm:$0xff]
        %v999 = vld [vmem:[%s817 + $0x310] sm:$0xff]
        %v1000 = vld [vmem:[%s817 + $0x318] sm:$0xff]
        %v1001 = vld [vmem:[%s817 + $0x320] sm:$0xff]
        %v1002 = vld [vmem:[%s817 + $0x328] sm:$0xff]
        %v1003 = vld [vmem:[%s817 + $0x330] sm:$0xff]
        %v1004 = vld [vmem:[%s817 + $0x338] sm:$0xff]
        %v1005 = vld [vmem:[%s817 + $0x340] sm:$0xff]
        %v1006 = vld [vmem:[%s817 + $0x348] sm:$0xff]
        %v1007 = vld [vmem:[%s817 + $0x350] sm:$0xff]
        %v1008 = vld [vmem:[%s817 + $0x358] sm:$0xff]
        %v1009 = vld [vmem:[%s817 + $0x360] sm:$0xff]
        %v1010 = vld [vmem:[%s817 + $0x368] sm:$0xff]
        %v1011 = vld [vmem:[%s817 + $0x370] sm:$0xff]
        %v1012 = vld [vmem:[%s817 + $0x378] sm:$0xff]
        %v1013 = vld [vmem:[%s817 + $0x380] sm:$0xff]
        %v1014 = vld [vmem:[%s817 + $0x388] sm:$0xff]
        %v1015 = vld [vmem:[%s817 + $0x390] sm:$0xff]
        %v1016 = vld [vmem:[%s817 + $0x398] sm:$0xff]
        %v1017 = vld [vmem:[%s817 + $0x3a0] sm:$0xff]
        %v1018 = vld [vmem:[%s817 + $0x3a8] sm:$0xff]
        %v1019 = vld [vmem:[%s817 + $0x3b0] sm:$0xff]
        %v1020 = vld [vmem:[%s817 + $0x3b8] sm:$0xff]
        %v1021 = vld [vmem:[%s817 + $0x3c0] sm:$0xff]
        %v1022 = vld [vmem:[%s817 + $0x3c8] sm:$0xff]
        %v1023 = vld [vmem:[%s817 + $0x3d0] sm:$0xff]
        %v1024 = vld [vmem:[%s817 + $0x3d8] sm:$0xff]
        %v1025 = vld [vmem:[%s817 + $0x3e0] sm:$0xff]
        %v1026 = vld [vmem:[%s817 + $0x3e8] sm:$0xff]
        %v1027 = vld [vmem:[%s817 + $0x3f0] sm:$0xff]
        %v1028 = vld [vmem:[%s817 + $0x3f8] sm:$0xff]
        %v1045 = vunpack.c.l.b16 %v885
        %v1046 = vunpack.c.h.b16 %v885
        %v1047 = vunpack.c.l.b16 %v886
        %v1048 = vunpack.c.h.b16 %v886
        %v1049 = vunpack.c.l.b16 %v887
        %v1050 = vunpack.c.h.b16 %v887
        %v1051 = vunpack.c.l.b16 %v888
        %v1052 = vunpack.c.h.b16 %v888
        %v1053 = vunpack.c.l.b16 %v889
        %v1054 = vunpack.c.h.b16 %v889
        %v1055 = vunpack.c.l.b16 %v890
        %v1056 = vunpack.c.h.b16 %v890
        %v1057 = vunpack.c.l.b16 %v891
        %v1058 = vunpack.c.h.b16 %v891
        %v1059 = vunpack.c.l.b16 %v892
        %v1060 = vunpack.c.h.b16 %v892
        %v1061 = vunpack.c.l.b16 %v893
        %v1062 = vunpack.c.h.b16 %v893
        %v1063 = vunpack.c.l.b16 %v894
        %v1064 = vunpack.c.h.b16 %v894
        %v1065 = vunpack.c.l.b16 %v895
        %v1066 = vunpack.c.h.b16 %v895
        %v1067 = vunpack.c.l.b16 %v896
        %v1068 = vunpack.c.h.b16 %v896
        %v1069 = vunpack.c.l.b16 %v897
        %v1070 = vunpack.c.h.b16 %v897
        %v1071 = vunpack.c.l.b16 %v898
        %v1072 = vunpack.c.h.b16 %v898
        %v1073 = vunpack.c.l.b16 %v899
        %v1074 = vunpack.c.h.b16 %v899
        %v1075 = vunpack.c.l.b16 %v900
        %v1076 = vunpack.c.h.b16 %v900
        %v1077 = vpack.c.b16 %v1053, %v1045
        %v1078 = vpack.c.b16 %v1054, %v1046
        %v1079 = vpack.c.b16 %v1055, %v1047
        %v1080 = vpack.c.b16 %v1056, %v1048
        %v1081 = vpack.c.b16 %v1057, %v1049
        %v1082 = vpack.c.b16 %v1058, %v1050
        %v1083 = vpack.c.b16 %v1059, %v1051
        %v1084 = vpack.c.b16 %v1060, %v1052
        %v1085 = vpack.c.b16 %v1069, %v1061
        %v1086 = vpack.c.b16 %v1070, %v1062
        %v1087 = vpack.c.b16 %v1071, %v1063
        %v1088 = vpack.c.b16 %v1072, %v1064
        %v1089 = vpack.c.b16 %v1073, %v1065
        %v1090 = vpack.c.b16 %v1074, %v1066
        %v1091 = vpack.c.b16 %v1075, %v1067
        %v1092 = vpack.c.b16 %v1076, %v1068
        %v1237 = vunpack.c.l.b16 %v901
        %v1238 = vunpack.c.h.b16 %v901
        %v1239 = vunpack.c.l.b16 %v902
        %v1240 = vunpack.c.h.b16 %v902
        %v1241 = vunpack.c.l.b16 %v903
        %v1242 = vunpack.c.h.b16 %v903
        %v1243 = vunpack.c.l.b16 %v904
        %v1244 = vunpack.c.h.b16 %v904
        %v1245 = vunpack.c.l.b16 %v905
        %v1246 = vunpack.c.h.b16 %v905
        %v1247 = vunpack.c.l.b16 %v906
        %v1248 = vunpack.c.h.b16 %v906
        %v1249 = vunpack.c.l.b16 %v907
        %v1250 = vunpack.c.h.b16 %v907
        %v1251 = vunpack.c.l.b16 %v908
        %v1252 = vunpack.c.h.b16 %v908
        %v1253 = vunpack.c.l.b16 %v909
        %v1254 = vunpack.c.h.b16 %v909
        %v1255 = vunpack.c.l.b16 %v910
        %v1256 = vunpack.c.h.b16 %v910
        %v1257 = vunpack.c.l.b16 %v911
        %v1258 = vunpack.c.h.b16 %v911
        %v1259 = vunpack.c.l.b16 %v912
        %v1260 = vunpack.c.h.b16 %v912
        %v1261 = vunpack.c.l.b16 %v913
        %v1262 = vunpack.c.h.b16 %v913
        %v1263 = vunpack.c.l.b16 %v914
        %v1264 = vunpack.c.h.b16 %v914
        %v1265 = vunpack.c.l.b16 %v915
        %v1266 = vunpack.c.h.b16 %v915
        %v1267 = vunpack.c.l.b16 %v916
        %v1268 = vunpack.c.h.b16 %v916
        %v1269 = vunpack.c.l.b16 %v917
        %v1270 = vunpack.c.h.b16 %v917
        %v1271 = vunpack.c.l.b16 %v918
        %v1272 = vunpack.c.h.b16 %v918
        %v1273 = vunpack.c.l.b16 %v919
        %v1274 = vunpack.c.h.b16 %v919
        %v1275 = vunpack.c.l.b16 %v920
        %v1276 = vunpack.c.h.b16 %v920
        %v1277 = vunpack.c.l.b16 %v921
        %v1278 = vunpack.c.h.b16 %v921
        %v1279 = vunpack.c.l.b16 %v922
        %v1280 = vunpack.c.h.b16 %v922
        %v1281 = vunpack.c.l.b16 %v923
        %v1282 = vunpack.c.h.b16 %v923
        %v1283 = vunpack.c.l.b16 %v924
        %v1284 = vunpack.c.h.b16 %v924
        %v1285 = vunpack.c.l.b16 %v925
        %v1286 = vunpack.c.h.b16 %v925
        %v1287 = vunpack.c.l.b16 %v926
        %v1288 = vunpack.c.h.b16 %v926
        %v1289 = vunpack.c.l.b16 %v927
        %v1290 = vunpack.c.h.b16 %v927
        %v1291 = vunpack.c.l.b16 %v928
        %v1292 = vunpack.c.h.b16 %v928
        %v1293 = vunpack.c.l.b16 %v929
        %v1294 = vunpack.c.h.b16 %v929
        %v1295 = vunpack.c.l.b16 %v930
        %v1296 = vunpack.c.h.b16 %v930
        %v1297 = vunpack.c.l.b16 %v931
        %v1298 = vunpack.c.h.b16 %v931
        %v1299 = vunpack.c.l.b16 %v932
        %v1300 = vunpack.c.h.b16 %v932
        %v1301 = vunpack.c.l.b16 %v933
        %v1302 = vunpack.c.h.b16 %v933
        %v1303 = vunpack.c.l.b16 %v934
        %v1304 = vunpack.c.h.b16 %v934
        %v1305 = vunpack.c.l.b16 %v935
        %v1306 = vunpack.c.h.b16 %v935
        %v1307 = vunpack.c.l.b16 %v936
        %v1308 = vunpack.c.h.b16 %v936
        %v1309 = vunpack.c.l.b16 %v937
        %v1310 = vunpack.c.h.b16 %v937
        %v1311 = vunpack.c.l.b16 %v938
        %v1312 = vunpack.c.h.b16 %v938
        %v1313 = vunpack.c.l.b16 %v939
        %v1314 = vunpack.c.h.b16 %v939
        %v1315 = vunpack.c.l.b16 %v940
        %v1316 = vunpack.c.h.b16 %v940
        %v1317 = vunpack.c.l.b16 %v941
        %v1318 = vunpack.c.h.b16 %v941
        %v1319 = vunpack.c.l.b16 %v942
        %v1320 = vunpack.c.h.b16 %v942
        %v1321 = vunpack.c.l.b16 %v943
        %v1322 = vunpack.c.h.b16 %v943
        %v1323 = vunpack.c.l.b16 %v944
        %v1324 = vunpack.c.h.b16 %v944
        %v1325 = vunpack.c.l.b16 %v945
        %v1326 = vunpack.c.h.b16 %v945
        %v1327 = vunpack.c.l.b16 %v946
        %v1328 = vunpack.c.h.b16 %v946
        %v1329 = vunpack.c.l.b16 %v947
        %v1330 = vunpack.c.h.b16 %v947
        %v1331 = vunpack.c.l.b16 %v948
        %v1332 = vunpack.c.h.b16 %v948
        %v1333 = vunpack.c.l.b16 %v949
        %v1334 = vunpack.c.h.b16 %v949
        %v1335 = vunpack.c.l.b16 %v950
        %v1336 = vunpack.c.h.b16 %v950
        %v1337 = vunpack.c.l.b16 %v951
        %v1338 = vunpack.c.h.b16 %v951
        %v1339 = vunpack.c.l.b16 %v952
        %v1340 = vunpack.c.h.b16 %v952
        %v1341 = vunpack.c.l.b16 %v953
        %v1342 = vunpack.c.h.b16 %v953
        %v1343 = vunpack.c.l.b16 %v954
        %v1344 = vunpack.c.h.b16 %v954
        %v1345 = vunpack.c.l.b16 %v955
        %v1346 = vunpack.c.h.b16 %v955
        %v1347 = vunpack.c.l.b16 %v956
        %v1348 = vunpack.c.h.b16 %v956
        %v1349 = vunpack.c.l.b16 %v957
        %v1350 = vunpack.c.h.b16 %v957
        %v1351 = vunpack.c.l.b16 %v958
        %v1352 = vunpack.c.h.b16 %v958
        %v1353 = vunpack.c.l.b16 %v959
        %v1354 = vunpack.c.h.b16 %v959
        %v1355 = vunpack.c.l.b16 %v960
        %v1356 = vunpack.c.h.b16 %v960
        %v1357 = vunpack.c.l.b16 %v961
        %v1358 = vunpack.c.h.b16 %v961
        %v1359 = vunpack.c.l.b16 %v962
        %v1360 = vunpack.c.h.b16 %v962
        %v1361 = vunpack.c.l.b16 %v963
        %v1362 = vunpack.c.h.b16 %v963
        %v1363 = vunpack.c.l.b16 %v964
        %v1364 = vunpack.c.h.b16 %v964
        %v1365 = vunpack.c.l.b16 %v965
        %v1366 = vunpack.c.h.b16 %v965
        %v1367 = vunpack.c.l.b16 %v966
        %v1368 = vunpack.c.h.b16 %v966
        %v1369 = vunpack.c.l.b16 %v967
        %v1370 = vunpack.c.h.b16 %v967
        %v1371 = vunpack.c.l.b16 %v968
        %v1372 = vunpack.c.h.b16 %v968
        %v1373 = vunpack.c.l.b16 %v969
        %v1374 = vunpack.c.h.b16 %v969
        %v1375 = vunpack.c.l.b16 %v970
        %v1376 = vunpack.c.h.b16 %v970
        %v1377 = vunpack.c.l.b16 %v971
        %v1378 = vunpack.c.h.b16 %v971
        %v1379 = vunpack.c.l.b16 %v972
        %v1380 = vunpack.c.h.b16 %v972
        %v1381 = vunpack.c.l.b16 %v973
        %v1382 = vunpack.c.h.b16 %v973
        %v1383 = vunpack.c.l.b16 %v974
        %v1384 = vunpack.c.h.b16 %v974
        %v1385 = vunpack.c.l.b16 %v975
        %v1386 = vunpack.c.h.b16 %v975
        %v1387 = vunpack.c.l.b16 %v976
        %v1388 = vunpack.c.h.b16 %v976
        %v1389 = vunpack.c.l.b16 %v977
        %v1390 = vunpack.c.h.b16 %v977
        %v1391 = vunpack.c.l.b16 %v978
        %v1392 = vunpack.c.h.b16 %v978
        %v1393 = vunpack.c.l.b16 %v979
        %v1394 = vunpack.c.h.b16 %v979
        %v1395 = vunpack.c.l.b16 %v980
        %v1396 = vunpack.c.h.b16 %v980
        %v1397 = vunpack.c.l.b16 %v981
        %v1398 = vunpack.c.h.b16 %v981
        %v1399 = vunpack.c.l.b16 %v982
        %v1400 = vunpack.c.h.b16 %v982
        %v1401 = vunpack.c.l.b16 %v983
        %v1402 = vunpack.c.h.b16 %v983
        %v1403 = vunpack.c.l.b16 %v984
        %v1404 = vunpack.c.h.b16 %v984
        %v1405 = vunpack.c.l.b16 %v985
        %v1406 = vunpack.c.h.b16 %v985
        %v1407 = vunpack.c.l.b16 %v986
        %v1408 = vunpack.c.h.b16 %v986
        %v1409 = vunpack.c.l.b16 %v987
        %v1410 = vunpack.c.h.b16 %v987
        %v1411 = vunpack.c.l.b16 %v988
        %v1412 = vunpack.c.h.b16 %v988
        %v1413 = vunpack.c.l.b16 %v989
        %v1414 = vunpack.c.h.b16 %v989
        %v1415 = vunpack.c.l.b16 %v990
        %v1416 = vunpack.c.h.b16 %v990
        %v1417 = vunpack.c.l.b16 %v991
        %v1418 = vunpack.c.h.b16 %v991
        %v1419 = vunpack.c.l.b16 %v992
        %v1420 = vunpack.c.h.b16 %v992
        %v1421 = vunpack.c.l.b16 %v993
        %v1422 = vunpack.c.h.b16 %v993
        %v1423 = vunpack.c.l.b16 %v994
        %v1424 = vunpack.c.h.b16 %v994
        %v1425 = vunpack.c.l.b16 %v995
        %v1426 = vunpack.c.h.b16 %v995
        %v1427 = vunpack.c.l.b16 %v996
        %v1428 = vunpack.c.h.b16 %v996
        %v1429 = vunpack.c.l.b16 %v997
        %v1430 = vunpack.c.h.b16 %v997
        %v1431 = vunpack.c.l.b16 %v998
        %v1432 = vunpack.c.h.b16 %v998
        %v1433 = vunpack.c.l.b16 %v999
        %v1434 = vunpack.c.h.b16 %v999
        %v1435 = vunpack.c.l.b16 %v1000
        %v1436 = vunpack.c.h.b16 %v1000
        %v1437 = vunpack.c.l.b16 %v1001
        %v1438 = vunpack.c.h.b16 %v1001
        %v1439 = vunpack.c.l.b16 %v1002
        %v1440 = vunpack.c.h.b16 %v1002
        %v1441 = vunpack.c.l.b16 %v1003
        %v1442 = vunpack.c.h.b16 %v1003
        %v1443 = vunpack.c.l.b16 %v1004
        %v1444 = vunpack.c.h.b16 %v1004
        %v1445 = vunpack.c.l.b16 %v1005
        %v1446 = vunpack.c.h.b16 %v1005
        %v1447 = vunpack.c.l.b16 %v1006
        %v1448 = vunpack.c.h.b16 %v1006
        %v1449 = vunpack.c.l.b16 %v1007
        %v1450 = vunpack.c.h.b16 %v1007
        %v1451 = vunpack.c.l.b16 %v1008
        %v1452 = vunpack.c.h.b16 %v1008
        %v1453 = vunpack.c.l.b16 %v1009
        %v1454 = vunpack.c.h.b16 %v1009
        %v1455 = vunpack.c.l.b16 %v1010
        %v1456 = vunpack.c.h.b16 %v1010
        %v1457 = vunpack.c.l.b16 %v1011
        %v1458 = vunpack.c.h.b16 %v1011
        %v1459 = vunpack.c.l.b16 %v1012
        %v1460 = vunpack.c.h.b16 %v1012
        %v1461 = vunpack.c.l.b16 %v1013
        %v1462 = vunpack.c.h.b16 %v1013
        %v1463 = vunpack.c.l.b16 %v1014
        %v1464 = vunpack.c.h.b16 %v1014
        %v1465 = vunpack.c.l.b16 %v1015
        %v1466 = vunpack.c.h.b16 %v1015
        %v1467 = vunpack.c.l.b16 %v1016
        %v1468 = vunpack.c.h.b16 %v1016
        %v1469 = vunpack.c.l.b16 %v1017
        %v1470 = vunpack.c.h.b16 %v1017
        %v1471 = vunpack.c.l.b16 %v1018
        %v1472 = vunpack.c.h.b16 %v1018
        %v1473 = vunpack.c.l.b16 %v1019
        %v1474 = vunpack.c.h.b16 %v1019
        %v1475 = vunpack.c.l.b16 %v1020
        %v1476 = vunpack.c.h.b16 %v1020
        %v1477 = vunpack.c.l.b16 %v1021
        %v1478 = vunpack.c.h.b16 %v1021
        %v1479 = vunpack.c.l.b16 %v1022
        %v1480 = vunpack.c.h.b16 %v1022
        %v1481 = vunpack.c.l.b16 %v1023
        %v1482 = vunpack.c.h.b16 %v1023
        %v1483 = vunpack.c.l.b16 %v1024
        %v1484 = vunpack.c.h.b16 %v1024
        %v1485 = vunpack.c.l.b16 %v1025
        %v1486 = vunpack.c.h.b16 %v1025
        %v1487 = vunpack.c.l.b16 %v1026
        %v1488 = vunpack.c.h.b16 %v1026
        %v1489 = vunpack.c.l.b16 %v1027
        %v1490 = vunpack.c.h.b16 %v1027
        %v1491 = vunpack.c.l.b16 %v1028
        %v1492 = vunpack.c.h.b16 %v1028
        %v1493 = vpack.c.b16 %v1239, %v1237
        %v1494 = vpack.c.b16 %v1240, %v1238
        %v1495 = vpack.c.b16 %v1243, %v1241
        %v1496 = vpack.c.b16 %v1244, %v1242
        %v1497 = vpack.c.b16 %v1247, %v1245
        %v1498 = vpack.c.b16 %v1248, %v1246
        %v1499 = vpack.c.b16 %v1251, %v1249
        %v1500 = vpack.c.b16 %v1252, %v1250
        %v1501 = vpack.c.b16 %v1255, %v1253
        %v1502 = vpack.c.b16 %v1256, %v1254
        %v1503 = vpack.c.b16 %v1259, %v1257
        %v1504 = vpack.c.b16 %v1260, %v1258
        %v1505 = vpack.c.b16 %v1263, %v1261
        %v1506 = vpack.c.b16 %v1264, %v1262
        %v1507 = vpack.c.b16 %v1267, %v1265
        %v1508 = vpack.c.b16 %v1268, %v1266
        %v1509 = vpack.c.b16 %v1271, %v1269
        %v1510 = vpack.c.b16 %v1272, %v1270
        %v1511 = vpack.c.b16 %v1275, %v1273
        %v1512 = vpack.c.b16 %v1276, %v1274
        %v1513 = vpack.c.b16 %v1279, %v1277
        %v1514 = vpack.c.b16 %v1280, %v1278
        %v1515 = vpack.c.b16 %v1283, %v1281
        %v1516 = vpack.c.b16 %v1284, %v1282
        %v1517 = vpack.c.b16 %v1287, %v1285
        %v1518 = vpack.c.b16 %v1288, %v1286
        %v1519 = vpack.c.b16 %v1291, %v1289
        %v1520 = vpack.c.b16 %v1292, %v1290
        %v1521 = vpack.c.b16 %v1295, %v1293
        %v1522 = vpack.c.b16 %v1296, %v1294
        %v1523 = vpack.c.b16 %v1299, %v1297
        %v1524 = vpack.c.b16 %v1300, %v1298
        %v1525 = vpack.c.b16 %v1303, %v1301
        %v1526 = vpack.c.b16 %v1304, %v1302
        %v1527 = vpack.c.b16 %v1307, %v1305
        %v1528 = vpack.c.b16 %v1308, %v1306
        %v1529 = vpack.c.b16 %v1311, %v1309
        %v1530 = vpack.c.b16 %v1312, %v1310
        %v1531 = vpack.c.b16 %v1315, %v1313
        %v1532 = vpack.c.b16 %v1316, %v1314
        %v1533 = vpack.c.b16 %v1319, %v1317
        %v1534 = vpack.c.b16 %v1320, %v1318
        %v1535 = vpack.c.b16 %v1323, %v1321
        %v1536 = vpack.c.b16 %v1324, %v1322
        %v1537 = vpack.c.b16 %v1327, %v1325
        %v1538 = vpack.c.b16 %v1328, %v1326
        %v1539 = vpack.c.b16 %v1331, %v1329
        %v1540 = vpack.c.b16 %v1332, %v1330
        %v1541 = vpack.c.b16 %v1335, %v1333
        %v1542 = vpack.c.b16 %v1336, %v1334
        %v1543 = vpack.c.b16 %v1339, %v1337
        %v1544 = vpack.c.b16 %v1340, %v1338
        %v1545 = vpack.c.b16 %v1343, %v1341
        %v1546 = vpack.c.b16 %v1344, %v1342
        %v1547 = vpack.c.b16 %v1347, %v1345
        %v1548 = vpack.c.b16 %v1348, %v1346
        %v1549 = vpack.c.b16 %v1351, %v1349
        %v1550 = vpack.c.b16 %v1352, %v1350
        %v1551 = vpack.c.b16 %v1355, %v1353
        %v1552 = vpack.c.b16 %v1356, %v1354
        %v1553 = vpack.c.b16 %v1359, %v1357
        %v1554 = vpack.c.b16 %v1360, %v1358
        %v1555 = vpack.c.b16 %v1363, %v1361
        %v1556 = vpack.c.b16 %v1364, %v1362
        %v1557 = vpack.c.b16 %v1367, %v1365
        %v1558 = vpack.c.b16 %v1368, %v1366
        %v1559 = vpack.c.b16 %v1371, %v1369
        %v1560 = vpack.c.b16 %v1372, %v1370
        %v1561 = vpack.c.b16 %v1375, %v1373
        %v1562 = vpack.c.b16 %v1376, %v1374
        %v1563 = vpack.c.b16 %v1379, %v1377
        %v1564 = vpack.c.b16 %v1380, %v1378
        %v1565 = vpack.c.b16 %v1383, %v1381
        %v1566 = vpack.c.b16 %v1384, %v1382
        %v1567 = vpack.c.b16 %v1387, %v1385
        %v1568 = vpack.c.b16 %v1388, %v1386
        %v1569 = vpack.c.b16 %v1391, %v1389
        %v1570 = vpack.c.b16 %v1392, %v1390
        %v1571 = vpack.c.b16 %v1395, %v1393
        %v1572 = vpack.c.b16 %v1396, %v1394
        %v1573 = vpack.c.b16 %v1399, %v1397
        %v1574 = vpack.c.b16 %v1400, %v1398
        %v1575 = vpack.c.b16 %v1403, %v1401
        %v1576 = vpack.c.b16 %v1404, %v1402
        %v1577 = vpack.c.b16 %v1407, %v1405
        %v1578 = vpack.c.b16 %v1408, %v1406
        %v1579 = vpack.c.b16 %v1411, %v1409
        %v1580 = vpack.c.b16 %v1412, %v1410
        %v1581 = vpack.c.b16 %v1415, %v1413
        %v1582 = vpack.c.b16 %v1416, %v1414
        %v1583 = vpack.c.b16 %v1419, %v1417
        %v1584 = vpack.c.b16 %v1420, %v1418
        %v1585 = vpack.c.b16 %v1423, %v1421
        %v1586 = vpack.c.b16 %v1424, %v1422
        %v1587 = vpack.c.b16 %v1427, %v1425
        %v1588 = vpack.c.b16 %v1428, %v1426
        %v1589 = vpack.c.b16 %v1431, %v1429
        %v1590 = vpack.c.b16 %v1432, %v1430
        %v1591 = vpack.c.b16 %v1435, %v1433
        %v1592 = vpack.c.b16 %v1436, %v1434
        %v1593 = vpack.c.b16 %v1439, %v1437
        %v1594 = vpack.c.b16 %v1440, %v1438
        %v1595 = vpack.c.b16 %v1443, %v1441
        %v1596 = vpack.c.b16 %v1444, %v1442
        %v1597 = vpack.c.b16 %v1447, %v1445
        %v1598 = vpack.c.b16 %v1448, %v1446
        %v1599 = vpack.c.b16 %v1451, %v1449
        %v1600 = vpack.c.b16 %v1452, %v1450
        %v1601 = vpack.c.b16 %v1455, %v1453
        %v1602 = vpack.c.b16 %v1456, %v1454
        %v1603 = vpack.c.b16 %v1459, %v1457
        %v1604 = vpack.c.b16 %v1460, %v1458
        %v1605 = vpack.c.b16 %v1463, %v1461
        %v1606 = vpack.c.b16 %v1464, %v1462
        %v1607 = vpack.c.b16 %v1467, %v1465
        %v1608 = vpack.c.b16 %v1468, %v1466
        %v1609 = vpack.c.b16 %v1471, %v1469
        %v1610 = vpack.c.b16 %v1472, %v1470
        %v1611 = vpack.c.b16 %v1475, %v1473
        %v1612 = vpack.c.b16 %v1476, %v1474
        %v1613 = vpack.c.b16 %v1479, %v1477
        %v1614 = vpack.c.b16 %v1480, %v1478
        %v1615 = vpack.c.b16 %v1483, %v1481
        %v1616 = vpack.c.b16 %v1484, %v1482
        %v1617 = vpack.c.b16 %v1487, %v1485
        %v1618 = vpack.c.b16 %v1488, %v1486
        %v1619 = vpack.c.b16 %v1491, %v1489
        %v1620 = vpack.c.b16 %v1492, %v1490
        %1749 = vmatprep.subr.bf16.mxu0 %v1508
        %1750 = vmatpush1.bf16.msra.mxu0 %v1507
        %1751 = vmatprep.subr.bf16.mxu0 %v1506
        %1752 = vmatpush1.bf16.msra.mxu0 %v1505
        %1753 = vmatprep.subr.bf16.mxu0 %v1504
        %1754 = vmatpush1.bf16.msra.mxu0 %v1503
        %1755 = vmatprep.subr.bf16.mxu0 %v1502
        %1756 = vmatpush1.bf16.msra.mxu0 %v1501
        %1757 = vmatprep.subr.bf16.mxu0 %v1500
        %1758 = vmatpush1.bf16.msra.mxu0 %v1499
        %1759 = vmatprep.subr.bf16.mxu0 %v1498
        %1760 = vmatpush1.bf16.msra.mxu0 %v1497
        %1761 = vmatprep.subr.bf16.mxu0 %v1496
        %1762 = vmatpush1.bf16.msra.mxu0 %v1495
        %1763 = vmatprep.subr.bf16.mxu0 %v1494
        %1764 = vmatpush1.bf16.msra.mxu0 %v1493
        %1765 = vmatprep.subr.bf16.mxu0 %v1524
        %1766 = vmatpush2.bf16.msra.mxu0 %v1523
        %1767 = vmatprep.subr.bf16.mxu0 %v1522
        %1768 = vmatpush2.bf16.msra.mxu0 %v1521
        %1769 = vmatprep.subr.bf16.mxu0 %v1520
        %1770 = vmatpush2.bf16.msra.mxu0 %v1519
        %1771 = vmatprep.subr.bf16.mxu0 %v1518
        %1772 = vmatpush2.bf16.msra.mxu0 %v1517
        %1773 = vmatprep.subr.bf16.mxu0 %v1516
        %1774 = vmatpush2.bf16.msra.mxu0 %v1515
        %1775 = vmatprep.subr.bf16.mxu0 %v1514
        %1776 = vmatpush2.bf16.msra.mxu0 %v1513
        %1777 = vmatprep.subr.bf16.mxu0 %v1512
        %1778 = vmatpush2.bf16.msra.mxu0 %v1511
        %1779 = vmatprep.subr.bf16.mxu0 %v1510
        %1780 = vmatpush2.bf16.msra.mxu0 %v1509
        %1781 = vmatprep.mubr.bf16.mxu0 %v1078
        %1782 = vmatmul.mubr.bf16.gmra.mxu0 %v1077
        %v1783 = vpop.f32.mrf.mxu0
        %v1784 = vadd.f32 0.0, %v1783
        %v1785 = vpop.f32.mrf.mxu0
        %v1786 = vadd.f32 0.0, %v1785
        %v1787 = vpop.f32.mrf.mxu0
        %v1788 = vadd.f32 0.0, %v1787
        %v1789 = vpop.f32.mrf.mxu0
        %v1790 = vadd.f32 0.0, %v1789
        %1791 = vmatprep.mubr.bf16.mxu0 %v1086
        %1792 = vmatmul.mubr.bf16.gmra.mxu0 %v1085
        %v1793 = vpop.f32.mrf.mxu0
        %v1794 = vadd.f32 0.0, %v1793
        %v1795 = vpop.f32.mrf.mxu0
        %v1796 = vadd.f32 0.0, %v1795
        %v1797 = vpop.f32.mrf.mxu0
        %v1798 = vadd.f32 0.0, %v1797
        %v1799 = vpop.f32.mrf.mxu0
        %v1800 = vadd.f32 0.0, %v1799
        %1801 = vdwg.mxu0
        %1802 = vmatprep.subr.bf16.mxu0 %v1540
        %1803 = vmatpush1.bf16.msra.mxu0 %v1539
        %1804 = vmatprep.subr.bf16.mxu0 %v1538
        %1805 = vmatpush1.bf16.msra.mxu0 %v1537
        %1806 = vmatprep.subr.bf16.mxu0 %v1536
        %1807 = vmatpush1.bf16.msra.mxu0 %v1535
        %1808 = vmatprep.subr.bf16.mxu0 %v1534
        %1809 = vmatpush1.bf16.msra.mxu0 %v1533
        %1810 = vmatprep.subr.bf16.mxu0 %v1532
        %1811 = vmatpush1.bf16.msra.mxu0 %v1531
        %1812 = vmatprep.subr.bf16.mxu0 %v1530
        %1813 = vmatpush1.bf16.msra.mxu0 %v1529
        %1814 = vmatprep.subr.bf16.mxu0 %v1528
        %1815 = vmatpush1.bf16.msra.mxu0 %v1527
        %1816 = vmatprep.subr.bf16.mxu0 %v1526
        %1817 = vmatpush1.bf16.msra.mxu0 %v1525
        %1818 = vmatprep.subr.bf16.mxu0 %v1556
        %1819 = vmatpush2.bf16.msra.mxu0 %v1555
        %1820 = vmatprep.subr.bf16.mxu0 %v1554
        %1821 = vmatpush2.bf16.msra.mxu0 %v1553
        %1822 = vmatprep.subr.bf16.mxu0 %v1552
        %1823 = vmatpush2.bf16.msra.mxu0 %v1551
        %1824 = vmatprep.subr.bf16.mxu0 %v1550
        %1825 = vmatpush2.bf16.msra.mxu0 %v1549
        %1826 = vmatprep.subr.bf16.mxu0 %v1548
        %1827 = vmatpush2.bf16.msra.mxu0 %v1547
        %1828 = vmatprep.subr.bf16.mxu0 %v1546
        %1829 = vmatpush2.bf16.msra.mxu0 %v1545
        %1830 = vmatprep.subr.bf16.mxu0 %v1544
        %1831 = vmatpush2.bf16.msra.mxu0 %v1543
        %1832 = vmatprep.subr.bf16.mxu0 %v1542
        %1833 = vmatpush2.bf16.msra.mxu0 %v1541
        %1834 = vmatprep.mubr.bf16.mxu0 %v1080
        %1835 = vmatmul.mubr.bf16.gmra.mxu0 %v1079
        %v1836 = vpop.f32.mrf.mxu0
        %v1837 = vadd.f32 %v1784, %v1836
        %v1838 = vpop.f32.mrf.mxu0
        %v1839 = vadd.f32 %v1786, %v1838
        %v1840 = vpop.f32.mrf.mxu0
        %v1841 = vadd.f32 %v1788, %v1840
        %v1842 = vpop.f32.mrf.mxu0
        %v1843 = vadd.f32 %v1790, %v1842
        %1844 = vmatprep.mubr.bf16.mxu0 %v1088
        %1845 = vmatmul.mubr.bf16.gmra.mxu0 %v1087
        %v1846 = vpop.f32.mrf.mxu0
        %v1847 = vadd.f32 %v1794, %v1846
        %v1848 = vpop.f32.mrf.mxu0
        %v1849 = vadd.f32 %v1796, %v1848
        %v1850 = vpop.f32.mrf.mxu0
        %v1851 = vadd.f32 %v1798, %v1850
        %v1852 = vpop.f32.mrf.mxu0
        %v1853 = vadd.f32 %v1800, %v1852
        %1854 = vdwg.mxu0
        %1855 = vmatprep.subr.bf16.mxu0 %v1572
        %1856 = vmatpush1.bf16.msra.mxu0 %v1571
        %1857 = vmatprep.subr.bf16.mxu0 %v1570
        %1858 = vmatpush1.bf16.msra.mxu0 %v1569
        %1859 = vmatprep.subr.bf16.mxu0 %v1568
        %1860 = vmatpush1.bf16.msra.mxu0 %v1567
        %1861 = vmatprep.subr.bf16.mxu0 %v1566
        %1862 = vmatpush1.bf16.msra.mxu0 %v1565
        %1863 = vmatprep.subr.bf16.mxu0 %v1564
        %1864 = vmatpush1.bf16.msra.mxu0 %v1563
        %1865 = vmatprep.subr.bf16.mxu0 %v1562
        %1866 = vmatpush1.bf16.msra.mxu0 %v1561
        %1867 = vmatprep.subr.bf16.mxu0 %v1560
        %1868 = vmatpush1.bf16.msra.mxu0 %v1559
        %1869 = vmatprep.subr.bf16.mxu0 %v1558
        %1870 = vmatpush1.bf16.msra.mxu0 %v1557
        %1871 = vmatprep.subr.bf16.mxu0 %v1588
        %1872 = vmatpush2.bf16.msra.mxu0 %v1587
        %1873 = vmatprep.subr.bf16.mxu0 %v1586
        %1874 = vmatpush2.bf16.msra.mxu0 %v1585
        %1875 = vmatprep.subr.bf16.mxu0 %v1584
        %1876 = vmatpush2.bf16.msra.mxu0 %v1583
        %1877 = vmatprep.subr.bf16.mxu0 %v1582
        %1878 = vmatpush2.bf16.msra.mxu0 %v1581
        %1879 = vmatprep.subr.bf16.mxu0 %v1580
        %1880 = vmatpush2.bf16.msra.mxu0 %v1579
        %1881 = vmatprep.subr.bf16.mxu0 %v1578
        %1882 = vmatpush2.bf16.msra.mxu0 %v1577
        %1883 = vmatprep.subr.bf16.mxu0 %v1576
        %1884 = vmatpush2.bf16.msra.mxu0 %v1575
        %1885 = vmatprep.subr.bf16.mxu0 %v1574
        %1886 = vmatpush2.bf16.msra.mxu0 %v1573
        %1887 = vmatprep.mubr.bf16.mxu0 %v1082
        %1888 = vmatmul.mubr.bf16.gmra.mxu0 %v1081
        %v1889 = vpop.f32.mrf.mxu0
        %v1890 = vadd.f32 %v1837, %v1889
        %v1891 = vpop.f32.mrf.mxu0
        %v1892 = vadd.f32 %v1839, %v1891
        %v1893 = vpop.f32.mrf.mxu0
        %v1894 = vadd.f32 %v1841, %v1893
        %v1895 = vpop.f32.mrf.mxu0
        %v1896 = vadd.f32 %v1843, %v1895
        %1897 = vmatprep.mubr.bf16.mxu0 %v1090
        %1898 = vmatmul.mubr.bf16.gmra.mxu0 %v1089
        %v1899 = vpop.f32.mrf.mxu0
        %v1900 = vadd.f32 %v1847, %v1899
        %v1901 = vpop.f32.mrf.mxu0
        %v1902 = vadd.f32 %v1849, %v1901
        %v1903 = vpop.f32.mrf.mxu0
        %v1904 = vadd.f32 %v1851, %v1903
        %v1905 = vpop.f32.mrf.mxu0
        %v1906 = vadd.f32 %v1853, %v1905
        %1907 = vdwg.mxu0
        %1908 = vmatprep.subr.bf16.mxu0 %v1604
        %1909 = vmatpush1.bf16.msra.mxu0 %v1603
        %1910 = vmatprep.subr.bf16.mxu0 %v1602
        %1911 = vmatpush1.bf16.msra.mxu0 %v1601
        %1912 = vmatprep.subr.bf16.mxu0 %v1600
        %1913 = vmatpush1.bf16.msra.mxu0 %v1599
        %1914 = vmatprep.subr.bf16.mxu0 %v1598
        %1915 = vmatpush1.bf16.msra.mxu0 %v1597
        %1916 = vmatprep.subr.bf16.mxu0 %v1596
        %1917 = vmatpush1.bf16.msra.mxu0 %v1595
        %1918 = vmatprep.subr.bf16.mxu0 %v1594
        %1919 = vmatpush1.bf16.msra.mxu0 %v1593
        %1920 = vmatprep.subr.bf16.mxu0 %v1592
        %1921 = vmatpush1.bf16.msra.mxu0 %v1591
        %1922 = vmatprep.subr.bf16.mxu0 %v1590
        %1923 = vmatpush1.bf16.msra.mxu0 %v1589
        %1924 = vmatprep.subr.bf16.mxu0 %v1620
        %1925 = vmatpush2.bf16.msra.mxu0 %v1619
        %1926 = vmatprep.subr.bf16.mxu0 %v1618
        %1927 = vmatpush2.bf16.msra.mxu0 %v1617
        %1928 = vmatprep.subr.bf16.mxu0 %v1616
        %1929 = vmatpush2.bf16.msra.mxu0 %v1615
        %1930 = vmatprep.subr.bf16.mxu0 %v1614
        %1931 = vmatpush2.bf16.msra.mxu0 %v1613
        %1932 = vmatprep.subr.bf16.mxu0 %v1612
        %1933 = vmatpush2.bf16.msra.mxu0 %v1611
        %1934 = vmatprep.subr.bf16.mxu0 %v1610
        %1935 = vmatpush2.bf16.msra.mxu0 %v1609
        %1936 = vmatprep.subr.bf16.mxu0 %v1608
        %1937 = vmatpush2.bf16.msra.mxu0 %v1607
        %1938 = vmatprep.subr.bf16.mxu0 %v1606
        %1939 = vmatpush2.bf16.msra.mxu0 %v1605
        %1940 = vmatprep.mubr.bf16.mxu0 %v1084
        %1941 = vmatmul.mubr.bf16.gmra.mxu0 %v1083
        %v1942 = vpop.f32.mrf.mxu0
        %v1943 = vadd.f32 %v1890, %v1942
        %v1944 = vpop.f32.mrf.mxu0
        %v1945 = vadd.f32 %v1892, %v1944
        %v1946 = vpop.f32.mrf.mxu0
        %v1947 = vadd.f32 %v1894, %v1946
        %v1948 = vpop.f32.mrf.mxu0
        %v1949 = vadd.f32 %v1896, %v1948
        %1950 = vmatprep.mubr.bf16.mxu0 %v1092
        %1951 = vmatmul.mubr.bf16.gmra.mxu0 %v1091
        %v1952 = vpop.f32.mrf.mxu0
        %v1953 = vadd.f32 %v1900, %v1952
        %v1954 = vpop.f32.mrf.mxu0
        %v1955 = vadd.f32 %v1902, %v1954
        %v1956 = vpop.f32.mrf.mxu0
        %v1957 = vadd.f32 %v1904, %v1956
        %v1958 = vpop.f32.mrf.mxu0
        %v1959 = vadd.f32 %v1906, %v1958
        %1960 = vdwg.mxu0
        %v1961 = vadd.f32 %v877, %v1943
        %v1962 = vadd.f32 %v878, %v1945
        %v1963 = vadd.f32 %v879, %v1947
        %v1964 = vadd.f32 %v880, %v1949
        %v1965 = vadd.f32 %v881, %v1953
        %v1966 = vadd.f32 %v882, %v1955
        %v1967 = vadd.f32 %v883, %v1957
        %v1968 = vadd.f32 %v884, %v1959
        %1969 = vst [vmem:[#allocation2] sm:$0xff] %v1961
        %1970 = vst [vmem:[#allocation2 + $0x8] sm:$0xff] %v1962
        %1971 = vst [vmem:[#allocation2 + $0x10] sm:$0xff] %v1963
        %1972 = vst [vmem:[#allocation2 + $0x18] sm:$0xff] %v1964
        %1973 = vst [vmem:[#allocation2 + $0x20] sm:$0xff] %v1965
        %1974 = vst [vmem:[#allocation2 + $0x28] sm:$0xff] %v1966
        %1975 = vst [vmem:[#allocation2 + $0x30] sm:$0xff] %v1967
        %1976 = vst [vmem:[#allocation2 + $0x38] sm:$0xff] %v1968
        %p1977 = scmp.eq.s32.totalorder %s20, 3
        // Predicated region
        $region102: #{critic_forward.8} parent=88 // pred_check
          %p1978 = pneg %p1977
        $region103: #{critic_forward.8} parent=88 // pred_check_branch
          %1980 = sbr.rel (%p1978) target = $region105
        $region104: #{critic_forward.8} parent=88 // pred_region
          %v1981 = vld [vmem:[#allocation2] sm:$0xff]
          %v1982 = vld [vmem:[#allocation2 + $0x8] sm:$0xff]
          %v1983 = vld [vmem:[#allocation2 + $0x10] sm:$0xff]
          %v1984 = vld [vmem:[#allocation2 + $0x18] sm:$0xff]
          %v1985 = vld [vmem:[#allocation2 + $0x20] sm:$0xff]
          %v1986 = vld [vmem:[#allocation2 + $0x28] sm:$0xff]
          %v1987 = vld [vmem:[#allocation2 + $0x30] sm:$0xff]
          %v1988 = vld [vmem:[#allocation2 + $0x38] sm:$0xff]
          %v1989 = vadd.f32 %v1981, %v1983
          %v1990 = vadd.f32 %v1989, %v1985
          %v1991 = vadd.f32 %v1990, %v1987
          %v1992 = vrot.slane %v1991, 4
          %v1993 = vadd.f32 %v1991, %v1992
          %v1994 = vrot.slane %v1993, 2
          %v1995 = vadd.f32 %v1993, %v1994
          %v1996 = vrot.slane %v1995, 1
          %v1997 = vadd.f32 %v1995, %v1996
          %v1998 = vadd.f32 %v1982, %v1984
          %v1999 = vadd.f32 %v1998, %v1986
          %v2000 = vadd.f32 %v1999, %v1988
          %v2001 = vrot.slane %v2000, 4
          %v2002 = vadd.f32 %v2000, %v2001
          %v2003 = vrot.slane %v2002, 2
          %v2004 = vadd.f32 %v2002, %v2003
          %v2005 = vrot.slane %v2004, 1
          %v2006 = vadd.f32 %v2004, %v2005
          %v2007 = vrcp.pop 32.0
          %v2008 = vmul.f32 %v1997, %v2007
          %v2009 = vmul.f32 %v2006, %v2007
          %v2010 = vsub.f32 %v1981, %v2008
          %v2011 = vsub.f32 %v1982, %v2009
          %v2012 = vsub.f32 %v1983, %v2008
          %v2013 = vsub.f32 %v1984, %v2009
          %v2014 = vsub.f32 %v1985, %v2008
          %v2015 = vsub.f32 %v1986, %v2009
          %v2016 = vsub.f32 %v1987, %v2008
          %v2017 = vsub.f32 %v1988, %v2009
          %v2018 = vmul.f32 %v2010, %v2010
          %v2019 = vmul.f32 %v2011, %v2011
          %v2020 = vmul.f32 %v2012, %v2012
          %v2021 = vmul.f32 %v2013, %v2013
          %v2022 = vmul.f32 %v2014, %v2014
          %v2023 = vmul.f32 %v2015, %v2015
          %v2024 = vmul.f32 %v2016, %v2016
          %v2025 = vmul.f32 %v2017, %v2017
          %v2026 = vadd.f32 %v2018, %v2020
          %v2027 = vadd.f32 %v2026, %v2022
          %v2028 = vadd.f32 %v2027, %v2024
          %v2029 = vrot.slane %v2028, 4
          %v2030 = vadd.f32 %v2028, %v2029
          %v2031 = vrot.slane %v2030, 2
          %v2032 = vadd.f32 %v2030, %v2031
          %v2033 = vrot.slane %v2032, 1
          %v2034 = vadd.f32 %v2032, %v2033
          %v2035 = vadd.f32 %v2019, %v2021
          %v2036 = vadd.f32 %v2035, %v2023
          %v2037 = vadd.f32 %v2036, %v2025
          %v2038 = vrot.slane %v2037, 4
          %v2039 = vadd.f32 %v2037, %v2038
          %v2040 = vrot.slane %v2039, 2
          %v2041 = vadd.f32 %v2039, %v2040
          %v2042 = vrot.slane %v2041, 1
          %v2043 = vadd.f32 %v2041, %v2042
          %v2044 = vmul.f32 %v2034, %v2007
          %v2045 = vmul.f32 %v2043, %v2007
          %v2046 = vadd.f32 %v2044, 1e-05
          %v2047 = vadd.f32 %v2045, 1e-05
          %v2048 = vrsqrt.pop %v2046
          %v2049 = vrsqrt.pop %v2047
          %v2050 = vmul.f32 %v2010, %v2048
          %v2051 = vmul.f32 %v2011, %v2049
          %v2052 = vmul.f32 %v2012, %v2048
          %v2053 = vmul.f32 %v2013, %v2049
          %v2054 = vmul.f32 %v2014, %v2048
          %v2055 = vmul.f32 %v2015, %v2049
          %v2056 = vmul.f32 %v2016, %v2048
          %v2057 = vmul.f32 %v2017, %v2049
          %v2058 = vld [vmem:[%s857] sm:$0x3]
          %v2060 = vlaneseq
          %v2061 = vshrl.u32 %v2060, 7
          %v2062 = vsub.s32 0, %v2061
          %v2063 = vrot.slane %v2058, %v2062
          %v2064 = vlaneseq
          %v2065 = vshrl.u32 %v2064, 7
          %v2066 = vsub.s32 1, %v2065
          %v2067 = vrot.slane %v2058, %v2066
          %v2070 = vmul.f32 %v2050, %v2063
          %v2071 = vmul.f32 %v2051, %v2067
          %v2072 = vmul.f32 %v2052, %v2063
          %v2073 = vmul.f32 %v2053, %v2067
          %v2074 = vmul.f32 %v2054, %v2063
          %v2075 = vmul.f32 %v2055, %v2067
          %v2076 = vmul.f32 %v2056, %v2063
          %v2077 = vmul.f32 %v2057, %v2067
          %v2078 = vld [vmem:[%s862] sm:$0x3]
          %v2080 = vlaneseq
          %v2081 = vshrl.u32 %v2080, 7
          %v2082 = vsub.s32 0, %v2081
          %v2083 = vrot.slane %v2078, %v2082
          %v2084 = vlaneseq
          %v2085 = vshrl.u32 %v2084, 7
          %v2086 = vsub.s32 1, %v2085
          %v2087 = vrot.slane %v2078, %v2086
          %v2090 = vadd.f32 %v2070, %v2083
          %v2091 = vadd.f32 %v2071, %v2087
          %v2092 = vadd.f32 %v2072, %v2083
          %v2093 = vadd.f32 %v2073, %v2087
          %v2094 = vadd.f32 %v2074, %v2083
          %v2095 = vadd.f32 %v2075, %v2087
          %v2096 = vadd.f32 %v2076, %v2083
          %v2097 = vadd.f32 %v2077, %v2087
          %vm2098 = vcmp.ge.f32.partialorder %v2090, 0.0
          %vm2099 = vcmp.ge.f32.partialorder %v2091, 0.0
          %vm2100 = vcmp.ge.f32.partialorder %v2092, 0.0
          %vm2101 = vcmp.ge.f32.partialorder %v2093, 0.0
          %vm2102 = vcmp.ge.f32.partialorder %v2094, 0.0
          %vm2103 = vcmp.ge.f32.partialorder %v2095, 0.0
          %vm2104 = vcmp.ge.f32.partialorder %v2096, 0.0
          %vm2105 = vcmp.ge.f32.partialorder %v2097, 0.0
          %v2106 = vmul.f32 %v2090, 0.2
          %v2107 = vmul.f32 %v2091, 0.2
          %v2108 = vmul.f32 %v2092, 0.2
          %v2109 = vmul.f32 %v2093, 0.2
          %v2110 = vmul.f32 %v2094, 0.2
          %v2111 = vmul.f32 %v2095, 0.2
          %v2112 = vmul.f32 %v2096, 0.2
          %v2113 = vmul.f32 %v2097, 0.2
          %v2114 = vsel %vm2098, %v2090, %v2106
          %v2115 = vsel %vm2099, %v2091, %v2107
          %v2116 = vsel %vm2100, %v2092, %v2108
          %v2117 = vsel %vm2101, %v2093, %v2109
          %v2118 = vsel %vm2102, %v2094, %v2110
          %v2119 = vsel %vm2103, %v2095, %v2111
          %v2120 = vsel %vm2104, %v2096, %v2112
          %v2121 = vsel %vm2105, %v2097, %v2113
          %v2122 = vpack.c.bf16 %v2116, %v2114
          %v2123 = vpack.c.bf16 %v2117, %v2115
          %v2124 = vpack.c.bf16 %v2120, %v2118
          %v2125 = vpack.c.bf16 %v2121, %v2119
          %v2130 = vunpack.c.l.b16 %v2122
          %v2131 = vunpack.c.l.b16 %v2123
          %v2132 = vunpack.c.h.b16 %v2122
          %v2133 = vunpack.c.h.b16 %v2123
          %v2134 = vunpack.c.l.b16 %v2124
          %v2135 = vunpack.c.l.b16 %v2125
          %v2136 = vunpack.c.h.b16 %v2124
          %v2137 = vunpack.c.h.b16 %v2125
          %v2138 = vpack.c.b16 %v2131, %v2130
          %v2139 = vpack.c.b16 %v2133, %v2132
          %v2140 = vpack.c.b16 %v2135, %v2134
          %v2141 = vpack.c.b16 %v2137, %v2136
          %2146 = vst [vmem:[%s850] sm:$0xff] %v2138
          %2147 = vst [vmem:[%s850 + $0x8] sm:$0xff] %v2139
          %2148 = vst [vmem:[%s850 + $0x10] sm:$0xff] %v2140
          %2149 = vst [vmem:[%s850 + $0x18] sm:$0xff] %v2141
        $region105: #{critic_forward.8} parent=88 // pred_fallthru
          _
        %s2150 = sand.u32 %s141, 1
        %s2151 = sand.u32 %s141, 1
        %s2152 = smul.addr %s2151, 32
        %s2153 = scalar_lea.vmem [#allocation5], %s2152
        // Predicated region
        $region106: #{critic_forward.8} parent=88 // pred_check
          %p2154 = pneg %p151
        $region107: #{critic_forward.8} parent=88 // pred_check_branch
          %2156 = sbr.rel (%p2154) target = $region109
        $region108: #{critic_forward.8} parent=88 // pred_region
          %s2157 = smul.u32 2, %s19
          %s2158 = smul.addr %s2157, 4
          %s2159 = scalar_lea.vmem %s4, %s2158
          // Predicated region
          $region110: #{critic_forward.8} parent=108 // pred_check
            _
          $region111: #{critic_forward.8} parent=108 // pred_check_branch
            %2161 = sbr.rel (0) target = $region113
          $region112: #{critic_forward.8} parent=108 // pred_region
            // Predicated region
            $region114: #{critic_forward.8} parent=112 // pred_check
              _
            $region115: #{critic_forward.8} parent=112 // pred_check_branch
              %2163 = sbr.rel (0) target = $region117
            $region116: #{critic_forward.8} parent=112 // pred_region
              // Predicated region
              $region129: #{critic_forward.8} parent=116 // pred_check
                _
              $region130: #{critic_forward.8} parent=116 // pred_check_branch
                %2185 = sbr.rel (0) target = $region132
              $region131: #{critic_forward.8} parent=116 // pred_region
                loop: start=0, step=1, limit=1
                $region133: #{critic_forward.8} parent=131 // loop_pre_header
                  _
                $region134: #{critic_forward.8} parent=131 // loop_header
                  %s2187 = sphi 0, %s2191
                  %p2188 = scmp.ge.s32.totalorder %s2187, 1
                  %s2192 = sphi %s2153, %s2153
                  %s2193 = sphi %s2159, %s2159
                $region135: #{critic_forward.8} parent=131 // loop_header_branch
                  %2190 = sbr.rel (%p2188) target = $region139
                $region136: #{critic_forward.8} parent=131 // loop_body
                  %v2194 = vld [vmem:[%s2192] sm:$0xff]
                  %2195 = vst [vmem:[%s2193] sm:$0xff] %v2194
                  %v2196 = vld [vmem:[%s2192 + $0x8] sm:$0xff]
                  %2197 = vst [vmem:[%s2193 + $0x10] sm:$0xff] %v2196
                  %v2198 = vld [vmem:[%s2192 + $0x10] sm:$0xff]
                  %2199 = vst [vmem:[%s2193 + $0x20] sm:$0xff] %v2198
                  %v2200 = vld [vmem:[%s2192 + $0x18] sm:$0xff]
                  %2201 = vst [vmem:[%s2193 + $0x30] sm:$0xff] %v2200
                $region137: #{critic_forward.8} parent=131 // loop_footer
                  %s2191 = sadd.s32 1, %s2187
                $region138: #{critic_forward.8} parent=131 // loop_footer_branch
                  %2186 = sbr.rel target = $region134
                $region139: #{critic_forward.8} parent=131 // loop_exit
                  _
              $region132: #{critic_forward.8} parent=116 // pred_fallthru
                _
              // Predicated region
              $region140: #{critic_forward.8} parent=116 // pred_check
                _
              $region141: #{critic_forward.8} parent=116 // pred_check_branch
                %2203 = sbr.rel target = $region143
              $region142: #{critic_forward.8} parent=116 // pred_region
                _
              $region143: #{critic_forward.8} parent=116 // pred_fallthru
                _
            $region117: #{critic_forward.8} parent=112 // pred_fallthru
              _
            // Predicated region
            $region118: #{critic_forward.8} parent=112 // pred_check
              _
            $region119: #{critic_forward.8} parent=112 // pred_check_branch
              %2165 = sbr.rel target = $region121
            $region120: #{critic_forward.8} parent=112 // pred_region
              %s2167 = ssub.s32 256, 1
              loop: start=0, step=1, limit=1
              $region122: #{critic_forward.8} parent=120 // loop_pre_header
                _
              $region123: #{critic_forward.8} parent=120 // loop_header
                %s2169 = sphi 0, %s2173
                %p2170 = scmp.ge.s32.totalorder %s2169, 1
                %s2174 = sphi %s2153, %s2153
                %s2175 = sphi %s2159, %s2159
              $region124: #{critic_forward.8} parent=120 // loop_header_branch
                %2172 = sbr.rel (%p2170) target = $region128
              $region125: #{critic_forward.8} parent=120 // loop_body
                %v2176 = vld [vmem:[%s2174] sm:%s2167]
                %2177 = vst [vmem:[%s2175] sm:%s2167] %v2176
                %v2178 = vld [vmem:[%s2174 + $0x8] sm:%s2167]
                %2179 = vst [vmem:[%s2175 + $0x10] sm:%s2167] %v2178
                %v2180 = vld [vmem:[%s2174 + $0x10] sm:%s2167]
                %2181 = vst [vmem:[%s2175 + $0x20] sm:%s2167] %v2180
                %v2182 = vld [vmem:[%s2174 + $0x18] sm:%s2167]
                %2183 = vst [vmem:[%s2175 + $0x30] sm:%s2167] %v2182
              $region126: #{critic_forward.8} parent=120 // loop_footer
                %s2173 = sadd.s32 1, %s2169
              $region127: #{critic_forward.8} parent=120 // loop_footer_branch
                %2168 = sbr.rel target = $region123
              $region128: #{critic_forward.8} parent=120 // loop_exit
                _
            $region121: #{critic_forward.8} parent=112 // pred_fallthru
              _
          $region113: #{critic_forward.8} parent=108 // pred_fallthru
            _
          %2204 = vnop
        $region109: #{critic_forward.8} parent=88 // pred_fallthru
          _
      $region89: #{critic_forward.8} parent=5 // pred_fallthru
        _
      %p2205 = scmp.le.s32.totalorder 2, %s10
      // Predicated region
      $region144: #{critic_forward.8} parent=5 // pred_check
        %p2206 = pneg %p2205
      $region145: #{critic_forward.8} parent=5 // pred_check_branch
        %2208 = sbr.rel (%p2206) target = $region147
      $region146: #{critic_forward.8} parent=5 // pred_region
        %s2209 = ssub.s32 %s10, 2
        // Predicated region
        $region148: #{critic_forward.8} parent=146 // pred_check
          %p2210 = pneg %p157
        $region149: #{critic_forward.8} parent=146 // pred_check_branch
          %2212 = sbr.rel (%p2210) target = $region151
        $region150: #{critic_forward.8} parent=146 // pred_region
          %s2213 = sand.u32 %s142, 1
          %s2214 = sand.u32 %s142, 1
          %s2215 = smul.addr %s2214, 32
          %s2216 = scalar_lea.vmem [#allocation5], %s2215
        $region151: #{critic_forward.8} parent=146 // pred_fallthru
          _
      $region147: #{critic_forward.8} parent=5 // pred_fallthru
        _
    $region6: #{critic_forward.8} parent=1 // loop_footer
      %s14 = sadd.s32 1, %s10
    $region7: #{critic_forward.8} parent=1 // loop_footer_branch
      %9 = sbr.rel target = $region3
    $region8: #{critic_forward.8} parent=1 // loop_exit
      _

</llo_original>
